<compile_context>
chip_gen: v7x
topology: tpu7x:2x2x1
jax: 0.10.0
libtpu: 0.0.40
codegen_flags: <defaults>
</compile_context>

<pallas_src>
import math

import jax
import jax.numpy as jnp
from jax import lax
from jax.experimental import pallas as pl
from jax.experimental.pallas import tpu as pltpu


def _mixblock_kernel(
    xl_ref, xg_ref,                                  # (B, C, N) f32, VMEM
    wql_ref, bql_ref, wqg_ref, bqg_ref,              # SMEM, flattened (C*C,)/(C,)
    wkl_ref, bkl_ref, wkg_ref, bkg_ref,
    lcw_ref, lcb_ref, gcw_ref, gcb_ref,              # (1, C, 1) f32, VMEM
    lbnw_ref, lbnb_ref, gbnw_ref, gbnb_ref,          # (1, C, 1) f32, VMEM
    lgam_ref, ggam_ref,                              # SMEM scalars
    yl_ref, yg_ref,                                  # (B, C, N) f32, VMEM
):
    B, C, N = xl_ref.shape
    S = math.isqrt(N)
    G = B * C

    # ---- load each input exactly once --------------------------------------
    xl = xl_ref[...]                                  # (B, C, N)
    xg = xg_ref[...]

    # lane-dense per-channel views of the already-loaded values (done once)
    xl_c = [xl[:, c, :] for c in range(C)]            # C x (B, N)
    xg_c = [xg[:, c, :] for c in range(C)]

    # ---- 1x1 channel-mixing convs: all output channels, scalar-FMA unroll ---
    def conv1x1(w_ref, b_ref, chans):
        rows = []
        for o in range(C):
            acc = chans[0] * w_ref[o * C]
            for ci in range(1, C):
                acc = acc + chans[ci] * w_ref[o * C + ci]
            rows.append((acc + b_ref[o]).reshape(B, S, S))
        # stack along an untiled leading dim, then merge (B, C) -> G batch dim
        return jnp.stack(rows, axis=1).reshape(G, S, S)

    ql = conv1x1(wql_ref, bql_ref, xl_c)               # (G, S, S)
    qg = conv1x1(wqg_ref, bqg_ref, xg_c)
    kl = conv1x1(wkl_ref, bkl_ref, xl_c)
    kg = conv1x1(wkg_ref, bkg_ref, xg_c)

    # ---- energy: one batched matmul stream over all B*C groups --------------
    # energy = ql . kl^T + qg . kg^T  (equivalent to the reference's K=2S bmm)
    energy = (
        jnp.einsum("gik,gjk->gij", ql, kl, preferred_element_type=jnp.float32)
        + jnp.einsum("gik,gjk->gij", qg, kg, preferred_element_type=jnp.float32)
    )                                                  # (G, S, S)

    # ---- softmax(dim=-1), exact divide ---------------------------------------
    e_max = jnp.max(energy, axis=-1, keepdims=True)
    p = jnp.exp(energy - e_max)
    attn = p / jnp.sum(p, axis=-1, keepdims=True)      # (G, S, S)
    attn = attn.reshape(B, C, S, S).reshape(B, C, N)   # back to lane-dense layout

    # ---- attention mixing -----------------------------------------------------
    sl = lgam_ref[0]                                   # sigmoid(gamma)*2-1, wrapper prep
    sg = ggam_ref[0]
    att_global = xg * attn * sg
    att_local = xl * attn * sl

    # ---- depthwise 1x1 conv + training-mode BN (one-pass stats) + LeakyReLU --
    # TODO(synk): BatchNorm running-mean/var buffer updates (training-time side
    # effect) are not materialized; only the normalization used by forward is.
    inv_n = 1.0 / float(B * N)
    eps = 1e-5

    def branch(att, cw, cb, bnw, bnb, x_res, out_ref):
        conv = att * cw + cb                           # (B, C, N), per-channel scale/bias
        s1 = jnp.sum(jnp.sum(conv, axis=2, keepdims=True), axis=0, keepdims=True)
        s2 = jnp.sum(jnp.sum(conv * conv, axis=2, keepdims=True),
                     axis=0, keepdims=True)            # (1, C, 1)
        mean = s1 * inv_n
        var = s2 * inv_n - mean * mean                 # biased (training-mode) var
        bn = (conv - mean) * (lax.rsqrt(var + eps) * bnw) + bnb
        act = jnp.where(bn >= 0, bn, 0.01 * bn)        # LeakyReLU(0.01)
        out_ref[...] = x_res + act                     # full-block lane-dense store

    branch(att_global, lcw_ref[...], lcb_ref[...], lbnw_ref[...], lbnb_ref[...],
           xl, yl_ref)
    branch(att_local, gcw_ref[...], gcb_ref[...], gbnw_ref[...], gbnb_ref[...],
           xg, yg_ref)


def mixblock_forward(x_local, x_global, params):
    B, C, S, S2 = x_local.shape
    assert S == S2
    N = S * S
    f32 = jnp.float32

    # Free reshapes (no HBM transpose anywhere): NCHW -> (B, C, S*S).
    xl = x_local.reshape(B, C, N).astype(f32)
    xg = x_global.reshape(B, C, N).astype(f32)

    def flat(a):                                       # 1-D SMEM params (no 2-D padding)
        return jnp.asarray(a, f32).reshape(-1)

    def chan(a):                                       # (1, C, 1) VMEM broadcast params
        return jnp.asarray(a, f32).reshape(1, C, 1)

    # scalar parameter prep (glue): sigmoid(gamma) * 2 - 1
    lgam = jax.nn.sigmoid(params["local_gamma"]) * 2.0 - 1.0
    ggam = jax.nn.sigmoid(params["global_gamma"]) * 2.0 - 1.0

    smem = pl.BlockSpec(memory_space=pltpu.MemorySpace.SMEM)
    x_spec = pl.BlockSpec((B, C, N), lambda i: (0, 0, 0))
    p_spec = pl.BlockSpec((1, C, 1), lambda i: (0, 0, 0))
    y_spec = pl.BlockSpec((B, C, N), lambda i: (0, 0, 0))

    args = (
        xl, xg,
        flat(params["wql"]), flat(params["bql"]),
        flat(params["wqg"]), flat(params["bqg"]),
        flat(params["wkl"]), flat(params["bkl"]),
        flat(params["wkg"]), flat(params["bkg"]),
        chan(params["lcw"]), chan(params["lcb"]),
        chan(params["gcw"]), chan(params["gcb"]),
        chan(params["lbnw"]), chan(params["lbnb"]),
        chan(params["gbnw"]), chan(params["gbnb"]),
        flat(lgam), flat(ggam),
    )

    in_specs = [x_spec, x_spec] + [smem] * 8 + [p_spec] * 8 + [smem] * 2

    yl, yg = pl.pallas_call(
        _mixblock_kernel,
        grid=(1,),                                     # single step: whole problem fits
        out_shape=(
            jax.ShapeDtypeStruct((B, C, N), f32),
            jax.ShapeDtypeStruct((B, C, N), f32),
        ),
        in_specs=in_specs,
        out_specs=(y_spec, y_spec),
        compiler_params=pltpu.CompilerParams(
            dimension_semantics=("arbitrary",),
        ),
    )(*args)

    # Free reshapes back to NCHW (no transpose).
    return yl.reshape(B, C, S, S), yg.reshape(B, C, S, S)


def mixblock_reference(x_local, x_global, params):
    """Pure-JAX reference matching the PyTorch forward (training-mode BN)."""
    B, C, S, _ = x_local.shape

    def conv1x1(w, b, x):
        return jnp.einsum("oc,bchw->bohw", w, x) + b[None, :, None, None]

    ql = conv1x1(params["wql"], params["bql"], x_local).reshape(B * C, S, S)
    qg = conv1x1(params["wqg"], params["bqg"], x_global).reshape(B * C, S, S)
    kl = conv1x1(params["wkl"], params["bkl"], x_local).reshape(B * C, S, S)
    kg = conv1x1(params["wkg"], params["bkg"], x_global).reshape(B * C, S, S)
    m_query = jnp.concatenate([ql, qg], axis=2)
    m_key = jnp.concatenate(
        [jnp.transpose(kl, (0, 2, 1)), jnp.transpose(kg, (0, 2, 1))], axis=1)
    energy = jnp.einsum("gwk,gkv->gwv", m_query, m_key)
    attn = jax.nn.softmax(energy, axis=-1).reshape(B, C, S, S)
    sl = jax.nn.sigmoid(params["local_gamma"][0]) * 2.0 - 1.0
    sg = jax.nn.sigmoid(params["global_gamma"][0]) * 2.0 - 1.0
    att_global = x_global * attn * sg
    att_local = x_local * attn * sl

    def branch(att, cw, cb, bnw, bnb, x_res):
        conv = att * cw[None, :, None, None] + cb[None, :, None, None]
        m = jnp.mean(conv, axis=(0, 2, 3), keepdims=True)
        v = jnp.mean((conv - m) ** 2, axis=(0, 2, 3), keepdims=True)
        bn = (conv - m) * jax.lax.rsqrt(v + 1e-5) * bnw[None, :, None, None] \
             + bnb[None, :, None, None]
        return x_res + jnp.where(bn >= 0, bn, 0.01 * bn)

    yl = branch(att_global, params["lcw"], params["lcb"],
                params["lbnw"], params["lbnb"], x_local)
    yg = branch(att_local, params["gcw"], params["gcb"],
                params["gbnw"], params["gbnb"], x_global)
    return yl, yg


if __name__ == "__main__":
    B, C, S = 2, 4, 16
    f32 = jnp.float32
    key = jax.random.PRNGKey(0)
    ks = jax.random.split(key, 20)
    params = {
        "wql": 0.3 * jax.random.normal(ks[0], (C, C), f32),
        "bql": 0.1 * jax.random.normal(ks[1], (C,), f32),
        "wqg": 0.3 * jax.random.normal(ks[2], (C, C), f32),
        "bqg": 0.1 * jax.random.normal(ks[3], (C,), f32),
        "wkl": 0.3 * jax.random.normal(ks[4], (C, C), f32),
        "bkl": 0.1 * jax.random.normal(ks[5], (C,), f32),
        "wkg": 0.3 * jax.random.normal(ks[6], (C, C), f32),
        "bkg": 0.1 * jax.random.normal(ks[7], (C,), f32),
        # depthwise (groups=C) 1x1 conv weight (C,1,1,1) -> per-channel scale
        "lcw": 0.5 * jax.random.normal(ks[8], (C,), f32),
        "lcb": 0.1 * jax.random.normal(ks[9], (C,), f32),
        "gcw": 0.5 * jax.random.normal(ks[10], (C,), f32),
        "gcb": 0.1 * jax.random.normal(ks[11], (C,), f32),
        "lbnw": 1.0 + 0.1 * jax.random.normal(ks[12], (C,), f32),
        "lbnb": 0.1 * jax.random.normal(ks[13], (C,), f32),
        "gbnw": 1.0 + 0.1 * jax.random.normal(ks[14], (C,), f32),
        "gbnb": 0.1 * jax.random.normal(ks[15], (C,), f32),
        # nn.Parameter(torch.zeros(1)) -> shape (1,); nonzero here so the
        # attention-mixing path is numerically exercised.
        "local_gamma": 0.3 * jax.random.normal(ks[16], (1,), f32),
        "global_gamma": 0.3 * jax.random.normal(ks[17], (1,), f32),
    }
    x_local = jax.random.normal(ks[18], (B, C, S, S), f32)
    x_global = jax.random.normal(ks[19], (B, C, S, S), f32)

    yl, yg = jax.jit(mixblock_forward)(x_local, x_global, params)
    jax.block_until_ready((yl, yg))

    yl_ref, yg_ref = mixblock_reference(x_local, x_global, params)
    assert yl.shape == (B, C, S, S) and yg.shape == (B, C, S, S)
    # Exact softmax divide now used -> tight f32 tolerance.
    assert jnp.allclose(yl, yl_ref, atol=1e-4, rtol=1e-4), \
        float(jnp.max(jnp.abs(yl - yl_ref)))
    assert jnp.allclose(yg, yg_ref, atol=1e-4, rtol=1e-4), \
        float(jnp.max(jnp.abs(yg - yg_ref)))
    print("KERNEL_OK")
</pallas_src>

<mosaic_0001>
module attributes {stable_mosaic.version = 11 : i64} {
  func.func @_mixblock_kernel(%arg0: i32, %arg1: memref<2x4x256xf32, #tpu.memory_space<vmem>>, %arg2: memref<2x4x256xf32, #tpu.memory_space<vmem>>, %arg3: memref<16xf32, #tpu.memory_space<smem>>, %arg4: memref<4xf32, #tpu.memory_space<smem>>, %arg5: memref<16xf32, #tpu.memory_space<smem>>, %arg6: memref<4xf32, #tpu.memory_space<smem>>, %arg7: memref<16xf32, #tpu.memory_space<smem>>, %arg8: memref<4xf32, #tpu.memory_space<smem>>, %arg9: memref<16xf32, #tpu.memory_space<smem>>, %arg10: memref<4xf32, #tpu.memory_space<smem>>, %arg11: memref<1x4x1xf32, #tpu.memory_space<vmem>>, %arg12: memref<1x4x1xf32, #tpu.memory_space<vmem>>, %arg13: memref<1x4x1xf32, #tpu.memory_space<vmem>>, %arg14: memref<1x4x1xf32, #tpu.memory_space<vmem>>, %arg15: memref<1x4x1xf32, #tpu.memory_space<vmem>>, %arg16: memref<1x4x1xf32, #tpu.memory_space<vmem>>, %arg17: memref<1x4x1xf32, #tpu.memory_space<vmem>>, %arg18: memref<1x4x1xf32, #tpu.memory_space<vmem>>, %arg19: memref<1xf32, #tpu.memory_space<smem>>, %arg20: memref<1xf32, #tpu.memory_space<smem>>, %arg21: memref<2x4x256xf32, #tpu.memory_space<vmem>>, %arg22: memref<2x4x256xf32, #tpu.memory_space<vmem>>) attributes {dimension_semantics = [#tpu.dimension_semantics<arbitrary>], iteration_bounds = array<i64: 1>, scalar_prefetch = 0 : i64, scratch_operands = 0 : i64, tpu.core_type = #tpu.core_type<tc>, window_params = [{pipeline_mode = #tpu.pipeline_mode<synchronous>, transform_indices = @transform_0, window_bounds = array<i64: 2, 4, 256>}, {pipeline_mode = #tpu.pipeline_mode<synchronous>, transform_indices = @transform_1, window_bounds = array<i64: 2, 4, 256>}, {transform_indices = @transform_2, window_bounds = array<i64: 16>}, {transform_indices = @transform_3, window_bounds = array<i64: 4>}, {transform_indices = @transform_4, window_bounds = array<i64: 16>}, {transform_indices = @transform_5, window_bounds = array<i64: 4>}, {transform_indices = @transform_6, window_bounds = array<i64: 16>}, {transform_indices = @transform_7, window_bounds = array<i64: 4>}, {transform_indices = @transform_8, window_bounds = array<i64: 16>}, {transform_indices = @transform_9, window_bounds = array<i64: 4>}, {pipeline_mode = #tpu.pipeline_mode<synchronous>, transform_indices = @transform_10, window_bounds = array<i64: 1, 4, 1>}, {pipeline_mode = #tpu.pipeline_mode<synchronous>, transform_indices = @transform_11, window_bounds = array<i64: 1, 4, 1>}, {pipeline_mode = #tpu.pipeline_mode<synchronous>, transform_indices = @transform_12, window_bounds = array<i64: 1, 4, 1>}, {pipeline_mode = #tpu.pipeline_mode<synchronous>, transform_indices = @transform_13, window_bounds = array<i64: 1, 4, 1>}, {pipeline_mode = #tpu.pipeline_mode<synchronous>, transform_indices = @transform_14, window_bounds = array<i64: 1, 4, 1>}, {pipeline_mode = #tpu.pipeline_mode<synchronous>, transform_indices = @transform_15, window_bounds = array<i64: 1, 4, 1>}, {pipeline_mode = #tpu.pipeline_mode<synchronous>, transform_indices = @transform_16, window_bounds = array<i64: 1, 4, 1>}, {pipeline_mode = #tpu.pipeline_mode<synchronous>, transform_indices = @transform_17, window_bounds = array<i64: 1, 4, 1>}, {transform_indices = @transform_18, window_bounds = array<i64: 1>}, {transform_indices = @transform_19, window_bounds = array<i64: 1>}, {pipeline_mode = #tpu.pipeline_mode<synchronous>, transform_indices = @transform_20, window_bounds = array<i64: 2, 4, 256>}, {pipeline_mode = #tpu.pipeline_mode<synchronous>, transform_indices = @transform_21, window_bounds = array<i64: 2, 4, 256>}]} {
    %c0 = arith.constant 0 : index
    %c0_0 = arith.constant 0 : index
    %c0_1 = arith.constant 0 : index
    %0 = vector.load %arg1[%c0, %c0_0, %c0_1] : memref<2x4x256xf32, #tpu.memory_space<vmem>>, vector<2x4x256xf32>
    %c0_2 = arith.constant 0 : index
    %c0_3 = arith.constant 0 : index
    %c0_4 = arith.constant 0 : index
    %1 = vector.load %arg2[%c0_2, %c0_3, %c0_4] : memref<2x4x256xf32, #tpu.memory_space<vmem>>, vector<2x4x256xf32>
    %2 = vector.extract_strided_slice %0 {offsets = [0, 0, 0], sizes = [2, 1, 256], strides = [1, 1, 1]} : vector<2x4x256xf32> to vector<2x1x256xf32>
    %3 = vector.shape_cast %2 : vector<2x1x256xf32> to vector<2x256xf32>
    %4 = vector.extract_strided_slice %0 {offsets = [0, 1, 0], sizes = [2, 1, 256], strides = [1, 1, 1]} : vector<2x4x256xf32> to vector<2x1x256xf32>
    %5 = vector.shape_cast %4 : vector<2x1x256xf32> to vector<2x256xf32>
    %6 = vector.extract_strided_slice %0 {offsets = [0, 2, 0], sizes = [2, 1, 256], strides = [1, 1, 1]} : vector<2x4x256xf32> to vector<2x1x256xf32>
    %7 = vector.shape_cast %6 : vector<2x1x256xf32> to vector<2x256xf32>
    %8 = vector.extract_strided_slice %0 {offsets = [0, 3, 0], sizes = [2, 1, 256], strides = [1, 1, 1]} : vector<2x4x256xf32> to vector<2x1x256xf32>
    %9 = vector.shape_cast %8 : vector<2x1x256xf32> to vector<2x256xf32>
    %10 = vector.extract_strided_slice %1 {offsets = [0, 0, 0], sizes = [2, 1, 256], strides = [1, 1, 1]} : vector<2x4x256xf32> to vector<2x1x256xf32>
    %11 = vector.shape_cast %10 : vector<2x1x256xf32> to vector<2x256xf32>
    %12 = vector.extract_strided_slice %1 {offsets = [0, 1, 0], sizes = [2, 1, 256], strides = [1, 1, 1]} : vector<2x4x256xf32> to vector<2x1x256xf32>
    %13 = vector.shape_cast %12 : vector<2x1x256xf32> to vector<2x256xf32>
    %14 = vector.extract_strided_slice %1 {offsets = [0, 2, 0], sizes = [2, 1, 256], strides = [1, 1, 1]} : vector<2x4x256xf32> to vector<2x1x256xf32>
    %15 = vector.shape_cast %14 : vector<2x1x256xf32> to vector<2x256xf32>
    %16 = vector.extract_strided_slice %1 {offsets = [0, 3, 0], sizes = [2, 1, 256], strides = [1, 1, 1]} : vector<2x4x256xf32> to vector<2x1x256xf32>
    %17 = vector.shape_cast %16 : vector<2x1x256xf32> to vector<2x256xf32>
    %c0_5 = arith.constant 0 : index
    %18 = memref.load %arg3[%c0_5] : memref<16xf32, #tpu.memory_space<smem>>
    %19 = vector.broadcast %18 : f32 to vector<2x256xf32>
    %20 = arith.mulf %3, %19 : vector<2x256xf32>
    %c1 = arith.constant 1 : index
    %21 = memref.load %arg3[%c1] : memref<16xf32, #tpu.memory_space<smem>>
    %22 = vector.broadcast %21 : f32 to vector<2x256xf32>
    %23 = arith.mulf %5, %22 : vector<2x256xf32>
    %24 = arith.addf %20, %23 : vector<2x256xf32>
    %c2 = arith.constant 2 : index
    %25 = memref.load %arg3[%c2] : memref<16xf32, #tpu.memory_space<smem>>
    %26 = vector.broadcast %25 : f32 to vector<2x256xf32>
    %27 = arith.mulf %7, %26 : vector<2x256xf32>
    %28 = arith.addf %24, %27 : vector<2x256xf32>
    %c3 = arith.constant 3 : index
    %29 = memref.load %arg3[%c3] : memref<16xf32, #tpu.memory_space<smem>>
    %30 = vector.broadcast %29 : f32 to vector<2x256xf32>
    %31 = arith.mulf %9, %30 : vector<2x256xf32>
    %32 = arith.addf %28, %31 : vector<2x256xf32>
    %c0_6 = arith.constant 0 : index
    %33 = memref.load %arg4[%c0_6] : memref<4xf32, #tpu.memory_space<smem>>
    %34 = vector.broadcast %33 : f32 to vector<2x256xf32>
    %35 = arith.addf %32, %34 : vector<2x256xf32>
    %36 = vector.shape_cast %35 : vector<2x256xf32> to vector<2x16x16xf32>
    %c4 = arith.constant 4 : index
    %37 = memref.load %arg3[%c4] : memref<16xf32, #tpu.memory_space<smem>>
    %38 = vector.broadcast %37 : f32 to vector<2x256xf32>
    %39 = arith.mulf %3, %38 : vector<2x256xf32>
    %c5 = arith.constant 5 : index
    %40 = memref.load %arg3[%c5] : memref<16xf32, #tpu.memory_space<smem>>
    %41 = vector.broadcast %40 : f32 to vector<2x256xf32>
    %42 = arith.mulf %5, %41 : vector<2x256xf32>
    %43 = arith.addf %39, %42 : vector<2x256xf32>
    %c6 = arith.constant 6 : index
    %44 = memref.load %arg3[%c6] : memref<16xf32, #tpu.memory_space<smem>>
    %45 = vector.broadcast %44 : f32 to vector<2x256xf32>
    %46 = arith.mulf %7, %45 : vector<2x256xf32>
    %47 = arith.addf %43, %46 : vector<2x256xf32>
    %c7 = arith.constant 7 : index
    %48 = memref.load %arg3[%c7] : memref<16xf32, #tpu.memory_space<smem>>
    %49 = vector.broadcast %48 : f32 to vector<2x256xf32>
    %50 = arith.mulf %9, %49 : vector<2x256xf32>
    %51 = arith.addf %47, %50 : vector<2x256xf32>
    %c1_7 = arith.constant 1 : index
    %52 = memref.load %arg4[%c1_7] : memref<4xf32, #tpu.memory_space<smem>>
    %53 = vector.broadcast %52 : f32 to vector<2x256xf32>
    %54 = arith.addf %51, %53 : vector<2x256xf32>
    %55 = vector.shape_cast %54 : vector<2x256xf32> to vector<2x16x16xf32>
    %c8 = arith.constant 8 : index
    %56 = memref.load %arg3[%c8] : memref<16xf32, #tpu.memory_space<smem>>
    %57 = vector.broadcast %56 : f32 to vector<2x256xf32>
    %58 = arith.mulf %3, %57 : vector<2x256xf32>
    %c9 = arith.constant 9 : index
    %59 = memref.load %arg3[%c9] : memref<16xf32, #tpu.memory_space<smem>>
    %60 = vector.broadcast %59 : f32 to vector<2x256xf32>
    %61 = arith.mulf %5, %60 : vector<2x256xf32>
    %62 = arith.addf %58, %61 : vector<2x256xf32>
    %c10 = arith.constant 10 : index
    %63 = memref.load %arg3[%c10] : memref<16xf32, #tpu.memory_space<smem>>
    %64 = vector.broadcast %63 : f32 to vector<2x256xf32>
    %65 = arith.mulf %7, %64 : vector<2x256xf32>
    %66 = arith.addf %62, %65 : vector<2x256xf32>
    %c11 = arith.constant 11 : index
    %67 = memref.load %arg3[%c11] : memref<16xf32, #tpu.memory_space<smem>>
    %68 = vector.broadcast %67 : f32 to vector<2x256xf32>
    %69 = arith.mulf %9, %68 : vector<2x256xf32>
    %70 = arith.addf %66, %69 : vector<2x256xf32>
    %c2_8 = arith.constant 2 : index
    %71 = memref.load %arg4[%c2_8] : memref<4xf32, #tpu.memory_space<smem>>
    %72 = vector.broadcast %71 : f32 to vector<2x256xf32>
    %73 = arith.addf %70, %72 : vector<2x256xf32>
    %74 = vector.shape_cast %73 : vector<2x256xf32> to vector<2x16x16xf32>
    %c12 = arith.constant 12 : index
    %75 = memref.load %arg3[%c12] : memref<16xf32, #tpu.memory_space<smem>>
    %76 = vector.broadcast %75 : f32 to vector<2x256xf32>
    %77 = arith.mulf %3, %76 : vector<2x256xf32>
    %c13 = arith.constant 13 : index
    %78 = memref.load %arg3[%c13] : memref<16xf32, #tpu.memory_space<smem>>
    %79 = vector.broadcast %78 : f32 to vector<2x256xf32>
    %80 = arith.mulf %5, %79 : vector<2x256xf32>
    %81 = arith.addf %77, %80 : vector<2x256xf32>
    %c14 = arith.constant 14 : index
    %82 = memref.load %arg3[%c14] : memref<16xf32, #tpu.memory_space<smem>>
    %83 = vector.broadcast %82 : f32 to vector<2x256xf32>
    %84 = arith.mulf %7, %83 : vector<2x256xf32>
    %85 = arith.addf %81, %84 : vector<2x256xf32>
    %c15 = arith.constant 15 : index
    %86 = memref.load %arg3[%c15] : memref<16xf32, #tpu.memory_space<smem>>
    %87 = vector.broadcast %86 : f32 to vector<2x256xf32>
    %88 = arith.mulf %9, %87 : vector<2x256xf32>
    %89 = arith.addf %85, %88 : vector<2x256xf32>
    %c3_9 = arith.constant 3 : index
    %90 = memref.load %arg4[%c3_9] : memref<4xf32, #tpu.memory_space<smem>>
    %91 = vector.broadcast %90 : f32 to vector<2x256xf32>
    %92 = arith.addf %89, %91 : vector<2x256xf32>
    %93 = vector.shape_cast %92 : vector<2x256xf32> to vector<2x16x16xf32>
    %94 = vector.shape_cast %36 : vector<2x16x16xf32> to vector<2x1x16x16xf32>
    %95 = vector.shape_cast %55 : vector<2x16x16xf32> to vector<2x1x16x16xf32>
    %96 = vector.shape_cast %74 : vector<2x16x16xf32> to vector<2x1x16x16xf32>
    %97 = vector.shape_cast %93 : vector<2x16x16xf32> to vector<2x1x16x16xf32>
    %98 = tpu.concatenate %94, %95, %96, %97 in 1 : vector<2x1x16x16xf32>, vector<2x1x16x16xf32>, vector<2x1x16x16xf32>, vector<2x1x16x16xf32> -> vector<2x4x16x16xf32>
    %99 = vector.shape_cast %98 : vector<2x4x16x16xf32> to vector<8x16x16xf32>
    %c0_10 = arith.constant 0 : index
    %100 = memref.load %arg5[%c0_10] : memref<16xf32, #tpu.memory_space<smem>>
    %101 = vector.broadcast %100 : f32 to vector<2x256xf32>
    %102 = arith.mulf %11, %101 : vector<2x256xf32>
    %c1_11 = arith.constant 1 : index
    %103 = memref.load %arg5[%c1_11] : memref<16xf32, #tpu.memory_space<smem>>
    %104 = vector.broadcast %103 : f32 to vector<2x256xf32>
    %105 = arith.mulf %13, %104 : vector<2x256xf32>
    %106 = arith.addf %102, %105 : vector<2x256xf32>
    %c2_12 = arith.constant 2 : index
    %107 = memref.load %arg5[%c2_12] : memref<16xf32, #tpu.memory_space<smem>>
    %108 = vector.broadcast %107 : f32 to vector<2x256xf32>
    %109 = arith.mulf %15, %108 : vector<2x256xf32>
    %110 = arith.addf %106, %109 : vector<2x256xf32>
    %c3_13 = arith.constant 3 : index
    %111 = memref.load %arg5[%c3_13] : memref<16xf32, #tpu.memory_space<smem>>
    %112 = vector.broadcast %111 : f32 to vector<2x256xf32>
    %113 = arith.mulf %17, %112 : vector<2x256xf32>
    %114 = arith.addf %110, %113 : vector<2x256xf32>
    %c0_14 = arith.constant 0 : index
    %115 = memref.load %arg6[%c0_14] : memref<4xf32, #tpu.memory_space<smem>>
    %116 = vector.broadcast %115 : f32 to vector<2x256xf32>
    %117 = arith.addf %114, %116 : vector<2x256xf32>
    %118 = vector.shape_cast %117 : vector<2x256xf32> to vector<2x16x16xf32>
    %c4_15 = arith.constant 4 : index
    %119 = memref.load %arg5[%c4_15] : memref<16xf32, #tpu.memory_space<smem>>
    %120 = vector.broadcast %119 : f32 to vector<2x256xf32>
    %121 = arith.mulf %11, %120 : vector<2x256xf32>
    %c5_16 = arith.constant 5 : index
    %122 = memref.load %arg5[%c5_16] : memref<16xf32, #tpu.memory_space<smem>>
    %123 = vector.broadcast %122 : f32 to vector<2x256xf32>
    %124 = arith.mulf %13, %123 : vector<2x256xf32>
    %125 = arith.addf %121, %124 : vector<2x256xf32>
    %c6_17 = arith.constant 6 : index
    %126 = memref.load %arg5[%c6_17] : memref<16xf32, #tpu.memory_space<smem>>
    %127 = vector.broadcast %126 : f32 to vector<2x256xf32>
    %128 = arith.mulf %15, %127 : vector<2x256xf32>
    %129 = arith.addf %125, %128 : vector<2x256xf32>
    %c7_18 = arith.constant 7 : index
    %130 = memref.load %arg5[%c7_18] : memref<16xf32, #tpu.memory_space<smem>>
    %131 = vector.broadcast %130 : f32 to vector<2x256xf32>
    %132 = arith.mulf %17, %131 : vector<2x256xf32>
    %133 = arith.addf %129, %132 : vector<2x256xf32>
    %c1_19 = arith.constant 1 : index
    %134 = memref.load %arg6[%c1_19] : memref<4xf32, #tpu.memory_space<smem>>
    %135 = vector.broadcast %134 : f32 to vector<2x256xf32>
    %136 = arith.addf %133, %135 : vector<2x256xf32>
    %137 = vector.shape_cast %136 : vector<2x256xf32> to vector<2x16x16xf32>
    %c8_20 = arith.constant 8 : index
    %138 = memref.load %arg5[%c8_20] : memref<16xf32, #tpu.memory_space<smem>>
    %139 = vector.broadcast %138 : f32 to vector<2x256xf32>
    %140 = arith.mulf %11, %139 : vector<2x256xf32>
    %c9_21 = arith.constant 9 : index
    %141 = memref.load %arg5[%c9_21] : memref<16xf32, #tpu.memory_space<smem>>
    %142 = vector.broadcast %141 : f32 to vector<2x256xf32>
    %143 = arith.mulf %13, %142 : vector<2x256xf32>
    %144 = arith.addf %140, %143 : vector<2x256xf32>
    %c10_22 = arith.constant 10 : index
    %145 = memref.load %arg5[%c10_22] : memref<16xf32, #tpu.memory_space<smem>>
    %146 = vector.broadcast %145 : f32 to vector<2x256xf32>
    %147 = arith.mulf %15, %146 : vector<2x256xf32>
    %148 = arith.addf %144, %147 : vector<2x256xf32>
    %c11_23 = arith.constant 11 : index
    %149 = memref.load %arg5[%c11_23] : memref<16xf32, #tpu.memory_space<smem>>
    %150 = vector.broadcast %149 : f32 to vector<2x256xf32>
    %151 = arith.mulf %17, %150 : vector<2x256xf32>
    %152 = arith.addf %148, %151 : vector<2x256xf32>
    %c2_24 = arith.constant 2 : index
    %153 = memref.load %arg6[%c2_24] : memref<4xf32, #tpu.memory_space<smem>>
    %154 = vector.broadcast %153 : f32 to vector<2x256xf32>
    %155 = arith.addf %152, %154 : vector<2x256xf32>
    %156 = vector.shape_cast %155 : vector<2x256xf32> to vector<2x16x16xf32>
    %c12_25 = arith.constant 12 : index
    %157 = memref.load %arg5[%c12_25] : memref<16xf32, #tpu.memory_space<smem>>
    %158 = vector.broadcast %157 : f32 to vector<2x256xf32>
    %159 = arith.mulf %11, %158 : vector<2x256xf32>
    %c13_26 = arith.constant 13 : index
    %160 = memref.load %arg5[%c13_26] : memref<16xf32, #tpu.memory_space<smem>>
    %161 = vector.broadcast %160 : f32 to vector<2x256xf32>
    %162 = arith.mulf %13, %161 : vector<2x256xf32>
    %163 = arith.addf %159, %162 : vector<2x256xf32>
    %c14_27 = arith.constant 14 : index
    %164 = memref.load %arg5[%c14_27] : memref<16xf32, #tpu.memory_space<smem>>
    %165 = vector.broadcast %164 : f32 to vector<2x256xf32>
    %166 = arith.mulf %15, %165 : vector<2x256xf32>
    %167 = arith.addf %163, %166 : vector<2x256xf32>
    %c15_28 = arith.constant 15 : index
    %168 = memref.load %arg5[%c15_28] : memref<16xf32, #tpu.memory_space<smem>>
    %169 = vector.broadcast %168 : f32 to vector<2x256xf32>
    %170 = arith.mulf %17, %169 : vector<2x256xf32>
    %171 = arith.addf %167, %170 : vector<2x256xf32>
    %c3_29 = arith.constant 3 : index
    %172 = memref.load %arg6[%c3_29] : memref<4xf32, #tpu.memory_space<smem>>
    %173 = vector.broadcast %172 : f32 to vector<2x256xf32>
    %174 = arith.addf %171, %173 : vector<2x256xf32>
    %175 = vector.shape_cast %174 : vector<2x256xf32> to vector<2x16x16xf32>
    %176 = vector.shape_cast %118 : vector<2x16x16xf32> to vector<2x1x16x16xf32>
    %177 = vector.shape_cast %137 : vector<2x16x16xf32> to vector<2x1x16x16xf32>
    %178 = vector.shape_cast %156 : vector<2x16x16xf32> to vector<2x1x16x16xf32>
    %179 = vector.shape_cast %175 : vector<2x16x16xf32> to vector<2x1x16x16xf32>
    %180 = tpu.concatenate %176, %177, %178, %179 in 1 : vector<2x1x16x16xf32>, vector<2x1x16x16xf32>, vector<2x1x16x16xf32>, vector<2x1x16x16xf32> -> vector<2x4x16x16xf32>
    %181 = vector.shape_cast %180 : vector<2x4x16x16xf32> to vector<8x16x16xf32>
    %c0_30 = arith.constant 0 : index
    %182 = memref.load %arg7[%c0_30] : memref<16xf32, #tpu.memory_space<smem>>
    %183 = vector.broadcast %182 : f32 to vector<2x256xf32>
    %184 = arith.mulf %3, %183 : vector<2x256xf32>
    %c1_31 = arith.constant 1 : index
    %185 = memref.load %arg7[%c1_31] : memref<16xf32, #tpu.memory_space<smem>>
    %186 = vector.broadcast %185 : f32 to vector<2x256xf32>
    %187 = arith.mulf %5, %186 : vector<2x256xf32>
    %188 = arith.addf %184, %187 : vector<2x256xf32>
    %c2_32 = arith.constant 2 : index
    %189 = memref.load %arg7[%c2_32] : memref<16xf32, #tpu.memory_space<smem>>
    %190 = vector.broadcast %189 : f32 to vector<2x256xf32>
    %191 = arith.mulf %7, %190 : vector<2x256xf32>
    %192 = arith.addf %188, %191 : vector<2x256xf32>
    %c3_33 = arith.constant 3 : index
    %193 = memref.load %arg7[%c3_33] : memref<16xf32, #tpu.memory_space<smem>>
    %194 = vector.broadcast %193 : f32 to vector<2x256xf32>
    %195 = arith.mulf %9, %194 : vector<2x256xf32>
    %196 = arith.addf %192, %195 : vector<2x256xf32>
    %c0_34 = arith.constant 0 : index
    %197 = memref.load %arg8[%c0_34] : memref<4xf32, #tpu.memory_space<smem>>
    %198 = vector.broadcast %197 : f32 to vector<2x256xf32>
    %199 = arith.addf %196, %198 : vector<2x256xf32>
    %200 = vector.shape_cast %199 : vector<2x256xf32> to vector<2x16x16xf32>
    %c4_35 = arith.constant 4 : index
    %201 = memref.load %arg7[%c4_35] : memref<16xf32, #tpu.memory_space<smem>>
    %202 = vector.broadcast %201 : f32 to vector<2x256xf32>
    %203 = arith.mulf %3, %202 : vector<2x256xf32>
    %c5_36 = arith.constant 5 : index
    %204 = memref.load %arg7[%c5_36] : memref<16xf32, #tpu.memory_space<smem>>
    %205 = vector.broadcast %204 : f32 to vector<2x256xf32>
    %206 = arith.mulf %5, %205 : vector<2x256xf32>
    %207 = arith.addf %203, %206 : vector<2x256xf32>
    %c6_37 = arith.constant 6 : index
    %208 = memref.load %arg7[%c6_37] : memref<16xf32, #tpu.memory_space<smem>>
    %209 = vector.broadcast %208 : f32 to vector<2x256xf32>
    %210 = arith.mulf %7, %209 : vector<2x256xf32>
    %211 = arith.addf %207, %210 : vector<2x256xf32>
    %c7_38 = arith.constant 7 : index
    %212 = memref.load %arg7[%c7_38] : memref<16xf32, #tpu.memory_space<smem>>
    %213 = vector.broadcast %212 : f32 to vector<2x256xf32>
    %214 = arith.mulf %9, %213 : vector<2x256xf32>
    %215 = arith.addf %211, %214 : vector<2x256xf32>
    %c1_39 = arith.constant 1 : index
    %216 = memref.load %arg8[%c1_39] : memref<4xf32, #tpu.memory_space<smem>>
    %217 = vector.broadcast %216 : f32 to vector<2x256xf32>
    %218 = arith.addf %215, %217 : vector<2x256xf32>
    %219 = vector.shape_cast %218 : vector<2x256xf32> to vector<2x16x16xf32>
    %c8_40 = arith.constant 8 : index
    %220 = memref.load %arg7[%c8_40] : memref<16xf32, #tpu.memory_space<smem>>
    %221 = vector.broadcast %220 : f32 to vector<2x256xf32>
    %222 = arith.mulf %3, %221 : vector<2x256xf32>
    %c9_41 = arith.constant 9 : index
    %223 = memref.load %arg7[%c9_41] : memref<16xf32, #tpu.memory_space<smem>>
    %224 = vector.broadcast %223 : f32 to vector<2x256xf32>
    %225 = arith.mulf %5, %224 : vector<2x256xf32>
    %226 = arith.addf %222, %225 : vector<2x256xf32>
    %c10_42 = arith.constant 10 : index
    %227 = memref.load %arg7[%c10_42] : memref<16xf32, #tpu.memory_space<smem>>
    %228 = vector.broadcast %227 : f32 to vector<2x256xf32>
    %229 = arith.mulf %7, %228 : vector<2x256xf32>
    %230 = arith.addf %226, %229 : vector<2x256xf32>
    %c11_43 = arith.constant 11 : index
    %231 = memref.load %arg7[%c11_43] : memref<16xf32, #tpu.memory_space<smem>>
    %232 = vector.broadcast %231 : f32 to vector<2x256xf32>
    %233 = arith.mulf %9, %232 : vector<2x256xf32>
    %234 = arith.addf %230, %233 : vector<2x256xf32>
    %c2_44 = arith.constant 2 : index
    %235 = memref.load %arg8[%c2_44] : memref<4xf32, #tpu.memory_space<smem>>
    %236 = vector.broadcast %235 : f32 to vector<2x256xf32>
    %237 = arith.addf %234, %236 : vector<2x256xf32>
    %238 = vector.shape_cast %237 : vector<2x256xf32> to vector<2x16x16xf32>
    %c12_45 = arith.constant 12 : index
    %239 = memref.load %arg7[%c12_45] : memref<16xf32, #tpu.memory_space<smem>>
    %240 = vector.broadcast %239 : f32 to vector<2x256xf32>
    %241 = arith.mulf %3, %240 : vector<2x256xf32>
    %c13_46 = arith.constant 13 : index
    %242 = memref.load %arg7[%c13_46] : memref<16xf32, #tpu.memory_space<smem>>
    %243 = vector.broadcast %242 : f32 to vector<2x256xf32>
    %244 = arith.mulf %5, %243 : vector<2x256xf32>
    %245 = arith.addf %241, %244 : vector<2x256xf32>
    %c14_47 = arith.constant 14 : index
    %246 = memref.load %arg7[%c14_47] : memref<16xf32, #tpu.memory_space<smem>>
    %247 = vector.broadcast %246 : f32 to vector<2x256xf32>
    %248 = arith.mulf %7, %247 : vector<2x256xf32>
    %249 = arith.addf %245, %248 : vector<2x256xf32>
    %c15_48 = arith.constant 15 : index
    %250 = memref.load %arg7[%c15_48] : memref<16xf32, #tpu.memory_space<smem>>
    %251 = vector.broadcast %250 : f32 to vector<2x256xf32>
    %252 = arith.mulf %9, %251 : vector<2x256xf32>
    %253 = arith.addf %249, %252 : vector<2x256xf32>
    %c3_49 = arith.constant 3 : index
    %254 = memref.load %arg8[%c3_49] : memref<4xf32, #tpu.memory_space<smem>>
    %255 = vector.broadcast %254 : f32 to vector<2x256xf32>
    %256 = arith.addf %253, %255 : vector<2x256xf32>
    %257 = vector.shape_cast %256 : vector<2x256xf32> to vector<2x16x16xf32>
    %258 = vector.shape_cast %200 : vector<2x16x16xf32> to vector<2x1x16x16xf32>
    %259 = vector.shape_cast %219 : vector<2x16x16xf32> to vector<2x1x16x16xf32>
    %260 = vector.shape_cast %238 : vector<2x16x16xf32> to vector<2x1x16x16xf32>
    %261 = vector.shape_cast %257 : vector<2x16x16xf32> to vector<2x1x16x16xf32>
    %262 = tpu.concatenate %258, %259, %260, %261 in 1 : vector<2x1x16x16xf32>, vector<2x1x16x16xf32>, vector<2x1x16x16xf32>, vector<2x1x16x16xf32> -> vector<2x4x16x16xf32>
    %263 = vector.shape_cast %262 : vector<2x4x16x16xf32> to vector<8x16x16xf32>
    %c0_50 = arith.constant 0 : index
    %264 = memref.load %arg9[%c0_50] : memref<16xf32, #tpu.memory_space<smem>>
    %265 = vector.broadcast %264 : f32 to vector<2x256xf32>
    %266 = arith.mulf %11, %265 : vector<2x256xf32>
    %c1_51 = arith.constant 1 : index
    %267 = memref.load %arg9[%c1_51] : memref<16xf32, #tpu.memory_space<smem>>
    %268 = vector.broadcast %267 : f32 to vector<2x256xf32>
    %269 = arith.mulf %13, %268 : vector<2x256xf32>
    %270 = arith.addf %266, %269 : vector<2x256xf32>
    %c2_52 = arith.constant 2 : index
    %271 = memref.load %arg9[%c2_52] : memref<16xf32, #tpu.memory_space<smem>>
    %272 = vector.broadcast %271 : f32 to vector<2x256xf32>
    %273 = arith.mulf %15, %272 : vector<2x256xf32>
    %274 = arith.addf %270, %273 : vector<2x256xf32>
    %c3_53 = arith.constant 3 : index
    %275 = memref.load %arg9[%c3_53] : memref<16xf32, #tpu.memory_space<smem>>
    %276 = vector.broadcast %275 : f32 to vector<2x256xf32>
    %277 = arith.mulf %17, %276 : vector<2x256xf32>
    %278 = arith.addf %274, %277 : vector<2x256xf32>
    %c0_54 = arith.constant 0 : index
    %279 = memref.load %arg10[%c0_54] : memref<4xf32, #tpu.memory_space<smem>>
    %280 = vector.broadcast %279 : f32 to vector<2x256xf32>
    %281 = arith.addf %278, %280 : vector<2x256xf32>
    %282 = vector.shape_cast %281 : vector<2x256xf32> to vector<2x16x16xf32>
    %c4_55 = arith.constant 4 : index
    %283 = memref.load %arg9[%c4_55] : memref<16xf32, #tpu.memory_space<smem>>
    %284 = vector.broadcast %283 : f32 to vector<2x256xf32>
    %285 = arith.mulf %11, %284 : vector<2x256xf32>
    %c5_56 = arith.constant 5 : index
    %286 = memref.load %arg9[%c5_56] : memref<16xf32, #tpu.memory_space<smem>>
    %287 = vector.broadcast %286 : f32 to vector<2x256xf32>
    %288 = arith.mulf %13, %287 : vector<2x256xf32>
    %289 = arith.addf %285, %288 : vector<2x256xf32>
    %c6_57 = arith.constant 6 : index
    %290 = memref.load %arg9[%c6_57] : memref<16xf32, #tpu.memory_space<smem>>
    %291 = vector.broadcast %290 : f32 to vector<2x256xf32>
    %292 = arith.mulf %15, %291 : vector<2x256xf32>
    %293 = arith.addf %289, %292 : vector<2x256xf32>
    %c7_58 = arith.constant 7 : index
    %294 = memref.load %arg9[%c7_58] : memref<16xf32, #tpu.memory_space<smem>>
    %295 = vector.broadcast %294 : f32 to vector<2x256xf32>
    %296 = arith.mulf %17, %295 : vector<2x256xf32>
    %297 = arith.addf %293, %296 : vector<2x256xf32>
    %c1_59 = arith.constant 1 : index
    %298 = memref.load %arg10[%c1_59] : memref<4xf32, #tpu.memory_space<smem>>
    %299 = vector.broadcast %298 : f32 to vector<2x256xf32>
    %300 = arith.addf %297, %299 : vector<2x256xf32>
    %301 = vector.shape_cast %300 : vector<2x256xf32> to vector<2x16x16xf32>
    %c8_60 = arith.constant 8 : index
    %302 = memref.load %arg9[%c8_60] : memref<16xf32, #tpu.memory_space<smem>>
    %303 = vector.broadcast %302 : f32 to vector<2x256xf32>
    %304 = arith.mulf %11, %303 : vector<2x256xf32>
    %c9_61 = arith.constant 9 : index
    %305 = memref.load %arg9[%c9_61] : memref<16xf32, #tpu.memory_space<smem>>
    %306 = vector.broadcast %305 : f32 to vector<2x256xf32>
    %307 = arith.mulf %13, %306 : vector<2x256xf32>
    %308 = arith.addf %304, %307 : vector<2x256xf32>
    %c10_62 = arith.constant 10 : index
    %309 = memref.load %arg9[%c10_62] : memref<16xf32, #tpu.memory_space<smem>>
    %310 = vector.broadcast %309 : f32 to vector<2x256xf32>
    %311 = arith.mulf %15, %310 : vector<2x256xf32>
    %312 = arith.addf %308, %311 : vector<2x256xf32>
    %c11_63 = arith.constant 11 : index
    %313 = memref.load %arg9[%c11_63] : memref<16xf32, #tpu.memory_space<smem>>
    %314 = vector.broadcast %313 : f32 to vector<2x256xf32>
    %315 = arith.mulf %17, %314 : vector<2x256xf32>
    %316 = arith.addf %312, %315 : vector<2x256xf32>
    %c2_64 = arith.constant 2 : index
    %317 = memref.load %arg10[%c2_64] : memref<4xf32, #tpu.memory_space<smem>>
    %318 = vector.broadcast %317 : f32 to vector<2x256xf32>
    %319 = arith.addf %316, %318 : vector<2x256xf32>
    %320 = vector.shape_cast %319 : vector<2x256xf32> to vector<2x16x16xf32>
    %c12_65 = arith.constant 12 : index
    %321 = memref.load %arg9[%c12_65] : memref<16xf32, #tpu.memory_space<smem>>
    %322 = vector.broadcast %321 : f32 to vector<2x256xf32>
    %323 = arith.mulf %11, %322 : vector<2x256xf32>
    %c13_66 = arith.constant 13 : index
    %324 = memref.load %arg9[%c13_66] : memref<16xf32, #tpu.memory_space<smem>>
    %325 = vector.broadcast %324 : f32 to vector<2x256xf32>
    %326 = arith.mulf %13, %325 : vector<2x256xf32>
    %327 = arith.addf %323, %326 : vector<2x256xf32>
    %c14_67 = arith.constant 14 : index
    %328 = memref.load %arg9[%c14_67] : memref<16xf32, #tpu.memory_space<smem>>
    %329 = vector.broadcast %328 : f32 to vector<2x256xf32>
    %330 = arith.mulf %15, %329 : vector<2x256xf32>
    %331 = arith.addf %327, %330 : vector<2x256xf32>
    %c15_68 = arith.constant 15 : index
    %332 = memref.load %arg9[%c15_68] : memref<16xf32, #tpu.memory_space<smem>>
    %333 = vector.broadcast %332 : f32 to vector<2x256xf32>
    %334 = arith.mulf %17, %333 : vector<2x256xf32>
    %335 = arith.addf %331, %334 : vector<2x256xf32>
    %c3_69 = arith.constant 3 : index
    %336 = memref.load %arg10[%c3_69] : memref<4xf32, #tpu.memory_space<smem>>
    %337 = vector.broadcast %336 : f32 to vector<2x256xf32>
    %338 = arith.addf %335, %337 : vector<2x256xf32>
    %339 = vector.shape_cast %338 : vector<2x256xf32> to vector<2x16x16xf32>
    %340 = vector.shape_cast %282 : vector<2x16x16xf32> to vector<2x1x16x16xf32>
    %341 = vector.shape_cast %301 : vector<2x16x16xf32> to vector<2x1x16x16xf32>
    %342 = vector.shape_cast %320 : vector<2x16x16xf32> to vector<2x1x16x16xf32>
    %343 = vector.shape_cast %339 : vector<2x16x16xf32> to vector<2x1x16x16xf32>
    %344 = tpu.concatenate %340, %341, %342, %343 in 1 : vector<2x1x16x16xf32>, vector<2x1x16x16xf32>, vector<2x1x16x16xf32>, vector<2x1x16x16xf32> -> vector<2x4x16x16xf32>
    %345 = vector.shape_cast %344 : vector<2x4x16x16xf32> to vector<8x16x16xf32>
    "tpu.trace_start"() <{level = 10 : i32, message = "gik,gjk->gij"}> : () -> ()
    %cst = arith.constant dense<0.000000e+00> : vector<8x16x16xf32>
    %346 = tpu.matmul %99, %263, %cst {dimension_numbers = #tpu.dot_dimension_numbers<[2], [2], [1], [1], [0, 0, 0, 1, 1, 1], [0], [0]>} : vector<8x16x16xf32>, vector<8x16x16xf32>, vector<8x16x16xf32> -> vector<8x16x16xf32>
    %cst_70 = arith.constant dense<0.000000e+00> : vector<8x16x16xf32>
    %347 = tpu.matmul %181, %345, %cst_70 {dimension_numbers = #tpu.dot_dimension_numbers<[2], [2], [1], [1], [0, 0, 0, 1, 1, 1], [0], [0]>} : vector<8x16x16xf32>, vector<8x16x16xf32>, vector<8x16x16xf32> -> vector<8x16x16xf32>
    "tpu.trace_stop"() : () -> ()
    %348 = arith.addf %346, %347 : vector<8x16x16xf32>
    %cst_71 = arith.constant dense<0xFF800000> : vector<8x16xf32>
    %349 = vector.multi_reduction <maximumf>, %348, %cst_71 [2] : vector<8x16x16xf32> to vector<8x16xf32>
    %350 = vector.shape_cast %349 : vector<8x16xf32> to vector<8x16x1xf32>
    %351 = vector.broadcast %350 : vector<8x16x1xf32> to vector<8x16x16xf32>
    %352 = arith.subf %348, %351 : vector<8x16x16xf32>
    %353 = math.exp %352 : vector<8x16x16xf32>
    %cst_72 = arith.constant dense<0.000000e+00> : vector<8x16xf32>
    %354 = vector.multi_reduction <add>, %353, %cst_72 [2] : vector<8x16x16xf32> to vector<8x16xf32>
    %355 = vector.shape_cast %354 : vector<8x16xf32> to vector<8x16x1xf32>
    %356 = vector.broadcast %355 : vector<8x16x1xf32> to vector<8x16x16xf32>
    %357 = arith.divf %353, %356 : vector<8x16x16xf32>
    %358 = vector.shape_cast %357 : vector<8x16x16xf32> to vector<2x4x16x16xf32>
    %359 = vector.shape_cast %358 : vector<2x4x16x16xf32> to vector<2x4x256xf32>
    %c0_73 = arith.constant 0 : index
    %360 = memref.load %arg19[%c0_73] : memref<1xf32, #tpu.memory_space<smem>>
    %c0_74 = arith.constant 0 : index
    %361 = memref.load %arg20[%c0_74] : memref<1xf32, #tpu.memory_space<smem>>
    %362 = arith.mulf %1, %359 : vector<2x4x256xf32>
    %363 = vector.broadcast %361 : f32 to vector<2x4x256xf32>
    %364 = arith.mulf %362, %363 : vector<2x4x256xf32>
    %365 = arith.mulf %0, %359 : vector<2x4x256xf32>
    %366 = vector.broadcast %360 : f32 to vector<2x4x256xf32>
    %367 = arith.mulf %365, %366 : vector<2x4x256xf32>
    %c0_75 = arith.constant 0 : index
    %c0_76 = arith.constant 0 : index
    %c0_77 = arith.constant 0 : index
    %368 = vector.load %arg11[%c0_75, %c0_76, %c0_77] : memref<1x4x1xf32, #tpu.memory_space<vmem>>, vector<1x4x1xf32>
    %c0_78 = arith.constant 0 : index
    %c0_79 = arith.constant 0 : index
    %c0_80 = arith.constant 0 : index
    %369 = vector.load %arg12[%c0_78, %c0_79, %c0_80] : memref<1x4x1xf32, #tpu.memory_space<vmem>>, vector<1x4x1xf32>
    %c0_81 = arith.constant 0 : index
    %c0_82 = arith.constant 0 : index
    %c0_83 = arith.constant 0 : index
    %370 = vector.load %arg15[%c0_81, %c0_82, %c0_83] : memref<1x4x1xf32, #tpu.memory_space<vmem>>, vector<1x4x1xf32>
    %c0_84 = arith.constant 0 : index
    %c0_85 = arith.constant 0 : index
    %c0_86 = arith.constant 0 : index
    %371 = vector.load %arg16[%c0_84, %c0_85, %c0_86] : memref<1x4x1xf32, #tpu.memory_space<vmem>>, vector<1x4x1xf32>
    %372 = vector.broadcast %368 : vector<1x4x1xf32> to vector<2x4x256xf32>
    %373 = arith.mulf %364, %372 : vector<2x4x256xf32>
    %374 = vector.broadcast %369 : vector<1x4x1xf32> to vector<2x4x256xf32>
    %375 = arith.addf %373, %374 : vector<2x4x256xf32>
    %cst_87 = arith.constant dense<0.000000e+00> : vector<2x4xf32>
    %376 = vector.multi_reduction <add>, %375, %cst_87 [2] : vector<2x4x256xf32> to vector<2x4xf32>
    %377 = vector.shape_cast %376 : vector<2x4xf32> to vector<2x4x1xf32>
    %cst_88 = arith.constant dense<0.000000e+00> : vector<4x1xf32>
    %378 = vector.multi_reduction <add>, %377, %cst_88 [0] : vector<2x4x1xf32> to vector<4x1xf32>
    %379 = vector.shape_cast %378 : vector<4x1xf32> to vector<1x4x1xf32>
    %380 = arith.mulf %375, %375 : vector<2x4x256xf32>
    %cst_89 = arith.constant dense<0.000000e+00> : vector<2x4xf32>
    %381 = vector.multi_reduction <add>, %380, %cst_89 [2] : vector<2x4x256xf32> to vector<2x4xf32>
    %382 = vector.shape_cast %381 : vector<2x4xf32> to vector<2x4x1xf32>
    %cst_90 = arith.constant dense<0.000000e+00> : vector<4x1xf32>
    %383 = vector.multi_reduction <add>, %382, %cst_90 [0] : vector<2x4x1xf32> to vector<4x1xf32>
    %384 = vector.shape_cast %383 : vector<4x1xf32> to vector<1x4x1xf32>
    %cst_91 = arith.constant 0.001953125 : f32
    %385 = vector.broadcast %cst_91 : f32 to vector<1x4x1xf32>
    %386 = arith.mulf %379, %385 : vector<1x4x1xf32>
    %cst_92 = arith.constant 0.001953125 : f32
    %387 = vector.broadcast %cst_92 : f32 to vector<1x4x1xf32>
    %388 = arith.mulf %384, %387 : vector<1x4x1xf32>
    %389 = arith.mulf %386, %386 : vector<1x4x1xf32>
    %390 = arith.subf %388, %389 : vector<1x4x1xf32>
    %391 = vector.broadcast %386 : vector<1x4x1xf32> to vector<2x4x256xf32>
    %392 = arith.subf %375, %391 : vector<2x4x256xf32>
    %cst_93 = arith.constant 9.99999974E-6 : f32
    %393 = vector.broadcast %cst_93 : f32 to vector<1x4x1xf32>
    %394 = arith.addf %390, %393 : vector<1x4x1xf32>
    %395 = math.rsqrt %394 : vector<1x4x1xf32>
    %396 = arith.mulf %395, %370 : vector<1x4x1xf32>
    %397 = vector.broadcast %396 : vector<1x4x1xf32> to vector<2x4x256xf32>
    %398 = arith.mulf %392, %397 : vector<2x4x256xf32>
    %399 = vector.broadcast %371 : vector<1x4x1xf32> to vector<2x4x256xf32>
    %400 = arith.addf %398, %399 : vector<2x4x256xf32>
    %cst_94 = arith.constant 0.000000e+00 : f32
    %401 = vector.broadcast %cst_94 : f32 to vector<2x4x256xf32>
    %402 = arith.cmpf oge, %400, %401 : vector<2x4x256xf32>
    %cst_95 = arith.constant 0.00999999977 : f32
    %403 = vector.broadcast %cst_95 : f32 to vector<2x4x256xf32>
    %404 = arith.mulf %403, %400 : vector<2x4x256xf32>
    %405 = arith.select %402, %400, %404 : vector<2x4x256xi1>, vector<2x4x256xf32>
    %406 = arith.addf %0, %405 : vector<2x4x256xf32>
    %c0_96 = arith.constant 0 : index
    %c0_97 = arith.constant 0 : index
    %c0_98 = arith.constant 0 : index
    %407 = vector.load %arg21[%c0_96, %c0_97, %c0_98] : memref<2x4x256xf32, #tpu.memory_space<vmem>>, vector<2x4x256xf32>
    tpu.vector_store %arg21[%c0_96, %c0_97, %c0_98], %406 {strides = array<i32>} : memref<2x4x256xf32, #tpu.memory_space<vmem>>, vector<2x4x256xf32>,
    %c0_99 = arith.constant 0 : index
    %c0_100 = arith.constant 0 : index
    %c0_101 = arith.constant 0 : index
    %408 = vector.load %arg13[%c0_99, %c0_100, %c0_101] : memref<1x4x1xf32, #tpu.memory_space<vmem>>, vector<1x4x1xf32>
    %c0_102 = arith.constant 0 : index
    %c0_103 = arith.constant 0 : index
    %c0_104 = arith.constant 0 : index
    %409 = vector.load %arg14[%c0_102, %c0_103, %c0_104] : memref<1x4x1xf32, #tpu.memory_space<vmem>>, vector<1x4x1xf32>
    %c0_105 = arith.constant 0 : index
    %c0_106 = arith.constant 0 : index
    %c0_107 = arith.constant 0 : index
    %410 = vector.load %arg17[%c0_105, %c0_106, %c0_107] : memref<1x4x1xf32, #tpu.memory_space<vmem>>, vector<1x4x1xf32>
    %c0_108 = arith.constant 0 : index
    %c0_109 = arith.constant 0 : index
    %c0_110 = arith.constant 0 : index
    %411 = vector.load %arg18[%c0_108, %c0_109, %c0_110] : memref<1x4x1xf32, #tpu.memory_space<vmem>>, vector<1x4x1xf32>
    %412 = vector.broadcast %408 : vector<1x4x1xf32> to vector<2x4x256xf32>
    %413 = arith.mulf %367, %412 : vector<2x4x256xf32>
    %414 = vector.broadcast %409 : vector<1x4x1xf32> to vector<2x4x256xf32>
    %415 = arith.addf %413, %414 : vector<2x4x256xf32>
    %cst_111 = arith.constant dense<0.000000e+00> : vector<2x4xf32>
    %416 = vector.multi_reduction <add>, %415, %cst_111 [2] : vector<2x4x256xf32> to vector<2x4xf32>
    %417 = vector.shape_cast %416 : vector<2x4xf32> to vector<2x4x1xf32>
    %cst_112 = arith.constant dense<0.000000e+00> : vector<4x1xf32>
    %418 = vector.multi_reduction <add>, %417, %cst_112 [0] : vector<2x4x1xf32> to vector<4x1xf32>
    %419 = vector.shape_cast %418 : vector<4x1xf32> to vector<1x4x1xf32>
    %420 = arith.mulf %415, %415 : vector<2x4x256xf32>
    %cst_113 = arith.constant dense<0.000000e+00> : vector<2x4xf32>
    %421 = vector.multi_reduction <add>, %420, %cst_113 [2] : vector<2x4x256xf32> to vector<2x4xf32>
    %422 = vector.shape_cast %421 : vector<2x4xf32> to vector<2x4x1xf32>
    %cst_114 = arith.constant dense<0.000000e+00> : vector<4x1xf32>
    %423 = vector.multi_reduction <add>, %422, %cst_114 [0] : vector<2x4x1xf32> to vector<4x1xf32>
    %424 = vector.shape_cast %423 : vector<4x1xf32> to vector<1x4x1xf32>
    %cst_115 = arith.constant 0.001953125 : f32
    %425 = vector.broadcast %cst_115 : f32 to vector<1x4x1xf32>
    %426 = arith.mulf %419, %425 : vector<1x4x1xf32>
    %cst_116 = arith.constant 0.001953125 : f32
    %427 = vector.broadcast %cst_116 : f32 to vector<1x4x1xf32>
    %428 = arith.mulf %424, %427 : vector<1x4x1xf32>
    %429 = arith.mulf %426, %426 : vector<1x4x1xf32>
    %430 = arith.subf %428, %429 : vector<1x4x1xf32>
    %431 = vector.broadcast %426 : vector<1x4x1xf32> to vector<2x4x256xf32>
    %432 = arith.subf %415, %431 : vector<2x4x256xf32>
    %cst_117 = arith.constant 9.99999974E-6 : f32
    %433 = vector.broadcast %cst_117 : f32 to vector<1x4x1xf32>
    %434 = arith.addf %430, %433 : vector<1x4x1xf32>
    %435 = math.rsqrt %434 : vector<1x4x1xf32>
    %436 = arith.mulf %435, %410 : vector<1x4x1xf32>
    %437 = vector.broadcast %436 : vector<1x4x1xf32> to vector<2x4x256xf32>
    %438 = arith.mulf %432, %437 : vector<2x4x256xf32>
    %439 = vector.broadcast %411 : vector<1x4x1xf32> to vector<2x4x256xf32>
    %440 = arith.addf %438, %439 : vector<2x4x256xf32>
    %cst_118 = arith.constant 0.000000e+00 : f32
    %441 = vector.broadcast %cst_118 : f32 to vector<2x4x256xf32>
    %442 = arith.cmpf oge, %440, %441 : vector<2x4x256xf32>
    %cst_119 = arith.constant 0.00999999977 : f32
    %443 = vector.broadcast %cst_119 : f32 to vector<2x4x256xf32>
    %444 = arith.mulf %443, %440 : vector<2x4x256xf32>
    %445 = arith.select %442, %440, %444 : vector<2x4x256xi1>, vector<2x4x256xf32>
    %446 = arith.addf %1, %445 : vector<2x4x256xf32>
    %c0_120 = arith.constant 0 : index
    %c0_121 = arith.constant 0 : index
    %c0_122 = arith.constant 0 : index
    %447 = vector.load %arg22[%c0_120, %c0_121, %c0_122] : memref<2x4x256xf32, #tpu.memory_space<vmem>>, vector<2x4x256xf32>
    tpu.vector_store %arg22[%c0_120, %c0_121, %c0_122], %446 {strides = array<i32>} : memref<2x4x256xf32, #tpu.memory_space<vmem>>, vector<2x4x256xf32>,
    return
  }
  func.func @transform_0(%arg0: i32) -> (i32, i32, i32) {
    %c0_i32 = arith.constant 0 : i32
    %c0_i32_0 = arith.constant 0 : i32
    %c0_i32_1 = arith.constant 0 : i32
    %c0_i32_2 = arith.constant 0 : i32
    return %c0_i32, %c0_i32_0, %c0_i32_1 : i32, i32, i32
  }
  func.func @transform_1(%arg0: i32) -> (i32, i32, i32) {
    %c0_i32 = arith.constant 0 : i32
    %c0_i32_0 = arith.constant 0 : i32
    %c0_i32_1 = arith.constant 0 : i32
    %c0_i32_2 = arith.constant 0 : i32
    return %c0_i32, %c0_i32_0, %c0_i32_1 : i32, i32, i32
  }
  func.func @transform_2(%arg0: i32) -> i32 {
    %c0_i32 = arith.constant 0 : i32
    %c0_i32_0 = arith.constant 0 : i32
    return %c0_i32 : i32
  }
  func.func @transform_3(%arg0: i32) -> i32 {
    %c0_i32 = arith.constant 0 : i32
    %c0_i32_0 = arith.constant 0 : i32
    return %c0_i32 : i32
  }
  func.func @transform_4(%arg0: i32) -> i32 {
    %c0_i32 = arith.constant 0 : i32
    %c0_i32_0 = arith.constant 0 : i32
    return %c0_i32 : i32
  }
  func.func @transform_5(%arg0: i32) -> i32 {
    %c0_i32 = arith.constant 0 : i32
    %c0_i32_0 = arith.constant 0 : i32
    return %c0_i32 : i32
  }
  func.func @transform_6(%arg0: i32) -> i32 {
    %c0_i32 = arith.constant 0 : i32
    %c0_i32_0 = arith.constant 0 : i32
    return %c0_i32 : i32
  }
  func.func @transform_7(%arg0: i32) -> i32 {
    %c0_i32 = arith.constant 0 : i32
    %c0_i32_0 = arith.constant 0 : i32
    return %c0_i32 : i32
  }
  func.func @transform_8(%arg0: i32) -> i32 {
    %c0_i32 = arith.constant 0 : i32
    %c0_i32_0 = arith.constant 0 : i32
    return %c0_i32 : i32
  }
  func.func @transform_9(%arg0: i32) -> i32 {
    %c0_i32 = arith.constant 0 : i32
    %c0_i32_0 = arith.constant 0 : i32
    return %c0_i32 : i32
  }
  func.func @transform_10(%arg0: i32) -> (i32, i32, i32) {
    %c0_i32 = arith.constant 0 : i32
    %c0_i32_0 = arith.constant 0 : i32
    %c0_i32_1 = arith.constant 0 : i32
    %c0_i32_2 = arith.constant 0 : i32
    return %c0_i32, %c0_i32_0, %c0_i32_1 : i32, i32, i32
  }
  func.func @transform_11(%arg0: i32) -> (i32, i32, i32) {
    %c0_i32 = arith.constant 0 : i32
    %c0_i32_0 = arith.constant 0 : i32
    %c0_i32_1 = arith.constant 0 : i32
    %c0_i32_2 = arith.constant 0 : i32
    return %c0_i32, %c0_i32_0, %c0_i32_1 : i32, i32, i32
  }
  func.func @transform_12(%arg0: i32) -> (i32, i32, i32) {
    %c0_i32 = arith.constant 0 : i32
    %c0_i32_0 = arith.constant 0 : i32
    %c0_i32_1 = arith.constant 0 : i32
    %c0_i32_2 = arith.constant 0 : i32
    return %c0_i32, %c0_i32_0, %c0_i32_1 : i32, i32, i32
  }
  func.func @transform_13(%arg0: i32) -> (i32, i32, i32) {
    %c0_i32 = arith.constant 0 : i32
    %c0_i32_0 = arith.constant 0 : i32
    %c0_i32_1 = arith.constant 0 : i32
    %c0_i32_2 = arith.constant 0 : i32
    return %c0_i32, %c0_i32_0, %c0_i32_1 : i32, i32, i32
  }
  func.func @transform_14(%arg0: i32) -> (i32, i32, i32) {
    %c0_i32 = arith.constant 0 : i32
    %c0_i32_0 = arith.constant 0 : i32
    %c0_i32_1 = arith.constant 0 : i32
    %c0_i32_2 = arith.constant 0 : i32
    return %c0_i32, %c0_i32_0, %c0_i32_1 : i32, i32, i32
  }
  func.func @transform_15(%arg0: i32) -> (i32, i32, i32) {
    %c0_i32 = arith.constant 0 : i32
    %c0_i32_0 = arith.constant 0 : i32
    %c0_i32_1 = arith.constant 0 : i32
    %c0_i32_2 = arith.constant 0 : i32
    return %c0_i32, %c0_i32_0, %c0_i32_1 : i32, i32, i32
  }
  func.func @transform_16(%arg0: i32) -> (i32, i32, i32) {
    %c0_i32 = arith.constant 0 : i32
    %c0_i32_0 = arith.constant 0 : i32
    %c0_i32_1 = arith.constant 0 : i32
    %c0_i32_2 = arith.constant 0 : i32
    return %c0_i32, %c0_i32_0, %c0_i32_1 : i32, i32, i32
  }
  func.func @transform_17(%arg0: i32) -> (i32, i32, i32) {
    %c0_i32 = arith.constant 0 : i32
    %c0_i32_0 = arith.constant 0 : i32
    %c0_i32_1 = arith.constant 0 : i32
    %c0_i32_2 = arith.constant 0 : i32
    return %c0_i32, %c0_i32_0, %c0_i32_1 : i32, i32, i32
  }
  func.func @transform_18(%arg0: i32) -> i32 {
    %c0_i32 = arith.constant 0 : i32
    %c0_i32_0 = arith.constant 0 : i32
    return %c0_i32 : i32
  }
  func.func @transform_19(%arg0: i32) -> i32 {
    %c0_i32 = arith.constant 0 : i32
    %c0_i32_0 = arith.constant 0 : i32
    return %c0_i32 : i32
  }
  func.func @transform_20(%arg0: i32) -> (i32, i32, i32) {
    %c0_i32 = arith.constant 0 : i32
    %c0_i32_0 = arith.constant 0 : i32
    %c0_i32_1 = arith.constant 0 : i32
    %c0_i32_2 = arith.constant 0 : i32
    return %c0_i32, %c0_i32_0, %c0_i32_1 : i32, i32, i32
  }
  func.func @transform_21(%arg0: i32) -> (i32, i32, i32) {
    %c0_i32 = arith.constant 0 : i32
    %c0_i32_0 = arith.constant 0 : i32
    %c0_i32_1 = arith.constant 0 : i32
    %c0_i32_2 = arith.constant 0 : i32
    return %c0_i32, %c0_i32_0, %c0_i32_1 : i32, i32, i32
  }
}

</mosaic_0001>

<llo_original>
// kernel: mixblock_forward.1
$region0: #{mixblock_forward.1}
  #allocation0 [shape = 'u32[]', space=smem, size = 0x4, offset = 0x4, fixed_abs, tag = 'smem constant byte address 0x4 - core index']
  #allocation1 [shape = 'u32[144,128]{1,0:T(1,128)}', space=vmem, size = 0x12000, scoped, tag = 'internal scratch']
  #allocation2 [shape = 'f32[1]{0:T(128)S(6)}', space=smem, size = 0x200, scoped, tag = 'scoped memory for mixblock_forward.1']
  #allocation3 [shape = 'f32[1]{0:T(128)S(6)}', space=smem, size = 0x200, scoped, tag = 'scoped memory for mixblock_forward.1']
  %s0 = inlined_call_operand.vmem [shape: f32[2,4,256], index: 0, kind: input, shape index: {}]
  %s1 = inlined_call_operand.vmem [shape: f32[2,4,256], index: 1, kind: input, shape index: {}]
  %s2 = inlined_call_operand.vmem [shape: f32[16], index: 2, kind: input, shape index: {}]
  %s3 = inlined_call_operand.vmem [shape: f32[4], index: 3, kind: input, shape index: {}]
  %s4 = inlined_call_operand.vmem [shape: f32[16], index: 4, kind: input, shape index: {}]
  %s5 = inlined_call_operand.vmem [shape: f32[4], index: 5, kind: input, shape index: {}]
  %s6 = inlined_call_operand.vmem [shape: f32[16], index: 6, kind: input, shape index: {}]
  %s7 = inlined_call_operand.vmem [shape: f32[4], index: 7, kind: input, shape index: {}]
  %s8 = inlined_call_operand.vmem [shape: f32[16], index: 8, kind: input, shape index: {}]
  %s9 = inlined_call_operand.vmem [shape: f32[4], index: 9, kind: input, shape index: {}]
  %s10 = inlined_call_operand.vmem [shape: f32[1,4,1], index: 10, kind: input, shape index: {}]
  %s11 = inlined_call_operand.vmem [shape: f32[1,4,1], index: 11, kind: input, shape index: {}]
  %s12 = inlined_call_operand.vmem [shape: f32[1,4,1], index: 12, kind: input, shape index: {}]
  %s13 = inlined_call_operand.vmem [shape: f32[1,4,1], index: 13, kind: input, shape index: {}]
  %s14 = inlined_call_operand.vmem [shape: f32[1,4,1], index: 14, kind: input, shape index: {}]
  %s15 = inlined_call_operand.vmem [shape: f32[1,4,1], index: 15, kind: input, shape index: {}]
  %s16 = inlined_call_operand.vmem [shape: f32[1,4,1], index: 16, kind: input, shape index: {}]
  %s17 = inlined_call_operand.vmem [shape: f32[1,4,1], index: 17, kind: input, shape index: {}]
  %s18 = inlined_call_operand.<no memory space> [shape: f32[1], index: 18, kind: input, shape index: {}]
  %s19 = inlined_call_operand.<no memory space> [shape: f32[1], index: 19, kind: input, shape index: {}]
  %s20 = inlined_call_operand.vmem [shape: f32[2,4,256], index: 20, kind: output, shape index: {0}]
  %s21 = inlined_call_operand.vmem [shape: f32[2,4,256], index: 21, kind: output, shape index: {1}]
  %22 = xla_tuple %s20, %s21
  %s23 = sld [smem:[#allocation0]]
  $region130: #{mixblock_forward.1} parent=0
    _
  %s25 = ssub.s32 1, %s23
  %s26 = scalar_select 0, %s25, %s23
  %27 = sst [smem:[#allocation2]] %s18
  %28 = sst [smem:[#allocation3]] %s19
  $region1: #{mixblock_forward.1} parent=0
    #allocation4 [shape = 'u8[512]{0}', space=smem, size = 0x200, scoped, tag = 'input window, operand 2, single buffered']
    #allocation5 [shape = 's32[1]{0}', space=sflag, size = 0x4, scoped, tag = 'scoped memory for mixblock_forward.1']
    #allocation6 [shape = 'u8[512]{0}', space=smem, size = 0x200, scoped, tag = 'input window, operand 3, single buffered']
    #allocation7 [shape = 's32[1]{0}', space=sflag, size = 0x4, scoped, tag = 'scoped memory for mixblock_forward.1']
    #allocation8 [shape = 'u8[512]{0}', space=smem, size = 0x200, scoped, tag = 'input window, operand 4, single buffered']
    #allocation9 [shape = 'u8[512]{0}', space=smem, size = 0x200, scoped, tag = 'input window, operand 5, single buffered']
    #allocation10 [shape = 's32[1]{0}', space=sflag, size = 0x4, scoped, tag = 'scoped memory for mixblock_forward.1']
    #allocation11 [shape = 'u8[512]{0}', space=smem, size = 0x200, scoped, tag = 'input window, operand 6, single buffered']
    #allocation12 [shape = 'u8[512]{0}', space=smem, size = 0x200, scoped, tag = 'input window, operand 7, single buffered']
    #allocation13 [shape = 's32[1]{0}', space=sflag, size = 0x4, scoped, tag = 'scoped memory for mixblock_forward.1']
    #allocation14 [shape = 'u8[512]{0}', space=smem, size = 0x200, scoped, tag = 'input window, operand 8, single buffered']
    #allocation15 [shape = 'u8[512]{0}', space=smem, size = 0x200, scoped, tag = 'input window, operand 9, single buffered']
    #allocation16 [shape = 's32[1]{0}', space=sflag, size = 0x4, scoped, tag = 'scoped memory for mixblock_forward.1']
    %29 = vsyncpa [#allocation5], 0
    %30 = vsyncpa [#allocation7], 0
    %31 = vsyncpa [#allocation10], 0
    %32 = vsyncpa [#allocation13], 0
    %33 = vsyncpa [#allocation16], 0
    // Predicated region
    $region2: #{mixblock_forward.1} parent=1 // pred_check
      _
    $region3: #{mixblock_forward.1} parent=1 // pred_check_branch
      %35 = sbr.rel (0) target = $region5
    $region4: #{mixblock_forward.1} parent=1 // pred_region
      _
    $region5: #{mixblock_forward.1} parent=1 // pred_fallthru
      _
    // Predicated region
    $region6: #{mixblock_forward.1} parent=1 // pred_check
      _
    $region7: #{mixblock_forward.1} parent=1 // pred_check_branch
      %37 = sbr.rel (0) target = $region9
    $region8: #{mixblock_forward.1} parent=1 // pred_region
      _
    $region9: #{mixblock_forward.1} parent=1 // pred_fallthru
      _
    // Predicated region
    $region10: #{mixblock_forward.1} parent=1 // pred_check
      _
    $region11: #{mixblock_forward.1} parent=1 // pred_check_branch
      %39 = sbr.rel (0) target = $region13
    $region12: #{mixblock_forward.1} parent=1 // pred_region
      %s41 = ssub.s32 16, 16
      %42 = vsyncadd [#allocation5], %s41
      %s44 = sshll.u32 %s2, 4
      %s45 = int_to_ptr.vmem [resolvable:$true] %s44
      %47 = dma.vmem_to_smem %s45, 16, [#allocation4], [#allocation5]
    $region13: #{mixblock_forward.1} parent=1 // pred_fallthru
      _
    // Predicated region
    $region14: #{mixblock_forward.1} parent=1 // pred_check
      _
    $region15: #{mixblock_forward.1} parent=1 // pred_check_branch
      %49 = sbr.rel (0) target = $region17
    $region16: #{mixblock_forward.1} parent=1 // pred_region
      %s51 = ssub.s32 16, 16
      %52 = vsyncadd [#allocation7], %s51
      %s54 = sshll.u32 %s3, 4
      %s55 = int_to_ptr.vmem [resolvable:$true] %s54
      %57 = dma.vmem_to_smem %s55, 16, [#allocation6], [#allocation7]
    $region17: #{mixblock_forward.1} parent=1 // pred_fallthru
      _
    // Predicated region
    $region18: #{mixblock_forward.1} parent=1 // pred_check
      _
    $region19: #{mixblock_forward.1} parent=1 // pred_check_branch
      %59 = sbr.rel (0) target = $region21
    $region20: #{mixblock_forward.1} parent=1 // pred_region
      %s61 = ssub.s32 16, 16
      %62 = vsyncadd [#allocation7], %s61
      %s64 = sshll.u32 %s4, 4
      %s65 = int_to_ptr.vmem [resolvable:$true] %s64
      %67 = dma.vmem_to_smem %s65, 16, [#allocation8], [#allocation7]
    $region21: #{mixblock_forward.1} parent=1 // pred_fallthru
      _
    // Predicated region
    $region22: #{mixblock_forward.1} parent=1 // pred_check
      _
    $region23: #{mixblock_forward.1} parent=1 // pred_check_branch
      %69 = sbr.rel (0) target = $region25
    $region24: #{mixblock_forward.1} parent=1 // pred_region
      %s71 = ssub.s32 16, 16
      %72 = vsyncadd [#allocation10], %s71
      %s74 = sshll.u32 %s5, 4
      %s75 = int_to_ptr.vmem [resolvable:$true] %s74
      %77 = dma.vmem_to_smem %s75, 16, [#allocation9], [#allocation10]
    $region25: #{mixblock_forward.1} parent=1 // pred_fallthru
      _
    // Predicated region
    $region26: #{mixblock_forward.1} parent=1 // pred_check
      _
    $region27: #{mixblock_forward.1} parent=1 // pred_check_branch
      %79 = sbr.rel (0) target = $region29
    $region28: #{mixblock_forward.1} parent=1 // pred_region
      %s81 = ssub.s32 16, 16
      %82 = vsyncadd [#allocation10], %s81
      %s84 = sshll.u32 %s6, 4
      %s85 = int_to_ptr.vmem [resolvable:$true] %s84
      %87 = dma.vmem_to_smem %s85, 16, [#allocation11], [#allocation10]
    $region29: #{mixblock_forward.1} parent=1 // pred_fallthru
      _
    // Predicated region
    $region30: #{mixblock_forward.1} parent=1 // pred_check
      _
    $region31: #{mixblock_forward.1} parent=1 // pred_check_branch
      %89 = sbr.rel (0) target = $region33
    $region32: #{mixblock_forward.1} parent=1 // pred_region
      %s91 = ssub.s32 16, 16
      %92 = vsyncadd [#allocation13], %s91
      %s94 = sshll.u32 %s7, 4
      %s95 = int_to_ptr.vmem [resolvable:$true] %s94
      %97 = dma.vmem_to_smem %s95, 16, [#allocation12], [#allocation13]
    $region33: #{mixblock_forward.1} parent=1 // pred_fallthru
      _
    // Predicated region
    $region34: #{mixblock_forward.1} parent=1 // pred_check
      _
    $region35: #{mixblock_forward.1} parent=1 // pred_check_branch
      %99 = sbr.rel (0) target = $region37
    $region36: #{mixblock_forward.1} parent=1 // pred_region
      %s101 = ssub.s32 16, 16
      %102 = vsyncadd [#allocation13], %s101
      %s104 = sshll.u32 %s8, 4
      %s105 = int_to_ptr.vmem [resolvable:$true] %s104
      %107 = dma.vmem_to_smem %s105, 16, [#allocation14], [#allocation13]
    $region37: #{mixblock_forward.1} parent=1 // pred_fallthru
      _
    // Predicated region
    $region38: #{mixblock_forward.1} parent=1 // pred_check
      _
    $region39: #{mixblock_forward.1} parent=1 // pred_check_branch
      %109 = sbr.rel (0) target = $region41
    $region40: #{mixblock_forward.1} parent=1 // pred_region
      %s111 = ssub.s32 16, 16
      %112 = vsyncadd [#allocation16], %s111
      %s114 = sshll.u32 %s9, 4
      %s115 = int_to_ptr.vmem [resolvable:$true] %s114
      %117 = dma.vmem_to_smem %s115, 16, [#allocation15], [#allocation16]
    $region41: #{mixblock_forward.1} parent=1 // pred_fallthru
      _
    // Predicated region
    $region42: #{mixblock_forward.1} parent=1 // pred_check
      _
    $region43: #{mixblock_forward.1} parent=1 // pred_check_branch
      %119 = sbr.rel (0) target = $region45
    $region44: #{mixblock_forward.1} parent=1 // pred_region
      _
    $region45: #{mixblock_forward.1} parent=1 // pred_fallthru
      _
    // Predicated region
    $region46: #{mixblock_forward.1} parent=1 // pred_check
      _
    $region47: #{mixblock_forward.1} parent=1 // pred_check_branch
      %121 = sbr.rel (0) target = $region49
    $region48: #{mixblock_forward.1} parent=1 // pred_region
      _
    $region49: #{mixblock_forward.1} parent=1 // pred_fallthru
      _
    // Predicated region
    $region50: #{mixblock_forward.1} parent=1 // pred_check
      _
    $region51: #{mixblock_forward.1} parent=1 // pred_check_branch
      %123 = sbr.rel (0) target = $region53
    $region52: #{mixblock_forward.1} parent=1 // pred_region
      _
    $region53: #{mixblock_forward.1} parent=1 // pred_fallthru
      _
    // Predicated region
    $region54: #{mixblock_forward.1} parent=1 // pred_check
      _
    $region55: #{mixblock_forward.1} parent=1 // pred_check_branch
      %125 = sbr.rel (0) target = $region57
    $region56: #{mixblock_forward.1} parent=1 // pred_region
      _
    $region57: #{mixblock_forward.1} parent=1 // pred_fallthru
      _
    // Predicated region
    $region58: #{mixblock_forward.1} parent=1 // pred_check
      _
    $region59: #{mixblock_forward.1} parent=1 // pred_check_branch
      %127 = sbr.rel (0) target = $region61
    $region60: #{mixblock_forward.1} parent=1 // pred_region
      _
    $region61: #{mixblock_forward.1} parent=1 // pred_fallthru
      _
    // Predicated region
    $region62: #{mixblock_forward.1} parent=1 // pred_check
      _
    $region63: #{mixblock_forward.1} parent=1 // pred_check_branch
      %129 = sbr.rel (0) target = $region65
    $region64: #{mixblock_forward.1} parent=1 // pred_region
      _
    $region65: #{mixblock_forward.1} parent=1 // pred_fallthru
      _
    // Predicated region
    $region66: #{mixblock_forward.1} parent=1 // pred_check
      _
    $region67: #{mixblock_forward.1} parent=1 // pred_check_branch
      %131 = sbr.rel (0) target = $region69
    $region68: #{mixblock_forward.1} parent=1 // pred_region
      _
    $region69: #{mixblock_forward.1} parent=1 // pred_fallthru
      _
    // Predicated region
    $region70: #{mixblock_forward.1} parent=1 // pred_check
      _
    $region71: #{mixblock_forward.1} parent=1 // pred_check_branch
      %133 = sbr.rel (0) target = $region73
    $region72: #{mixblock_forward.1} parent=1 // pred_region
      _
    $region73: #{mixblock_forward.1} parent=1 // pred_fallthru
      _
    // Predicated region
    $region74: #{mixblock_forward.1} parent=1 // pred_check
      _
    $region75: #{mixblock_forward.1} parent=1 // pred_check_branch
      %135 = sbr.rel (0) target = $region77
    $region76: #{mixblock_forward.1} parent=1 // pred_region
      _
    $region77: #{mixblock_forward.1} parent=1 // pred_fallthru
      _
    // Predicated region
    $region78: #{mixblock_forward.1} parent=1 // pred_check
      _
    $region79: #{mixblock_forward.1} parent=1 // pred_check_branch
      %137 = sbr.rel (0) target = $region81
    $region80: #{mixblock_forward.1} parent=1 // pred_region
      _
    $region81: #{mixblock_forward.1} parent=1 // pred_fallthru
      _
    // Predicated region
    $region82: #{mixblock_forward.1} parent=1 // pred_check
      _
    $region83: #{mixblock_forward.1} parent=1 // pred_check_branch
      %139 = sbr.rel (0) target = $region85
    $region84: #{mixblock_forward.1} parent=1 // pred_region
      %140 = dma.done [#allocation5], 16
    $region85: #{mixblock_forward.1} parent=1 // pred_fallthru
      _
    // Predicated region
    $region86: #{mixblock_forward.1} parent=1 // pred_check
      _
    $region87: #{mixblock_forward.1} parent=1 // pred_check_branch
      %142 = sbr.rel (0) target = $region89
    $region88: #{mixblock_forward.1} parent=1 // pred_region
      %143 = dma.done [#allocation7], 16
    $region89: #{mixblock_forward.1} parent=1 // pred_fallthru
      _
    // Predicated region
    $region90: #{mixblock_forward.1} parent=1 // pred_check
      _
    $region91: #{mixblock_forward.1} parent=1 // pred_check_branch
      %145 = sbr.rel (0) target = $region93
    $region92: #{mixblock_forward.1} parent=1 // pred_region
      %146 = dma.done [#allocation7], 16
    $region93: #{mixblock_forward.1} parent=1 // pred_fallthru
      _
    // Predicated region
    $region94: #{mixblock_forward.1} parent=1 // pred_check
      _
    $region95: #{mixblock_forward.1} parent=1 // pred_check_branch
      %148 = sbr.rel (0) target = $region97
    $region96: #{mixblock_forward.1} parent=1 // pred_region
      %149 = dma.done [#allocation10], 16
    $region97: #{mixblock_forward.1} parent=1 // pred_fallthru
      _
    // Predicated region
    $region98: #{mixblock_forward.1} parent=1 // pred_check
      _
    $region99: #{mixblock_forward.1} parent=1 // pred_check_branch
      %151 = sbr.rel (0) target = $region101
    $region100: #{mixblock_forward.1} parent=1 // pred_region
      %152 = dma.done [#allocation10], 16
    $region101: #{mixblock_forward.1} parent=1 // pred_fallthru
      _
    // Predicated region
    $region102: #{mixblock_forward.1} parent=1 // pred_check
      _
    $region103: #{mixblock_forward.1} parent=1 // pred_check_branch
      %154 = sbr.rel (0) target = $region105
    $region104: #{mixblock_forward.1} parent=1 // pred_region
      %155 = dma.done [#allocation13], 16
    $region105: #{mixblock_forward.1} parent=1 // pred_fallthru
      _
    // Predicated region
    $region106: #{mixblock_forward.1} parent=1 // pred_check
      _
    $region107: #{mixblock_forward.1} parent=1 // pred_check_branch
      %157 = sbr.rel (0) target = $region109
    $region108: #{mixblock_forward.1} parent=1 // pred_region
      %158 = dma.done [#allocation13], 16
    $region109: #{mixblock_forward.1} parent=1 // pred_fallthru
      _
    // Predicated region
    $region110: #{mixblock_forward.1} parent=1 // pred_check
      _
    $region111: #{mixblock_forward.1} parent=1 // pred_check_branch
      %160 = sbr.rel (0) target = $region113
    $region112: #{mixblock_forward.1} parent=1 // pred_region
      %161 = dma.done [#allocation16], 16
    $region113: #{mixblock_forward.1} parent=1 // pred_fallthru
      _
    %162 = sfence
    %v163 = vld [vmem:[%s0] sm:$0xff]
    %v164 = vld [vmem:[%s0 + $0x8] sm:$0xff]
    %v165 = vld [vmem:[%s1] sm:$0xff]
    %v166 = vld [vmem:[%s1 + $0x8] sm:$0xff]
    %s167 = sld [smem:[#allocation4]]
    %v168 = vstv %s167
    %v169 = vmul.f32 %v163, %v168
    %v170 = vmul.f32 %v164, %v168
    %s171 = sld [smem:[#allocation4 + $0x1]]
    %v172 = vstv %s171
    %v173 = vmul.f32 %v163, %v172
    %v174 = vmul.f32 %v164, %v172
    %v177 = vrot.slane %v173, 5
    %v178 = vrot.slane %v177, 4
    %v179 = vrot.slane %v174, 5
    %v180 = vrot.slane %v179, 4
    %v183 = vadd.f32 %v169, %v178
    %v184 = vadd.f32 %v170, %v180
    %s185 = sld [smem:[#allocation4 + $0x2]]
    %v186 = vstv %s185
    %v187 = vmul.f32 %v163, %v186
    %v188 = vmul.f32 %v164, %v186
    %v191 = vrot.slane %v187, 6
    %v192 = vrot.slane %v191, 4
    %v193 = vrot.slane %v188, 6
    %v194 = vrot.slane %v193, 4
    %v197 = vadd.f32 %v183, %v192
    %v198 = vadd.f32 %v184, %v194
    %s199 = sld [smem:[#allocation4 + $0x3]]
    %v200 = vstv %s199
    %v201 = vmul.f32 %v163, %v200
    %v202 = vmul.f32 %v164, %v200
    %v205 = vrot.slane %v201, 7
    %v206 = vrot.slane %v205, 4
    %v207 = vrot.slane %v202, 7
    %v208 = vrot.slane %v207, 4
    %v211 = vadd.f32 %v197, %v206
    %v212 = vadd.f32 %v198, %v208
    %s213 = sld [smem:[#allocation6]]
    %v214 = vstv %s213
    %v215 = vadd.f32 %v211, %v214
    %v216 = vadd.f32 %v212, %v214
    %s217 = sld [smem:[#allocation4 + $0x4]]
    %v218 = vstv %s217
    %v219 = vmul.f32 %v163, %v218
    %v220 = vmul.f32 %v164, %v218
    %s221 = sld [smem:[#allocation4 + $0x5]]
    %v222 = vstv %s221
    %v223 = vmul.f32 %v163, %v222
    %v224 = vmul.f32 %v164, %v222
    %v227 = vrot.slane %v223, 5
    %v228 = vrot.slane %v227, 4
    %v229 = vrot.slane %v224, 5
    %v230 = vrot.slane %v229, 4
    %v233 = vadd.f32 %v219, %v228
    %v234 = vadd.f32 %v220, %v230
    %s235 = sld [smem:[#allocation4 + $0x6]]
    %v236 = vstv %s235
    %v237 = vmul.f32 %v163, %v236
    %v238 = vmul.f32 %v164, %v236
    %v241 = vrot.slane %v237, 6
    %v242 = vrot.slane %v241, 4
    %v243 = vrot.slane %v238, 6
    %v244 = vrot.slane %v243, 4
    %v247 = vadd.f32 %v233, %v242
    %v248 = vadd.f32 %v234, %v244
    %s249 = sld [smem:[#allocation4 + $0x7]]
    %v250 = vstv %s249
    %v251 = vmul.f32 %v163, %v250
    %v252 = vmul.f32 %v164, %v250
    %v255 = vrot.slane %v251, 7
    %v256 = vrot.slane %v255, 4
    %v257 = vrot.slane %v252, 7
    %v258 = vrot.slane %v257, 4
    %v261 = vadd.f32 %v247, %v256
    %v262 = vadd.f32 %v248, %v258
    %s263 = sld [smem:[#allocation6 + $0x1]]
    %v264 = vstv %s263
    %v265 = vadd.f32 %v261, %v264
    %v266 = vadd.f32 %v262, %v264
    %s267 = sld [smem:[#allocation4 + $0x8]]
    %v268 = vstv %s267
    %v269 = vmul.f32 %v163, %v268
    %v270 = vmul.f32 %v164, %v268
    %s271 = sld [smem:[#allocation4 + $0x9]]
    %v272 = vstv %s271
    %v273 = vmul.f32 %v163, %v272
    %v274 = vmul.f32 %v164, %v272
    %v277 = vrot.slane %v273, 5
    %v278 = vrot.slane %v277, 4
    %v279 = vrot.slane %v274, 5
    %v280 = vrot.slane %v279, 4
    %v283 = vadd.f32 %v269, %v278
    %v284 = vadd.f32 %v270, %v280
    %s285 = sld [smem:[#allocation4 + $0xa]]
    %v286 = vstv %s285
    %v287 = vmul.f32 %v163, %v286
    %v288 = vmul.f32 %v164, %v286
    %v291 = vrot.slane %v287, 6
    %v292 = vrot.slane %v291, 4
    %v293 = vrot.slane %v288, 6
    %v294 = vrot.slane %v293, 4
    %v297 = vadd.f32 %v283, %v292
    %v298 = vadd.f32 %v284, %v294
    %s299 = sld [smem:[#allocation4 + $0xb]]
    %v300 = vstv %s299
    %v301 = vmul.f32 %v163, %v300
    %v302 = vmul.f32 %v164, %v300
    %v305 = vrot.slane %v301, 7
    %v306 = vrot.slane %v305, 4
    %v307 = vrot.slane %v302, 7
    %v308 = vrot.slane %v307, 4
    %v311 = vadd.f32 %v297, %v306
    %v312 = vadd.f32 %v298, %v308
    %s313 = sld [smem:[#allocation6 + $0x2]]
    %v314 = vstv %s313
    %v315 = vadd.f32 %v311, %v314
    %v316 = vadd.f32 %v312, %v314
    %s317 = sld [smem:[#allocation4 + $0xc]]
    %v318 = vstv %s317
    %v319 = vmul.f32 %v163, %v318
    %v320 = vmul.f32 %v164, %v318
    %s321 = sld [smem:[#allocation4 + $0xd]]
    %v322 = vstv %s321
    %v323 = vmul.f32 %v163, %v322
    %v324 = vmul.f32 %v164, %v322
    %v327 = vrot.slane %v323, 5
    %v328 = vrot.slane %v327, 4
    %v329 = vrot.slane %v324, 5
    %v330 = vrot.slane %v329, 4
    %v333 = vadd.f32 %v319, %v328
    %v334 = vadd.f32 %v320, %v330
    %s335 = sld [smem:[#allocation4 + $0xe]]
    %v336 = vstv %s335
    %v337 = vmul.f32 %v163, %v336
    %v338 = vmul.f32 %v164, %v336
    %v341 = vrot.slane %v337, 6
    %v342 = vrot.slane %v341, 4
    %v343 = vrot.slane %v338, 6
    %v344 = vrot.slane %v343, 4
    %v347 = vadd.f32 %v333, %v342
    %v348 = vadd.f32 %v334, %v344
    %s349 = sld [smem:[#allocation4 + $0xf]]
    %v350 = vstv %s349
    %v351 = vmul.f32 %v163, %v350
    %v352 = vmul.f32 %v164, %v350
    %v355 = vrot.slane %v351, 7
    %v356 = vrot.slane %v355, 4
    %v357 = vrot.slane %v352, 7
    %v358 = vrot.slane %v357, 4
    %v361 = vadd.f32 %v347, %v356
    %v362 = vadd.f32 %v348, %v358
    %s363 = sld [smem:[#allocation6 + $0x3]]
    %v364 = vstv %s363
    %v365 = vadd.f32 %v361, %v364
    %v366 = vadd.f32 %v362, %v364
    %v369 = vrot.slane %v215, 4
    %v370 = vrot.slane %v216, 4
    %371 = vrot.lane.b32.xlu0 %v215, 112
    %v372 = vpop.permute.xlu0 %371
    %373 = vrot.lane.b32.xlu0 %v216, 112
    %v374 = vpop.permute.xlu0 %373
    %v375 = vrot.slane %v372, 4
    %v376 = vrot.slane %v374, 4
    %377 = vrot.lane.b32.xlu0 %v215, 96
    %v378 = vpop.permute.xlu0 %377
    %379 = vrot.lane.b32.xlu0 %v216, 96
    %v380 = vpop.permute.xlu0 %379
    %v381 = vrot.slane %v378, 4
    %v382 = vrot.slane %v380, 4
    %383 = vrot.lane.b32.xlu0 %v215, 80
    %v384 = vpop.permute.xlu0 %383
    %385 = vrot.lane.b32.xlu0 %v216, 80
    %v386 = vpop.permute.xlu0 %385
    %v387 = vrot.slane %v384, 4
    %v388 = vrot.slane %v386, 4
    %389 = vrot.lane.b32.xlu0 %v215, 64
    %v390 = vpop.permute.xlu0 %389
    %391 = vrot.lane.b32.xlu0 %v216, 64
    %v392 = vpop.permute.xlu0 %391
    %v393 = vrot.slane %v390, 4
    %v394 = vrot.slane %v392, 4
    %395 = vrot.lane.b32.xlu0 %v215, 48
    %v396 = vpop.permute.xlu0 %395
    %397 = vrot.lane.b32.xlu0 %v216, 48
    %v398 = vpop.permute.xlu0 %397
    %v399 = vrot.slane %v396, 4
    %v400 = vrot.slane %v398, 4
    %401 = vrot.lane.b32.xlu0 %v215, 32
    %v402 = vpop.permute.xlu0 %401
    %403 = vrot.lane.b32.xlu0 %v216, 32
    %v404 = vpop.permute.xlu0 %403
    %v405 = vrot.slane %v402, 4
    %v406 = vrot.slane %v404, 4
    %407 = vrot.lane.b32.xlu0 %v215, 16
    %v408 = vpop.permute.xlu0 %407
    %409 = vrot.lane.b32.xlu0 %v216, 16
    %v410 = vpop.permute.xlu0 %409
    %v411 = vrot.slane %v408, 4
    %v412 = vrot.slane %v410, 4
    %v413 = vrot.slane %v216, 7
    %vm414 = vcmask 1041409
    %v415 = vsel %vm414, %v413, %v215
    %vm416 = vcmask 1045509
    %v417 = vsel %vm416, %v413, %v415
    %v418 = vrot.slane %v374, 7
    %v419 = vsel %vm414, %v418, %v372
    %v420 = vsel %vm416, %v418, %v419
    %v421 = vrot.slane %v380, 7
    %v422 = vsel %vm414, %v421, %v378
    %v423 = vsel %vm416, %v421, %v422
    %v424 = vrot.slane %v386, 7
    %v425 = vsel %vm414, %v424, %v384
    %v426 = vsel %vm416, %v424, %v425
    %v427 = vrot.slane %v392, 7
    %v428 = vsel %vm414, %v427, %v390
    %v429 = vsel %vm416, %v427, %v428
    %v430 = vrot.slane %v398, 7
    %v431 = vsel %vm414, %v430, %v396
    %v432 = vsel %vm416, %v430, %v431
    %v433 = vrot.slane %v404, 7
    %v434 = vsel %vm414, %v433, %v402
    %v435 = vsel %vm416, %v433, %v434
    %v436 = vrot.slane %v410, 7
    %v437 = vsel %vm414, %v436, %v408
    %v438 = vsel %vm416, %v436, %v437
    %v439 = vrot.slane %v370, 7
    %v440 = vsel %vm414, %v439, %v369
    %v441 = vsel %vm416, %v439, %v440
    %v442 = vrot.slane %v376, 7
    %v443 = vsel %vm414, %v442, %v375
    %v444 = vsel %vm416, %v442, %v443
    %v445 = vrot.slane %v382, 7
    %v446 = vsel %vm414, %v445, %v381
    %v447 = vsel %vm416, %v445, %v446
    %v448 = vrot.slane %v388, 7
    %v449 = vsel %vm414, %v448, %v387
    %v450 = vsel %vm416, %v448, %v449
    %v451 = vrot.slane %v394, 7
    %v452 = vsel %vm414, %v451, %v393
    %v453 = vsel %vm416, %v451, %v452
    %v454 = vrot.slane %v400, 7
    %v455 = vsel %vm414, %v454, %v399
    %v456 = vsel %vm416, %v454, %v455
    %v457 = vrot.slane %v406, 7
    %v458 = vsel %vm414, %v457, %v405
    %v459 = vsel %vm416, %v457, %v458
    %v460 = vrot.slane %v412, 7
    %v461 = vsel %vm414, %v460, %v411
    %v462 = vsel %vm416, %v460, %v461
    %v479 = vcombine.low %v417, %v423
    %v481 = vunpack.c.l.s4 1983009808
    %v482 = vunpack.c.0.s8 %v481
    %v483 = vlaneseq
    %v484 = vshrl.u32 %v483, 7
    %v485 = vsub.s32 %v482, %v484
    %v486 = vrot.slane %v479, %v485
    %v487 = vcombine.low %v420, %v426
    %v489 = vunpack.c.l.s4 1983009808
    %v490 = vunpack.c.0.s8 %v489
    %v491 = vlaneseq
    %v492 = vshrl.u32 %v491, 7
    %v493 = vsub.s32 %v490, %v492
    %v494 = vrot.slane %v487, %v493
    %v495 = vcombine.low %v486, %v494
    %v497 = vunpack.c.l.s4 1934713408
    %v498 = vunpack.c.0.s8 %v497
    %v499 = vlaneseq
    %v500 = vshrl.u32 %v499, 7
    %v501 = vsub.s32 %v498, %v500
    %v502 = vrot.slane %v495, %v501
    %v503 = vcombine.high %v502, 0.0
    %v504 = vcombine.low %v429, %v435
    %v506 = vunpack.c.l.s4 1983009808
    %v507 = vunpack.c.0.s8 %v506
    %v508 = vlaneseq
    %v509 = vshrl.u32 %v508, 7
    %v510 = vsub.s32 %v507, %v509
    %v511 = vrot.slane %v504, %v510
    %v512 = vcombine.low %v432, %v438
    %v514 = vunpack.c.l.s4 1983009808
    %v515 = vunpack.c.0.s8 %v514
    %v516 = vlaneseq
    %v517 = vshrl.u32 %v516, 7
    %v518 = vsub.s32 %v515, %v517
    %v519 = vrot.slane %v512, %v518
    %v520 = vcombine.low %v511, %v519
    %v522 = vunpack.c.l.s4 1934713408
    %v523 = vunpack.c.0.s8 %v522
    %v524 = vlaneseq
    %v525 = vshrl.u32 %v524, 7
    %v526 = vsub.s32 %v523, %v525
    %v527 = vrot.slane %v520, %v526
    %v528 = vcombine.high %v527, 0.0
    %v529 = vcombine.low %v441, %v447
    %v531 = vunpack.c.l.s4 1983009808
    %v532 = vunpack.c.0.s8 %v531
    %v533 = vlaneseq
    %v534 = vshrl.u32 %v533, 7
    %v535 = vsub.s32 %v532, %v534
    %v536 = vrot.slane %v529, %v535
    %v537 = vcombine.low %v444, %v450
    %v539 = vunpack.c.l.s4 1983009808
    %v540 = vunpack.c.0.s8 %v539
    %v541 = vlaneseq
    %v542 = vshrl.u32 %v541, 7
    %v543 = vsub.s32 %v540, %v542
    %v544 = vrot.slane %v537, %v543
    %v545 = vcombine.low %v536, %v544
    %v547 = vunpack.c.l.s4 1934713408
    %v548 = vunpack.c.0.s8 %v547
    %v549 = vlaneseq
    %v550 = vshrl.u32 %v549, 7
    %v551 = vsub.s32 %v548, %v550
    %v552 = vrot.slane %v545, %v551
    %v553 = vcombine.high %v552, 0.0
    %v554 = vcombine.low %v453, %v459
    %v556 = vunpack.c.l.s4 1983009808
    %v557 = vunpack.c.0.s8 %v556
    %v558 = vlaneseq
    %v559 = vshrl.u32 %v558, 7
    %v560 = vsub.s32 %v557, %v559
    %v561 = vrot.slane %v554, %v560
    %v562 = vcombine.low %v456, %v462
    %v564 = vunpack.c.l.s4 1983009808
    %v565 = vunpack.c.0.s8 %v564
    %v566 = vlaneseq
    %v567 = vshrl.u32 %v566, 7
    %v568 = vsub.s32 %v565, %v567
    %v569 = vrot.slane %v562, %v568
    %v570 = vcombine.low %v561, %v569
    %v572 = vunpack.c.l.s4 1934713408
    %v573 = vunpack.c.0.s8 %v572
    %v574 = vlaneseq
    %v575 = vshrl.u32 %v574, 7
    %v576 = vsub.s32 %v573, %v575
    %v577 = vrot.slane %v570, %v576
    %v578 = vcombine.high %v577, 0.0
    %v581 = vrot.slane %v265, 4
    %v582 = vrot.slane %v266, 4
    %583 = vrot.lane.b32.xlu0 %v265, 112
    %v584 = vpop.permute.xlu0 %583
    %585 = vrot.lane.b32.xlu0 %v266, 112
    %v586 = vpop.permute.xlu0 %585
    %v587 = vrot.slane %v584, 4
    %v588 = vrot.slane %v586, 4
    %589 = vrot.lane.b32.xlu0 %v265, 96
    %v590 = vpop.permute.xlu0 %589
    %591 = vrot.lane.b32.xlu0 %v266, 96
    %v592 = vpop.permute.xlu0 %591
    %v593 = vrot.slane %v590, 4
    %v594 = vrot.slane %v592, 4
    %595 = vrot.lane.b32.xlu0 %v265, 80
    %v596 = vpop.permute.xlu0 %595
    %597 = vrot.lane.b32.xlu0 %v266, 80
    %v598 = vpop.permute.xlu0 %597
    %v599 = vrot.slane %v596, 4
    %v600 = vrot.slane %v598, 4
    %601 = vrot.lane.b32.xlu0 %v265, 64
    %v602 = vpop.permute.xlu0 %601
    %603 = vrot.lane.b32.xlu0 %v266, 64
    %v604 = vpop.permute.xlu0 %603
    %v605 = vrot.slane %v602, 4
    %v606 = vrot.slane %v604, 4
    %607 = vrot.lane.b32.xlu0 %v265, 48
    %v608 = vpop.permute.xlu0 %607
    %609 = vrot.lane.b32.xlu0 %v266, 48
    %v610 = vpop.permute.xlu0 %609
    %v611 = vrot.slane %v608, 4
    %v612 = vrot.slane %v610, 4
    %613 = vrot.lane.b32.xlu0 %v265, 32
    %v614 = vpop.permute.xlu0 %613
    %615 = vrot.lane.b32.xlu0 %v266, 32
    %v616 = vpop.permute.xlu0 %615
    %v617 = vrot.slane %v614, 4
    %v618 = vrot.slane %v616, 4
    %619 = vrot.lane.b32.xlu0 %v265, 16
    %v620 = vpop.permute.xlu0 %619
    %621 = vrot.lane.b32.xlu0 %v266, 16
    %v622 = vpop.permute.xlu0 %621
    %v623 = vrot.slane %v620, 4
    %v624 = vrot.slane %v622, 4
    %v625 = vrot.slane %v266, 7
    %v626 = vsel %vm414, %v625, %v265
    %v627 = vsel %vm416, %v625, %v626
    %v628 = vrot.slane %v586, 7
    %v629 = vsel %vm414, %v628, %v584
    %v630 = vsel %vm416, %v628, %v629
    %v631 = vrot.slane %v592, 7
    %v632 = vsel %vm414, %v631, %v590
    %v633 = vsel %vm416, %v631, %v632
    %v634 = vrot.slane %v598, 7
    %v635 = vsel %vm414, %v634, %v596
    %v636 = vsel %vm416, %v634, %v635
    %v637 = vrot.slane %v604, 7
    %v638 = vsel %vm414, %v637, %v602
    %v639 = vsel %vm416, %v637, %v638
    %v640 = vrot.slane %v610, 7
    %v641 = vsel %vm414, %v640, %v608
    %v642 = vsel %vm416, %v640, %v641
    %v643 = vrot.slane %v616, 7
    %v644 = vsel %vm414, %v643, %v614
    %v645 = vsel %vm416, %v643, %v644
    %v646 = vrot.slane %v622, 7
    %v647 = vsel %vm414, %v646, %v620
    %v648 = vsel %vm416, %v646, %v647
    %v649 = vrot.slane %v582, 7
    %v650 = vsel %vm414, %v649, %v581
    %v651 = vsel %vm416, %v649, %v650
    %v652 = vrot.slane %v588, 7
    %v653 = vsel %vm414, %v652, %v587
    %v654 = vsel %vm416, %v652, %v653
    %v655 = vrot.slane %v594, 7
    %v656 = vsel %vm414, %v655, %v593
    %v657 = vsel %vm416, %v655, %v656
    %v658 = vrot.slane %v600, 7
    %v659 = vsel %vm414, %v658, %v599
    %v660 = vsel %vm416, %v658, %v659
    %v661 = vrot.slane %v606, 7
    %v662 = vsel %vm414, %v661, %v605
    %v663 = vsel %vm416, %v661, %v662
    %v664 = vrot.slane %v612, 7
    %v665 = vsel %vm414, %v664, %v611
    %v666 = vsel %vm416, %v664, %v665
    %v667 = vrot.slane %v618, 7
    %v668 = vsel %vm414, %v667, %v617
    %v669 = vsel %vm416, %v667, %v668
    %v670 = vrot.slane %v624, 7
    %v671 = vsel %vm414, %v670, %v623
    %v672 = vsel %vm416, %v670, %v671
    %v689 = vcombine.low %v627, %v633
    %v691 = vunpack.c.l.s4 1983009808
    %v692 = vunpack.c.0.s8 %v691
    %v693 = vlaneseq
    %v694 = vshrl.u32 %v693, 7
    %v695 = vsub.s32 %v692, %v694
    %v696 = vrot.slane %v689, %v695
    %v697 = vcombine.low %v630, %v636
    %v699 = vunpack.c.l.s4 1983009808
    %v700 = vunpack.c.0.s8 %v699
    %v701 = vlaneseq
    %v702 = vshrl.u32 %v701, 7
    %v703 = vsub.s32 %v700, %v702
    %v704 = vrot.slane %v697, %v703
    %v705 = vcombine.low %v696, %v704
    %v707 = vunpack.c.l.s4 1934713408
    %v708 = vunpack.c.0.s8 %v707
    %v709 = vlaneseq
    %v710 = vshrl.u32 %v709, 7
    %v711 = vsub.s32 %v708, %v710
    %v712 = vrot.slane %v705, %v711
    %v713 = vcombine.high %v712, 0.0
    %v714 = vcombine.low %v639, %v645
    %v716 = vunpack.c.l.s4 1983009808
    %v717 = vunpack.c.0.s8 %v716
    %v718 = vlaneseq
    %v719 = vshrl.u32 %v718, 7
    %v720 = vsub.s32 %v717, %v719
    %v721 = vrot.slane %v714, %v720
    %v722 = vcombine.low %v642, %v648
    %v724 = vunpack.c.l.s4 1983009808
    %v725 = vunpack.c.0.s8 %v724
    %v726 = vlaneseq
    %v727 = vshrl.u32 %v726, 7
    %v728 = vsub.s32 %v725, %v727
    %v729 = vrot.slane %v722, %v728
    %v730 = vcombine.low %v721, %v729
    %v732 = vunpack.c.l.s4 1934713408
    %v733 = vunpack.c.0.s8 %v732
    %v734 = vlaneseq
    %v735 = vshrl.u32 %v734, 7
    %v736 = vsub.s32 %v733, %v735
    %v737 = vrot.slane %v730, %v736
    %v738 = vcombine.high %v737, 0.0
    %v739 = vcombine.low %v651, %v657
    %v741 = vunpack.c.l.s4 1983009808
    %v742 = vunpack.c.0.s8 %v741
    %v743 = vlaneseq
    %v744 = vshrl.u32 %v743, 7
    %v745 = vsub.s32 %v742, %v744
    %v746 = vrot.slane %v739, %v745
    %v747 = vcombine.low %v654, %v660
    %v749 = vunpack.c.l.s4 1983009808
    %v750 = vunpack.c.0.s8 %v749
    %v751 = vlaneseq
    %v752 = vshrl.u32 %v751, 7
    %v753 = vsub.s32 %v750, %v752
    %v754 = vrot.slane %v747, %v753
    %v755 = vcombine.low %v746, %v754
    %v757 = vunpack.c.l.s4 1934713408
    %v758 = vunpack.c.0.s8 %v757
    %v759 = vlaneseq
    %v760 = vshrl.u32 %v759, 7
    %v761 = vsub.s32 %v758, %v760
    %v762 = vrot.slane %v755, %v761
    %v763 = vcombine.high %v762, 0.0
    %v764 = vcombine.low %v663, %v669
    %v766 = vunpack.c.l.s4 1983009808
    %v767 = vunpack.c.0.s8 %v766
    %v768 = vlaneseq
    %v769 = vshrl.u32 %v768, 7
    %v770 = vsub.s32 %v767, %v769
    %v771 = vrot.slane %v764, %v770
    %v772 = vcombine.low %v666, %v672
    %v774 = vunpack.c.l.s4 1983009808
    %v775 = vunpack.c.0.s8 %v774
    %v776 = vlaneseq
    %v777 = vshrl.u32 %v776, 7
    %v778 = vsub.s32 %v775, %v777
    %v779 = vrot.slane %v772, %v778
    %v780 = vcombine.low %v771, %v779
    %v782 = vunpack.c.l.s4 1934713408
    %v783 = vunpack.c.0.s8 %v782
    %v784 = vlaneseq
    %v785 = vshrl.u32 %v784, 7
    %v786 = vsub.s32 %v783, %v785
    %v787 = vrot.slane %v780, %v786
    %v788 = vcombine.high %v787, 0.0
    %v791 = vrot.slane %v315, 4
    %v792 = vrot.slane %v316, 4
    %793 = vrot.lane.b32.xlu0 %v315, 112
    %v794 = vpop.permute.xlu0 %793
    %795 = vrot.lane.b32.xlu0 %v316, 112
    %v796 = vpop.permute.xlu0 %795
    %v797 = vrot.slane %v794, 4
    %v798 = vrot.slane %v796, 4
    %799 = vrot.lane.b32.xlu0 %v315, 96
    %v800 = vpop.permute.xlu0 %799
    %801 = vrot.lane.b32.xlu0 %v316, 96
    %v802 = vpop.permute.xlu0 %801
    %v803 = vrot.slane %v800, 4
    %v804 = vrot.slane %v802, 4
    %805 = vrot.lane.b32.xlu0 %v315, 80
    %v806 = vpop.permute.xlu0 %805
    %807 = vrot.lane.b32.xlu0 %v316, 80
    %v808 = vpop.permute.xlu0 %807
    %v809 = vrot.slane %v806, 4
    %v810 = vrot.slane %v808, 4
    %811 = vrot.lane.b32.xlu0 %v315, 64
    %v812 = vpop.permute.xlu0 %811
    %813 = vrot.lane.b32.xlu0 %v316, 64
    %v814 = vpop.permute.xlu0 %813
    %v815 = vrot.slane %v812, 4
    %v816 = vrot.slane %v814, 4
    %817 = vrot.lane.b32.xlu0 %v315, 48
    %v818 = vpop.permute.xlu0 %817
    %819 = vrot.lane.b32.xlu0 %v316, 48
    %v820 = vpop.permute.xlu0 %819
    %v821 = vrot.slane %v818, 4
    %v822 = vrot.slane %v820, 4
    %823 = vrot.lane.b32.xlu0 %v315, 32
    %v824 = vpop.permute.xlu0 %823
    %825 = vrot.lane.b32.xlu0 %v316, 32
    %v826 = vpop.permute.xlu0 %825
    %v827 = vrot.slane %v824, 4
    %v828 = vrot.slane %v826, 4
    %829 = vrot.lane.b32.xlu0 %v315, 16
    %v830 = vpop.permute.xlu0 %829
    %831 = vrot.lane.b32.xlu0 %v316, 16
    %v832 = vpop.permute.xlu0 %831
    %v833 = vrot.slane %v830, 4
    %v834 = vrot.slane %v832, 4
    %v835 = vrot.slane %v316, 7
    %v836 = vsel %vm414, %v835, %v315
    %v837 = vsel %vm416, %v835, %v836
    %v838 = vrot.slane %v796, 7
    %v839 = vsel %vm414, %v838, %v794
    %v840 = vsel %vm416, %v838, %v839
    %v841 = vrot.slane %v802, 7
    %v842 = vsel %vm414, %v841, %v800
    %v843 = vsel %vm416, %v841, %v842
    %v844 = vrot.slane %v808, 7
    %v845 = vsel %vm414, %v844, %v806
    %v846 = vsel %vm416, %v844, %v845
    %v847 = vrot.slane %v814, 7
    %v848 = vsel %vm414, %v847, %v812
    %v849 = vsel %vm416, %v847, %v848
    %v850 = vrot.slane %v820, 7
    %v851 = vsel %vm414, %v850, %v818
    %v852 = vsel %vm416, %v850, %v851
    %v853 = vrot.slane %v826, 7
    %v854 = vsel %vm414, %v853, %v824
    %v855 = vsel %vm416, %v853, %v854
    %v856 = vrot.slane %v832, 7
    %v857 = vsel %vm414, %v856, %v830
    %v858 = vsel %vm416, %v856, %v857
    %v859 = vrot.slane %v792, 7
    %v860 = vsel %vm414, %v859, %v791
    %v861 = vsel %vm416, %v859, %v860
    %v862 = vrot.slane %v798, 7
    %v863 = vsel %vm414, %v862, %v797
    %v864 = vsel %vm416, %v862, %v863
    %v865 = vrot.slane %v804, 7
    %v866 = vsel %vm414, %v865, %v803
    %v867 = vsel %vm416, %v865, %v866
    %v868 = vrot.slane %v810, 7
    %v869 = vsel %vm414, %v868, %v809
    %v870 = vsel %vm416, %v868, %v869
    %v871 = vrot.slane %v816, 7
    %v872 = vsel %vm414, %v871, %v815
    %v873 = vsel %vm416, %v871, %v872
    %v874 = vrot.slane %v822, 7
    %v875 = vsel %vm414, %v874, %v821
    %v876 = vsel %vm416, %v874, %v875
    %v877 = vrot.slane %v828, 7
    %v878 = vsel %vm414, %v877, %v827
    %v879 = vsel %vm416, %v877, %v878
    %v880 = vrot.slane %v834, 7
    %v881 = vsel %vm414, %v880, %v833
    %v882 = vsel %vm416, %v880, %v881
    %v899 = vcombine.low %v837, %v843
    %v901 = vunpack.c.l.s4 1983009808
    %v902 = vunpack.c.0.s8 %v901
    %v903 = vlaneseq
    %v904 = vshrl.u32 %v903, 7
    %v905 = vsub.s32 %v902, %v904
    %v906 = vrot.slane %v899, %v905
    %v907 = vcombine.low %v840, %v846
    %v909 = vunpack.c.l.s4 1983009808
    %v910 = vunpack.c.0.s8 %v909
    %v911 = vlaneseq
    %v912 = vshrl.u32 %v911, 7
    %v913 = vsub.s32 %v910, %v912
    %v914 = vrot.slane %v907, %v913
    %v915 = vcombine.low %v906, %v914
    %v917 = vunpack.c.l.s4 1934713408
    %v918 = vunpack.c.0.s8 %v917
    %v919 = vlaneseq
    %v920 = vshrl.u32 %v919, 7
    %v921 = vsub.s32 %v918, %v920
    %v922 = vrot.slane %v915, %v921
    %v923 = vcombine.high %v922, 0.0
    %v924 = vcombine.low %v849, %v855
    %v926 = vunpack.c.l.s4 1983009808
    %v927 = vunpack.c.0.s8 %v926
    %v928 = vlaneseq
    %v929 = vshrl.u32 %v928, 7
    %v930 = vsub.s32 %v927, %v929
    %v931 = vrot.slane %v924, %v930
    %v932 = vcombine.low %v852, %v858
    %v934 = vunpack.c.l.s4 1983009808
    %v935 = vunpack.c.0.s8 %v934
    %v936 = vlaneseq
    %v937 = vshrl.u32 %v936, 7
    %v938 = vsub.s32 %v935, %v937
    %v939 = vrot.slane %v932, %v938
    %v940 = vcombine.low %v931, %v939
    %v942 = vunpack.c.l.s4 1934713408
    %v943 = vunpack.c.0.s8 %v942
    %v944 = vlaneseq
    %v945 = vshrl.u32 %v944, 7
    %v946 = vsub.s32 %v943, %v945
    %v947 = vrot.slane %v940, %v946
    %v948 = vcombine.high %v947, 0.0
    %v949 = vcombine.low %v861, %v867
    %v951 = vunpack.c.l.s4 1983009808
    %v952 = vunpack.c.0.s8 %v951
    %v953 = vlaneseq
    %v954 = vshrl.u32 %v953, 7
    %v955 = vsub.s32 %v952, %v954
    %v956 = vrot.slane %v949, %v955
    %v957 = vcombine.low %v864, %v870
    %v959 = vunpack.c.l.s4 1983009808
    %v960 = vunpack.c.0.s8 %v959
    %v961 = vlaneseq
    %v962 = vshrl.u32 %v961, 7
    %v963 = vsub.s32 %v960, %v962
    %v964 = vrot.slane %v957, %v963
    %v965 = vcombine.low %v956, %v964
    %v967 = vunpack.c.l.s4 1934713408
    %v968 = vunpack.c.0.s8 %v967
    %v969 = vlaneseq
    %v970 = vshrl.u32 %v969, 7
    %v971 = vsub.s32 %v968, %v970
    %v972 = vrot.slane %v965, %v971
    %v973 = vcombine.high %v972, 0.0
    %v974 = vcombine.low %v873, %v879
    %v976 = vunpack.c.l.s4 1983009808
    %v977 = vunpack.c.0.s8 %v976
    %v978 = vlaneseq
    %v979 = vshrl.u32 %v978, 7
    %v980 = vsub.s32 %v977, %v979
    %v981 = vrot.slane %v974, %v980
    %v982 = vcombine.low %v876, %v882
    %v984 = vunpack.c.l.s4 1983009808
    %v985 = vunpack.c.0.s8 %v984
    %v986 = vlaneseq
    %v987 = vshrl.u32 %v986, 7
    %v988 = vsub.s32 %v985, %v987
    %v989 = vrot.slane %v982, %v988
    %v990 = vcombine.low %v981, %v989
    %v992 = vunpack.c.l.s4 1934713408
    %v993 = vunpack.c.0.s8 %v992
    %v994 = vlaneseq
    %v995 = vshrl.u32 %v994, 7
    %v996 = vsub.s32 %v993, %v995
    %v997 = vrot.slane %v990, %v996
    %v998 = vcombine.high %v997, 0.0
    %v1001 = vrot.slane %v365, 4
    %v1002 = vrot.slane %v366, 4
    %1003 = vrot.lane.b32.xlu0 %v365, 112
    %v1004 = vpop.permute.xlu0 %1003
    %1005 = vrot.lane.b32.xlu0 %v366, 112
    %v1006 = vpop.permute.xlu0 %1005
    %v1007 = vrot.slane %v1004, 4
    %v1008 = vrot.slane %v1006, 4
    %1009 = vrot.lane.b32.xlu0 %v365, 96
    %v1010 = vpop.permute.xlu0 %1009
    %1011 = vrot.lane.b32.xlu0 %v366, 96
    %v1012 = vpop.permute.xlu0 %1011
    %v1013 = vrot.slane %v1010, 4
    %v1014 = vrot.slane %v1012, 4
    %1015 = vrot.lane.b32.xlu0 %v365, 80
    %v1016 = vpop.permute.xlu0 %1015
    %1017 = vrot.lane.b32.xlu0 %v366, 80
    %v1018 = vpop.permute.xlu0 %1017
    %v1019 = vrot.slane %v1016, 4
    %v1020 = vrot.slane %v1018, 4
    %1021 = vrot.lane.b32.xlu0 %v365, 64
    %v1022 = vpop.permute.xlu0 %1021
    %1023 = vrot.lane.b32.xlu0 %v366, 64
    %v1024 = vpop.permute.xlu0 %1023
    %v1025 = vrot.slane %v1022, 4
    %v1026 = vrot.slane %v1024, 4
    %1027 = vrot.lane.b32.xlu0 %v365, 48
    %v1028 = vpop.permute.xlu0 %1027
    %1029 = vrot.lane.b32.xlu0 %v366, 48
    %v1030 = vpop.permute.xlu0 %1029
    %v1031 = vrot.slane %v1028, 4
    %v1032 = vrot.slane %v1030, 4
    %1033 = vrot.lane.b32.xlu0 %v365, 32
    %v1034 = vpop.permute.xlu0 %1033
    %1035 = vrot.lane.b32.xlu0 %v366, 32
    %v1036 = vpop.permute.xlu0 %1035
    %v1037 = vrot.slane %v1034, 4
    %v1038 = vrot.slane %v1036, 4
    %1039 = vrot.lane.b32.xlu0 %v365, 16
    %v1040 = vpop.permute.xlu0 %1039
    %1041 = vrot.lane.b32.xlu0 %v366, 16
    %v1042 = vpop.permute.xlu0 %1041
    %v1043 = vrot.slane %v1040, 4
    %v1044 = vrot.slane %v1042, 4
    %v1045 = vrot.slane %v366, 7
    %v1046 = vsel %vm414, %v1045, %v365
    %v1047 = vsel %vm416, %v1045, %v1046
    %v1048 = vrot.slane %v1006, 7
    %v1049 = vsel %vm414, %v1048, %v1004
    %v1050 = vsel %vm416, %v1048, %v1049
    %v1051 = vrot.slane %v1012, 7
    %v1052 = vsel %vm414, %v1051, %v1010
    %v1053 = vsel %vm416, %v1051, %v1052
    %v1054 = vrot.slane %v1018, 7
    %v1055 = vsel %vm414, %v1054, %v1016
    %v1056 = vsel %vm416, %v1054, %v1055
    %v1057 = vrot.slane %v1024, 7
    %v1058 = vsel %vm414, %v1057, %v1022
    %v1059 = vsel %vm416, %v1057, %v1058
    %v1060 = vrot.slane %v1030, 7
    %v1061 = vsel %vm414, %v1060, %v1028
    %v1062 = vsel %vm416, %v1060, %v1061
    %v1063 = vrot.slane %v1036, 7
    %v1064 = vsel %vm414, %v1063, %v1034
    %v1065 = vsel %vm416, %v1063, %v1064
    %v1066 = vrot.slane %v1042, 7
    %v1067 = vsel %vm414, %v1066, %v1040
    %v1068 = vsel %vm416, %v1066, %v1067
    %v1069 = vrot.slane %v1002, 7
    %v1070 = vsel %vm414, %v1069, %v1001
    %v1071 = vsel %vm416, %v1069, %v1070
    %v1072 = vrot.slane %v1008, 7
    %v1073 = vsel %vm414, %v1072, %v1007
    %v1074 = vsel %vm416, %v1072, %v1073
    %v1075 = vrot.slane %v1014, 7
    %v1076 = vsel %vm414, %v1075, %v1013
    %v1077 = vsel %vm416, %v1075, %v1076
    %v1078 = vrot.slane %v1020, 7
    %v1079 = vsel %vm414, %v1078, %v1019
    %v1080 = vsel %vm416, %v1078, %v1079
    %v1081 = vrot.slane %v1026, 7
    %v1082 = vsel %vm414, %v1081, %v1025
    %v1083 = vsel %vm416, %v1081, %v1082
    %v1084 = vrot.slane %v1032, 7
    %v1085 = vsel %vm414, %v1084, %v1031
    %v1086 = vsel %vm416, %v1084, %v1085
    %v1087 = vrot.slane %v1038, 7
    %v1088 = vsel %vm414, %v1087, %v1037
    %v1089 = vsel %vm416, %v1087, %v1088
    %v1090 = vrot.slane %v1044, 7
    %v1091 = vsel %vm414, %v1090, %v1043
    %v1092 = vsel %vm416, %v1090, %v1091
    %v1109 = vcombine.low %v1047, %v1053
    %v1111 = vunpack.c.l.s4 1983009808
    %v1112 = vunpack.c.0.s8 %v1111
    %v1113 = vlaneseq
    %v1114 = vshrl.u32 %v1113, 7
    %v1115 = vsub.s32 %v1112, %v1114
    %v1116 = vrot.slane %v1109, %v1115
    %v1117 = vcombine.low %v1050, %v1056
    %v1119 = vunpack.c.l.s4 1983009808
    %v1120 = vunpack.c.0.s8 %v1119
    %v1121 = vlaneseq
    %v1122 = vshrl.u32 %v1121, 7
    %v1123 = vsub.s32 %v1120, %v1122
    %v1124 = vrot.slane %v1117, %v1123
    %v1125 = vcombine.low %v1116, %v1124
    %v1127 = vunpack.c.l.s4 1934713408
    %v1128 = vunpack.c.0.s8 %v1127
    %v1129 = vlaneseq
    %v1130 = vshrl.u32 %v1129, 7
    %v1131 = vsub.s32 %v1128, %v1130
    %v1132 = vrot.slane %v1125, %v1131
    %v1133 = vcombine.high %v1132, 0.0
    %v1134 = vcombine.low %v1059, %v1065
    %v1136 = vunpack.c.l.s4 1983009808
    %v1137 = vunpack.c.0.s8 %v1136
    %v1138 = vlaneseq
    %v1139 = vshrl.u32 %v1138, 7
    %v1140 = vsub.s32 %v1137, %v1139
    %v1141 = vrot.slane %v1134, %v1140
    %v1142 = vcombine.low %v1062, %v1068
    %v1144 = vunpack.c.l.s4 1983009808
    %v1145 = vunpack.c.0.s8 %v1144
    %v1146 = vlaneseq
    %v1147 = vshrl.u32 %v1146, 7
    %v1148 = vsub.s32 %v1145, %v1147
    %v1149 = vrot.slane %v1142, %v1148
    %v1150 = vcombine.low %v1141, %v1149
    %v1152 = vunpack.c.l.s4 1934713408
    %v1153 = vunpack.c.0.s8 %v1152
    %v1154 = vlaneseq
    %v1155 = vshrl.u32 %v1154, 7
    %v1156 = vsub.s32 %v1153, %v1155
    %v1157 = vrot.slane %v1150, %v1156
    %v1158 = vcombine.high %v1157, 0.0
    %v1159 = vcombine.low %v1071, %v1077
    %v1161 = vunpack.c.l.s4 1983009808
    %v1162 = vunpack.c.0.s8 %v1161
    %v1163 = vlaneseq
    %v1164 = vshrl.u32 %v1163, 7
    %v1165 = vsub.s32 %v1162, %v1164
    %v1166 = vrot.slane %v1159, %v1165
    %v1167 = vcombine.low %v1074, %v1080
    %v1169 = vunpack.c.l.s4 1983009808
    %v1170 = vunpack.c.0.s8 %v1169
    %v1171 = vlaneseq
    %v1172 = vshrl.u32 %v1171, 7
    %v1173 = vsub.s32 %v1170, %v1172
    %v1174 = vrot.slane %v1167, %v1173
    %v1175 = vcombine.low %v1166, %v1174
    %v1177 = vunpack.c.l.s4 1934713408
    %v1178 = vunpack.c.0.s8 %v1177
    %v1179 = vlaneseq
    %v1180 = vshrl.u32 %v1179, 7
    %v1181 = vsub.s32 %v1178, %v1180
    %v1182 = vrot.slane %v1175, %v1181
    %v1183 = vcombine.high %v1182, 0.0
    %v1184 = vcombine.low %v1083, %v1089
    %v1186 = vunpack.c.l.s4 1983009808
    %v1187 = vunpack.c.0.s8 %v1186
    %v1188 = vlaneseq
    %v1189 = vshrl.u32 %v1188, 7
    %v1190 = vsub.s32 %v1187, %v1189
    %v1191 = vrot.slane %v1184, %v1190
    %v1192 = vcombine.low %v1086, %v1092
    %v1194 = vunpack.c.l.s4 1983009808
    %v1195 = vunpack.c.0.s8 %v1194
    %v1196 = vlaneseq
    %v1197 = vshrl.u32 %v1196, 7
    %v1198 = vsub.s32 %v1195, %v1197
    %v1199 = vrot.slane %v1192, %v1198
    %v1200 = vcombine.low %v1191, %v1199
    %v1202 = vunpack.c.l.s4 1934713408
    %v1203 = vunpack.c.0.s8 %v1202
    %v1204 = vlaneseq
    %v1205 = vshrl.u32 %v1204, 7
    %v1206 = vsub.s32 %v1203, %v1205
    %v1207 = vrot.slane %v1200, %v1206
    %v1208 = vcombine.high %v1207, 0.0
    %s1209 = sld [smem:[#allocation8]]
    %v1210 = vstv %s1209
    %v1211 = vmul.f32 %v165, %v1210
    %v1212 = vmul.f32 %v166, %v1210
    %s1213 = sld [smem:[#allocation8 + $0x1]]
    %v1214 = vstv %s1213
    %v1215 = vmul.f32 %v165, %v1214
    %v1216 = vmul.f32 %v166, %v1214
    %v1219 = vrot.slane %v1215, 5
    %v1220 = vrot.slane %v1219, 4
    %v1221 = vrot.slane %v1216, 5
    %v1222 = vrot.slane %v1221, 4
    %v1225 = vadd.f32 %v1211, %v1220
    %v1226 = vadd.f32 %v1212, %v1222
    %s1227 = sld [smem:[#allocation8 + $0x2]]
    %v1228 = vstv %s1227
    %v1229 = vmul.f32 %v165, %v1228
    %v1230 = vmul.f32 %v166, %v1228
    %v1233 = vrot.slane %v1229, 6
    %v1234 = vrot.slane %v1233, 4
    %v1235 = vrot.slane %v1230, 6
    %v1236 = vrot.slane %v1235, 4
    %v1239 = vadd.f32 %v1225, %v1234
    %v1240 = vadd.f32 %v1226, %v1236
    %s1241 = sld [smem:[#allocation8 + $0x3]]
    %v1242 = vstv %s1241
    %v1243 = vmul.f32 %v165, %v1242
    %v1244 = vmul.f32 %v166, %v1242
    %v1247 = vrot.slane %v1243, 7
    %v1248 = vrot.slane %v1247, 4
    %v1249 = vrot.slane %v1244, 7
    %v1250 = vrot.slane %v1249, 4
    %v1253 = vadd.f32 %v1239, %v1248
    %v1254 = vadd.f32 %v1240, %v1250
    %s1255 = sld [smem:[#allocation9]]
    %v1256 = vstv %s1255
    %v1257 = vadd.f32 %v1253, %v1256
    %v1258 = vadd.f32 %v1254, %v1256
    %s1259 = sld [smem:[#allocation8 + $0x4]]
    %v1260 = vstv %s1259
    %v1261 = vmul.f32 %v165, %v1260
    %v1262 = vmul.f32 %v166, %v1260
    %s1263 = sld [smem:[#allocation8 + $0x5]]
    %v1264 = vstv %s1263
    %v1265 = vmul.f32 %v165, %v1264
    %v1266 = vmul.f32 %v166, %v1264
    %v1269 = vrot.slane %v1265, 5
    %v1270 = vrot.slane %v1269, 4
    %v1271 = vrot.slane %v1266, 5
    %v1272 = vrot.slane %v1271, 4
    %v1275 = vadd.f32 %v1261, %v1270
    %v1276 = vadd.f32 %v1262, %v1272
    %s1277 = sld [smem:[#allocation8 + $0x6]]
    %v1278 = vstv %s1277
    %v1279 = vmul.f32 %v165, %v1278
    %v1280 = vmul.f32 %v166, %v1278
    %v1283 = vrot.slane %v1279, 6
    %v1284 = vrot.slane %v1283, 4
    %v1285 = vrot.slane %v1280, 6
    %v1286 = vrot.slane %v1285, 4
    %v1289 = vadd.f32 %v1275, %v1284
    %v1290 = vadd.f32 %v1276, %v1286
    %s1291 = sld [smem:[#allocation8 + $0x7]]
    %v1292 = vstv %s1291
    %v1293 = vmul.f32 %v165, %v1292
    %v1294 = vmul.f32 %v166, %v1292
    %v1297 = vrot.slane %v1293, 7
    %v1298 = vrot.slane %v1297, 4
    %v1299 = vrot.slane %v1294, 7
    %v1300 = vrot.slane %v1299, 4
    %v1303 = vadd.f32 %v1289, %v1298
    %v1304 = vadd.f32 %v1290, %v1300
    %s1305 = sld [smem:[#allocation9 + $0x1]]
    %v1306 = vstv %s1305
    %v1307 = vadd.f32 %v1303, %v1306
    %v1308 = vadd.f32 %v1304, %v1306
    %s1309 = sld [smem:[#allocation8 + $0x8]]
    %v1310 = vstv %s1309
    %v1311 = vmul.f32 %v165, %v1310
    %v1312 = vmul.f32 %v166, %v1310
    %s1313 = sld [smem:[#allocation8 + $0x9]]
    %v1314 = vstv %s1313
    %v1315 = vmul.f32 %v165, %v1314
    %v1316 = vmul.f32 %v166, %v1314
    %v1319 = vrot.slane %v1315, 5
    %v1320 = vrot.slane %v1319, 4
    %v1321 = vrot.slane %v1316, 5
    %v1322 = vrot.slane %v1321, 4
    %v1325 = vadd.f32 %v1311, %v1320
    %v1326 = vadd.f32 %v1312, %v1322
    %s1327 = sld [smem:[#allocation8 + $0xa]]
    %v1328 = vstv %s1327
    %v1329 = vmul.f32 %v165, %v1328
    %v1330 = vmul.f32 %v166, %v1328
    %v1333 = vrot.slane %v1329, 6
    %v1334 = vrot.slane %v1333, 4
    %v1335 = vrot.slane %v1330, 6
    %v1336 = vrot.slane %v1335, 4
    %v1339 = vadd.f32 %v1325, %v1334
    %v1340 = vadd.f32 %v1326, %v1336
    %s1341 = sld [smem:[#allocation8 + $0xb]]
    %v1342 = vstv %s1341
    %v1343 = vmul.f32 %v165, %v1342
    %v1344 = vmul.f32 %v166, %v1342
    %v1347 = vrot.slane %v1343, 7
    %v1348 = vrot.slane %v1347, 4
    %v1349 = vrot.slane %v1344, 7
    %v1350 = vrot.slane %v1349, 4
    %v1353 = vadd.f32 %v1339, %v1348
    %v1354 = vadd.f32 %v1340, %v1350
    %s1355 = sld [smem:[#allocation9 + $0x2]]
    %v1356 = vstv %s1355
    %v1357 = vadd.f32 %v1353, %v1356
    %v1358 = vadd.f32 %v1354, %v1356
    %s1359 = sld [smem:[#allocation8 + $0xc]]
    %v1360 = vstv %s1359
    %v1361 = vmul.f32 %v165, %v1360
    %v1362 = vmul.f32 %v166, %v1360
    %s1363 = sld [smem:[#allocation8 + $0xd]]
    %v1364 = vstv %s1363
    %v1365 = vmul.f32 %v165, %v1364
    %v1366 = vmul.f32 %v166, %v1364
    %v1369 = vrot.slane %v1365, 5
    %v1370 = vrot.slane %v1369, 4
    %v1371 = vrot.slane %v1366, 5
    %v1372 = vrot.slane %v1371, 4
    %v1375 = vadd.f32 %v1361, %v1370
    %v1376 = vadd.f32 %v1362, %v1372
    %s1377 = sld [smem:[#allocation8 + $0xe]]
    %v1378 = vstv %s1377
    %v1379 = vmul.f32 %v165, %v1378
    %v1380 = vmul.f32 %v166, %v1378
    %v1383 = vrot.slane %v1379, 6
    %v1384 = vrot.slane %v1383, 4
    %v1385 = vrot.slane %v1380, 6
    %v1386 = vrot.slane %v1385, 4
    %v1389 = vadd.f32 %v1375, %v1384
    %v1390 = vadd.f32 %v1376, %v1386
    %s1391 = sld [smem:[#allocation8 + $0xf]]
    %v1392 = vstv %s1391
    %v1393 = vmul.f32 %v165, %v1392
    %v1394 = vmul.f32 %v166, %v1392
    %v1397 = vrot.slane %v1393, 7
    %v1398 = vrot.slane %v1397, 4
    %v1399 = vrot.slane %v1394, 7
    %v1400 = vrot.slane %v1399, 4
    %v1403 = vadd.f32 %v1389, %v1398
    %v1404 = vadd.f32 %v1390, %v1400
    %s1405 = sld [smem:[#allocation9 + $0x3]]
    %v1406 = vstv %s1405
    %v1407 = vadd.f32 %v1403, %v1406
    %v1408 = vadd.f32 %v1404, %v1406
    %v1411 = vrot.slane %v1257, 4
    %v1412 = vrot.slane %v1258, 4
    %1413 = vrot.lane.b32.xlu0 %v1257, 112
    %v1414 = vpop.permute.xlu0 %1413
    %1415 = vrot.lane.b32.xlu0 %v1258, 112
    %v1416 = vpop.permute.xlu0 %1415
    %v1417 = vrot.slane %v1414, 4
    %v1418 = vrot.slane %v1416, 4
    %1419 = vrot.lane.b32.xlu0 %v1257, 96
    %v1420 = vpop.permute.xlu0 %1419
    %1421 = vrot.lane.b32.xlu0 %v1258, 96
    %v1422 = vpop.permute.xlu0 %1421
    %v1423 = vrot.slane %v1420, 4
    %v1424 = vrot.slane %v1422, 4
    %1425 = vrot.lane.b32.xlu0 %v1257, 80
    %v1426 = vpop.permute.xlu0 %1425
    %1427 = vrot.lane.b32.xlu0 %v1258, 80
    %v1428 = vpop.permute.xlu0 %1427
    %v1429 = vrot.slane %v1426, 4
    %v1430 = vrot.slane %v1428, 4
    %1431 = vrot.lane.b32.xlu0 %v1257, 64
    %v1432 = vpop.permute.xlu0 %1431
    %1433 = vrot.lane.b32.xlu0 %v1258, 64
    %v1434 = vpop.permute.xlu0 %1433
    %v1435 = vrot.slane %v1432, 4
    %v1436 = vrot.slane %v1434, 4
    %1437 = vrot.lane.b32.xlu0 %v1257, 48
    %v1438 = vpop.permute.xlu0 %1437
    %1439 = vrot.lane.b32.xlu0 %v1258, 48
    %v1440 = vpop.permute.xlu0 %1439
    %v1441 = vrot.slane %v1438, 4
    %v1442 = vrot.slane %v1440, 4
    %1443 = vrot.lane.b32.xlu0 %v1257, 32
    %v1444 = vpop.permute.xlu0 %1443
    %1445 = vrot.lane.b32.xlu0 %v1258, 32
    %v1446 = vpop.permute.xlu0 %1445
    %v1447 = vrot.slane %v1444, 4
    %v1448 = vrot.slane %v1446, 4
    %1449 = vrot.lane.b32.xlu0 %v1257, 16
    %v1450 = vpop.permute.xlu0 %1449
    %1451 = vrot.lane.b32.xlu0 %v1258, 16
    %v1452 = vpop.permute.xlu0 %1451
    %v1453 = vrot.slane %v1450, 4
    %v1454 = vrot.slane %v1452, 4
    %v1455 = vrot.slane %v1258, 7
    %v1456 = vsel %vm414, %v1455, %v1257
    %v1457 = vsel %vm416, %v1455, %v1456
    %v1458 = vrot.slane %v1416, 7
    %v1459 = vsel %vm414, %v1458, %v1414
    %v1460 = vsel %vm416, %v1458, %v1459
    %v1461 = vrot.slane %v1422, 7
    %v1462 = vsel %vm414, %v1461, %v1420
    %v1463 = vsel %vm416, %v1461, %v1462
    %v1464 = vrot.slane %v1428, 7
    %v1465 = vsel %vm414, %v1464, %v1426
    %v1466 = vsel %vm416, %v1464, %v1465
    %v1467 = vrot.slane %v1434, 7
    %v1468 = vsel %vm414, %v1467, %v1432
    %v1469 = vsel %vm416, %v1467, %v1468
    %v1470 = vrot.slane %v1440, 7
    %v1471 = vsel %vm414, %v1470, %v1438
    %v1472 = vsel %vm416, %v1470, %v1471
    %v1473 = vrot.slane %v1446, 7
    %v1474 = vsel %vm414, %v1473, %v1444
    %v1475 = vsel %vm416, %v1473, %v1474
    %v1476 = vrot.slane %v1452, 7
    %v1477 = vsel %vm414, %v1476, %v1450
    %v1478 = vsel %vm416, %v1476, %v1477
    %v1479 = vrot.slane %v1412, 7
    %v1480 = vsel %vm414, %v1479, %v1411
    %v1481 = vsel %vm416, %v1479, %v1480
    %v1482 = vrot.slane %v1418, 7
    %v1483 = vsel %vm414, %v1482, %v1417
    %v1484 = vsel %vm416, %v1482, %v1483
    %v1485 = vrot.slane %v1424, 7
    %v1486 = vsel %vm414, %v1485, %v1423
    %v1487 = vsel %vm416, %v1485, %v1486
    %v1488 = vrot.slane %v1430, 7
    %v1489 = vsel %vm414, %v1488, %v1429
    %v1490 = vsel %vm416, %v1488, %v1489
    %v1491 = vrot.slane %v1436, 7
    %v1492 = vsel %vm414, %v1491, %v1435
    %v1493 = vsel %vm416, %v1491, %v1492
    %v1494 = vrot.slane %v1442, 7
    %v1495 = vsel %vm414, %v1494, %v1441
    %v1496 = vsel %vm416, %v1494, %v1495
    %v1497 = vrot.slane %v1448, 7
    %v1498 = vsel %vm414, %v1497, %v1447
    %v1499 = vsel %vm416, %v1497, %v1498
    %v1500 = vrot.slane %v1454, 7
    %v1501 = vsel %vm414, %v1500, %v1453
    %v1502 = vsel %vm416, %v1500, %v1501
    %v1519 = vcombine.low %v1457, %v1463
    %v1521 = vunpack.c.l.s4 1983009808
    %v1522 = vunpack.c.0.s8 %v1521
    %v1523 = vlaneseq
    %v1524 = vshrl.u32 %v1523, 7
    %v1525 = vsub.s32 %v1522, %v1524
    %v1526 = vrot.slane %v1519, %v1525
    %v1527 = vcombine.low %v1460, %v1466
    %v1529 = vunpack.c.l.s4 1983009808
    %v1530 = vunpack.c.0.s8 %v1529
    %v1531 = vlaneseq
    %v1532 = vshrl.u32 %v1531, 7
    %v1533 = vsub.s32 %v1530, %v1532
    %v1534 = vrot.slane %v1527, %v1533
    %v1535 = vcombine.low %v1526, %v1534
    %v1537 = vunpack.c.l.s4 1934713408
    %v1538 = vunpack.c.0.s8 %v1537
    %v1539 = vlaneseq
    %v1540 = vshrl.u32 %v1539, 7
    %v1541 = vsub.s32 %v1538, %v1540
    %v1542 = vrot.slane %v1535, %v1541
    %v1543 = vcombine.high %v1542, 0.0
    %v1544 = vcombine.low %v1469, %v1475
    %v1546 = vunpack.c.l.s4 1983009808
    %v1547 = vunpack.c.0.s8 %v1546
    %v1548 = vlaneseq
    %v1549 = vshrl.u32 %v1548, 7
    %v1550 = vsub.s32 %v1547, %v1549
    %v1551 = vrot.slane %v1544, %v1550
    %v1552 = vcombine.low %v1472, %v1478
    %v1554 = vunpack.c.l.s4 1983009808
    %v1555 = vunpack.c.0.s8 %v1554
    %v1556 = vlaneseq
    %v1557 = vshrl.u32 %v1556, 7
    %v1558 = vsub.s32 %v1555, %v1557
    %v1559 = vrot.slane %v1552, %v1558
    %v1560 = vcombine.low %v1551, %v1559
    %v1562 = vunpack.c.l.s4 1934713408
    %v1563 = vunpack.c.0.s8 %v1562
    %v1564 = vlaneseq
    %v1565 = vshrl.u32 %v1564, 7
    %v1566 = vsub.s32 %v1563, %v1565
    %v1567 = vrot.slane %v1560, %v1566
    %v1568 = vcombine.high %v1567, 0.0
    %v1569 = vcombine.low %v1481, %v1487
    %v1571 = vunpack.c.l.s4 1983009808
    %v1572 = vunpack.c.0.s8 %v1571
    %v1573 = vlaneseq
    %v1574 = vshrl.u32 %v1573, 7
    %v1575 = vsub.s32 %v1572, %v1574
    %v1576 = vrot.slane %v1569, %v1575
    %v1577 = vcombine.low %v1484, %v1490
    %v1579 = vunpack.c.l.s4 1983009808
    %v1580 = vunpack.c.0.s8 %v1579
    %v1581 = vlaneseq
    %v1582 = vshrl.u32 %v1581, 7
    %v1583 = vsub.s32 %v1580, %v1582
    %v1584 = vrot.slane %v1577, %v1583
    %v1585 = vcombine.low %v1576, %v1584
    %v1587 = vunpack.c.l.s4 1934713408
    %v1588 = vunpack.c.0.s8 %v1587
    %v1589 = vlaneseq
    %v1590 = vshrl.u32 %v1589, 7
    %v1591 = vsub.s32 %v1588, %v1590
    %v1592 = vrot.slane %v1585, %v1591
    %v1593 = vcombine.high %v1592, 0.0
    %v1594 = vcombine.low %v1493, %v1499
    %v1596 = vunpack.c.l.s4 1983009808
    %v1597 = vunpack.c.0.s8 %v1596
    %v1598 = vlaneseq
    %v1599 = vshrl.u32 %v1598, 7
    %v1600 = vsub.s32 %v1597, %v1599
    %v1601 = vrot.slane %v1594, %v1600
    %v1602 = vcombine.low %v1496, %v1502
    %v1604 = vunpack.c.l.s4 1983009808
    %v1605 = vunpack.c.0.s8 %v1604
    %v1606 = vlaneseq
    %v1607 = vshrl.u32 %v1606, 7
    %v1608 = vsub.s32 %v1605, %v1607
    %v1609 = vrot.slane %v1602, %v1608
    %v1610 = vcombine.low %v1601, %v1609
    %v1612 = vunpack.c.l.s4 1934713408
    %v1613 = vunpack.c.0.s8 %v1612
    %v1614 = vlaneseq
    %v1615 = vshrl.u32 %v1614, 7
    %v1616 = vsub.s32 %v1613, %v1615
    %v1617 = vrot.slane %v1610, %v1616
    %v1618 = vcombine.high %v1617, 0.0
    %v1621 = vrot.slane %v1307, 4
    %v1622 = vrot.slane %v1308, 4
    %1623 = vrot.lane.b32.xlu0 %v1307, 112
    %v1624 = vpop.permute.xlu0 %1623
    %1625 = vrot.lane.b32.xlu0 %v1308, 112
    %v1626 = vpop.permute.xlu0 %1625
    %v1627 = vrot.slane %v1624, 4
    %v1628 = vrot.slane %v1626, 4
    %1629 = vrot.lane.b32.xlu0 %v1307, 96
    %v1630 = vpop.permute.xlu0 %1629
    %1631 = vrot.lane.b32.xlu0 %v1308, 96
    %v1632 = vpop.permute.xlu0 %1631
    %v1633 = vrot.slane %v1630, 4
    %v1634 = vrot.slane %v1632, 4
    %1635 = vrot.lane.b32.xlu0 %v1307, 80
    %v1636 = vpop.permute.xlu0 %1635
    %1637 = vrot.lane.b32.xlu0 %v1308, 80
    %v1638 = vpop.permute.xlu0 %1637
    %v1639 = vrot.slane %v1636, 4
    %v1640 = vrot.slane %v1638, 4
    %1641 = vrot.lane.b32.xlu0 %v1307, 64
    %v1642 = vpop.permute.xlu0 %1641
    %1643 = vrot.lane.b32.xlu0 %v1308, 64
    %v1644 = vpop.permute.xlu0 %1643
    %v1645 = vrot.slane %v1642, 4
    %v1646 = vrot.slane %v1644, 4
    %1647 = vrot.lane.b32.xlu0 %v1307, 48
    %v1648 = vpop.permute.xlu0 %1647
    %1649 = vrot.lane.b32.xlu0 %v1308, 48
    %v1650 = vpop.permute.xlu0 %1649
    %v1651 = vrot.slane %v1648, 4
    %v1652 = vrot.slane %v1650, 4
    %1653 = vrot.lane.b32.xlu0 %v1307, 32
    %v1654 = vpop.permute.xlu0 %1653
    %1655 = vrot.lane.b32.xlu0 %v1308, 32
    %v1656 = vpop.permute.xlu0 %1655
    %v1657 = vrot.slane %v1654, 4
    %v1658 = vrot.slane %v1656, 4
    %1659 = vrot.lane.b32.xlu0 %v1307, 16
    %v1660 = vpop.permute.xlu0 %1659
    %1661 = vrot.lane.b32.xlu0 %v1308, 16
    %v1662 = vpop.permute.xlu0 %1661
    %v1663 = vrot.slane %v1660, 4
    %v1664 = vrot.slane %v1662, 4
    %v1665 = vrot.slane %v1308, 7
    %v1666 = vsel %vm414, %v1665, %v1307
    %v1667 = vsel %vm416, %v1665, %v1666
    %v1668 = vrot.slane %v1626, 7
    %v1669 = vsel %vm414, %v1668, %v1624
    %v1670 = vsel %vm416, %v1668, %v1669
    %v1671 = vrot.slane %v1632, 7
    %v1672 = vsel %vm414, %v1671, %v1630
    %v1673 = vsel %vm416, %v1671, %v1672
    %v1674 = vrot.slane %v1638, 7
    %v1675 = vsel %vm414, %v1674, %v1636
    %v1676 = vsel %vm416, %v1674, %v1675
    %v1677 = vrot.slane %v1644, 7
    %v1678 = vsel %vm414, %v1677, %v1642
    %v1679 = vsel %vm416, %v1677, %v1678
    %v1680 = vrot.slane %v1650, 7
    %v1681 = vsel %vm414, %v1680, %v1648
    %v1682 = vsel %vm416, %v1680, %v1681
    %v1683 = vrot.slane %v1656, 7
    %v1684 = vsel %vm414, %v1683, %v1654
    %v1685 = vsel %vm416, %v1683, %v1684
    %v1686 = vrot.slane %v1662, 7
    %v1687 = vsel %vm414, %v1686, %v1660
    %v1688 = vsel %vm416, %v1686, %v1687
    %v1689 = vrot.slane %v1622, 7
    %v1690 = vsel %vm414, %v1689, %v1621
    %v1691 = vsel %vm416, %v1689, %v1690
    %v1692 = vrot.slane %v1628, 7
    %v1693 = vsel %vm414, %v1692, %v1627
    %v1694 = vsel %vm416, %v1692, %v1693
    %v1695 = vrot.slane %v1634, 7
    %v1696 = vsel %vm414, %v1695, %v1633
    %v1697 = vsel %vm416, %v1695, %v1696
    %v1698 = vrot.slane %v1640, 7
    %v1699 = vsel %vm414, %v1698, %v1639
    %v1700 = vsel %vm416, %v1698, %v1699
    %v1701 = vrot.slane %v1646, 7
    %v1702 = vsel %vm414, %v1701, %v1645
    %v1703 = vsel %vm416, %v1701, %v1702
    %v1704 = vrot.slane %v1652, 7
    %v1705 = vsel %vm414, %v1704, %v1651
    %v1706 = vsel %vm416, %v1704, %v1705
    %v1707 = vrot.slane %v1658, 7
    %v1708 = vsel %vm414, %v1707, %v1657
    %v1709 = vsel %vm416, %v1707, %v1708
    %v1710 = vrot.slane %v1664, 7
    %v1711 = vsel %vm414, %v1710, %v1663
    %v1712 = vsel %vm416, %v1710, %v1711
    %v1729 = vcombine.low %v1667, %v1673
    %v1731 = vunpack.c.l.s4 1983009808
    %v1732 = vunpack.c.0.s8 %v1731
    %v1733 = vlaneseq
    %v1734 = vshrl.u32 %v1733, 7
    %v1735 = vsub.s32 %v1732, %v1734
    %v1736 = vrot.slane %v1729, %v1735
    %v1737 = vcombine.low %v1670, %v1676
    %v1739 = vunpack.c.l.s4 1983009808
    %v1740 = vunpack.c.0.s8 %v1739
    %v1741 = vlaneseq
    %v1742 = vshrl.u32 %v1741, 7
    %v1743 = vsub.s32 %v1740, %v1742
    %v1744 = vrot.slane %v1737, %v1743
    %v1745 = vcombine.low %v1736, %v1744
    %v1747 = vunpack.c.l.s4 1934713408
    %v1748 = vunpack.c.0.s8 %v1747
    %v1749 = vlaneseq
    %v1750 = vshrl.u32 %v1749, 7
    %v1751 = vsub.s32 %v1748, %v1750
    %v1752 = vrot.slane %v1745, %v1751
    %v1753 = vcombine.high %v1752, 0.0
    %v1754 = vcombine.low %v1679, %v1685
    %v1756 = vunpack.c.l.s4 1983009808
    %v1757 = vunpack.c.0.s8 %v1756
    %v1758 = vlaneseq
    %v1759 = vshrl.u32 %v1758, 7
    %v1760 = vsub.s32 %v1757, %v1759
    %v1761 = vrot.slane %v1754, %v1760
    %v1762 = vcombine.low %v1682, %v1688
    %v1764 = vunpack.c.l.s4 1983009808
    %v1765 = vunpack.c.0.s8 %v1764
    %v1766 = vlaneseq
    %v1767 = vshrl.u32 %v1766, 7
    %v1768 = vsub.s32 %v1765, %v1767
    %v1769 = vrot.slane %v1762, %v1768
    %v1770 = vcombine.low %v1761, %v1769
    %v1772 = vunpack.c.l.s4 1934713408
    %v1773 = vunpack.c.0.s8 %v1772
    %v1774 = vlaneseq
    %v1775 = vshrl.u32 %v1774, 7
    %v1776 = vsub.s32 %v1773, %v1775
    %v1777 = vrot.slane %v1770, %v1776
    %v1778 = vcombine.high %v1777, 0.0
    %v1779 = vcombine.low %v1691, %v1697
    %v1781 = vunpack.c.l.s4 1983009808
    %v1782 = vunpack.c.0.s8 %v1781
    %v1783 = vlaneseq
    %v1784 = vshrl.u32 %v1783, 7
    %v1785 = vsub.s32 %v1782, %v1784
    %v1786 = vrot.slane %v1779, %v1785
    %v1787 = vcombine.low %v1694, %v1700
    %v1789 = vunpack.c.l.s4 1983009808
    %v1790 = vunpack.c.0.s8 %v1789
    %v1791 = vlaneseq
    %v1792 = vshrl.u32 %v1791, 7
    %v1793 = vsub.s32 %v1790, %v1792
    %v1794 = vrot.slane %v1787, %v1793
    %v1795 = vcombine.low %v1786, %v1794
    %v1797 = vunpack.c.l.s4 1934713408
    %v1798 = vunpack.c.0.s8 %v1797
    %v1799 = vlaneseq
    %v1800 = vshrl.u32 %v1799, 7
    %v1801 = vsub.s32 %v1798, %v1800
    %v1802 = vrot.slane %v1795, %v1801
    %v1803 = vcombine.high %v1802, 0.0
    %v1804 = vcombine.low %v1703, %v1709
    %v1806 = vunpack.c.l.s4 1983009808
    %v1807 = vunpack.c.0.s8 %v1806
    %v1808 = vlaneseq
    %v1809 = vshrl.u32 %v1808, 7
    %v1810 = vsub.s32 %v1807, %v1809
    %v1811 = vrot.slane %v1804, %v1810
    %v1812 = vcombine.low %v1706, %v1712
    %v1814 = vunpack.c.l.s4 1983009808
    %v1815 = vunpack.c.0.s8 %v1814
    %v1816 = vlaneseq
    %v1817 = vshrl.u32 %v1816, 7
    %v1818 = vsub.s32 %v1815, %v1817
    %v1819 = vrot.slane %v1812, %v1818
    %v1820 = vcombine.low %v1811, %v1819
    %v1822 = vunpack.c.l.s4 1934713408
    %v1823 = vunpack.c.0.s8 %v1822
    %v1824 = vlaneseq
    %v1825 = vshrl.u32 %v1824, 7
    %v1826 = vsub.s32 %v1823, %v1825
    %v1827 = vrot.slane %v1820, %v1826
    %v1828 = vcombine.high %v1827, 0.0
    %v1831 = vrot.slane %v1357, 4
    %v1832 = vrot.slane %v1358, 4
    %1833 = vrot.lane.b32.xlu0 %v1357, 112
    %v1834 = vpop.permute.xlu0 %1833
    %1835 = vrot.lane.b32.xlu0 %v1358, 112
    %v1836 = vpop.permute.xlu0 %1835
    %v1837 = vrot.slane %v1834, 4
    %v1838 = vrot.slane %v1836, 4
    %1839 = vrot.lane.b32.xlu0 %v1357, 96
    %v1840 = vpop.permute.xlu0 %1839
    %1841 = vrot.lane.b32.xlu0 %v1358, 96
    %v1842 = vpop.permute.xlu0 %1841
    %v1843 = vrot.slane %v1840, 4
    %v1844 = vrot.slane %v1842, 4
    %1845 = vrot.lane.b32.xlu0 %v1357, 80
    %v1846 = vpop.permute.xlu0 %1845
    %1847 = vrot.lane.b32.xlu0 %v1358, 80
    %v1848 = vpop.permute.xlu0 %1847
    %v1849 = vrot.slane %v1846, 4
    %v1850 = vrot.slane %v1848, 4
    %1851 = vrot.lane.b32.xlu0 %v1357, 64
    %v1852 = vpop.permute.xlu0 %1851
    %1853 = vrot.lane.b32.xlu0 %v1358, 64
    %v1854 = vpop.permute.xlu0 %1853
    %v1855 = vrot.slane %v1852, 4
    %v1856 = vrot.slane %v1854, 4
    %1857 = vrot.lane.b32.xlu0 %v1357, 48
    %v1858 = vpop.permute.xlu0 %1857
    %1859 = vrot.lane.b32.xlu0 %v1358, 48
    %v1860 = vpop.permute.xlu0 %1859
    %v1861 = vrot.slane %v1858, 4
    %v1862 = vrot.slane %v1860, 4
    %1863 = vrot.lane.b32.xlu0 %v1357, 32
    %v1864 = vpop.permute.xlu0 %1863
    %1865 = vrot.lane.b32.xlu0 %v1358, 32
    %v1866 = vpop.permute.xlu0 %1865
    %v1867 = vrot.slane %v1864, 4
    %v1868 = vrot.slane %v1866, 4
    %1869 = vrot.lane.b32.xlu0 %v1357, 16
    %v1870 = vpop.permute.xlu0 %1869
    %1871 = vrot.lane.b32.xlu0 %v1358, 16
    %v1872 = vpop.permute.xlu0 %1871
    %v1873 = vrot.slane %v1870, 4
    %v1874 = vrot.slane %v1872, 4
    %v1875 = vrot.slane %v1358, 7
    %v1876 = vsel %vm414, %v1875, %v1357
    %v1877 = vsel %vm416, %v1875, %v1876
    %v1878 = vrot.slane %v1836, 7
    %v1879 = vsel %vm414, %v1878, %v1834
    %v1880 = vsel %vm416, %v1878, %v1879
    %v1881 = vrot.slane %v1842, 7
    %v1882 = vsel %vm414, %v1881, %v1840
    %v1883 = vsel %vm416, %v1881, %v1882
    %v1884 = vrot.slane %v1848, 7
    %v1885 = vsel %vm414, %v1884, %v1846
    %v1886 = vsel %vm416, %v1884, %v1885
    %v1887 = vrot.slane %v1854, 7
    %v1888 = vsel %vm414, %v1887, %v1852
    %v1889 = vsel %vm416, %v1887, %v1888
    %v1890 = vrot.slane %v1860, 7
    %v1891 = vsel %vm414, %v1890, %v1858
    %v1892 = vsel %vm416, %v1890, %v1891
    %v1893 = vrot.slane %v1866, 7
    %v1894 = vsel %vm414, %v1893, %v1864
    %v1895 = vsel %vm416, %v1893, %v1894
    %v1896 = vrot.slane %v1872, 7
    %v1897 = vsel %vm414, %v1896, %v1870
    %v1898 = vsel %vm416, %v1896, %v1897
    %v1899 = vrot.slane %v1832, 7
    %v1900 = vsel %vm414, %v1899, %v1831
    %v1901 = vsel %vm416, %v1899, %v1900
    %v1902 = vrot.slane %v1838, 7
    %v1903 = vsel %vm414, %v1902, %v1837
    %v1904 = vsel %vm416, %v1902, %v1903
    %v1905 = vrot.slane %v1844, 7
    %v1906 = vsel %vm414, %v1905, %v1843
    %v1907 = vsel %vm416, %v1905, %v1906
    %v1908 = vrot.slane %v1850, 7
    %v1909 = vsel %vm414, %v1908, %v1849
    %v1910 = vsel %vm416, %v1908, %v1909
    %v1911 = vrot.slane %v1856, 7
    %v1912 = vsel %vm414, %v1911, %v1855
    %v1913 = vsel %vm416, %v1911, %v1912
    %v1914 = vrot.slane %v1862, 7
    %v1915 = vsel %vm414, %v1914, %v1861
    %v1916 = vsel %vm416, %v1914, %v1915
    %v1917 = vrot.slane %v1868, 7
    %v1918 = vsel %vm414, %v1917, %v1867
    %v1919 = vsel %vm416, %v1917, %v1918
    %v1920 = vrot.slane %v1874, 7
    %v1921 = vsel %vm414, %v1920, %v1873
    %v1922 = vsel %vm416, %v1920, %v1921
    %v1939 = vcombine.low %v1877, %v1883
    %v1941 = vunpack.c.l.s4 1983009808
    %v1942 = vunpack.c.0.s8 %v1941
    %v1943 = vlaneseq
    %v1944 = vshrl.u32 %v1943, 7
    %v1945 = vsub.s32 %v1942, %v1944
    %v1946 = vrot.slane %v1939, %v1945
    %v1947 = vcombine.low %v1880, %v1886
    %v1949 = vunpack.c.l.s4 1983009808
    %v1950 = vunpack.c.0.s8 %v1949
    %v1951 = vlaneseq
    %v1952 = vshrl.u32 %v1951, 7
    %v1953 = vsub.s32 %v1950, %v1952
    %v1954 = vrot.slane %v1947, %v1953
    %v1955 = vcombine.low %v1946, %v1954
    %v1957 = vunpack.c.l.s4 1934713408
    %v1958 = vunpack.c.0.s8 %v1957
    %v1959 = vlaneseq
    %v1960 = vshrl.u32 %v1959, 7
    %v1961 = vsub.s32 %v1958, %v1960
    %v1962 = vrot.slane %v1955, %v1961
    %v1963 = vcombine.high %v1962, 0.0
    %v1964 = vcombine.low %v1889, %v1895
    %v1966 = vunpack.c.l.s4 1983009808
    %v1967 = vunpack.c.0.s8 %v1966
    %v1968 = vlaneseq
    %v1969 = vshrl.u32 %v1968, 7
    %v1970 = vsub.s32 %v1967, %v1969
    %v1971 = vrot.slane %v1964, %v1970
    %v1972 = vcombine.low %v1892, %v1898
    %v1974 = vunpack.c.l.s4 1983009808
    %v1975 = vunpack.c.0.s8 %v1974
    %v1976 = vlaneseq
    %v1977 = vshrl.u32 %v1976, 7
    %v1978 = vsub.s32 %v1975, %v1977
    %v1979 = vrot.slane %v1972, %v1978
    %v1980 = vcombine.low %v1971, %v1979
    %v1982 = vunpack.c.l.s4 1934713408
    %v1983 = vunpack.c.0.s8 %v1982
    %v1984 = vlaneseq
    %v1985 = vshrl.u32 %v1984, 7
    %v1986 = vsub.s32 %v1983, %v1985
    %v1987 = vrot.slane %v1980, %v1986
    %v1988 = vcombine.high %v1987, 0.0
    %v1989 = vcombine.low %v1901, %v1907
    %v1991 = vunpack.c.l.s4 1983009808
    %v1992 = vunpack.c.0.s8 %v1991
    %v1993 = vlaneseq
    %v1994 = vshrl.u32 %v1993, 7
    %v1995 = vsub.s32 %v1992, %v1994
    %v1996 = vrot.slane %v1989, %v1995
    %v1997 = vcombine.low %v1904, %v1910
    %v1999 = vunpack.c.l.s4 1983009808
    %v2000 = vunpack.c.0.s8 %v1999
    %v2001 = vlaneseq
    %v2002 = vshrl.u32 %v2001, 7
    %v2003 = vsub.s32 %v2000, %v2002
    %v2004 = vrot.slane %v1997, %v2003
    %v2005 = vcombine.low %v1996, %v2004
    %v2007 = vunpack.c.l.s4 1934713408
    %v2008 = vunpack.c.0.s8 %v2007
    %v2009 = vlaneseq
    %v2010 = vshrl.u32 %v2009, 7
    %v2011 = vsub.s32 %v2008, %v2010
    %v2012 = vrot.slane %v2005, %v2011
    %v2013 = vcombine.high %v2012, 0.0
    %v2014 = vcombine.low %v1913, %v1919
    %v2016 = vunpack.c.l.s4 1983009808
    %v2017 = vunpack.c.0.s8 %v2016
    %v2018 = vlaneseq
    %v2019 = vshrl.u32 %v2018, 7
    %v2020 = vsub.s32 %v2017, %v2019
    %v2021 = vrot.slane %v2014, %v2020
    %v2022 = vcombine.low %v1916, %v1922
    %v2024 = vunpack.c.l.s4 1983009808
    %v2025 = vunpack.c.0.s8 %v2024
    %v2026 = vlaneseq
    %v2027 = vshrl.u32 %v2026, 7
    %v2028 = vsub.s32 %v2025, %v2027
    %v2029 = vrot.slane %v2022, %v2028
    %v2030 = vcombine.low %v2021, %v2029
    %v2032 = vunpack.c.l.s4 1934713408
    %v2033 = vunpack.c.0.s8 %v2032
    %v2034 = vlaneseq
    %v2035 = vshrl.u32 %v2034, 7
    %v2036 = vsub.s32 %v2033, %v2035
    %v2037 = vrot.slane %v2030, %v2036
    %v2038 = vcombine.high %v2037, 0.0
    %v2041 = vrot.slane %v1407, 4
    %v2042 = vrot.slane %v1408, 4
    %2043 = vrot.lane.b32.xlu0 %v1407, 112
    %v2044 = vpop.permute.xlu0 %2043
    %2045 = vrot.lane.b32.xlu0 %v1408, 112
    %v2046 = vpop.permute.xlu0 %2045
    %v2047 = vrot.slane %v2044, 4
    %v2048 = vrot.slane %v2046, 4
    %2049 = vrot.lane.b32.xlu0 %v1407, 96
    %v2050 = vpop.permute.xlu0 %2049
    %2051 = vrot.lane.b32.xlu0 %v1408, 96
    %v2052 = vpop.permute.xlu0 %2051
    %v2053 = vrot.slane %v2050, 4
    %v2054 = vrot.slane %v2052, 4
    %2055 = vrot.lane.b32.xlu0 %v1407, 80
    %v2056 = vpop.permute.xlu0 %2055
    %2057 = vrot.lane.b32.xlu0 %v1408, 80
    %v2058 = vpop.permute.xlu0 %2057
    %v2059 = vrot.slane %v2056, 4
    %v2060 = vrot.slane %v2058, 4
    %2061 = vrot.lane.b32.xlu0 %v1407, 64
    %v2062 = vpop.permute.xlu0 %2061
    %2063 = vrot.lane.b32.xlu0 %v1408, 64
    %v2064 = vpop.permute.xlu0 %2063
    %v2065 = vrot.slane %v2062, 4
    %v2066 = vrot.slane %v2064, 4
    %2067 = vrot.lane.b32.xlu0 %v1407, 48
    %v2068 = vpop.permute.xlu0 %2067
    %2069 = vrot.lane.b32.xlu0 %v1408, 48
    %v2070 = vpop.permute.xlu0 %2069
    %v2071 = vrot.slane %v2068, 4
    %v2072 = vrot.slane %v2070, 4
    %2073 = vrot.lane.b32.xlu0 %v1407, 32
    %v2074 = vpop.permute.xlu0 %2073
    %2075 = vrot.lane.b32.xlu0 %v1408, 32
    %v2076 = vpop.permute.xlu0 %2075
    %v2077 = vrot.slane %v2074, 4
    %v2078 = vrot.slane %v2076, 4
    %2079 = vrot.lane.b32.xlu0 %v1407, 16
    %v2080 = vpop.permute.xlu0 %2079
    %2081 = vrot.lane.b32.xlu0 %v1408, 16
    %v2082 = vpop.permute.xlu0 %2081
    %v2083 = vrot.slane %v2080, 4
    %v2084 = vrot.slane %v2082, 4
    %v2085 = vrot.slane %v1408, 7
    %v2086 = vsel %vm414, %v2085, %v1407
    %v2087 = vsel %vm416, %v2085, %v2086
    %v2088 = vrot.slane %v2046, 7
    %v2089 = vsel %vm414, %v2088, %v2044
    %v2090 = vsel %vm416, %v2088, %v2089
    %v2091 = vrot.slane %v2052, 7
    %v2092 = vsel %vm414, %v2091, %v2050
    %v2093 = vsel %vm416, %v2091, %v2092
    %v2094 = vrot.slane %v2058, 7
    %v2095 = vsel %vm414, %v2094, %v2056
    %v2096 = vsel %vm416, %v2094, %v2095
    %v2097 = vrot.slane %v2064, 7
    %v2098 = vsel %vm414, %v2097, %v2062
    %v2099 = vsel %vm416, %v2097, %v2098
    %v2100 = vrot.slane %v2070, 7
    %v2101 = vsel %vm414, %v2100, %v2068
    %v2102 = vsel %vm416, %v2100, %v2101
    %v2103 = vrot.slane %v2076, 7
    %v2104 = vsel %vm414, %v2103, %v2074
    %v2105 = vsel %vm416, %v2103, %v2104
    %v2106 = vrot.slane %v2082, 7
    %v2107 = vsel %vm414, %v2106, %v2080
    %v2108 = vsel %vm416, %v2106, %v2107
    %v2109 = vrot.slane %v2042, 7
    %v2110 = vsel %vm414, %v2109, %v2041
    %v2111 = vsel %vm416, %v2109, %v2110
    %v2112 = vrot.slane %v2048, 7
    %v2113 = vsel %vm414, %v2112, %v2047
    %v2114 = vsel %vm416, %v2112, %v2113
    %v2115 = vrot.slane %v2054, 7
    %v2116 = vsel %vm414, %v2115, %v2053
    %v2117 = vsel %vm416, %v2115, %v2116
    %v2118 = vrot.slane %v2060, 7
    %v2119 = vsel %vm414, %v2118, %v2059
    %v2120 = vsel %vm416, %v2118, %v2119
    %v2121 = vrot.slane %v2066, 7
    %v2122 = vsel %vm414, %v2121, %v2065
    %v2123 = vsel %vm416, %v2121, %v2122
    %v2124 = vrot.slane %v2072, 7
    %v2125 = vsel %vm414, %v2124, %v2071
    %v2126 = vsel %vm416, %v2124, %v2125
    %v2127 = vrot.slane %v2078, 7
    %v2128 = vsel %vm414, %v2127, %v2077
    %v2129 = vsel %vm416, %v2127, %v2128
    %v2130 = vrot.slane %v2084, 7
    %v2131 = vsel %vm414, %v2130, %v2083
    %v2132 = vsel %vm416, %v2130, %v2131
    %v2149 = vcombine.low %v2087, %v2093
    %v2151 = vunpack.c.l.s4 1983009808
    %v2152 = vunpack.c.0.s8 %v2151
    %v2153 = vlaneseq
    %v2154 = vshrl.u32 %v2153, 7
    %v2155 = vsub.s32 %v2152, %v2154
    %v2156 = vrot.slane %v2149, %v2155
    %v2157 = vcombine.low %v2090, %v2096
    %v2159 = vunpack.c.l.s4 1983009808
    %v2160 = vunpack.c.0.s8 %v2159
    %v2161 = vlaneseq
    %v2162 = vshrl.u32 %v2161, 7
    %v2163 = vsub.s32 %v2160, %v2162
    %v2164 = vrot.slane %v2157, %v2163
    %v2165 = vcombine.low %v2156, %v2164
    %v2167 = vunpack.c.l.s4 1934713408
    %v2168 = vunpack.c.0.s8 %v2167
    %v2169 = vlaneseq
    %v2170 = vshrl.u32 %v2169, 7
    %v2171 = vsub.s32 %v2168, %v2170
    %v2172 = vrot.slane %v2165, %v2171
    %v2173 = vcombine.high %v2172, 0.0
    %v2174 = vcombine.low %v2099, %v2105
    %v2176 = vunpack.c.l.s4 1983009808
    %v2177 = vunpack.c.0.s8 %v2176
    %v2178 = vlaneseq
    %v2179 = vshrl.u32 %v2178, 7
    %v2180 = vsub.s32 %v2177, %v2179
    %v2181 = vrot.slane %v2174, %v2180
    %v2182 = vcombine.low %v2102, %v2108
    %v2184 = vunpack.c.l.s4 1983009808
    %v2185 = vunpack.c.0.s8 %v2184
    %v2186 = vlaneseq
    %v2187 = vshrl.u32 %v2186, 7
    %v2188 = vsub.s32 %v2185, %v2187
    %v2189 = vrot.slane %v2182, %v2188
    %v2190 = vcombine.low %v2181, %v2189
    %v2192 = vunpack.c.l.s4 1934713408
    %v2193 = vunpack.c.0.s8 %v2192
    %v2194 = vlaneseq
    %v2195 = vshrl.u32 %v2194, 7
    %v2196 = vsub.s32 %v2193, %v2195
    %v2197 = vrot.slane %v2190, %v2196
    %v2198 = vcombine.high %v2197, 0.0
    %v2199 = vcombine.low %v2111, %v2117
    %v2201 = vunpack.c.l.s4 1983009808
    %v2202 = vunpack.c.0.s8 %v2201
    %v2203 = vlaneseq
    %v2204 = vshrl.u32 %v2203, 7
    %v2205 = vsub.s32 %v2202, %v2204
    %v2206 = vrot.slane %v2199, %v2205
    %v2207 = vcombine.low %v2114, %v2120
    %v2209 = vunpack.c.l.s4 1983009808
    %v2210 = vunpack.c.0.s8 %v2209
    %v2211 = vlaneseq
    %v2212 = vshrl.u32 %v2211, 7
    %v2213 = vsub.s32 %v2210, %v2212
    %v2214 = vrot.slane %v2207, %v2213
    %v2215 = vcombine.low %v2206, %v2214
    %v2217 = vunpack.c.l.s4 1934713408
    %v2218 = vunpack.c.0.s8 %v2217
    %v2219 = vlaneseq
    %v2220 = vshrl.u32 %v2219, 7
    %v2221 = vsub.s32 %v2218, %v2220
    %v2222 = vrot.slane %v2215, %v2221
    %v2223 = vcombine.high %v2222, 0.0
    %v2224 = vcombine.low %v2123, %v2129
    %v2226 = vunpack.c.l.s4 1983009808
    %v2227 = vunpack.c.0.s8 %v2226
    %v2228 = vlaneseq
    %v2229 = vshrl.u32 %v2228, 7
    %v2230 = vsub.s32 %v2227, %v2229
    %v2231 = vrot.slane %v2224, %v2230
    %v2232 = vcombine.low %v2126, %v2132
    %v2234 = vunpack.c.l.s4 1983009808
    %v2235 = vunpack.c.0.s8 %v2234
    %v2236 = vlaneseq
    %v2237 = vshrl.u32 %v2236, 7
    %v2238 = vsub.s32 %v2235, %v2237
    %v2239 = vrot.slane %v2232, %v2238
    %v2240 = vcombine.low %v2231, %v2239
    %v2242 = vunpack.c.l.s4 1934713408
    %v2243 = vunpack.c.0.s8 %v2242
    %v2244 = vlaneseq
    %v2245 = vshrl.u32 %v2244, 7
    %v2246 = vsub.s32 %v2243, %v2245
    %v2247 = vrot.slane %v2240, %v2246
    %v2248 = vcombine.high %v2247, 0.0
    %s2249 = sld [smem:[#allocation11]]
    %v2250 = vstv %s2249
    %v2251 = vmul.f32 %v163, %v2250
    %v2252 = vmul.f32 %v164, %v2250
    %s2253 = sld [smem:[#allocation11 + $0x1]]
    %v2254 = vstv %s2253
    %v2255 = vmul.f32 %v163, %v2254
    %v2256 = vmul.f32 %v164, %v2254
    %v2259 = vrot.slane %v2255, 5
    %v2260 = vrot.slane %v2259, 4
    %v2261 = vrot.slane %v2256, 5
    %v2262 = vrot.slane %v2261, 4
    %v2265 = vadd.f32 %v2251, %v2260
    %v2266 = vadd.f32 %v2252, %v2262
    %s2267 = sld [smem:[#allocation11 + $0x2]]
    %v2268 = vstv %s2267
    %v2269 = vmul.f32 %v163, %v2268
    %v2270 = vmul.f32 %v164, %v2268
    %v2273 = vrot.slane %v2269, 6
    %v2274 = vrot.slane %v2273, 4
    %v2275 = vrot.slane %v2270, 6
    %v2276 = vrot.slane %v2275, 4
    %v2279 = vadd.f32 %v2265, %v2274
    %v2280 = vadd.f32 %v2266, %v2276
    %s2281 = sld [smem:[#allocation11 + $0x3]]
    %v2282 = vstv %s2281
    %v2283 = vmul.f32 %v163, %v2282
    %v2284 = vmul.f32 %v164, %v2282
    %v2287 = vrot.slane %v2283, 7
    %v2288 = vrot.slane %v2287, 4
    %v2289 = vrot.slane %v2284, 7
    %v2290 = vrot.slane %v2289, 4
    %v2293 = vadd.f32 %v2279, %v2288
    %v2294 = vadd.f32 %v2280, %v2290
    %s2295 = sld [smem:[#allocation12]]
    %v2296 = vstv %s2295
    %v2297 = vadd.f32 %v2293, %v2296
    %v2298 = vadd.f32 %v2294, %v2296
    %s2299 = sld [smem:[#allocation11 + $0x4]]
    %v2300 = vstv %s2299
    %v2301 = vmul.f32 %v163, %v2300
    %v2302 = vmul.f32 %v164, %v2300
    %s2303 = sld [smem:[#allocation11 + $0x5]]
    %v2304 = vstv %s2303
    %v2305 = vmul.f32 %v163, %v2304
    %v2306 = vmul.f32 %v164, %v2304
    %v2309 = vrot.slane %v2305, 5
    %v2310 = vrot.slane %v2309, 4
    %v2311 = vrot.slane %v2306, 5
    %v2312 = vrot.slane %v2311, 4
    %v2315 = vadd.f32 %v2301, %v2310
    %v2316 = vadd.f32 %v2302, %v2312
    %s2317 = sld [smem:[#allocation11 + $0x6]]
    %v2318 = vstv %s2317
    %v2319 = vmul.f32 %v163, %v2318
    %v2320 = vmul.f32 %v164, %v2318
    %v2323 = vrot.slane %v2319, 6
    %v2324 = vrot.slane %v2323, 4
    %v2325 = vrot.slane %v2320, 6
    %v2326 = vrot.slane %v2325, 4
    %v2329 = vadd.f32 %v2315, %v2324
    %v2330 = vadd.f32 %v2316, %v2326
    %s2331 = sld [smem:[#allocation11 + $0x7]]
    %v2332 = vstv %s2331
    %v2333 = vmul.f32 %v163, %v2332
    %v2334 = vmul.f32 %v164, %v2332
    %v2337 = vrot.slane %v2333, 7
    %v2338 = vrot.slane %v2337, 4
    %v2339 = vrot.slane %v2334, 7
    %v2340 = vrot.slane %v2339, 4
    %v2343 = vadd.f32 %v2329, %v2338
    %v2344 = vadd.f32 %v2330, %v2340
    %s2345 = sld [smem:[#allocation12 + $0x1]]
    %v2346 = vstv %s2345
    %v2347 = vadd.f32 %v2343, %v2346
    %v2348 = vadd.f32 %v2344, %v2346
    %s2349 = sld [smem:[#allocation11 + $0x8]]
    %v2350 = vstv %s2349
    %v2351 = vmul.f32 %v163, %v2350
    %v2352 = vmul.f32 %v164, %v2350
    %s2353 = sld [smem:[#allocation11 + $0x9]]
    %v2354 = vstv %s2353
    %v2355 = vmul.f32 %v163, %v2354
    %v2356 = vmul.f32 %v164, %v2354
    %v2359 = vrot.slane %v2355, 5
    %v2360 = vrot.slane %v2359, 4
    %v2361 = vrot.slane %v2356, 5
    %v2362 = vrot.slane %v2361, 4
    %v2365 = vadd.f32 %v2351, %v2360
    %v2366 = vadd.f32 %v2352, %v2362
    %s2367 = sld [smem:[#allocation11 + $0xa]]
    %v2368 = vstv %s2367
    %v2369 = vmul.f32 %v163, %v2368
    %v2370 = vmul.f32 %v164, %v2368
    %v2373 = vrot.slane %v2369, 6
    %v2374 = vrot.slane %v2373, 4
    %v2375 = vrot.slane %v2370, 6
    %v2376 = vrot.slane %v2375, 4
    %v2379 = vadd.f32 %v2365, %v2374
    %v2380 = vadd.f32 %v2366, %v2376
    %s2381 = sld [smem:[#allocation11 + $0xb]]
    %v2382 = vstv %s2381
    %v2383 = vmul.f32 %v163, %v2382
    %v2384 = vmul.f32 %v164, %v2382
    %v2387 = vrot.slane %v2383, 7
    %v2388 = vrot.slane %v2387, 4
    %v2389 = vrot.slane %v2384, 7
    %v2390 = vrot.slane %v2389, 4
    %v2393 = vadd.f32 %v2379, %v2388
    %v2394 = vadd.f32 %v2380, %v2390
    %s2395 = sld [smem:[#allocation12 + $0x2]]
    %v2396 = vstv %s2395
    %v2397 = vadd.f32 %v2393, %v2396
    %v2398 = vadd.f32 %v2394, %v2396
    %s2399 = sld [smem:[#allocation11 + $0xc]]
    %v2400 = vstv %s2399
    %v2401 = vmul.f32 %v163, %v2400
    %v2402 = vmul.f32 %v164, %v2400
    %s2403 = sld [smem:[#allocation11 + $0xd]]
    %v2404 = vstv %s2403
    %v2405 = vmul.f32 %v163, %v2404
    %v2406 = vmul.f32 %v164, %v2404
    %v2409 = vrot.slane %v2405, 5
    %v2410 = vrot.slane %v2409, 4
    %v2411 = vrot.slane %v2406, 5
    %v2412 = vrot.slane %v2411, 4
    %v2415 = vadd.f32 %v2401, %v2410
    %v2416 = vadd.f32 %v2402, %v2412
    %s2417 = sld [smem:[#allocation11 + $0xe]]
    %v2418 = vstv %s2417
    %v2419 = vmul.f32 %v163, %v2418
    %v2420 = vmul.f32 %v164, %v2418
    %v2423 = vrot.slane %v2419, 6
    %v2424 = vrot.slane %v2423, 4
    %v2425 = vrot.slane %v2420, 6
    %v2426 = vrot.slane %v2425, 4
    %v2429 = vadd.f32 %v2415, %v2424
    %v2430 = vadd.f32 %v2416, %v2426
    %s2431 = sld [smem:[#allocation11 + $0xf]]
    %v2432 = vstv %s2431
    %v2433 = vmul.f32 %v163, %v2432
    %v2434 = vmul.f32 %v164, %v2432
    %v2437 = vrot.slane %v2433, 7
    %v2438 = vrot.slane %v2437, 4
    %v2439 = vrot.slane %v2434, 7
    %v2440 = vrot.slane %v2439, 4
    %v2443 = vadd.f32 %v2429, %v2438
    %v2444 = vadd.f32 %v2430, %v2440
    %s2445 = sld [smem:[#allocation12 + $0x3]]
    %v2446 = vstv %s2445
    %v2447 = vadd.f32 %v2443, %v2446
    %v2448 = vadd.f32 %v2444, %v2446
    %v2451 = vrot.slane %v2297, 4
    %v2452 = vrot.slane %v2298, 4
    %2453 = vrot.lane.b32.xlu0 %v2297, 112
    %v2454 = vpop.permute.xlu0 %2453
    %2455 = vrot.lane.b32.xlu0 %v2298, 112
    %v2456 = vpop.permute.xlu0 %2455
    %v2457 = vrot.slane %v2454, 4
    %v2458 = vrot.slane %v2456, 4
    %2459 = vrot.lane.b32.xlu0 %v2297, 96
    %v2460 = vpop.permute.xlu0 %2459
    %2461 = vrot.lane.b32.xlu0 %v2298, 96
    %v2462 = vpop.permute.xlu0 %2461
    %v2463 = vrot.slane %v2460, 4
    %v2464 = vrot.slane %v2462, 4
    %2465 = vrot.lane.b32.xlu0 %v2297, 80
    %v2466 = vpop.permute.xlu0 %2465
    %2467 = vrot.lane.b32.xlu0 %v2298, 80
    %v2468 = vpop.permute.xlu0 %2467
    %v2469 = vrot.slane %v2466, 4
    %v2470 = vrot.slane %v2468, 4
    %2471 = vrot.lane.b32.xlu0 %v2297, 64
    %v2472 = vpop.permute.xlu0 %2471
    %2473 = vrot.lane.b32.xlu0 %v2298, 64
    %v2474 = vpop.permute.xlu0 %2473
    %v2475 = vrot.slane %v2472, 4
    %v2476 = vrot.slane %v2474, 4
    %2477 = vrot.lane.b32.xlu0 %v2297, 48
    %v2478 = vpop.permute.xlu0 %2477
    %2479 = vrot.lane.b32.xlu0 %v2298, 48
    %v2480 = vpop.permute.xlu0 %2479
    %v2481 = vrot.slane %v2478, 4
    %v2482 = vrot.slane %v2480, 4
    %2483 = vrot.lane.b32.xlu0 %v2297, 32
    %v2484 = vpop.permute.xlu0 %2483
    %2485 = vrot.lane.b32.xlu0 %v2298, 32
    %v2486 = vpop.permute.xlu0 %2485
    %v2487 = vrot.slane %v2484, 4
    %v2488 = vrot.slane %v2486, 4
    %2489 = vrot.lane.b32.xlu0 %v2297, 16
    %v2490 = vpop.permute.xlu0 %2489
    %2491 = vrot.lane.b32.xlu0 %v2298, 16
    %v2492 = vpop.permute.xlu0 %2491
    %v2493 = vrot.slane %v2490, 4
    %v2494 = vrot.slane %v2492, 4
    %v2495 = vrot.slane %v2298, 7
    %v2496 = vsel %vm414, %v2495, %v2297
    %v2497 = vsel %vm416, %v2495, %v2496
    %v2498 = vrot.slane %v2456, 7
    %v2499 = vsel %vm414, %v2498, %v2454
    %v2500 = vsel %vm416, %v2498, %v2499
    %v2501 = vrot.slane %v2462, 7
    %v2502 = vsel %vm414, %v2501, %v2460
    %v2503 = vsel %vm416, %v2501, %v2502
    %v2504 = vrot.slane %v2468, 7
    %v2505 = vsel %vm414, %v2504, %v2466
    %v2506 = vsel %vm416, %v2504, %v2505
    %v2507 = vrot.slane %v2474, 7
    %v2508 = vsel %vm414, %v2507, %v2472
    %v2509 = vsel %vm416, %v2507, %v2508
    %v2510 = vrot.slane %v2480, 7
    %v2511 = vsel %vm414, %v2510, %v2478
    %v2512 = vsel %vm416, %v2510, %v2511
    %v2513 = vrot.slane %v2486, 7
    %v2514 = vsel %vm414, %v2513, %v2484
    %v2515 = vsel %vm416, %v2513, %v2514
    %v2516 = vrot.slane %v2492, 7
    %v2517 = vsel %vm414, %v2516, %v2490
    %v2518 = vsel %vm416, %v2516, %v2517
    %v2519 = vrot.slane %v2452, 7
    %v2520 = vsel %vm414, %v2519, %v2451
    %v2521 = vsel %vm416, %v2519, %v2520
    %v2522 = vrot.slane %v2458, 7
    %v2523 = vsel %vm414, %v2522, %v2457
    %v2524 = vsel %vm416, %v2522, %v2523
    %v2525 = vrot.slane %v2464, 7
    %v2526 = vsel %vm414, %v2525, %v2463
    %v2527 = vsel %vm416, %v2525, %v2526
    %v2528 = vrot.slane %v2470, 7
    %v2529 = vsel %vm414, %v2528, %v2469
    %v2530 = vsel %vm416, %v2528, %v2529
    %v2531 = vrot.slane %v2476, 7
    %v2532 = vsel %vm414, %v2531, %v2475
    %v2533 = vsel %vm416, %v2531, %v2532
    %v2534 = vrot.slane %v2482, 7
    %v2535 = vsel %vm414, %v2534, %v2481
    %v2536 = vsel %vm416, %v2534, %v2535
    %v2537 = vrot.slane %v2488, 7
    %v2538 = vsel %vm414, %v2537, %v2487
    %v2539 = vsel %vm416, %v2537, %v2538
    %v2540 = vrot.slane %v2494, 7
    %v2541 = vsel %vm414, %v2540, %v2493
    %v2542 = vsel %vm416, %v2540, %v2541
    %v2559 = vcombine.low %v2497, %v2503
    %v2561 = vunpack.c.l.s4 1983009808
    %v2562 = vunpack.c.0.s8 %v2561
    %v2563 = vlaneseq
    %v2564 = vshrl.u32 %v2563, 7
    %v2565 = vsub.s32 %v2562, %v2564
    %v2566 = vrot.slane %v2559, %v2565
    %v2567 = vcombine.low %v2500, %v2506
    %v2569 = vunpack.c.l.s4 1983009808
    %v2570 = vunpack.c.0.s8 %v2569
    %v2571 = vlaneseq
    %v2572 = vshrl.u32 %v2571, 7
    %v2573 = vsub.s32 %v2570, %v2572
    %v2574 = vrot.slane %v2567, %v2573
    %v2575 = vcombine.low %v2566, %v2574
    %v2577 = vunpack.c.l.s4 1934713408
    %v2578 = vunpack.c.0.s8 %v2577
    %v2579 = vlaneseq
    %v2580 = vshrl.u32 %v2579, 7
    %v2581 = vsub.s32 %v2578, %v2580
    %v2582 = vrot.slane %v2575, %v2581
    %v2583 = vcombine.high %v2582, 0.0
    %v2584 = vcombine.low %v2509, %v2515
    %v2586 = vunpack.c.l.s4 1983009808
    %v2587 = vunpack.c.0.s8 %v2586
    %v2588 = vlaneseq
    %v2589 = vshrl.u32 %v2588, 7
    %v2590 = vsub.s32 %v2587, %v2589
    %v2591 = vrot.slane %v2584, %v2590
    %v2592 = vcombine.low %v2512, %v2518
    %v2594 = vunpack.c.l.s4 1983009808
    %v2595 = vunpack.c.0.s8 %v2594
    %v2596 = vlaneseq
    %v2597 = vshrl.u32 %v2596, 7
    %v2598 = vsub.s32 %v2595, %v2597
    %v2599 = vrot.slane %v2592, %v2598
    %v2600 = vcombine.low %v2591, %v2599
    %v2602 = vunpack.c.l.s4 1934713408
    %v2603 = vunpack.c.0.s8 %v2602
    %v2604 = vlaneseq
    %v2605 = vshrl.u32 %v2604, 7
    %v2606 = vsub.s32 %v2603, %v2605
    %v2607 = vrot.slane %v2600, %v2606
    %v2608 = vcombine.high %v2607, 0.0
    %v2609 = vcombine.low %v2521, %v2527
    %v2611 = vunpack.c.l.s4 1983009808
    %v2612 = vunpack.c.0.s8 %v2611
    %v2613 = vlaneseq
    %v2614 = vshrl.u32 %v2613, 7
    %v2615 = vsub.s32 %v2612, %v2614
    %v2616 = vrot.slane %v2609, %v2615
    %v2617 = vcombine.low %v2524, %v2530
    %v2619 = vunpack.c.l.s4 1983009808
    %v2620 = vunpack.c.0.s8 %v2619
    %v2621 = vlaneseq
    %v2622 = vshrl.u32 %v2621, 7
    %v2623 = vsub.s32 %v2620, %v2622
    %v2624 = vrot.slane %v2617, %v2623
    %v2625 = vcombine.low %v2616, %v2624
    %v2627 = vunpack.c.l.s4 1934713408
    %v2628 = vunpack.c.0.s8 %v2627
    %v2629 = vlaneseq
    %v2630 = vshrl.u32 %v2629, 7
    %v2631 = vsub.s32 %v2628, %v2630
    %v2632 = vrot.slane %v2625, %v2631
    %v2633 = vcombine.high %v2632, 0.0
    %v2634 = vcombine.low %v2533, %v2539
    %v2636 = vunpack.c.l.s4 1983009808
    %v2637 = vunpack.c.0.s8 %v2636
    %v2638 = vlaneseq
    %v2639 = vshrl.u32 %v2638, 7
    %v2640 = vsub.s32 %v2637, %v2639
    %v2641 = vrot.slane %v2634, %v2640
    %v2642 = vcombine.low %v2536, %v2542
    %v2644 = vunpack.c.l.s4 1983009808
    %v2645 = vunpack.c.0.s8 %v2644
    %v2646 = vlaneseq
    %v2647 = vshrl.u32 %v2646, 7
    %v2648 = vsub.s32 %v2645, %v2647
    %v2649 = vrot.slane %v2642, %v2648
    %v2650 = vcombine.low %v2641, %v2649
    %v2652 = vunpack.c.l.s4 1934713408
    %v2653 = vunpack.c.0.s8 %v2652
    %v2654 = vlaneseq
    %v2655 = vshrl.u32 %v2654, 7
    %v2656 = vsub.s32 %v2653, %v2655
    %v2657 = vrot.slane %v2650, %v2656
    %v2658 = vcombine.high %v2657, 0.0
    %v2661 = vrot.slane %v2347, 4
    %v2662 = vrot.slane %v2348, 4
    %2663 = vrot.lane.b32.xlu0 %v2347, 112
    %v2664 = vpop.permute.xlu0 %2663
    %2665 = vrot.lane.b32.xlu0 %v2348, 112
    %v2666 = vpop.permute.xlu0 %2665
    %v2667 = vrot.slane %v2664, 4
    %v2668 = vrot.slane %v2666, 4
    %2669 = vrot.lane.b32.xlu0 %v2347, 96
    %v2670 = vpop.permute.xlu0 %2669
    %2671 = vrot.lane.b32.xlu0 %v2348, 96
    %v2672 = vpop.permute.xlu0 %2671
    %v2673 = vrot.slane %v2670, 4
    %v2674 = vrot.slane %v2672, 4
    %2675 = vrot.lane.b32.xlu0 %v2347, 80
    %v2676 = vpop.permute.xlu0 %2675
    %2677 = vrot.lane.b32.xlu0 %v2348, 80
    %v2678 = vpop.permute.xlu0 %2677
    %v2679 = vrot.slane %v2676, 4
    %v2680 = vrot.slane %v2678, 4
    %2681 = vrot.lane.b32.xlu0 %v2347, 64
    %v2682 = vpop.permute.xlu0 %2681
    %2683 = vrot.lane.b32.xlu0 %v2348, 64
    %v2684 = vpop.permute.xlu0 %2683
    %v2685 = vrot.slane %v2682, 4
    %v2686 = vrot.slane %v2684, 4
    %2687 = vrot.lane.b32.xlu0 %v2347, 48
    %v2688 = vpop.permute.xlu0 %2687
    %2689 = vrot.lane.b32.xlu0 %v2348, 48
    %v2690 = vpop.permute.xlu0 %2689
    %v2691 = vrot.slane %v2688, 4
    %v2692 = vrot.slane %v2690, 4
    %2693 = vrot.lane.b32.xlu0 %v2347, 32
    %v2694 = vpop.permute.xlu0 %2693
    %2695 = vrot.lane.b32.xlu0 %v2348, 32
    %v2696 = vpop.permute.xlu0 %2695
    %v2697 = vrot.slane %v2694, 4
    %v2698 = vrot.slane %v2696, 4
    %2699 = vrot.lane.b32.xlu0 %v2347, 16
    %v2700 = vpop.permute.xlu0 %2699
    %2701 = vrot.lane.b32.xlu0 %v2348, 16
    %v2702 = vpop.permute.xlu0 %2701
    %v2703 = vrot.slane %v2700, 4
    %v2704 = vrot.slane %v2702, 4
    %v2705 = vrot.slane %v2348, 7
    %v2706 = vsel %vm414, %v2705, %v2347
    %v2707 = vsel %vm416, %v2705, %v2706
    %v2708 = vrot.slane %v2666, 7
    %v2709 = vsel %vm414, %v2708, %v2664
    %v2710 = vsel %vm416, %v2708, %v2709
    %v2711 = vrot.slane %v2672, 7
    %v2712 = vsel %vm414, %v2711, %v2670
    %v2713 = vsel %vm416, %v2711, %v2712
    %v2714 = vrot.slane %v2678, 7
    %v2715 = vsel %vm414, %v2714, %v2676
    %v2716 = vsel %vm416, %v2714, %v2715
    %v2717 = vrot.slane %v2684, 7
    %v2718 = vsel %vm414, %v2717, %v2682
    %v2719 = vsel %vm416, %v2717, %v2718
    %v2720 = vrot.slane %v2690, 7
    %v2721 = vsel %vm414, %v2720, %v2688
    %v2722 = vsel %vm416, %v2720, %v2721
    %v2723 = vrot.slane %v2696, 7
    %v2724 = vsel %vm414, %v2723, %v2694
    %v2725 = vsel %vm416, %v2723, %v2724
    %v2726 = vrot.slane %v2702, 7
    %v2727 = vsel %vm414, %v2726, %v2700
    %v2728 = vsel %vm416, %v2726, %v2727
    %v2729 = vrot.slane %v2662, 7
    %v2730 = vsel %vm414, %v2729, %v2661
    %v2731 = vsel %vm416, %v2729, %v2730
    %v2732 = vrot.slane %v2668, 7
    %v2733 = vsel %vm414, %v2732, %v2667
    %v2734 = vsel %vm416, %v2732, %v2733
    %v2735 = vrot.slane %v2674, 7
    %v2736 = vsel %vm414, %v2735, %v2673
    %v2737 = vsel %vm416, %v2735, %v2736
    %v2738 = vrot.slane %v2680, 7
    %v2739 = vsel %vm414, %v2738, %v2679
    %v2740 = vsel %vm416, %v2738, %v2739
    %v2741 = vrot.slane %v2686, 7
    %v2742 = vsel %vm414, %v2741, %v2685
    %v2743 = vsel %vm416, %v2741, %v2742
    %v2744 = vrot.slane %v2692, 7
    %v2745 = vsel %vm414, %v2744, %v2691
    %v2746 = vsel %vm416, %v2744, %v2745
    %v2747 = vrot.slane %v2698, 7
    %v2748 = vsel %vm414, %v2747, %v2697
    %v2749 = vsel %vm416, %v2747, %v2748
    %v2750 = vrot.slane %v2704, 7
    %v2751 = vsel %vm414, %v2750, %v2703
    %v2752 = vsel %vm416, %v2750, %v2751
    %v2769 = vcombine.low %v2707, %v2713
    %v2771 = vunpack.c.l.s4 1983009808
    %v2772 = vunpack.c.0.s8 %v2771
    %v2773 = vlaneseq
    %v2774 = vshrl.u32 %v2773, 7
    %v2775 = vsub.s32 %v2772, %v2774
    %v2776 = vrot.slane %v2769, %v2775
    %v2777 = vcombine.low %v2710, %v2716
    %v2779 = vunpack.c.l.s4 1983009808
    %v2780 = vunpack.c.0.s8 %v2779
    %v2781 = vlaneseq
    %v2782 = vshrl.u32 %v2781, 7
    %v2783 = vsub.s32 %v2780, %v2782
    %v2784 = vrot.slane %v2777, %v2783
    %v2785 = vcombine.low %v2776, %v2784
    %v2787 = vunpack.c.l.s4 1934713408
    %v2788 = vunpack.c.0.s8 %v2787
    %v2789 = vlaneseq
    %v2790 = vshrl.u32 %v2789, 7
    %v2791 = vsub.s32 %v2788, %v2790
    %v2792 = vrot.slane %v2785, %v2791
    %v2793 = vcombine.high %v2792, 0.0
    %v2794 = vcombine.low %v2719, %v2725
    %v2796 = vunpack.c.l.s4 1983009808
    %v2797 = vunpack.c.0.s8 %v2796
    %v2798 = vlaneseq
    %v2799 = vshrl.u32 %v2798, 7
    %v2800 = vsub.s32 %v2797, %v2799
    %v2801 = vrot.slane %v2794, %v2800
    %v2802 = vcombine.low %v2722, %v2728
    %v2804 = vunpack.c.l.s4 1983009808
    %v2805 = vunpack.c.0.s8 %v2804
    %v2806 = vlaneseq
    %v2807 = vshrl.u32 %v2806, 7
    %v2808 = vsub.s32 %v2805, %v2807
    %v2809 = vrot.slane %v2802, %v2808
    %v2810 = vcombine.low %v2801, %v2809
    %v2812 = vunpack.c.l.s4 1934713408
    %v2813 = vunpack.c.0.s8 %v2812
    %v2814 = vlaneseq
    %v2815 = vshrl.u32 %v2814, 7
    %v2816 = vsub.s32 %v2813, %v2815
    %v2817 = vrot.slane %v2810, %v2816
    %v2818 = vcombine.high %v2817, 0.0
    %v2819 = vcombine.low %v2731, %v2737
    %v2821 = vunpack.c.l.s4 1983009808
    %v2822 = vunpack.c.0.s8 %v2821
    %v2823 = vlaneseq
    %v2824 = vshrl.u32 %v2823, 7
    %v2825 = vsub.s32 %v2822, %v2824
    %v2826 = vrot.slane %v2819, %v2825
    %v2827 = vcombine.low %v2734, %v2740
    %v2829 = vunpack.c.l.s4 1983009808
    %v2830 = vunpack.c.0.s8 %v2829
    %v2831 = vlaneseq
    %v2832 = vshrl.u32 %v2831, 7
    %v2833 = vsub.s32 %v2830, %v2832
    %v2834 = vrot.slane %v2827, %v2833
    %v2835 = vcombine.low %v2826, %v2834
    %v2837 = vunpack.c.l.s4 1934713408
    %v2838 = vunpack.c.0.s8 %v2837
    %v2839 = vlaneseq
    %v2840 = vshrl.u32 %v2839, 7
    %v2841 = vsub.s32 %v2838, %v2840
    %v2842 = vrot.slane %v2835, %v2841
    %v2843 = vcombine.high %v2842, 0.0
    %v2844 = vcombine.low %v2743, %v2749
    %v2846 = vunpack.c.l.s4 1983009808
    %v2847 = vunpack.c.0.s8 %v2846
    %v2848 = vlaneseq
    %v2849 = vshrl.u32 %v2848, 7
    %v2850 = vsub.s32 %v2847, %v2849
    %v2851 = vrot.slane %v2844, %v2850
    %v2852 = vcombine.low %v2746, %v2752
    %v2854 = vunpack.c.l.s4 1983009808
    %v2855 = vunpack.c.0.s8 %v2854
    %v2856 = vlaneseq
    %v2857 = vshrl.u32 %v2856, 7
    %v2858 = vsub.s32 %v2855, %v2857
    %v2859 = vrot.slane %v2852, %v2858
    %v2860 = vcombine.low %v2851, %v2859
    %v2862 = vunpack.c.l.s4 1934713408
    %v2863 = vunpack.c.0.s8 %v2862
    %v2864 = vlaneseq
    %v2865 = vshrl.u32 %v2864, 7
    %v2866 = vsub.s32 %v2863, %v2865
    %v2867 = vrot.slane %v2860, %v2866
    %v2868 = vcombine.high %v2867, 0.0
    %v2871 = vrot.slane %v2397, 4
    %v2872 = vrot.slane %v2398, 4
    %2873 = vrot.lane.b32.xlu0 %v2397, 112
    %v2874 = vpop.permute.xlu0 %2873
    %2875 = vrot.lane.b32.xlu0 %v2398, 112
    %v2876 = vpop.permute.xlu0 %2875
    %v2877 = vrot.slane %v2874, 4
    %v2878 = vrot.slane %v2876, 4
    %2879 = vrot.lane.b32.xlu0 %v2397, 96
    %v2880 = vpop.permute.xlu0 %2879
    %2881 = vrot.lane.b32.xlu0 %v2398, 96
    %v2882 = vpop.permute.xlu0 %2881
    %v2883 = vrot.slane %v2880, 4
    %v2884 = vrot.slane %v2882, 4
    %2885 = vrot.lane.b32.xlu0 %v2397, 80
    %v2886 = vpop.permute.xlu0 %2885
    %2887 = vrot.lane.b32.xlu0 %v2398, 80
    %v2888 = vpop.permute.xlu0 %2887
    %v2889 = vrot.slane %v2886, 4
    %v2890 = vrot.slane %v2888, 4
    %2891 = vrot.lane.b32.xlu0 %v2397, 64
    %v2892 = vpop.permute.xlu0 %2891
    %2893 = vrot.lane.b32.xlu0 %v2398, 64
    %v2894 = vpop.permute.xlu0 %2893
    %v2895 = vrot.slane %v2892, 4
    %v2896 = vrot.slane %v2894, 4
    %2897 = vrot.lane.b32.xlu0 %v2397, 48
    %v2898 = vpop.permute.xlu0 %2897
    %2899 = vrot.lane.b32.xlu0 %v2398, 48
    %v2900 = vpop.permute.xlu0 %2899
    %v2901 = vrot.slane %v2898, 4
    %v2902 = vrot.slane %v2900, 4
    %2903 = vrot.lane.b32.xlu0 %v2397, 32
    %v2904 = vpop.permute.xlu0 %2903
    %2905 = vrot.lane.b32.xlu0 %v2398, 32
    %v2906 = vpop.permute.xlu0 %2905
    %v2907 = vrot.slane %v2904, 4
    %v2908 = vrot.slane %v2906, 4
    %2909 = vrot.lane.b32.xlu0 %v2397, 16
    %v2910 = vpop.permute.xlu0 %2909
    %2911 = vrot.lane.b32.xlu0 %v2398, 16
    %v2912 = vpop.permute.xlu0 %2911
    %v2913 = vrot.slane %v2910, 4
    %v2914 = vrot.slane %v2912, 4
    %v2915 = vrot.slane %v2398, 7
    %v2916 = vsel %vm414, %v2915, %v2397
    %v2917 = vsel %vm416, %v2915, %v2916
    %v2918 = vrot.slane %v2876, 7
    %v2919 = vsel %vm414, %v2918, %v2874
    %v2920 = vsel %vm416, %v2918, %v2919
    %v2921 = vrot.slane %v2882, 7
    %v2922 = vsel %vm414, %v2921, %v2880
    %v2923 = vsel %vm416, %v2921, %v2922
    %v2924 = vrot.slane %v2888, 7
    %v2925 = vsel %vm414, %v2924, %v2886
    %v2926 = vsel %vm416, %v2924, %v2925
    %v2927 = vrot.slane %v2894, 7
    %v2928 = vsel %vm414, %v2927, %v2892
    %v2929 = vsel %vm416, %v2927, %v2928
    %v2930 = vrot.slane %v2900, 7
    %v2931 = vsel %vm414, %v2930, %v2898
    %v2932 = vsel %vm416, %v2930, %v2931
    %v2933 = vrot.slane %v2906, 7
    %v2934 = vsel %vm414, %v2933, %v2904
    %v2935 = vsel %vm416, %v2933, %v2934
    %v2936 = vrot.slane %v2912, 7
    %v2937 = vsel %vm414, %v2936, %v2910
    %v2938 = vsel %vm416, %v2936, %v2937
    %v2939 = vrot.slane %v2872, 7
    %v2940 = vsel %vm414, %v2939, %v2871
    %v2941 = vsel %vm416, %v2939, %v2940
    %v2942 = vrot.slane %v2878, 7
    %v2943 = vsel %vm414, %v2942, %v2877
    %v2944 = vsel %vm416, %v2942, %v2943
    %v2945 = vrot.slane %v2884, 7
    %v2946 = vsel %vm414, %v2945, %v2883
    %v2947 = vsel %vm416, %v2945, %v2946
    %v2948 = vrot.slane %v2890, 7
    %v2949 = vsel %vm414, %v2948, %v2889
    %v2950 = vsel %vm416, %v2948, %v2949
    %v2951 = vrot.slane %v2896, 7
    %v2952 = vsel %vm414, %v2951, %v2895
    %v2953 = vsel %vm416, %v2951, %v2952
    %v2954 = vrot.slane %v2902, 7
    %v2955 = vsel %vm414, %v2954, %v2901
    %v2956 = vsel %vm416, %v2954, %v2955
    %v2957 = vrot.slane %v2908, 7
    %v2958 = vsel %vm414, %v2957, %v2907
    %v2959 = vsel %vm416, %v2957, %v2958
    %v2960 = vrot.slane %v2914, 7
    %v2961 = vsel %vm414, %v2960, %v2913
    %v2962 = vsel %vm416, %v2960, %v2961
    %v2979 = vcombine.low %v2917, %v2923
    %v2981 = vunpack.c.l.s4 1983009808
    %v2982 = vunpack.c.0.s8 %v2981
    %v2983 = vlaneseq
    %v2984 = vshrl.u32 %v2983, 7
    %v2985 = vsub.s32 %v2982, %v2984
    %v2986 = vrot.slane %v2979, %v2985
    %v2987 = vcombine.low %v2920, %v2926
    %v2989 = vunpack.c.l.s4 1983009808
    %v2990 = vunpack.c.0.s8 %v2989
    %v2991 = vlaneseq
    %v2992 = vshrl.u32 %v2991, 7
    %v2993 = vsub.s32 %v2990, %v2992
    %v2994 = vrot.slane %v2987, %v2993
    %v2995 = vcombine.low %v2986, %v2994
    %v2997 = vunpack.c.l.s4 1934713408
    %v2998 = vunpack.c.0.s8 %v2997
    %v2999 = vlaneseq
    %v3000 = vshrl.u32 %v2999, 7
    %v3001 = vsub.s32 %v2998, %v3000
    %v3002 = vrot.slane %v2995, %v3001
    %v3003 = vcombine.high %v3002, 0.0
    %v3004 = vcombine.low %v2929, %v2935
    %v3006 = vunpack.c.l.s4 1983009808
    %v3007 = vunpack.c.0.s8 %v3006
    %v3008 = vlaneseq
    %v3009 = vshrl.u32 %v3008, 7
    %v3010 = vsub.s32 %v3007, %v3009
    %v3011 = vrot.slane %v3004, %v3010
    %v3012 = vcombine.low %v2932, %v2938
    %v3014 = vunpack.c.l.s4 1983009808
    %v3015 = vunpack.c.0.s8 %v3014
    %v3016 = vlaneseq
    %v3017 = vshrl.u32 %v3016, 7
    %v3018 = vsub.s32 %v3015, %v3017
    %v3019 = vrot.slane %v3012, %v3018
    %v3020 = vcombine.low %v3011, %v3019
    %v3022 = vunpack.c.l.s4 1934713408
    %v3023 = vunpack.c.0.s8 %v3022
    %v3024 = vlaneseq
    %v3025 = vshrl.u32 %v3024, 7
    %v3026 = vsub.s32 %v3023, %v3025
    %v3027 = vrot.slane %v3020, %v3026
    %v3028 = vcombine.high %v3027, 0.0
    %v3029 = vcombine.low %v2941, %v2947
    %v3031 = vunpack.c.l.s4 1983009808
    %v3032 = vunpack.c.0.s8 %v3031
    %v3033 = vlaneseq
    %v3034 = vshrl.u32 %v3033, 7
    %v3035 = vsub.s32 %v3032, %v3034
    %v3036 = vrot.slane %v3029, %v3035
    %v3037 = vcombine.low %v2944, %v2950
    %v3039 = vunpack.c.l.s4 1983009808
    %v3040 = vunpack.c.0.s8 %v3039
    %v3041 = vlaneseq
    %v3042 = vshrl.u32 %v3041, 7
    %v3043 = vsub.s32 %v3040, %v3042
    %v3044 = vrot.slane %v3037, %v3043
    %v3045 = vcombine.low %v3036, %v3044
    %v3047 = vunpack.c.l.s4 1934713408
    %v3048 = vunpack.c.0.s8 %v3047
    %v3049 = vlaneseq
    %v3050 = vshrl.u32 %v3049, 7
    %v3051 = vsub.s32 %v3048, %v3050
    %v3052 = vrot.slane %v3045, %v3051
    %v3053 = vcombine.high %v3052, 0.0
    %v3054 = vcombine.low %v2953, %v2959
    %v3056 = vunpack.c.l.s4 1983009808
    %v3057 = vunpack.c.0.s8 %v3056
    %v3058 = vlaneseq
    %v3059 = vshrl.u32 %v3058, 7
    %v3060 = vsub.s32 %v3057, %v3059
    %v3061 = vrot.slane %v3054, %v3060
    %v3062 = vcombine.low %v2956, %v2962
    %v3064 = vunpack.c.l.s4 1983009808
    %v3065 = vunpack.c.0.s8 %v3064
    %v3066 = vlaneseq
    %v3067 = vshrl.u32 %v3066, 7
    %v3068 = vsub.s32 %v3065, %v3067
    %v3069 = vrot.slane %v3062, %v3068
    %v3070 = vcombine.low %v3061, %v3069
    %v3072 = vunpack.c.l.s4 1934713408
    %v3073 = vunpack.c.0.s8 %v3072
    %v3074 = vlaneseq
    %v3075 = vshrl.u32 %v3074, 7
    %v3076 = vsub.s32 %v3073, %v3075
    %v3077 = vrot.slane %v3070, %v3076
    %v3078 = vcombine.high %v3077, 0.0
    %v3081 = vrot.slane %v2447, 4
    %v3082 = vrot.slane %v2448, 4
    %3083 = vrot.lane.b32.xlu0 %v2447, 112
    %v3084 = vpop.permute.xlu0 %3083
    %3085 = vrot.lane.b32.xlu0 %v2448, 112
    %v3086 = vpop.permute.xlu0 %3085
    %v3087 = vrot.slane %v3084, 4
    %v3088 = vrot.slane %v3086, 4
    %3089 = vrot.lane.b32.xlu0 %v2447, 96
    %v3090 = vpop.permute.xlu0 %3089
    %3091 = vrot.lane.b32.xlu0 %v2448, 96
    %v3092 = vpop.permute.xlu0 %3091
    %v3093 = vrot.slane %v3090, 4
    %v3094 = vrot.slane %v3092, 4
    %3095 = vrot.lane.b32.xlu0 %v2447, 80
    %v3096 = vpop.permute.xlu0 %3095
    %3097 = vrot.lane.b32.xlu0 %v2448, 80
    %v3098 = vpop.permute.xlu0 %3097
    %v3099 = vrot.slane %v3096, 4
    %v3100 = vrot.slane %v3098, 4
    %3101 = vrot.lane.b32.xlu0 %v2447, 64
    %v3102 = vpop.permute.xlu0 %3101
    %3103 = vrot.lane.b32.xlu0 %v2448, 64
    %v3104 = vpop.permute.xlu0 %3103
    %v3105 = vrot.slane %v3102, 4
    %v3106 = vrot.slane %v3104, 4
    %3107 = vrot.lane.b32.xlu0 %v2447, 48
    %v3108 = vpop.permute.xlu0 %3107
    %3109 = vrot.lane.b32.xlu0 %v2448, 48
    %v3110 = vpop.permute.xlu0 %3109
    %v3111 = vrot.slane %v3108, 4
    %v3112 = vrot.slane %v3110, 4
    %3113 = vrot.lane.b32.xlu0 %v2447, 32
    %v3114 = vpop.permute.xlu0 %3113
    %3115 = vrot.lane.b32.xlu0 %v2448, 32
    %v3116 = vpop.permute.xlu0 %3115
    %v3117 = vrot.slane %v3114, 4
    %v3118 = vrot.slane %v3116, 4
    %3119 = vrot.lane.b32.xlu0 %v2447, 16
    %v3120 = vpop.permute.xlu0 %3119
    %3121 = vrot.lane.b32.xlu0 %v2448, 16
    %v3122 = vpop.permute.xlu0 %3121
    %v3123 = vrot.slane %v3120, 4
    %v3124 = vrot.slane %v3122, 4
    %v3125 = vrot.slane %v2448, 7
    %v3126 = vsel %vm414, %v3125, %v2447
    %v3127 = vsel %vm416, %v3125, %v3126
    %v3128 = vrot.slane %v3086, 7
    %v3129 = vsel %vm414, %v3128, %v3084
    %v3130 = vsel %vm416, %v3128, %v3129
    %v3131 = vrot.slane %v3092, 7
    %v3132 = vsel %vm414, %v3131, %v3090
    %v3133 = vsel %vm416, %v3131, %v3132
    %v3134 = vrot.slane %v3098, 7
    %v3135 = vsel %vm414, %v3134, %v3096
    %v3136 = vsel %vm416, %v3134, %v3135
    %v3137 = vrot.slane %v3104, 7
    %v3138 = vsel %vm414, %v3137, %v3102
    %v3139 = vsel %vm416, %v3137, %v3138
    %v3140 = vrot.slane %v3110, 7
    %v3141 = vsel %vm414, %v3140, %v3108
    %v3142 = vsel %vm416, %v3140, %v3141
    %v3143 = vrot.slane %v3116, 7
    %v3144 = vsel %vm414, %v3143, %v3114
    %v3145 = vsel %vm416, %v3143, %v3144
    %v3146 = vrot.slane %v3122, 7
    %v3147 = vsel %vm414, %v3146, %v3120
    %v3148 = vsel %vm416, %v3146, %v3147
    %v3149 = vrot.slane %v3082, 7
    %v3150 = vsel %vm414, %v3149, %v3081
    %v3151 = vsel %vm416, %v3149, %v3150
    %v3152 = vrot.slane %v3088, 7
    %v3153 = vsel %vm414, %v3152, %v3087
    %v3154 = vsel %vm416, %v3152, %v3153
    %v3155 = vrot.slane %v3094, 7
    %v3156 = vsel %vm414, %v3155, %v3093
    %v3157 = vsel %vm416, %v3155, %v3156
    %v3158 = vrot.slane %v3100, 7
    %v3159 = vsel %vm414, %v3158, %v3099
    %v3160 = vsel %vm416, %v3158, %v3159
    %v3161 = vrot.slane %v3106, 7
    %v3162 = vsel %vm414, %v3161, %v3105
    %v3163 = vsel %vm416, %v3161, %v3162
    %v3164 = vrot.slane %v3112, 7
    %v3165 = vsel %vm414, %v3164, %v3111
    %v3166 = vsel %vm416, %v3164, %v3165
    %v3167 = vrot.slane %v3118, 7
    %v3168 = vsel %vm414, %v3167, %v3117
    %v3169 = vsel %vm416, %v3167, %v3168
    %v3170 = vrot.slane %v3124, 7
    %v3171 = vsel %vm414, %v3170, %v3123
    %v3172 = vsel %vm416, %v3170, %v3171
    %v3189 = vcombine.low %v3127, %v3133
    %v3191 = vunpack.c.l.s4 1983009808
    %v3192 = vunpack.c.0.s8 %v3191
    %v3193 = vlaneseq
    %v3194 = vshrl.u32 %v3193, 7
    %v3195 = vsub.s32 %v3192, %v3194
    %v3196 = vrot.slane %v3189, %v3195
    %v3197 = vcombine.low %v3130, %v3136
    %v3199 = vunpack.c.l.s4 1983009808
    %v3200 = vunpack.c.0.s8 %v3199
    %v3201 = vlaneseq
    %v3202 = vshrl.u32 %v3201, 7
    %v3203 = vsub.s32 %v3200, %v3202
    %v3204 = vrot.slane %v3197, %v3203
    %v3205 = vcombine.low %v3196, %v3204
    %v3207 = vunpack.c.l.s4 1934713408
    %v3208 = vunpack.c.0.s8 %v3207
    %v3209 = vlaneseq
    %v3210 = vshrl.u32 %v3209, 7
    %v3211 = vsub.s32 %v3208, %v3210
    %v3212 = vrot.slane %v3205, %v3211
    %v3213 = vcombine.high %v3212, 0.0
    %v3214 = vcombine.low %v3139, %v3145
    %v3216 = vunpack.c.l.s4 1983009808
    %v3217 = vunpack.c.0.s8 %v3216
    %v3218 = vlaneseq
    %v3219 = vshrl.u32 %v3218, 7
    %v3220 = vsub.s32 %v3217, %v3219
    %v3221 = vrot.slane %v3214, %v3220
    %v3222 = vcombine.low %v3142, %v3148
    %v3224 = vunpack.c.l.s4 1983009808
    %v3225 = vunpack.c.0.s8 %v3224
    %v3226 = vlaneseq
    %v3227 = vshrl.u32 %v3226, 7
    %v3228 = vsub.s32 %v3225, %v3227
    %v3229 = vrot.slane %v3222, %v3228
    %v3230 = vcombine.low %v3221, %v3229
    %v3232 = vunpack.c.l.s4 1934713408
    %v3233 = vunpack.c.0.s8 %v3232
    %v3234 = vlaneseq
    %v3235 = vshrl.u32 %v3234, 7
    %v3236 = vsub.s32 %v3233, %v3235
    %v3237 = vrot.slane %v3230, %v3236
    %v3238 = vcombine.high %v3237, 0.0
    %v3239 = vcombine.low %v3151, %v3157
    %v3241 = vunpack.c.l.s4 1983009808
    %v3242 = vunpack.c.0.s8 %v3241
    %v3243 = vlaneseq
    %v3244 = vshrl.u32 %v3243, 7
    %v3245 = vsub.s32 %v3242, %v3244
    %v3246 = vrot.slane %v3239, %v3245
    %v3247 = vcombine.low %v3154, %v3160
    %v3249 = vunpack.c.l.s4 1983009808
    %v3250 = vunpack.c.0.s8 %v3249
    %v3251 = vlaneseq
    %v3252 = vshrl.u32 %v3251, 7
    %v3253 = vsub.s32 %v3250, %v3252
    %v3254 = vrot.slane %v3247, %v3253
    %v3255 = vcombine.low %v3246, %v3254
    %v3257 = vunpack.c.l.s4 1934713408
    %v3258 = vunpack.c.0.s8 %v3257
    %v3259 = vlaneseq
    %v3260 = vshrl.u32 %v3259, 7
    %v3261 = vsub.s32 %v3258, %v3260
    %v3262 = vrot.slane %v3255, %v3261
    %v3263 = vcombine.high %v3262, 0.0
    %v3264 = vcombine.low %v3163, %v3169
    %v3266 = vunpack.c.l.s4 1983009808
    %v3267 = vunpack.c.0.s8 %v3266
    %v3268 = vlaneseq
    %v3269 = vshrl.u32 %v3268, 7
    %v3270 = vsub.s32 %v3267, %v3269
    %v3271 = vrot.slane %v3264, %v3270
    %v3272 = vcombine.low %v3166, %v3172
    %v3274 = vunpack.c.l.s4 1983009808
    %v3275 = vunpack.c.0.s8 %v3274
    %v3276 = vlaneseq
    %v3277 = vshrl.u32 %v3276, 7
    %v3278 = vsub.s32 %v3275, %v3277
    %v3279 = vrot.slane %v3272, %v3278
    %v3280 = vcombine.low %v3271, %v3279
    %v3282 = vunpack.c.l.s4 1934713408
    %v3283 = vunpack.c.0.s8 %v3282
    %v3284 = vlaneseq
    %v3285 = vshrl.u32 %v3284, 7
    %v3286 = vsub.s32 %v3283, %v3285
    %v3287 = vrot.slane %v3280, %v3286
    %v3288 = vcombine.high %v3287, 0.0
    %s3289 = sld [smem:[#allocation14]]
    %v3290 = vstv %s3289
    %v3291 = vmul.f32 %v165, %v3290
    %v3292 = vmul.f32 %v166, %v3290
    %s3293 = sld [smem:[#allocation14 + $0x1]]
    %v3294 = vstv %s3293
    %v3295 = vmul.f32 %v165, %v3294
    %v3296 = vmul.f32 %v166, %v3294
    %v3299 = vrot.slane %v3295, 5
    %v3300 = vrot.slane %v3299, 4
    %v3301 = vrot.slane %v3296, 5
    %v3302 = vrot.slane %v3301, 4
    %v3305 = vadd.f32 %v3291, %v3300
    %v3306 = vadd.f32 %v3292, %v3302
    %s3307 = sld [smem:[#allocation14 + $0x2]]
    %v3308 = vstv %s3307
    %v3309 = vmul.f32 %v165, %v3308
    %v3310 = vmul.f32 %v166, %v3308
    %v3313 = vrot.slane %v3309, 6
    %v3314 = vrot.slane %v3313, 4
    %v3315 = vrot.slane %v3310, 6
    %v3316 = vrot.slane %v3315, 4
    %v3319 = vadd.f32 %v3305, %v3314
    %v3320 = vadd.f32 %v3306, %v3316
    %s3321 = sld [smem:[#allocation14 + $0x3]]
    %v3322 = vstv %s3321
    %v3323 = vmul.f32 %v165, %v3322
    %v3324 = vmul.f32 %v166, %v3322
    %v3327 = vrot.slane %v3323, 7
    %v3328 = vrot.slane %v3327, 4
    %v3329 = vrot.slane %v3324, 7
    %v3330 = vrot.slane %v3329, 4
    %v3333 = vadd.f32 %v3319, %v3328
    %v3334 = vadd.f32 %v3320, %v3330
    %s3335 = sld [smem:[#allocation15]]
    %v3336 = vstv %s3335
    %v3337 = vadd.f32 %v3333, %v3336
    %v3338 = vadd.f32 %v3334, %v3336
    %s3339 = sld [smem:[#allocation14 + $0x4]]
    %v3340 = vstv %s3339
    %v3341 = vmul.f32 %v165, %v3340
    %v3342 = vmul.f32 %v166, %v3340
    %s3343 = sld [smem:[#allocation14 + $0x5]]
    %v3344 = vstv %s3343
    %v3345 = vmul.f32 %v165, %v3344
    %v3346 = vmul.f32 %v166, %v3344
    %v3349 = vrot.slane %v3345, 5
    %v3350 = vrot.slane %v3349, 4
    %v3351 = vrot.slane %v3346, 5
    %v3352 = vrot.slane %v3351, 4
    %v3355 = vadd.f32 %v3341, %v3350
    %v3356 = vadd.f32 %v3342, %v3352
    %s3357 = sld [smem:[#allocation14 + $0x6]]
    %v3358 = vstv %s3357
    %v3359 = vmul.f32 %v165, %v3358
    %v3360 = vmul.f32 %v166, %v3358
    %v3363 = vrot.slane %v3359, 6
    %v3364 = vrot.slane %v3363, 4
    %v3365 = vrot.slane %v3360, 6
    %v3366 = vrot.slane %v3365, 4
    %v3369 = vadd.f32 %v3355, %v3364
    %v3370 = vadd.f32 %v3356, %v3366
    %s3371 = sld [smem:[#allocation14 + $0x7]]
    %v3372 = vstv %s3371
    %v3373 = vmul.f32 %v165, %v3372
    %v3374 = vmul.f32 %v166, %v3372
    %v3377 = vrot.slane %v3373, 7
    %v3378 = vrot.slane %v3377, 4
    %v3379 = vrot.slane %v3374, 7
    %v3380 = vrot.slane %v3379, 4
    %v3383 = vadd.f32 %v3369, %v3378
    %v3384 = vadd.f32 %v3370, %v3380
    %s3385 = sld [smem:[#allocation15 + $0x1]]
    %v3386 = vstv %s3385
    %v3387 = vadd.f32 %v3383, %v3386
    %v3388 = vadd.f32 %v3384, %v3386
    %s3389 = sld [smem:[#allocation14 + $0x8]]
    %v3390 = vstv %s3389
    %v3391 = vmul.f32 %v165, %v3390
    %v3392 = vmul.f32 %v166, %v3390
    %s3393 = sld [smem:[#allocation14 + $0x9]]
    %v3394 = vstv %s3393
    %v3395 = vmul.f32 %v165, %v3394
    %v3396 = vmul.f32 %v166, %v3394
    %v3399 = vrot.slane %v3395, 5
    %v3400 = vrot.slane %v3399, 4
    %v3401 = vrot.slane %v3396, 5
    %v3402 = vrot.slane %v3401, 4
    %v3405 = vadd.f32 %v3391, %v3400
    %v3406 = vadd.f32 %v3392, %v3402
    %s3407 = sld [smem:[#allocation14 + $0xa]]
    %v3408 = vstv %s3407
    %v3409 = vmul.f32 %v165, %v3408
    %v3410 = vmul.f32 %v166, %v3408
    %v3413 = vrot.slane %v3409, 6
    %v3414 = vrot.slane %v3413, 4
    %v3415 = vrot.slane %v3410, 6
    %v3416 = vrot.slane %v3415, 4
    %v3419 = vadd.f32 %v3405, %v3414
    %v3420 = vadd.f32 %v3406, %v3416
    %s3421 = sld [smem:[#allocation14 + $0xb]]
    %v3422 = vstv %s3421
    %v3423 = vmul.f32 %v165, %v3422
    %v3424 = vmul.f32 %v166, %v3422
    %v3427 = vrot.slane %v3423, 7
    %v3428 = vrot.slane %v3427, 4
    %v3429 = vrot.slane %v3424, 7
    %v3430 = vrot.slane %v3429, 4
    %v3433 = vadd.f32 %v3419, %v3428
    %v3434 = vadd.f32 %v3420, %v3430
    %s3435 = sld [smem:[#allocation15 + $0x2]]
    %v3436 = vstv %s3435
    %v3437 = vadd.f32 %v3433, %v3436
    %v3438 = vadd.f32 %v3434, %v3436
    %s3439 = sld [smem:[#allocation14 + $0xc]]
    %v3440 = vstv %s3439
    %v3441 = vmul.f32 %v165, %v3440
    %v3442 = vmul.f32 %v166, %v3440
    %s3443 = sld [smem:[#allocation14 + $0xd]]
    %v3444 = vstv %s3443
    %v3445 = vmul.f32 %v165, %v3444
    %v3446 = vmul.f32 %v166, %v3444
    %v3449 = vrot.slane %v3445, 5
    %v3450 = vrot.slane %v3449, 4
    %v3451 = vrot.slane %v3446, 5
    %v3452 = vrot.slane %v3451, 4
    %v3455 = vadd.f32 %v3441, %v3450
    %v3456 = vadd.f32 %v3442, %v3452
    %s3457 = sld [smem:[#allocation14 + $0xe]]
    %v3458 = vstv %s3457
    %v3459 = vmul.f32 %v165, %v3458
    %v3460 = vmul.f32 %v166, %v3458
    %v3463 = vrot.slane %v3459, 6
    %v3464 = vrot.slane %v3463, 4
    %v3465 = vrot.slane %v3460, 6
    %v3466 = vrot.slane %v3465, 4
    %v3469 = vadd.f32 %v3455, %v3464
    %v3470 = vadd.f32 %v3456, %v3466
    %s3471 = sld [smem:[#allocation14 + $0xf]]
    %v3472 = vstv %s3471
    %v3473 = vmul.f32 %v165, %v3472
    %v3474 = vmul.f32 %v166, %v3472
    %v3477 = vrot.slane %v3473, 7
    %v3478 = vrot.slane %v3477, 4
    %v3479 = vrot.slane %v3474, 7
    %v3480 = vrot.slane %v3479, 4
    %v3483 = vadd.f32 %v3469, %v3478
    %v3484 = vadd.f32 %v3470, %v3480
    %s3485 = sld [smem:[#allocation15 + $0x3]]
    %v3486 = vstv %s3485
    %v3487 = vadd.f32 %v3483, %v3486
    %v3488 = vadd.f32 %v3484, %v3486
    %v3491 = vrot.slane %v3337, 4
    %v3492 = vrot.slane %v3338, 4
    %3493 = vrot.lane.b32.xlu0 %v3337, 112
    %v3494 = vpop.permute.xlu0 %3493
    %3495 = vrot.lane.b32.xlu0 %v3338, 112
    %v3496 = vpop.permute.xlu0 %3495
    %v3497 = vrot.slane %v3494, 4
    %v3498 = vrot.slane %v3496, 4
    %3499 = vrot.lane.b32.xlu0 %v3337, 96
    %v3500 = vpop.permute.xlu0 %3499
    %3501 = vrot.lane.b32.xlu0 %v3338, 96
    %v3502 = vpop.permute.xlu0 %3501
    %v3503 = vrot.slane %v3500, 4
    %v3504 = vrot.slane %v3502, 4
    %3505 = vrot.lane.b32.xlu0 %v3337, 80
    %v3506 = vpop.permute.xlu0 %3505
    %3507 = vrot.lane.b32.xlu0 %v3338, 80
    %v3508 = vpop.permute.xlu0 %3507
    %v3509 = vrot.slane %v3506, 4
    %v3510 = vrot.slane %v3508, 4
    %3511 = vrot.lane.b32.xlu0 %v3337, 64
    %v3512 = vpop.permute.xlu0 %3511
    %3513 = vrot.lane.b32.xlu0 %v3338, 64
    %v3514 = vpop.permute.xlu0 %3513
    %v3515 = vrot.slane %v3512, 4
    %v3516 = vrot.slane %v3514, 4
    %3517 = vrot.lane.b32.xlu0 %v3337, 48
    %v3518 = vpop.permute.xlu0 %3517
    %3519 = vrot.lane.b32.xlu0 %v3338, 48
    %v3520 = vpop.permute.xlu0 %3519
    %v3521 = vrot.slane %v3518, 4
    %v3522 = vrot.slane %v3520, 4
    %3523 = vrot.lane.b32.xlu0 %v3337, 32
    %v3524 = vpop.permute.xlu0 %3523
    %3525 = vrot.lane.b32.xlu0 %v3338, 32
    %v3526 = vpop.permute.xlu0 %3525
    %v3527 = vrot.slane %v3524, 4
    %v3528 = vrot.slane %v3526, 4
    %3529 = vrot.lane.b32.xlu0 %v3337, 16
    %v3530 = vpop.permute.xlu0 %3529
    %3531 = vrot.lane.b32.xlu0 %v3338, 16
    %v3532 = vpop.permute.xlu0 %3531
    %v3533 = vrot.slane %v3530, 4
    %v3534 = vrot.slane %v3532, 4
    %v3535 = vrot.slane %v3338, 7
    %v3536 = vsel %vm414, %v3535, %v3337
    %v3537 = vsel %vm416, %v3535, %v3536
    %v3538 = vrot.slane %v3496, 7
    %v3539 = vsel %vm414, %v3538, %v3494
    %v3540 = vsel %vm416, %v3538, %v3539
    %v3541 = vrot.slane %v3502, 7
    %v3542 = vsel %vm414, %v3541, %v3500
    %v3543 = vsel %vm416, %v3541, %v3542
    %v3544 = vrot.slane %v3508, 7
    %v3545 = vsel %vm414, %v3544, %v3506
    %v3546 = vsel %vm416, %v3544, %v3545
    %v3547 = vrot.slane %v3514, 7
    %v3548 = vsel %vm414, %v3547, %v3512
    %v3549 = vsel %vm416, %v3547, %v3548
    %v3550 = vrot.slane %v3520, 7
    %v3551 = vsel %vm414, %v3550, %v3518
    %v3552 = vsel %vm416, %v3550, %v3551
    %v3553 = vrot.slane %v3526, 7
    %v3554 = vsel %vm414, %v3553, %v3524
    %v3555 = vsel %vm416, %v3553, %v3554
    %v3556 = vrot.slane %v3532, 7
    %v3557 = vsel %vm414, %v3556, %v3530
    %v3558 = vsel %vm416, %v3556, %v3557
    %v3559 = vrot.slane %v3492, 7
    %v3560 = vsel %vm414, %v3559, %v3491
    %v3561 = vsel %vm416, %v3559, %v3560
    %v3562 = vrot.slane %v3498, 7
    %v3563 = vsel %vm414, %v3562, %v3497
    %v3564 = vsel %vm416, %v3562, %v3563
    %v3565 = vrot.slane %v3504, 7
    %v3566 = vsel %vm414, %v3565, %v3503
    %v3567 = vsel %vm416, %v3565, %v3566
    %v3568 = vrot.slane %v3510, 7
    %v3569 = vsel %vm414, %v3568, %v3509
    %v3570 = vsel %vm416, %v3568, %v3569
    %v3571 = vrot.slane %v3516, 7
    %v3572 = vsel %vm414, %v3571, %v3515
    %v3573 = vsel %vm416, %v3571, %v3572
    %v3574 = vrot.slane %v3522, 7
    %v3575 = vsel %vm414, %v3574, %v3521
    %v3576 = vsel %vm416, %v3574, %v3575
    %v3577 = vrot.slane %v3528, 7
    %v3578 = vsel %vm414, %v3577, %v3527
    %v3579 = vsel %vm416, %v3577, %v3578
    %v3580 = vrot.slane %v3534, 7
    %v3581 = vsel %vm414, %v3580, %v3533
    %v3582 = vsel %vm416, %v3580, %v3581
    %v3599 = vcombine.low %v3537, %v3543
    %v3601 = vunpack.c.l.s4 1983009808
    %v3602 = vunpack.c.0.s8 %v3601
    %v3603 = vlaneseq
    %v3604 = vshrl.u32 %v3603, 7
    %v3605 = vsub.s32 %v3602, %v3604
    %v3606 = vrot.slane %v3599, %v3605
    %v3607 = vcombine.low %v3540, %v3546
    %v3609 = vunpack.c.l.s4 1983009808
    %v3610 = vunpack.c.0.s8 %v3609
    %v3611 = vlaneseq
    %v3612 = vshrl.u32 %v3611, 7
    %v3613 = vsub.s32 %v3610, %v3612
    %v3614 = vrot.slane %v3607, %v3613
    %v3615 = vcombine.low %v3606, %v3614
    %v3617 = vunpack.c.l.s4 1934713408
    %v3618 = vunpack.c.0.s8 %v3617
    %v3619 = vlaneseq
    %v3620 = vshrl.u32 %v3619, 7
    %v3621 = vsub.s32 %v3618, %v3620
    %v3622 = vrot.slane %v3615, %v3621
    %v3623 = vcombine.high %v3622, 0.0
    %v3624 = vcombine.low %v3549, %v3555
    %v3626 = vunpack.c.l.s4 1983009808
    %v3627 = vunpack.c.0.s8 %v3626
    %v3628 = vlaneseq
    %v3629 = vshrl.u32 %v3628, 7
    %v3630 = vsub.s32 %v3627, %v3629
    %v3631 = vrot.slane %v3624, %v3630
    %v3632 = vcombine.low %v3552, %v3558
    %v3634 = vunpack.c.l.s4 1983009808
    %v3635 = vunpack.c.0.s8 %v3634
    %v3636 = vlaneseq
    %v3637 = vshrl.u32 %v3636, 7
    %v3638 = vsub.s32 %v3635, %v3637
    %v3639 = vrot.slane %v3632, %v3638
    %v3640 = vcombine.low %v3631, %v3639
    %v3642 = vunpack.c.l.s4 1934713408
    %v3643 = vunpack.c.0.s8 %v3642
    %v3644 = vlaneseq
    %v3645 = vshrl.u32 %v3644, 7
    %v3646 = vsub.s32 %v3643, %v3645
    %v3647 = vrot.slane %v3640, %v3646
    %v3648 = vcombine.high %v3647, 0.0
    %v3649 = vcombine.low %v3561, %v3567
    %v3651 = vunpack.c.l.s4 1983009808
    %v3652 = vunpack.c.0.s8 %v3651
    %v3653 = vlaneseq
    %v3654 = vshrl.u32 %v3653, 7
    %v3655 = vsub.s32 %v3652, %v3654
    %v3656 = vrot.slane %v3649, %v3655
    %v3657 = vcombine.low %v3564, %v3570
    %v3659 = vunpack.c.l.s4 1983009808
    %v3660 = vunpack.c.0.s8 %v3659
    %v3661 = vlaneseq
    %v3662 = vshrl.u32 %v3661, 7
    %v3663 = vsub.s32 %v3660, %v3662
    %v3664 = vrot.slane %v3657, %v3663
    %v3665 = vcombine.low %v3656, %v3664
    %v3667 = vunpack.c.l.s4 1934713408
    %v3668 = vunpack.c.0.s8 %v3667
    %v3669 = vlaneseq
    %v3670 = vshrl.u32 %v3669, 7
    %v3671 = vsub.s32 %v3668, %v3670
    %v3672 = vrot.slane %v3665, %v3671
    %v3673 = vcombine.high %v3672, 0.0
    %v3674 = vcombine.low %v3573, %v3579
    %v3676 = vunpack.c.l.s4 1983009808
    %v3677 = vunpack.c.0.s8 %v3676
    %v3678 = vlaneseq
    %v3679 = vshrl.u32 %v3678, 7
    %v3680 = vsub.s32 %v3677, %v3679
    %v3681 = vrot.slane %v3674, %v3680
    %v3682 = vcombine.low %v3576, %v3582
    %v3684 = vunpack.c.l.s4 1983009808
    %v3685 = vunpack.c.0.s8 %v3684
    %v3686 = vlaneseq
    %v3687 = vshrl.u32 %v3686, 7
    %v3688 = vsub.s32 %v3685, %v3687
    %v3689 = vrot.slane %v3682, %v3688
    %v3690 = vcombine.low %v3681, %v3689
    %v3692 = vunpack.c.l.s4 1934713408
    %v3693 = vunpack.c.0.s8 %v3692
    %v3694 = vlaneseq
    %v3695 = vshrl.u32 %v3694, 7
    %v3696 = vsub.s32 %v3693, %v3695
    %v3697 = vrot.slane %v3690, %v3696
    %v3698 = vcombine.high %v3697, 0.0
    %v3701 = vrot.slane %v3387, 4
    %v3702 = vrot.slane %v3388, 4
    %3703 = vrot.lane.b32.xlu0 %v3387, 112
    %v3704 = vpop.permute.xlu0 %3703
    %3705 = vrot.lane.b32.xlu0 %v3388, 112
    %v3706 = vpop.permute.xlu0 %3705
    %v3707 = vrot.slane %v3704, 4
    %v3708 = vrot.slane %v3706, 4
    %3709 = vrot.lane.b32.xlu0 %v3387, 96
    %v3710 = vpop.permute.xlu0 %3709
    %3711 = vrot.lane.b32.xlu0 %v3388, 96
    %v3712 = vpop.permute.xlu0 %3711
    %v3713 = vrot.slane %v3710, 4
    %v3714 = vrot.slane %v3712, 4
    %3715 = vrot.lane.b32.xlu0 %v3387, 80
    %v3716 = vpop.permute.xlu0 %3715
    %3717 = vrot.lane.b32.xlu0 %v3388, 80
    %v3718 = vpop.permute.xlu0 %3717
    %v3719 = vrot.slane %v3716, 4
    %v3720 = vrot.slane %v3718, 4
    %3721 = vrot.lane.b32.xlu0 %v3387, 64
    %v3722 = vpop.permute.xlu0 %3721
    %3723 = vrot.lane.b32.xlu0 %v3388, 64
    %v3724 = vpop.permute.xlu0 %3723
    %v3725 = vrot.slane %v3722, 4
    %v3726 = vrot.slane %v3724, 4
    %3727 = vrot.lane.b32.xlu0 %v3387, 48
    %v3728 = vpop.permute.xlu0 %3727
    %3729 = vrot.lane.b32.xlu0 %v3388, 48
    %v3730 = vpop.permute.xlu0 %3729
    %v3731 = vrot.slane %v3728, 4
    %v3732 = vrot.slane %v3730, 4
    %3733 = vrot.lane.b32.xlu0 %v3387, 32
    %v3734 = vpop.permute.xlu0 %3733
    %3735 = vrot.lane.b32.xlu0 %v3388, 32
    %v3736 = vpop.permute.xlu0 %3735
    %v3737 = vrot.slane %v3734, 4
    %v3738 = vrot.slane %v3736, 4
    %3739 = vrot.lane.b32.xlu0 %v3387, 16
    %v3740 = vpop.permute.xlu0 %3739
    %3741 = vrot.lane.b32.xlu0 %v3388, 16
    %v3742 = vpop.permute.xlu0 %3741
    %v3743 = vrot.slane %v3740, 4
    %v3744 = vrot.slane %v3742, 4
    %v3745 = vrot.slane %v3388, 7
    %v3746 = vsel %vm414, %v3745, %v3387
    %v3747 = vsel %vm416, %v3745, %v3746
    %v3748 = vrot.slane %v3706, 7
    %v3749 = vsel %vm414, %v3748, %v3704
    %v3750 = vsel %vm416, %v3748, %v3749
    %v3751 = vrot.slane %v3712, 7
    %v3752 = vsel %vm414, %v3751, %v3710
    %v3753 = vsel %vm416, %v3751, %v3752
    %v3754 = vrot.slane %v3718, 7
    %v3755 = vsel %vm414, %v3754, %v3716
    %v3756 = vsel %vm416, %v3754, %v3755
    %v3757 = vrot.slane %v3724, 7
    %v3758 = vsel %vm414, %v3757, %v3722
    %v3759 = vsel %vm416, %v3757, %v3758
    %v3760 = vrot.slane %v3730, 7
    %v3761 = vsel %vm414, %v3760, %v3728
    %v3762 = vsel %vm416, %v3760, %v3761
    %v3763 = vrot.slane %v3736, 7
    %v3764 = vsel %vm414, %v3763, %v3734
    %v3765 = vsel %vm416, %v3763, %v3764
    %v3766 = vrot.slane %v3742, 7
    %v3767 = vsel %vm414, %v3766, %v3740
    %v3768 = vsel %vm416, %v3766, %v3767
    %v3769 = vrot.slane %v3702, 7
    %v3770 = vsel %vm414, %v3769, %v3701
    %v3771 = vsel %vm416, %v3769, %v3770
    %v3772 = vrot.slane %v3708, 7
    %v3773 = vsel %vm414, %v3772, %v3707
    %v3774 = vsel %vm416, %v3772, %v3773
    %v3775 = vrot.slane %v3714, 7
    %v3776 = vsel %vm414, %v3775, %v3713
    %v3777 = vsel %vm416, %v3775, %v3776
    %v3778 = vrot.slane %v3720, 7
    %v3779 = vsel %vm414, %v3778, %v3719
    %v3780 = vsel %vm416, %v3778, %v3779
    %v3781 = vrot.slane %v3726, 7
    %v3782 = vsel %vm414, %v3781, %v3725
    %v3783 = vsel %vm416, %v3781, %v3782
    %v3784 = vrot.slane %v3732, 7
    %v3785 = vsel %vm414, %v3784, %v3731
    %v3786 = vsel %vm416, %v3784, %v3785
    %v3787 = vrot.slane %v3738, 7
    %v3788 = vsel %vm414, %v3787, %v3737
    %v3789 = vsel %vm416, %v3787, %v3788
    %v3790 = vrot.slane %v3744, 7
    %v3791 = vsel %vm414, %v3790, %v3743
    %v3792 = vsel %vm416, %v3790, %v3791
    %v3809 = vcombine.low %v3747, %v3753
    %v3811 = vunpack.c.l.s4 1983009808
    %v3812 = vunpack.c.0.s8 %v3811
    %v3813 = vlaneseq
    %v3814 = vshrl.u32 %v3813, 7
    %v3815 = vsub.s32 %v3812, %v3814
    %v3816 = vrot.slane %v3809, %v3815
    %v3817 = vcombine.low %v3750, %v3756
    %v3819 = vunpack.c.l.s4 1983009808
    %v3820 = vunpack.c.0.s8 %v3819
    %v3821 = vlaneseq
    %v3822 = vshrl.u32 %v3821, 7
    %v3823 = vsub.s32 %v3820, %v3822
    %v3824 = vrot.slane %v3817, %v3823
    %v3825 = vcombine.low %v3816, %v3824
    %v3827 = vunpack.c.l.s4 1934713408
    %v3828 = vunpack.c.0.s8 %v3827
    %v3829 = vlaneseq
    %v3830 = vshrl.u32 %v3829, 7
    %v3831 = vsub.s32 %v3828, %v3830
    %v3832 = vrot.slane %v3825, %v3831
    %v3833 = vcombine.high %v3832, 0.0
    %v3834 = vcombine.low %v3759, %v3765
    %v3836 = vunpack.c.l.s4 1983009808
    %v3837 = vunpack.c.0.s8 %v3836
    %v3838 = vlaneseq
    %v3839 = vshrl.u32 %v3838, 7
    %v3840 = vsub.s32 %v3837, %v3839
    %v3841 = vrot.slane %v3834, %v3840
    %v3842 = vcombine.low %v3762, %v3768
    %v3844 = vunpack.c.l.s4 1983009808
    %v3845 = vunpack.c.0.s8 %v3844
    %v3846 = vlaneseq
    %v3847 = vshrl.u32 %v3846, 7
    %v3848 = vsub.s32 %v3845, %v3847
    %v3849 = vrot.slane %v3842, %v3848
    %v3850 = vcombine.low %v3841, %v3849
    %v3852 = vunpack.c.l.s4 1934713408
    %v3853 = vunpack.c.0.s8 %v3852
    %v3854 = vlaneseq
    %v3855 = vshrl.u32 %v3854, 7
    %v3856 = vsub.s32 %v3853, %v3855
    %v3857 = vrot.slane %v3850, %v3856
    %v3858 = vcombine.high %v3857, 0.0
    %v3859 = vcombine.low %v3771, %v3777
    %v3861 = vunpack.c.l.s4 1983009808
    %v3862 = vunpack.c.0.s8 %v3861
    %v3863 = vlaneseq
    %v3864 = vshrl.u32 %v3863, 7
    %v3865 = vsub.s32 %v3862, %v3864
    %v3866 = vrot.slane %v3859, %v3865
    %v3867 = vcombine.low %v3774, %v3780
    %v3869 = vunpack.c.l.s4 1983009808
    %v3870 = vunpack.c.0.s8 %v3869
    %v3871 = vlaneseq
    %v3872 = vshrl.u32 %v3871, 7
    %v3873 = vsub.s32 %v3870, %v3872
    %v3874 = vrot.slane %v3867, %v3873
    %v3875 = vcombine.low %v3866, %v3874
    %v3877 = vunpack.c.l.s4 1934713408
    %v3878 = vunpack.c.0.s8 %v3877
    %v3879 = vlaneseq
    %v3880 = vshrl.u32 %v3879, 7
    %v3881 = vsub.s32 %v3878, %v3880
    %v3882 = vrot.slane %v3875, %v3881
    %v3883 = vcombine.high %v3882, 0.0
    %v3884 = vcombine.low %v3783, %v3789
    %v3886 = vunpack.c.l.s4 1983009808
    %v3887 = vunpack.c.0.s8 %v3886
    %v3888 = vlaneseq
    %v3889 = vshrl.u32 %v3888, 7
    %v3890 = vsub.s32 %v3887, %v3889
    %v3891 = vrot.slane %v3884, %v3890
    %v3892 = vcombine.low %v3786, %v3792
    %v3894 = vunpack.c.l.s4 1983009808
    %v3895 = vunpack.c.0.s8 %v3894
    %v3896 = vlaneseq
    %v3897 = vshrl.u32 %v3896, 7
    %v3898 = vsub.s32 %v3895, %v3897
    %v3899 = vrot.slane %v3892, %v3898
    %v3900 = vcombine.low %v3891, %v3899
    %v3902 = vunpack.c.l.s4 1934713408
    %v3903 = vunpack.c.0.s8 %v3902
    %v3904 = vlaneseq
    %v3905 = vshrl.u32 %v3904, 7
    %v3906 = vsub.s32 %v3903, %v3905
    %v3907 = vrot.slane %v3900, %v3906
    %v3908 = vcombine.high %v3907, 0.0
    %v3911 = vrot.slane %v3437, 4
    %v3912 = vrot.slane %v3438, 4
    %3913 = vrot.lane.b32.xlu0 %v3437, 112
    %v3914 = vpop.permute.xlu0 %3913
    %3915 = vrot.lane.b32.xlu0 %v3438, 112
    %v3916 = vpop.permute.xlu0 %3915
    %v3917 = vrot.slane %v3914, 4
    %v3918 = vrot.slane %v3916, 4
    %3919 = vrot.lane.b32.xlu0 %v3437, 96
    %v3920 = vpop.permute.xlu0 %3919
    %3921 = vrot.lane.b32.xlu0 %v3438, 96
    %v3922 = vpop.permute.xlu0 %3921
    %v3923 = vrot.slane %v3920, 4
    %v3924 = vrot.slane %v3922, 4
    %3925 = vrot.lane.b32.xlu0 %v3437, 80
    %v3926 = vpop.permute.xlu0 %3925
    %3927 = vrot.lane.b32.xlu0 %v3438, 80
    %v3928 = vpop.permute.xlu0 %3927
    %v3929 = vrot.slane %v3926, 4
    %v3930 = vrot.slane %v3928, 4
    %3931 = vrot.lane.b32.xlu0 %v3437, 64
    %v3932 = vpop.permute.xlu0 %3931
    %3933 = vrot.lane.b32.xlu0 %v3438, 64
    %v3934 = vpop.permute.xlu0 %3933
    %v3935 = vrot.slane %v3932, 4
    %v3936 = vrot.slane %v3934, 4
    %3937 = vrot.lane.b32.xlu0 %v3437, 48
    %v3938 = vpop.permute.xlu0 %3937
    %3939 = vrot.lane.b32.xlu0 %v3438, 48
    %v3940 = vpop.permute.xlu0 %3939
    %v3941 = vrot.slane %v3938, 4
    %v3942 = vrot.slane %v3940, 4
    %3943 = vrot.lane.b32.xlu0 %v3437, 32
    %v3944 = vpop.permute.xlu0 %3943
    %3945 = vrot.lane.b32.xlu0 %v3438, 32
    %v3946 = vpop.permute.xlu0 %3945
    %v3947 = vrot.slane %v3944, 4
    %v3948 = vrot.slane %v3946, 4
    %3949 = vrot.lane.b32.xlu0 %v3437, 16
    %v3950 = vpop.permute.xlu0 %3949
    %3951 = vrot.lane.b32.xlu0 %v3438, 16
    %v3952 = vpop.permute.xlu0 %3951
    %v3953 = vrot.slane %v3950, 4
    %v3954 = vrot.slane %v3952, 4
    %v3955 = vrot.slane %v3438, 7
    %v3956 = vsel %vm414, %v3955, %v3437
    %v3957 = vsel %vm416, %v3955, %v3956
    %v3958 = vrot.slane %v3916, 7
    %v3959 = vsel %vm414, %v3958, %v3914
    %v3960 = vsel %vm416, %v3958, %v3959
    %v3961 = vrot.slane %v3922, 7
    %v3962 = vsel %vm414, %v3961, %v3920
    %v3963 = vsel %vm416, %v3961, %v3962
    %v3964 = vrot.slane %v3928, 7
    %v3965 = vsel %vm414, %v3964, %v3926
    %v3966 = vsel %vm416, %v3964, %v3965
    %v3967 = vrot.slane %v3934, 7
    %v3968 = vsel %vm414, %v3967, %v3932
    %v3969 = vsel %vm416, %v3967, %v3968
    %v3970 = vrot.slane %v3940, 7
    %v3971 = vsel %vm414, %v3970, %v3938
    %v3972 = vsel %vm416, %v3970, %v3971
    %v3973 = vrot.slane %v3946, 7
    %v3974 = vsel %vm414, %v3973, %v3944
    %v3975 = vsel %vm416, %v3973, %v3974
    %v3976 = vrot.slane %v3952, 7
    %v3977 = vsel %vm414, %v3976, %v3950
    %v3978 = vsel %vm416, %v3976, %v3977
    %v3979 = vrot.slane %v3912, 7
    %v3980 = vsel %vm414, %v3979, %v3911
    %v3981 = vsel %vm416, %v3979, %v3980
    %v3982 = vrot.slane %v3918, 7
    %v3983 = vsel %vm414, %v3982, %v3917
    %v3984 = vsel %vm416, %v3982, %v3983
    %v3985 = vrot.slane %v3924, 7
    %v3986 = vsel %vm414, %v3985, %v3923
    %v3987 = vsel %vm416, %v3985, %v3986
    %v3988 = vrot.slane %v3930, 7
    %v3989 = vsel %vm414, %v3988, %v3929
    %v3990 = vsel %vm416, %v3988, %v3989
    %v3991 = vrot.slane %v3936, 7
    %v3992 = vsel %vm414, %v3991, %v3935
    %v3993 = vsel %vm416, %v3991, %v3992
    %v3994 = vrot.slane %v3942, 7
    %v3995 = vsel %vm414, %v3994, %v3941
    %v3996 = vsel %vm416, %v3994, %v3995
    %v3997 = vrot.slane %v3948, 7
    %v3998 = vsel %vm414, %v3997, %v3947
    %v3999 = vsel %vm416, %v3997, %v3998
    %v4000 = vrot.slane %v3954, 7
    %v4001 = vsel %vm414, %v4000, %v3953
    %v4002 = vsel %vm416, %v4000, %v4001
    %v4019 = vcombine.low %v3957, %v3963
    %v4021 = vunpack.c.l.s4 1983009808
    %v4022 = vunpack.c.0.s8 %v4021
    %v4023 = vlaneseq
    %v4024 = vshrl.u32 %v4023, 7
    %v4025 = vsub.s32 %v4022, %v4024
    %v4026 = vrot.slane %v4019, %v4025
    %v4027 = vcombine.low %v3960, %v3966
    %v4029 = vunpack.c.l.s4 1983009808
    %v4030 = vunpack.c.0.s8 %v4029
    %v4031 = vlaneseq
    %v4032 = vshrl.u32 %v4031, 7
    %v4033 = vsub.s32 %v4030, %v4032
    %v4034 = vrot.slane %v4027, %v4033
    %v4035 = vcombine.low %v4026, %v4034
    %v4037 = vunpack.c.l.s4 1934713408
    %v4038 = vunpack.c.0.s8 %v4037
    %v4039 = vlaneseq
    %v4040 = vshrl.u32 %v4039, 7
    %v4041 = vsub.s32 %v4038, %v4040
    %v4042 = vrot.slane %v4035, %v4041
    %v4043 = vcombine.high %v4042, 0.0
    %v4044 = vcombine.low %v3969, %v3975
    %v4046 = vunpack.c.l.s4 1983009808
    %v4047 = vunpack.c.0.s8 %v4046
    %v4048 = vlaneseq
    %v4049 = vshrl.u32 %v4048, 7
    %v4050 = vsub.s32 %v4047, %v4049
    %v4051 = vrot.slane %v4044, %v4050
    %v4052 = vcombine.low %v3972, %v3978
    %v4054 = vunpack.c.l.s4 1983009808
    %v4055 = vunpack.c.0.s8 %v4054
    %v4056 = vlaneseq
    %v4057 = vshrl.u32 %v4056, 7
    %v4058 = vsub.s32 %v4055, %v4057
    %v4059 = vrot.slane %v4052, %v4058
    %v4060 = vcombine.low %v4051, %v4059
    %v4062 = vunpack.c.l.s4 1934713408
    %v4063 = vunpack.c.0.s8 %v4062
    %v4064 = vlaneseq
    %v4065 = vshrl.u32 %v4064, 7
    %v4066 = vsub.s32 %v4063, %v4065
    %v4067 = vrot.slane %v4060, %v4066
    %v4068 = vcombine.high %v4067, 0.0
    %v4069 = vcombine.low %v3981, %v3987
    %v4071 = vunpack.c.l.s4 1983009808
    %v4072 = vunpack.c.0.s8 %v4071
    %v4073 = vlaneseq
    %v4074 = vshrl.u32 %v4073, 7
    %v4075 = vsub.s32 %v4072, %v4074
    %v4076 = vrot.slane %v4069, %v4075
    %v4077 = vcombine.low %v3984, %v3990
    %v4079 = vunpack.c.l.s4 1983009808
    %v4080 = vunpack.c.0.s8 %v4079
    %v4081 = vlaneseq
    %v4082 = vshrl.u32 %v4081, 7
    %v4083 = vsub.s32 %v4080, %v4082
    %v4084 = vrot.slane %v4077, %v4083
    %v4085 = vcombine.low %v4076, %v4084
    %v4087 = vunpack.c.l.s4 1934713408
    %v4088 = vunpack.c.0.s8 %v4087
    %v4089 = vlaneseq
    %v4090 = vshrl.u32 %v4089, 7
    %v4091 = vsub.s32 %v4088, %v4090
    %v4092 = vrot.slane %v4085, %v4091
    %v4093 = vcombine.high %v4092, 0.0
    %v4094 = vcombine.low %v3993, %v3999
    %v4096 = vunpack.c.l.s4 1983009808
    %v4097 = vunpack.c.0.s8 %v4096
    %v4098 = vlaneseq
    %v4099 = vshrl.u32 %v4098, 7
    %v4100 = vsub.s32 %v4097, %v4099
    %v4101 = vrot.slane %v4094, %v4100
    %v4102 = vcombine.low %v3996, %v4002
    %v4104 = vunpack.c.l.s4 1983009808
    %v4105 = vunpack.c.0.s8 %v4104
    %v4106 = vlaneseq
    %v4107 = vshrl.u32 %v4106, 7
    %v4108 = vsub.s32 %v4105, %v4107
    %v4109 = vrot.slane %v4102, %v4108
    %v4110 = vcombine.low %v4101, %v4109
    %v4112 = vunpack.c.l.s4 1934713408
    %v4113 = vunpack.c.0.s8 %v4112
    %v4114 = vlaneseq
    %v4115 = vshrl.u32 %v4114, 7
    %v4116 = vsub.s32 %v4113, %v4115
    %v4117 = vrot.slane %v4110, %v4116
    %v4118 = vcombine.high %v4117, 0.0
    %v4121 = vrot.slane %v3487, 4
    %v4122 = vrot.slane %v3488, 4
    %4123 = vrot.lane.b32.xlu0 %v3487, 112
    %v4124 = vpop.permute.xlu0 %4123
    %4125 = vrot.lane.b32.xlu0 %v3488, 112
    %v4126 = vpop.permute.xlu0 %4125
    %v4127 = vrot.slane %v4124, 4
    %v4128 = vrot.slane %v4126, 4
    %4129 = vrot.lane.b32.xlu0 %v3487, 96
    %v4130 = vpop.permute.xlu0 %4129
    %4131 = vrot.lane.b32.xlu0 %v3488, 96
    %v4132 = vpop.permute.xlu0 %4131
    %v4133 = vrot.slane %v4130, 4
    %v4134 = vrot.slane %v4132, 4
    %4135 = vrot.lane.b32.xlu0 %v3487, 80
    %v4136 = vpop.permute.xlu0 %4135
    %4137 = vrot.lane.b32.xlu0 %v3488, 80
    %v4138 = vpop.permute.xlu0 %4137
    %v4139 = vrot.slane %v4136, 4
    %v4140 = vrot.slane %v4138, 4
    %4141 = vrot.lane.b32.xlu0 %v3487, 64
    %v4142 = vpop.permute.xlu0 %4141
    %4143 = vrot.lane.b32.xlu0 %v3488, 64
    %v4144 = vpop.permute.xlu0 %4143
    %v4145 = vrot.slane %v4142, 4
    %v4146 = vrot.slane %v4144, 4
    %4147 = vrot.lane.b32.xlu0 %v3487, 48
    %v4148 = vpop.permute.xlu0 %4147
    %4149 = vrot.lane.b32.xlu0 %v3488, 48
    %v4150 = vpop.permute.xlu0 %4149
    %v4151 = vrot.slane %v4148, 4
    %v4152 = vrot.slane %v4150, 4
    %4153 = vrot.lane.b32.xlu0 %v3487, 32
    %v4154 = vpop.permute.xlu0 %4153
    %4155 = vrot.lane.b32.xlu0 %v3488, 32
    %v4156 = vpop.permute.xlu0 %4155
    %v4157 = vrot.slane %v4154, 4
    %v4158 = vrot.slane %v4156, 4
    %4159 = vrot.lane.b32.xlu0 %v3487, 16
    %v4160 = vpop.permute.xlu0 %4159
    %4161 = vrot.lane.b32.xlu0 %v3488, 16
    %v4162 = vpop.permute.xlu0 %4161
    %v4163 = vrot.slane %v4160, 4
    %v4164 = vrot.slane %v4162, 4
    %v4165 = vrot.slane %v3488, 7
    %v4166 = vsel %vm414, %v4165, %v3487
    %v4167 = vsel %vm416, %v4165, %v4166
    %v4168 = vrot.slane %v4126, 7
    %v4169 = vsel %vm414, %v4168, %v4124
    %v4170 = vsel %vm416, %v4168, %v4169
    %v4171 = vrot.slane %v4132, 7
    %v4172 = vsel %vm414, %v4171, %v4130
    %v4173 = vsel %vm416, %v4171, %v4172
    %v4174 = vrot.slane %v4138, 7
    %v4175 = vsel %vm414, %v4174, %v4136
    %v4176 = vsel %vm416, %v4174, %v4175
    %v4177 = vrot.slane %v4144, 7
    %v4178 = vsel %vm414, %v4177, %v4142
    %v4179 = vsel %vm416, %v4177, %v4178
    %v4180 = vrot.slane %v4150, 7
    %v4181 = vsel %vm414, %v4180, %v4148
    %v4182 = vsel %vm416, %v4180, %v4181
    %v4183 = vrot.slane %v4156, 7
    %v4184 = vsel %vm414, %v4183, %v4154
    %v4185 = vsel %vm416, %v4183, %v4184
    %v4186 = vrot.slane %v4162, 7
    %v4187 = vsel %vm414, %v4186, %v4160
    %v4188 = vsel %vm416, %v4186, %v4187
    %v4189 = vrot.slane %v4122, 7
    %v4190 = vsel %vm414, %v4189, %v4121
    %v4191 = vsel %vm416, %v4189, %v4190
    %v4192 = vrot.slane %v4128, 7
    %v4193 = vsel %vm414, %v4192, %v4127
    %v4194 = vsel %vm416, %v4192, %v4193
    %v4195 = vrot.slane %v4134, 7
    %v4196 = vsel %vm414, %v4195, %v4133
    %v4197 = vsel %vm416, %v4195, %v4196
    %v4198 = vrot.slane %v4140, 7
    %v4199 = vsel %vm414, %v4198, %v4139
    %v4200 = vsel %vm416, %v4198, %v4199
    %v4201 = vrot.slane %v4146, 7
    %v4202 = vsel %vm414, %v4201, %v4145
    %v4203 = vsel %vm416, %v4201, %v4202
    %v4204 = vrot.slane %v4152, 7
    %v4205 = vsel %vm414, %v4204, %v4151
    %v4206 = vsel %vm416, %v4204, %v4205
    %v4207 = vrot.slane %v4158, 7
    %v4208 = vsel %vm414, %v4207, %v4157
    %v4209 = vsel %vm416, %v4207, %v4208
    %v4210 = vrot.slane %v4164, 7
    %v4211 = vsel %vm414, %v4210, %v4163
    %v4212 = vsel %vm416, %v4210, %v4211
    %v4229 = vcombine.low %v4167, %v4173
    %v4231 = vunpack.c.l.s4 1983009808
    %v4232 = vunpack.c.0.s8 %v4231
    %v4233 = vlaneseq
    %v4234 = vshrl.u32 %v4233, 7
    %v4235 = vsub.s32 %v4232, %v4234
    %v4236 = vrot.slane %v4229, %v4235
    %v4237 = vcombine.low %v4170, %v4176
    %v4239 = vunpack.c.l.s4 1983009808
    %v4240 = vunpack.c.0.s8 %v4239
    %v4241 = vlaneseq
    %v4242 = vshrl.u32 %v4241, 7
    %v4243 = vsub.s32 %v4240, %v4242
    %v4244 = vrot.slane %v4237, %v4243
    %v4245 = vcombine.low %v4236, %v4244
    %v4247 = vunpack.c.l.s4 1934713408
    %v4248 = vunpack.c.0.s8 %v4247
    %v4249 = vlaneseq
    %v4250 = vshrl.u32 %v4249, 7
    %v4251 = vsub.s32 %v4248, %v4250
    %v4252 = vrot.slane %v4245, %v4251
    %v4253 = vcombine.high %v4252, 0.0
    %v4254 = vcombine.low %v4179, %v4185
    %v4256 = vunpack.c.l.s4 1983009808
    %v4257 = vunpack.c.0.s8 %v4256
    %v4258 = vlaneseq
    %v4259 = vshrl.u32 %v4258, 7
    %v4260 = vsub.s32 %v4257, %v4259
    %v4261 = vrot.slane %v4254, %v4260
    %v4262 = vcombine.low %v4182, %v4188
    %v4264 = vunpack.c.l.s4 1983009808
    %v4265 = vunpack.c.0.s8 %v4264
    %v4266 = vlaneseq
    %v4267 = vshrl.u32 %v4266, 7
    %v4268 = vsub.s32 %v4265, %v4267
    %v4269 = vrot.slane %v4262, %v4268
    %v4270 = vcombine.low %v4261, %v4269
    %v4272 = vunpack.c.l.s4 1934713408
    %v4273 = vunpack.c.0.s8 %v4272
    %v4274 = vlaneseq
    %v4275 = vshrl.u32 %v4274, 7
    %v4276 = vsub.s32 %v4273, %v4275
    %v4277 = vrot.slane %v4270, %v4276
    %v4278 = vcombine.high %v4277, 0.0
    %v4279 = vcombine.low %v4191, %v4197
    %v4281 = vunpack.c.l.s4 1983009808
    %v4282 = vunpack.c.0.s8 %v4281
    %v4283 = vlaneseq
    %v4284 = vshrl.u32 %v4283, 7
    %v4285 = vsub.s32 %v4282, %v4284
    %v4286 = vrot.slane %v4279, %v4285
    %v4287 = vcombine.low %v4194, %v4200
    %v4289 = vunpack.c.l.s4 1983009808
    %v4290 = vunpack.c.0.s8 %v4289
    %v4291 = vlaneseq
    %v4292 = vshrl.u32 %v4291, 7
    %v4293 = vsub.s32 %v4290, %v4292
    %v4294 = vrot.slane %v4287, %v4293
    %v4295 = vcombine.low %v4286, %v4294
    %v4297 = vunpack.c.l.s4 1934713408
    %v4298 = vunpack.c.0.s8 %v4297
    %v4299 = vlaneseq
    %v4300 = vshrl.u32 %v4299, 7
    %v4301 = vsub.s32 %v4298, %v4300
    %v4302 = vrot.slane %v4295, %v4301
    %v4303 = vcombine.high %v4302, 0.0
    %v4304 = vcombine.low %v4203, %v4209
    %v4306 = vunpack.c.l.s4 1983009808
    %v4307 = vunpack.c.0.s8 %v4306
    %v4308 = vlaneseq
    %v4309 = vshrl.u32 %v4308, 7
    %v4310 = vsub.s32 %v4307, %v4309
    %v4311 = vrot.slane %v4304, %v4310
    %v4312 = vcombine.low %v4206, %v4212
    %v4314 = vunpack.c.l.s4 1983009808
    %v4315 = vunpack.c.0.s8 %v4314
    %v4316 = vlaneseq
    %v4317 = vshrl.u32 %v4316, 7
    %v4318 = vsub.s32 %v4315, %v4317
    %v4319 = vrot.slane %v4312, %v4318
    %v4320 = vcombine.low %v4311, %v4319
    %v4322 = vunpack.c.l.s4 1934713408
    %v4323 = vunpack.c.0.s8 %v4322
    %v4324 = vlaneseq
    %v4325 = vshrl.u32 %v4324, 7
    %v4326 = vsub.s32 %v4323, %v4325
    %v4327 = vrot.slane %v4320, %v4326
    %v4328 = vcombine.high %v4327, 0.0
    %v4333 = vcombine.low %v1542, %v1567
    %v4334 = vcombine.low %v1592, %v1617
    %v4339 = vcombine.low %v3622, %v3647
    %v4340 = vcombine.low %v3672, %v3697
    %vm4341 = vcmask 130048
    %v4342 = vsel %vm4341, %v4333, 0
    %v4344 = vsel %vm4341, %v4334, 0
    %v4346 = vsel %vm4341, %v4339, 0
    %v4348 = vsel %vm4341, %v4340, 0
    %4350 = vmatprep.subr.mxu0 0.0
    %4351 = vmatpush1.xpose.msra.mxu0 %v4346
    %4352 = vmatprep.subr.mxu0 0.0
    %4353 = vmatpush1.xpose.msra.mxu0 %v4348
    %4354 = vmatprep.subr.mxu0 0.0
    %4355 = vmatpush1.xpose.msra.mxu0 0.0
    %4356 = vmatprep.subr.mxu0 0.0
    %4357 = vmatpush1.xpose.msra.mxu0 0.0
    %4358 = vmatprep.subr.mxu0 0.0
    %4359 = vmatpush1.xpose.msra.mxu0 0.0
    %4360 = vmatprep.subr.mxu0 0.0
    %4361 = vmatpush1.xpose.msra.mxu0 0.0
    %4362 = vmatprep.subr.mxu0 0.0
    %4363 = vmatpush1.xpose.msra.mxu0 0.0
    %4364 = vmatprep.subr.mxu0 0.0
    %4365 = vmatpush1.xpose.msra.mxu0 0.0
    %4366 = vmatprep.subr.mxu0 0.0
    %4367 = vmatpush1.xpose.msra.mxu0 0.0
    %4368 = vmatprep.subr.mxu0 0.0
    %4369 = vmatpush1.xpose.msra.mxu0 0.0
    %4370 = vmatprep.subr.mxu0 0.0
    %4371 = vmatpush1.xpose.msra.mxu0 0.0
    %4372 = vmatprep.subr.mxu0 0.0
    %4373 = vmatpush1.xpose.msra.mxu0 0.0
    %4374 = vmatprep.subr.mxu0 0.0
    %4375 = vmatpush1.xpose.msra.mxu0 0.0
    %4376 = vmatprep.subr.mxu0 0.0
    %4377 = vmatpush1.xpose.msra.mxu0 0.0
    %4378 = vmatprep.subr.mxu0 0.0
    %4379 = vmatpush1.xpose.msra.mxu0 0.0
    %4380 = vmatprep.subr.mxu0 0.0
    %4381 = vmatpush1.xpose.msra.mxu0 0.0
    %4382 = vmatprep.subr.mxu0 0.0
    %4383 = vmatpush1.xpose.msra.mxu0 0.0
    %4384 = vmatprep.subr.mxu0 0.0
    %4385 = vmatpush1.xpose.msra.mxu0 0.0
    %4386 = vmatprep.subr.mxu0 0.0
    %4387 = vmatpush1.xpose.msra.mxu0 0.0
    %4388 = vmatprep.subr.mxu0 0.0
    %4389 = vmatpush1.xpose.msra.mxu0 0.0
    %4390 = vmatprep.subr.mxu0 0.0
    %4391 = vmatpush1.xpose.msra.mxu0 0.0
    %4392 = vmatprep.subr.mxu0 0.0
    %4393 = vmatpush1.xpose.msra.mxu0 0.0
    %4394 = vmatprep.subr.mxu0 0.0
    %4395 = vmatpush1.xpose.msra.mxu0 0.0
    %4396 = vmatprep.subr.mxu0 0.0
    %4397 = vmatpush1.xpose.msra.mxu0 0.0
    %4398 = vmatprep.subr.mxu0 0.0
    %4399 = vmatpush1.xpose.msra.mxu0 0.0
    %4400 = vmatprep.subr.mxu0 0.0
    %4401 = vmatpush1.xpose.msra.mxu0 0.0
    %4402 = vmatprep.subr.mxu0 0.0
    %4403 = vmatpush1.xpose.msra.mxu0 0.0
    %4404 = vmatprep.subr.mxu0 0.0
    %4405 = vmatpush1.xpose.msra.mxu0 0.0
    %4406 = vmatprep.subr.mxu0 0.0
    %4407 = vmatpush1.xpose.msra.mxu0 0.0
    %4408 = vmatprep.subr.mxu0 0.0
    %4409 = vmatpush1.xpose.msra.mxu0 0.0
    %4410 = vmatprep.subr.mxu0 0.0
    %4411 = vmatpush1.xpose.msra.mxu0 0.0
    %4412 = vmatprep.subr.mxu0 0.0
    %4413 = vmatpush1.xpose.msra.mxu0 0.0
    %4414 = vmatprep.mubr.f32.mxu0 0.0
    %4415 = vmatmul.mubr.f32.gmra.mrb[0].mxu0 %v4342
    %v4416 = vpop.f32.mrb[0].mxu0
    %v4417 = vadd.f32 0.0, %v4416
    %v4418 = vpop.f32.mrb[0].mxu0
    %4419 = vmatprep.mubr.f32.mxu0 0.0
    %4420 = vmatmul.mubr.f32.gmra.mrb[0].mxu0 %v4344
    %v4421 = vpop.f32.mrb[0].mxu0
    %v4422 = vadd.f32 0.0, %v4421
    %v4423 = vpop.f32.mrb[0].mxu0
    %4424 = vdwg.mxu0
    %v4429 = vcombine.low %v1752, %v1777
    %v4430 = vcombine.low %v1802, %v1827
    %v4435 = vcombine.low %v3832, %v3857
    %v4436 = vcombine.low %v3882, %v3907
    %v4437 = vsel %vm4341, %v4429, 0
    %v4439 = vsel %vm4341, %v4430, 0
    %v4441 = vsel %vm4341, %v4435, 0
    %v4443 = vsel %vm4341, %v4436, 0
    %4445 = vmatprep.subr.mxu0 0.0
    %4446 = vmatpush1.xpose.msra.mxu0 %v4441
    %4447 = vmatprep.subr.mxu0 0.0
    %4448 = vmatpush1.xpose.msra.mxu0 %v4443
    %4449 = vmatprep.subr.mxu0 0.0
    %4450 = vmatpush1.xpose.msra.mxu0 0.0
    %4451 = vmatprep.subr.mxu0 0.0
    %4452 = vmatpush1.xpose.msra.mxu0 0.0
    %4453 = vmatprep.subr.mxu0 0.0
    %4454 = vmatpush1.xpose.msra.mxu0 0.0
    %4455 = vmatprep.subr.mxu0 0.0
    %4456 = vmatpush1.xpose.msra.mxu0 0.0
    %4457 = vmatprep.subr.mxu0 0.0
    %4458 = vmatpush1.xpose.msra.mxu0 0.0
    %4459 = vmatprep.subr.mxu0 0.0
    %4460 = vmatpush1.xpose.msra.mxu0 0.0
    %4461 = vmatprep.subr.mxu0 0.0
    %4462 = vmatpush1.xpose.msra.mxu0 0.0
    %4463 = vmatprep.subr.mxu0 0.0
    %4464 = vmatpush1.xpose.msra.mxu0 0.0
    %4465 = vmatprep.subr.mxu0 0.0
    %4466 = vmatpush1.xpose.msra.mxu0 0.0
    %4467 = vmatprep.subr.mxu0 0.0
    %4468 = vmatpush1.xpose.msra.mxu0 0.0
    %4469 = vmatprep.subr.mxu0 0.0
    %4470 = vmatpush1.xpose.msra.mxu0 0.0
    %4471 = vmatprep.subr.mxu0 0.0
    %4472 = vmatpush1.xpose.msra.mxu0 0.0
    %4473 = vmatprep.subr.mxu0 0.0
    %4474 = vmatpush1.xpose.msra.mxu0 0.0
    %4475 = vmatprep.subr.mxu0 0.0
    %4476 = vmatpush1.xpose.msra.mxu0 0.0
    %4477 = vmatprep.subr.mxu0 0.0
    %4478 = vmatpush1.xpose.msra.mxu0 0.0
    %4479 = vmatprep.subr.mxu0 0.0
    %4480 = vmatpush1.xpose.msra.mxu0 0.0
    %4481 = vmatprep.subr.mxu0 0.0
    %4482 = vmatpush1.xpose.msra.mxu0 0.0
    %4483 = vmatprep.subr.mxu0 0.0
    %4484 = vmatpush1.xpose.msra.mxu0 0.0
    %4485 = vmatprep.subr.mxu0 0.0
    %4486 = vmatpush1.xpose.msra.mxu0 0.0
    %4487 = vmatprep.subr.mxu0 0.0
    %4488 = vmatpush1.xpose.msra.mxu0 0.0
    %4489 = vmatprep.subr.mxu0 0.0
    %4490 = vmatpush1.xpose.msra.mxu0 0.0
    %4491 = vmatprep.subr.mxu0 0.0
    %4492 = vmatpush1.xpose.msra.mxu0 0.0
    %4493 = vmatprep.subr.mxu0 0.0
    %4494 = vmatpush1.xpose.msra.mxu0 0.0
    %4495 = vmatprep.subr.mxu0 0.0
    %4496 = vmatpush1.xpose.msra.mxu0 0.0
    %4497 = vmatprep.subr.mxu0 0.0
    %4498 = vmatpush1.xpose.msra.mxu0 0.0
    %4499 = vmatprep.subr.mxu0 0.0
    %4500 = vmatpush1.xpose.msra.mxu0 0.0
    %4501 = vmatprep.subr.mxu0 0.0
    %4502 = vmatpush1.xpose.msra.mxu0 0.0
    %4503 = vmatprep.subr.mxu0 0.0
    %4504 = vmatpush1.xpose.msra.mxu0 0.0
    %4505 = vmatprep.subr.mxu0 0.0
    %4506 = vmatpush1.xpose.msra.mxu0 0.0
    %4507 = vmatprep.subr.mxu0 0.0
    %4508 = vmatpush1.xpose.msra.mxu0 0.0
    %4509 = vmatprep.mubr.f32.mxu0 0.0
    %4510 = vmatmul.mubr.f32.gmra.mrb[0].mxu0 %v4437
    %v4511 = vpop.f32.mrb[0].mxu0
    %v4512 = vadd.f32 0.0, %v4511
    %v4513 = vpop.f32.mrb[0].mxu0
    %4514 = vmatprep.mubr.f32.mxu0 0.0
    %4515 = vmatmul.mubr.f32.gmra.mrb[0].mxu0 %v4439
    %v4516 = vpop.f32.mrb[0].mxu0
    %v4517 = vadd.f32 0.0, %v4516
    %v4518 = vpop.f32.mrb[0].mxu0
    %4519 = vdwg.mxu0
    %v4524 = vcombine.low %v1962, %v1987
    %v4525 = vcombine.low %v2012, %v2037
    %v4530 = vcombine.low %v4042, %v4067
    %v4531 = vcombine.low %v4092, %v4117
    %v4532 = vsel %vm4341, %v4524, 0
    %v4534 = vsel %vm4341, %v4525, 0
    %v4536 = vsel %vm4341, %v4530, 0
    %v4538 = vsel %vm4341, %v4531, 0
    %4540 = vmatprep.subr.mxu0 0.0
    %4541 = vmatpush1.xpose.msra.mxu0 %v4536
    %4542 = vmatprep.subr.mxu0 0.0
    %4543 = vmatpush1.xpose.msra.mxu0 %v4538
    %4544 = vmatprep.subr.mxu0 0.0
    %4545 = vmatpush1.xpose.msra.mxu0 0.0
    %4546 = vmatprep.subr.mxu0 0.0
    %4547 = vmatpush1.xpose.msra.mxu0 0.0
    %4548 = vmatprep.subr.mxu0 0.0
    %4549 = vmatpush1.xpose.msra.mxu0 0.0
    %4550 = vmatprep.subr.mxu0 0.0
    %4551 = vmatpush1.xpose.msra.mxu0 0.0
    %4552 = vmatprep.subr.mxu0 0.0
    %4553 = vmatpush1.xpose.msra.mxu0 0.0
    %4554 = vmatprep.subr.mxu0 0.0
    %4555 = vmatpush1.xpose.msra.mxu0 0.0
    %4556 = vmatprep.subr.mxu0 0.0
    %4557 = vmatpush1.xpose.msra.mxu0 0.0
    %4558 = vmatprep.subr.mxu0 0.0
    %4559 = vmatpush1.xpose.msra.mxu0 0.0
    %4560 = vmatprep.subr.mxu0 0.0
    %4561 = vmatpush1.xpose.msra.mxu0 0.0
    %4562 = vmatprep.subr.mxu0 0.0
    %4563 = vmatpush1.xpose.msra.mxu0 0.0
    %4564 = vmatprep.subr.mxu0 0.0
    %4565 = vmatpush1.xpose.msra.mxu0 0.0
    %4566 = vmatprep.subr.mxu0 0.0
    %4567 = vmatpush1.xpose.msra.mxu0 0.0
    %4568 = vmatprep.subr.mxu0 0.0
    %4569 = vmatpush1.xpose.msra.mxu0 0.0
    %4570 = vmatprep.subr.mxu0 0.0
    %4571 = vmatpush1.xpose.msra.mxu0 0.0
    %4572 = vmatprep.subr.mxu0 0.0
    %4573 = vmatpush1.xpose.msra.mxu0 0.0
    %4574 = vmatprep.subr.mxu0 0.0
    %4575 = vmatpush1.xpose.msra.mxu0 0.0
    %4576 = vmatprep.subr.mxu0 0.0
    %4577 = vmatpush1.xpose.msra.mxu0 0.0
    %4578 = vmatprep.subr.mxu0 0.0
    %4579 = vmatpush1.xpose.msra.mxu0 0.0
    %4580 = vmatprep.subr.mxu0 0.0
    %4581 = vmatpush1.xpose.msra.mxu0 0.0
    %4582 = vmatprep.subr.mxu0 0.0
    %4583 = vmatpush1.xpose.msra.mxu0 0.0
    %4584 = vmatprep.subr.mxu0 0.0
    %4585 = vmatpush1.xpose.msra.mxu0 0.0
    %4586 = vmatprep.subr.mxu0 0.0
    %4587 = vmatpush1.xpose.msra.mxu0 0.0
    %4588 = vmatprep.subr.mxu0 0.0
    %4589 = vmatpush1.xpose.msra.mxu0 0.0
    %4590 = vmatprep.subr.mxu0 0.0
    %4591 = vmatpush1.xpose.msra.mxu0 0.0
    %4592 = vmatprep.subr.mxu0 0.0
    %4593 = vmatpush1.xpose.msra.mxu0 0.0
    %4594 = vmatprep.subr.mxu0 0.0
    %4595 = vmatpush1.xpose.msra.mxu0 0.0
    %4596 = vmatprep.subr.mxu0 0.0
    %4597 = vmatpush1.xpose.msra.mxu0 0.0
    %4598 = vmatprep.subr.mxu0 0.0
    %4599 = vmatpush1.xpose.msra.mxu0 0.0
    %4600 = vmatprep.subr.mxu0 0.0
    %4601 = vmatpush1.xpose.msra.mxu0 0.0
    %4602 = vmatprep.subr.mxu0 0.0
    %4603 = vmatpush1.xpose.msra.mxu0 0.0
    %4604 = vmatprep.mubr.f32.mxu0 0.0
    %4605 = vmatmul.mubr.f32.gmra.mrb[0].mxu0 %v4532
    %v4606 = vpop.f32.mrb[0].mxu0
    %v4607 = vadd.f32 0.0, %v4606
    %v4608 = vpop.f32.mrb[0].mxu0
    %4609 = vmatprep.mubr.f32.mxu0 0.0
    %4610 = vmatmul.mubr.f32.gmra.mrb[0].mxu0 %v4534
    %v4611 = vpop.f32.mrb[0].mxu0
    %v4612 = vadd.f32 0.0, %v4611
    %v4613 = vpop.f32.mrb[0].mxu0
    %4614 = vdwg.mxu0
    %v4619 = vcombine.low %v2172, %v2197
    %v4620 = vcombine.low %v2222, %v2247
    %v4625 = vcombine.low %v4252, %v4277
    %v4626 = vcombine.low %v4302, %v4327
    %v4627 = vsel %vm4341, %v4619, 0
    %v4629 = vsel %vm4341, %v4620, 0
    %v4631 = vsel %vm4341, %v4625, 0
    %v4633 = vsel %vm4341, %v4626, 0
    %4635 = vmatprep.subr.mxu0 0.0
    %4636 = vmatpush1.xpose.msra.mxu0 %v4631
    %4637 = vmatprep.subr.mxu0 0.0
    %4638 = vmatpush1.xpose.msra.mxu0 %v4633
    %4639 = vmatprep.subr.mxu0 0.0
    %4640 = vmatpush1.xpose.msra.mxu0 0.0
    %4641 = vmatprep.subr.mxu0 0.0
    %4642 = vmatpush1.xpose.msra.mxu0 0.0
    %4643 = vmatprep.subr.mxu0 0.0
    %4644 = vmatpush1.xpose.msra.mxu0 0.0
    %4645 = vmatprep.subr.mxu0 0.0
    %4646 = vmatpush1.xpose.msra.mxu0 0.0
    %4647 = vmatprep.subr.mxu0 0.0
    %4648 = vmatpush1.xpose.msra.mxu0 0.0
    %4649 = vmatprep.subr.mxu0 0.0
    %4650 = vmatpush1.xpose.msra.mxu0 0.0
    %4651 = vmatprep.subr.mxu0 0.0
    %4652 = vmatpush1.xpose.msra.mxu0 0.0
    %4653 = vmatprep.subr.mxu0 0.0
    %4654 = vmatpush1.xpose.msra.mxu0 0.0
    %4655 = vmatprep.subr.mxu0 0.0
    %4656 = vmatpush1.xpose.msra.mxu0 0.0
    %4657 = vmatprep.subr.mxu0 0.0
    %4658 = vmatpush1.xpose.msra.mxu0 0.0
    %4659 = vmatprep.subr.mxu0 0.0
    %4660 = vmatpush1.xpose.msra.mxu0 0.0
    %4661 = vmatprep.subr.mxu0 0.0
    %4662 = vmatpush1.xpose.msra.mxu0 0.0
    %4663 = vmatprep.subr.mxu0 0.0
    %4664 = vmatpush1.xpose.msra.mxu0 0.0
    %4665 = vmatprep.subr.mxu0 0.0
    %4666 = vmatpush1.xpose.msra.mxu0 0.0
    %4667 = vmatprep.subr.mxu0 0.0
    %4668 = vmatpush1.xpose.msra.mxu0 0.0
    %4669 = vmatprep.subr.mxu0 0.0
    %4670 = vmatpush1.xpose.msra.mxu0 0.0
    %4671 = vmatprep.subr.mxu0 0.0
    %4672 = vmatpush1.xpose.msra.mxu0 0.0
    %4673 = vmatprep.subr.mxu0 0.0
    %4674 = vmatpush1.xpose.msra.mxu0 0.0
    %4675 = vmatprep.subr.mxu0 0.0
    %4676 = vmatpush1.xpose.msra.mxu0 0.0
    %4677 = vmatprep.subr.mxu0 0.0
    %4678 = vmatpush1.xpose.msra.mxu0 0.0
    %4679 = vmatprep.subr.mxu0 0.0
    %4680 = vmatpush1.xpose.msra.mxu0 0.0
    %4681 = vmatprep.subr.mxu0 0.0
    %4682 = vmatpush1.xpose.msra.mxu0 0.0
    %4683 = vmatprep.subr.mxu0 0.0
    %4684 = vmatpush1.xpose.msra.mxu0 0.0
    %4685 = vmatprep.subr.mxu0 0.0
    %4686 = vmatpush1.xpose.msra.mxu0 0.0
    %4687 = vmatprep.subr.mxu0 0.0
    %4688 = vmatpush1.xpose.msra.mxu0 0.0
    %4689 = vmatprep.subr.mxu0 0.0
    %4690 = vmatpush1.xpose.msra.mxu0 0.0
    %4691 = vmatprep.subr.mxu0 0.0
    %4692 = vmatpush1.xpose.msra.mxu0 0.0
    %4693 = vmatprep.subr.mxu0 0.0
    %4694 = vmatpush1.xpose.msra.mxu0 0.0
    %4695 = vmatprep.subr.mxu0 0.0
    %4696 = vmatpush1.xpose.msra.mxu0 0.0
    %4697 = vmatprep.subr.mxu0 0.0
    %4698 = vmatpush1.xpose.msra.mxu0 0.0
    %4699 = vmatprep.mubr.f32.mxu0 0.0
    %4700 = vmatmul.mubr.f32.gmra.mrb[0].mxu0 %v4627
    %v4701 = vpop.f32.mrb[0].mxu0
    %v4702 = vadd.f32 0.0, %v4701
    %v4703 = vpop.f32.mrb[0].mxu0
    %4704 = vmatprep.mubr.f32.mxu0 0.0
    %4705 = vmatmul.mubr.f32.gmra.mrb[0].mxu0 %v4629
    %v4706 = vpop.f32.mrb[0].mxu0
    %v4707 = vadd.f32 0.0, %v4706
    %v4708 = vpop.f32.mrb[0].mxu0
    %4709 = vdwg.mxu0
    %v4714 = vcombine.low %v1543, %v1568
    %v4715 = vcombine.low %v1593, %v1618
    %v4720 = vcombine.low %v3623, %v3648
    %v4721 = vcombine.low %v3673, %v3698
    %v4722 = vsel %vm4341, %v4714, 0
    %v4724 = vsel %vm4341, %v4715, 0
    %v4726 = vsel %vm4341, %v4720, 0
    %v4728 = vsel %vm4341, %v4721, 0
    %4730 = vmatprep.subr.mxu0 0.0
    %4731 = vmatpush1.xpose.msra.mxu0 %v4726
    %4732 = vmatprep.subr.mxu0 0.0
    %4733 = vmatpush1.xpose.msra.mxu0 %v4728
    %4734 = vmatprep.subr.mxu0 0.0
    %4735 = vmatpush1.xpose.msra.mxu0 0.0
    %4736 = vmatprep.subr.mxu0 0.0
    %4737 = vmatpush1.xpose.msra.mxu0 0.0
    %4738 = vmatprep.subr.mxu0 0.0
    %4739 = vmatpush1.xpose.msra.mxu0 0.0
    %4740 = vmatprep.subr.mxu0 0.0
    %4741 = vmatpush1.xpose.msra.mxu0 0.0
    %4742 = vmatprep.subr.mxu0 0.0
    %4743 = vmatpush1.xpose.msra.mxu0 0.0
    %4744 = vmatprep.subr.mxu0 0.0
    %4745 = vmatpush1.xpose.msra.mxu0 0.0
    %4746 = vmatprep.subr.mxu0 0.0
    %4747 = vmatpush1.xpose.msra.mxu0 0.0
    %4748 = vmatprep.subr.mxu0 0.0
    %4749 = vmatpush1.xpose.msra.mxu0 0.0
    %4750 = vmatprep.subr.mxu0 0.0
    %4751 = vmatpush1.xpose.msra.mxu0 0.0
    %4752 = vmatprep.subr.mxu0 0.0
    %4753 = vmatpush1.xpose.msra.mxu0 0.0
    %4754 = vmatprep.subr.mxu0 0.0
    %4755 = vmatpush1.xpose.msra.mxu0 0.0
    %4756 = vmatprep.subr.mxu0 0.0
    %4757 = vmatpush1.xpose.msra.mxu0 0.0
    %4758 = vmatprep.subr.mxu0 0.0
    %4759 = vmatpush1.xpose.msra.mxu0 0.0
    %4760 = vmatprep.subr.mxu0 0.0
    %4761 = vmatpush1.xpose.msra.mxu0 0.0
    %4762 = vmatprep.subr.mxu0 0.0
    %4763 = vmatpush1.xpose.msra.mxu0 0.0
    %4764 = vmatprep.subr.mxu0 0.0
    %4765 = vmatpush1.xpose.msra.mxu0 0.0
    %4766 = vmatprep.subr.mxu0 0.0
    %4767 = vmatpush1.xpose.msra.mxu0 0.0
    %4768 = vmatprep.subr.mxu0 0.0
    %4769 = vmatpush1.xpose.msra.mxu0 0.0
    %4770 = vmatprep.subr.mxu0 0.0
    %4771 = vmatpush1.xpose.msra.mxu0 0.0
    %4772 = vmatprep.subr.mxu0 0.0
    %4773 = vmatpush1.xpose.msra.mxu0 0.0
    %4774 = vmatprep.subr.mxu0 0.0
    %4775 = vmatpush1.xpose.msra.mxu0 0.0
    %4776 = vmatprep.subr.mxu0 0.0
    %4777 = vmatpush1.xpose.msra.mxu0 0.0
    %4778 = vmatprep.subr.mxu0 0.0
    %4779 = vmatpush1.xpose.msra.mxu0 0.0
    %4780 = vmatprep.subr.mxu0 0.0
    %4781 = vmatpush1.xpose.msra.mxu0 0.0
    %4782 = vmatprep.subr.mxu0 0.0
    %4783 = vmatpush1.xpose.msra.mxu0 0.0
    %4784 = vmatprep.subr.mxu0 0.0
    %4785 = vmatpush1.xpose.msra.mxu0 0.0
    %4786 = vmatprep.subr.mxu0 0.0
    %4787 = vmatpush1.xpose.msra.mxu0 0.0
    %4788 = vmatprep.subr.mxu0 0.0
    %4789 = vmatpush1.xpose.msra.mxu0 0.0
    %4790 = vmatprep.subr.mxu0 0.0
    %4791 = vmatpush1.xpose.msra.mxu0 0.0
    %4792 = vmatprep.subr.mxu0 0.0
    %4793 = vmatpush1.xpose.msra.mxu0 0.0
    %4794 = vmatprep.mubr.f32.mxu0 0.0
    %4795 = vmatmul.mubr.f32.gmra.mrb[0].mxu0 %v4722
    %v4796 = vpop.f32.mrb[0].mxu0
    %v4797 = vadd.f32 0.0, %v4796
    %v4798 = vpop.f32.mrb[0].mxu0
    %4799 = vmatprep.mubr.f32.mxu0 0.0
    %4800 = vmatmul.mubr.f32.gmra.mrb[0].mxu0 %v4724
    %v4801 = vpop.f32.mrb[0].mxu0
    %v4802 = vadd.f32 0.0, %v4801
    %v4803 = vpop.f32.mrb[0].mxu0
    %4804 = vdwg.mxu0
    %v4809 = vcombine.low %v1753, %v1778
    %v4810 = vcombine.low %v1803, %v1828
    %v4815 = vcombine.low %v3833, %v3858
    %v4816 = vcombine.low %v3883, %v3908
    %v4817 = vsel %vm4341, %v4809, 0
    %v4819 = vsel %vm4341, %v4810, 0
    %v4821 = vsel %vm4341, %v4815, 0
    %v4823 = vsel %vm4341, %v4816, 0
    %4825 = vmatprep.subr.mxu0 0.0
    %4826 = vmatpush1.xpose.msra.mxu0 %v4821
    %4827 = vmatprep.subr.mxu0 0.0
    %4828 = vmatpush1.xpose.msra.mxu0 %v4823
    %4829 = vmatprep.subr.mxu0 0.0
    %4830 = vmatpush1.xpose.msra.mxu0 0.0
    %4831 = vmatprep.subr.mxu0 0.0
    %4832 = vmatpush1.xpose.msra.mxu0 0.0
    %4833 = vmatprep.subr.mxu0 0.0
    %4834 = vmatpush1.xpose.msra.mxu0 0.0
    %4835 = vmatprep.subr.mxu0 0.0
    %4836 = vmatpush1.xpose.msra.mxu0 0.0
    %4837 = vmatprep.subr.mxu0 0.0
    %4838 = vmatpush1.xpose.msra.mxu0 0.0
    %4839 = vmatprep.subr.mxu0 0.0
    %4840 = vmatpush1.xpose.msra.mxu0 0.0
    %4841 = vmatprep.subr.mxu0 0.0
    %4842 = vmatpush1.xpose.msra.mxu0 0.0
    %4843 = vmatprep.subr.mxu0 0.0
    %4844 = vmatpush1.xpose.msra.mxu0 0.0
    %4845 = vmatprep.subr.mxu0 0.0
    %4846 = vmatpush1.xpose.msra.mxu0 0.0
    %4847 = vmatprep.subr.mxu0 0.0
    %4848 = vmatpush1.xpose.msra.mxu0 0.0
    %4849 = vmatprep.subr.mxu0 0.0
    %4850 = vmatpush1.xpose.msra.mxu0 0.0
    %4851 = vmatprep.subr.mxu0 0.0
    %4852 = vmatpush1.xpose.msra.mxu0 0.0
    %4853 = vmatprep.subr.mxu0 0.0
    %4854 = vmatpush1.xpose.msra.mxu0 0.0
    %4855 = vmatprep.subr.mxu0 0.0
    %4856 = vmatpush1.xpose.msra.mxu0 0.0
    %4857 = vmatprep.subr.mxu0 0.0
    %4858 = vmatpush1.xpose.msra.mxu0 0.0
    %4859 = vmatprep.subr.mxu0 0.0
    %4860 = vmatpush1.xpose.msra.mxu0 0.0
    %4861 = vmatprep.subr.mxu0 0.0
    %4862 = vmatpush1.xpose.msra.mxu0 0.0
    %4863 = vmatprep.subr.mxu0 0.0
    %4864 = vmatpush1.xpose.msra.mxu0 0.0
    %4865 = vmatprep.subr.mxu0 0.0
    %4866 = vmatpush1.xpose.msra.mxu0 0.0
    %4867 = vmatprep.subr.mxu0 0.0
    %4868 = vmatpush1.xpose.msra.mxu0 0.0
    %4869 = vmatprep.subr.mxu0 0.0
    %4870 = vmatpush1.xpose.msra.mxu0 0.0
    %4871 = vmatprep.subr.mxu0 0.0
    %4872 = vmatpush1.xpose.msra.mxu0 0.0
    %4873 = vmatprep.subr.mxu0 0.0
    %4874 = vmatpush1.xpose.msra.mxu0 0.0
    %4875 = vmatprep.subr.mxu0 0.0
    %4876 = vmatpush1.xpose.msra.mxu0 0.0
    %4877 = vmatprep.subr.mxu0 0.0
    %4878 = vmatpush1.xpose.msra.mxu0 0.0
    %4879 = vmatprep.subr.mxu0 0.0
    %4880 = vmatpush1.xpose.msra.mxu0 0.0
    %4881 = vmatprep.subr.mxu0 0.0
    %4882 = vmatpush1.xpose.msra.mxu0 0.0
    %4883 = vmatprep.subr.mxu0 0.0
    %4884 = vmatpush1.xpose.msra.mxu0 0.0
    %4885 = vmatprep.subr.mxu0 0.0
    %4886 = vmatpush1.xpose.msra.mxu0 0.0
    %4887 = vmatprep.subr.mxu0 0.0
    %4888 = vmatpush1.xpose.msra.mxu0 0.0
    %4889 = vmatprep.mubr.f32.mxu0 0.0
    %4890 = vmatmul.mubr.f32.gmra.mrb[0].mxu0 %v4817
    %v4891 = vpop.f32.mrb[0].mxu0
    %v4892 = vadd.f32 0.0, %v4891
    %v4893 = vpop.f32.mrb[0].mxu0
    %4894 = vmatprep.mubr.f32.mxu0 0.0
    %4895 = vmatmul.mubr.f32.gmra.mrb[0].mxu0 %v4819
    %v4896 = vpop.f32.mrb[0].mxu0
    %v4897 = vadd.f32 0.0, %v4896
    %v4898 = vpop.f32.mrb[0].mxu0
    %4899 = vdwg.mxu0
    %v4904 = vcombine.low %v1963, %v1988
    %v4905 = vcombine.low %v2013, %v2038
    %v4910 = vcombine.low %v4043, %v4068
    %v4911 = vcombine.low %v4093, %v4118
    %v4912 = vsel %vm4341, %v4904, 0
    %v4914 = vsel %vm4341, %v4905, 0
    %v4916 = vsel %vm4341, %v4910, 0
    %v4918 = vsel %vm4341, %v4911, 0
    %4920 = vmatprep.subr.mxu0 0.0
    %4921 = vmatpush1.xpose.msra.mxu0 %v4916
    %4922 = vmatprep.subr.mxu0 0.0
    %4923 = vmatpush1.xpose.msra.mxu0 %v4918
    %4924 = vmatprep.subr.mxu0 0.0
    %4925 = vmatpush1.xpose.msra.mxu0 0.0
    %4926 = vmatprep.subr.mxu0 0.0
    %4927 = vmatpush1.xpose.msra.mxu0 0.0
    %4928 = vmatprep.subr.mxu0 0.0
    %4929 = vmatpush1.xpose.msra.mxu0 0.0
    %4930 = vmatprep.subr.mxu0 0.0
    %4931 = vmatpush1.xpose.msra.mxu0 0.0
    %4932 = vmatprep.subr.mxu0 0.0
    %4933 = vmatpush1.xpose.msra.mxu0 0.0
    %4934 = vmatprep.subr.mxu0 0.0
    %4935 = vmatpush1.xpose.msra.mxu0 0.0
    %4936 = vmatprep.subr.mxu0 0.0
    %4937 = vmatpush1.xpose.msra.mxu0 0.0
    %4938 = vmatprep.subr.mxu0 0.0
    %4939 = vmatpush1.xpose.msra.mxu0 0.0
    %4940 = vmatprep.subr.mxu0 0.0
    %4941 = vmatpush1.xpose.msra.mxu0 0.0
    %4942 = vmatprep.subr.mxu0 0.0
    %4943 = vmatpush1.xpose.msra.mxu0 0.0
    %4944 = vmatprep.subr.mxu0 0.0
    %4945 = vmatpush1.xpose.msra.mxu0 0.0
    %4946 = vmatprep.subr.mxu0 0.0
    %4947 = vmatpush1.xpose.msra.mxu0 0.0
    %4948 = vmatprep.subr.mxu0 0.0
    %4949 = vmatpush1.xpose.msra.mxu0 0.0
    %4950 = vmatprep.subr.mxu0 0.0
    %4951 = vmatpush1.xpose.msra.mxu0 0.0
    %4952 = vmatprep.subr.mxu0 0.0
    %4953 = vmatpush1.xpose.msra.mxu0 0.0
    %4954 = vmatprep.subr.mxu0 0.0
    %4955 = vmatpush1.xpose.msra.mxu0 0.0
    %4956 = vmatprep.subr.mxu0 0.0
    %4957 = vmatpush1.xpose.msra.mxu0 0.0
    %4958 = vmatprep.subr.mxu0 0.0
    %4959 = vmatpush1.xpose.msra.mxu0 0.0
    %4960 = vmatprep.subr.mxu0 0.0
    %4961 = vmatpush1.xpose.msra.mxu0 0.0
    %4962 = vmatprep.subr.mxu0 0.0
    %4963 = vmatpush1.xpose.msra.mxu0 0.0
    %4964 = vmatprep.subr.mxu0 0.0
    %4965 = vmatpush1.xpose.msra.mxu0 0.0
    %4966 = vmatprep.subr.mxu0 0.0
    %4967 = vmatpush1.xpose.msra.mxu0 0.0
    %4968 = vmatprep.subr.mxu0 0.0
    %4969 = vmatpush1.xpose.msra.mxu0 0.0
    %4970 = vmatprep.subr.mxu0 0.0
    %4971 = vmatpush1.xpose.msra.mxu0 0.0
    %4972 = vmatprep.subr.mxu0 0.0
    %4973 = vmatpush1.xpose.msra.mxu0 0.0
    %4974 = vmatprep.subr.mxu0 0.0
    %4975 = vmatpush1.xpose.msra.mxu0 0.0
    %4976 = vmatprep.subr.mxu0 0.0
    %4977 = vmatpush1.xpose.msra.mxu0 0.0
    %4978 = vmatprep.subr.mxu0 0.0
    %4979 = vmatpush1.xpose.msra.mxu0 0.0
    %4980 = vmatprep.subr.mxu0 0.0
    %4981 = vmatpush1.xpose.msra.mxu0 0.0
    %4982 = vmatprep.subr.mxu0 0.0
    %4983 = vmatpush1.xpose.msra.mxu0 0.0
    %4984 = vmatprep.mubr.f32.mxu0 0.0
    %4985 = vmatmul.mubr.f32.gmra.mrb[0].mxu0 %v4912
    %v4986 = vpop.f32.mrb[0].mxu0
    %v4987 = vadd.f32 0.0, %v4986
    %v4988 = vpop.f32.mrb[0].mxu0
    %4989 = vmatprep.mubr.f32.mxu0 0.0
    %4990 = vmatmul.mubr.f32.gmra.mrb[0].mxu0 %v4914
    %v4991 = vpop.f32.mrb[0].mxu0
    %v4992 = vadd.f32 0.0, %v4991
    %v4993 = vpop.f32.mrb[0].mxu0
    %4994 = vdwg.mxu0
    %v4999 = vcombine.low %v2173, %v2198
    %v5000 = vcombine.low %v2223, %v2248
    %v5005 = vcombine.low %v4253, %v4278
    %v5006 = vcombine.low %v4303, %v4328
    %v5007 = vsel %vm4341, %v4999, 0
    %v5009 = vsel %vm4341, %v5000, 0
    %v5011 = vsel %vm4341, %v5005, 0
    %v5013 = vsel %vm4341, %v5006, 0
    %5015 = vmatprep.subr.mxu0 0.0
    %5016 = vmatpush1.xpose.msra.mxu0 %v5011
    %5017 = vmatprep.subr.mxu0 0.0
    %5018 = vmatpush1.xpose.msra.mxu0 %v5013
    %5019 = vmatprep.subr.mxu0 0.0
    %5020 = vmatpush1.xpose.msra.mxu0 0.0
    %5021 = vmatprep.subr.mxu0 0.0
    %5022 = vmatpush1.xpose.msra.mxu0 0.0
    %5023 = vmatprep.subr.mxu0 0.0
    %5024 = vmatpush1.xpose.msra.mxu0 0.0
    %5025 = vmatprep.subr.mxu0 0.0
    %5026 = vmatpush1.xpose.msra.mxu0 0.0
    %5027 = vmatprep.subr.mxu0 0.0
    %5028 = vmatpush1.xpose.msra.mxu0 0.0
    %5029 = vmatprep.subr.mxu0 0.0
    %5030 = vmatpush1.xpose.msra.mxu0 0.0
    %5031 = vmatprep.subr.mxu0 0.0
    %5032 = vmatpush1.xpose.msra.mxu0 0.0
    %5033 = vmatprep.subr.mxu0 0.0
    %5034 = vmatpush1.xpose.msra.mxu0 0.0
    %5035 = vmatprep.subr.mxu0 0.0
    %5036 = vmatpush1.xpose.msra.mxu0 0.0
    %5037 = vmatprep.subr.mxu0 0.0
    %5038 = vmatpush1.xpose.msra.mxu0 0.0
    %5039 = vmatprep.subr.mxu0 0.0
    %5040 = vmatpush1.xpose.msra.mxu0 0.0
    %5041 = vmatprep.subr.mxu0 0.0
    %5042 = vmatpush1.xpose.msra.mxu0 0.0
    %5043 = vmatprep.subr.mxu0 0.0
    %5044 = vmatpush1.xpose.msra.mxu0 0.0
    %5045 = vmatprep.subr.mxu0 0.0
    %5046 = vmatpush1.xpose.msra.mxu0 0.0
    %5047 = vmatprep.subr.mxu0 0.0
    %5048 = vmatpush1.xpose.msra.mxu0 0.0
    %5049 = vmatprep.subr.mxu0 0.0
    %5050 = vmatpush1.xpose.msra.mxu0 0.0
    %5051 = vmatprep.subr.mxu0 0.0
    %5052 = vmatpush1.xpose.msra.mxu0 0.0
    %5053 = vmatprep.subr.mxu0 0.0
    %5054 = vmatpush1.xpose.msra.mxu0 0.0
    %5055 = vmatprep.subr.mxu0 0.0
    %5056 = vmatpush1.xpose.msra.mxu0 0.0
    %5057 = vmatprep.subr.mxu0 0.0
    %5058 = vmatpush1.xpose.msra.mxu0 0.0
    %5059 = vmatprep.subr.mxu0 0.0
    %5060 = vmatpush1.xpose.msra.mxu0 0.0
    %5061 = vmatprep.subr.mxu0 0.0
    %5062 = vmatpush1.xpose.msra.mxu0 0.0
    %5063 = vmatprep.subr.mxu0 0.0
    %5064 = vmatpush1.xpose.msra.mxu0 0.0
    %5065 = vmatprep.subr.mxu0 0.0
    %5066 = vmatpush1.xpose.msra.mxu0 0.0
    %5067 = vmatprep.subr.mxu0 0.0
    %5068 = vmatpush1.xpose.msra.mxu0 0.0
    %5069 = vmatprep.subr.mxu0 0.0
    %5070 = vmatpush1.xpose.msra.mxu0 0.0
    %5071 = vmatprep.subr.mxu0 0.0
    %5072 = vmatpush1.xpose.msra.mxu0 0.0
    %5073 = vmatprep.subr.mxu0 0.0
    %5074 = vmatpush1.xpose.msra.mxu0 0.0
    %5075 = vmatprep.subr.mxu0 0.0
    %5076 = vmatpush1.xpose.msra.mxu0 0.0
    %5077 = vmatprep.subr.mxu0 0.0
    %5078 = vmatpush1.xpose.msra.mxu0 0.0
    %5079 = vmatprep.mubr.f32.mxu0 0.0
    %5080 = vmatmul.mubr.f32.gmra.mrb[0].mxu0 %v5007
    %v5081 = vpop.f32.mrb[0].mxu0
    %v5082 = vadd.f32 0.0, %v5081
    %v5083 = vpop.f32.mrb[0].mxu0
    %5084 = vmatprep.mubr.f32.mxu0 0.0
    %5085 = vmatmul.mubr.f32.gmra.mrb[0].mxu0 %v5009
    %v5086 = vpop.f32.mrb[0].mxu0
    %v5087 = vadd.f32 0.0, %v5086
    %v5088 = vpop.f32.mrb[0].mxu0
    %5089 = vdwg.mxu0
    %v5094 = vcombine.low %v502, %v527
    %v5095 = vcombine.low %v552, %v577
    %v5100 = vcombine.low %v2582, %v2607
    %v5101 = vcombine.low %v2632, %v2657
    %v5102 = vsel %vm4341, %v5094, 0
    %v5104 = vsel %vm4341, %v5095, 0
    %v5106 = vsel %vm4341, %v5100, 0
    %v5108 = vsel %vm4341, %v5101, 0
    %5110 = vmatprep.subr.mxu0 0.0
    %5111 = vmatpush1.xpose.msra.mxu0 %v5106
    %5112 = vmatprep.subr.mxu0 0.0
    %5113 = vmatpush1.xpose.msra.mxu0 %v5108
    %5114 = vmatprep.subr.mxu0 0.0
    %5115 = vmatpush1.xpose.msra.mxu0 0.0
    %5116 = vmatprep.subr.mxu0 0.0
    %5117 = vmatpush1.xpose.msra.mxu0 0.0
    %5118 = vmatprep.subr.mxu0 0.0
    %5119 = vmatpush1.xpose.msra.mxu0 0.0
    %5120 = vmatprep.subr.mxu0 0.0
    %5121 = vmatpush1.xpose.msra.mxu0 0.0
    %5122 = vmatprep.subr.mxu0 0.0
    %5123 = vmatpush1.xpose.msra.mxu0 0.0
    %5124 = vmatprep.subr.mxu0 0.0
    %5125 = vmatpush1.xpose.msra.mxu0 0.0
    %5126 = vmatprep.subr.mxu0 0.0
    %5127 = vmatpush1.xpose.msra.mxu0 0.0
    %5128 = vmatprep.subr.mxu0 0.0
    %5129 = vmatpush1.xpose.msra.mxu0 0.0
    %5130 = vmatprep.subr.mxu0 0.0
    %5131 = vmatpush1.xpose.msra.mxu0 0.0
    %5132 = vmatprep.subr.mxu0 0.0
    %5133 = vmatpush1.xpose.msra.mxu0 0.0
    %5134 = vmatprep.subr.mxu0 0.0
    %5135 = vmatpush1.xpose.msra.mxu0 0.0
    %5136 = vmatprep.subr.mxu0 0.0
    %5137 = vmatpush1.xpose.msra.mxu0 0.0
    %5138 = vmatprep.subr.mxu0 0.0
    %5139 = vmatpush1.xpose.msra.mxu0 0.0
    %5140 = vmatprep.subr.mxu0 0.0
    %5141 = vmatpush1.xpose.msra.mxu0 0.0
    %5142 = vmatprep.subr.mxu0 0.0
    %5143 = vmatpush1.xpose.msra.mxu0 0.0
    %5144 = vmatprep.subr.mxu0 0.0
    %5145 = vmatpush1.xpose.msra.mxu0 0.0
    %5146 = vmatprep.subr.mxu0 0.0
    %5147 = vmatpush1.xpose.msra.mxu0 0.0
    %5148 = vmatprep.subr.mxu0 0.0
    %5149 = vmatpush1.xpose.msra.mxu0 0.0
    %5150 = vmatprep.subr.mxu0 0.0
    %5151 = vmatpush1.xpose.msra.mxu0 0.0
    %5152 = vmatprep.subr.mxu0 0.0
    %5153 = vmatpush1.xpose.msra.mxu0 0.0
    %5154 = vmatprep.subr.mxu0 0.0
    %5155 = vmatpush1.xpose.msra.mxu0 0.0
    %5156 = vmatprep.subr.mxu0 0.0
    %5157 = vmatpush1.xpose.msra.mxu0 0.0
    %5158 = vmatprep.subr.mxu0 0.0
    %5159 = vmatpush1.xpose.msra.mxu0 0.0
    %5160 = vmatprep.subr.mxu0 0.0
    %5161 = vmatpush1.xpose.msra.mxu0 0.0
    %5162 = vmatprep.subr.mxu0 0.0
    %5163 = vmatpush1.xpose.msra.mxu0 0.0
    %5164 = vmatprep.subr.mxu0 0.0
    %5165 = vmatpush1.xpose.msra.mxu0 0.0
    %5166 = vmatprep.subr.mxu0 0.0
    %5167 = vmatpush1.xpose.msra.mxu0 0.0
    %5168 = vmatprep.subr.mxu0 0.0
    %5169 = vmatpush1.xpose.msra.mxu0 0.0
    %5170 = vmatprep.subr.mxu0 0.0
    %5171 = vmatpush1.xpose.msra.mxu0 0.0
    %5172 = vmatprep.subr.mxu0 0.0
    %5173 = vmatpush1.xpose.msra.mxu0 0.0
    %5174 = vmatprep.mubr.f32.mxu0 0.0
    %5175 = vmatmul.mubr.f32.gmra.mrb[0].mxu0 %v5102
    %v5176 = vpop.f32.mrb[0].mxu0
    %v5177 = vadd.f32 %v4417, %v5176
    %v5178 = vpop.f32.mrb[0].mxu0
    %5179 = vmatprep.mubr.f32.mxu0 0.0
    %5180 = vmatmul.mubr.f32.gmra.mrb[0].mxu0 %v5104
    %v5181 = vpop.f32.mrb[0].mxu0
    %v5182 = vadd.f32 %v4422, %v5181
    %v5183 = vpop.f32.mrb[0].mxu0
    %5184 = vdwg.mxu0
    %v5189 = vcombine.low %v712, %v737
    %v5190 = vcombine.low %v762, %v787
    %v5195 = vcombine.low %v2792, %v2817
    %v5196 = vcombine.low %v2842, %v2867
    %v5197 = vsel %vm4341, %v5189, 0
    %v5199 = vsel %vm4341, %v5190, 0
    %v5201 = vsel %vm4341, %v5195, 0
    %v5203 = vsel %vm4341, %v5196, 0
    %5205 = vmatprep.subr.mxu0 0.0
    %5206 = vmatpush1.xpose.msra.mxu0 %v5201
    %5207 = vmatprep.subr.mxu0 0.0
    %5208 = vmatpush1.xpose.msra.mxu0 %v5203
    %5209 = vmatprep.subr.mxu0 0.0
    %5210 = vmatpush1.xpose.msra.mxu0 0.0
    %5211 = vmatprep.subr.mxu0 0.0
    %5212 = vmatpush1.xpose.msra.mxu0 0.0
    %5213 = vmatprep.subr.mxu0 0.0
    %5214 = vmatpush1.xpose.msra.mxu0 0.0
    %5215 = vmatprep.subr.mxu0 0.0
    %5216 = vmatpush1.xpose.msra.mxu0 0.0
    %5217 = vmatprep.subr.mxu0 0.0
    %5218 = vmatpush1.xpose.msra.mxu0 0.0
    %5219 = vmatprep.subr.mxu0 0.0
    %5220 = vmatpush1.xpose.msra.mxu0 0.0
    %5221 = vmatprep.subr.mxu0 0.0
    %5222 = vmatpush1.xpose.msra.mxu0 0.0
    %5223 = vmatprep.subr.mxu0 0.0
    %5224 = vmatpush1.xpose.msra.mxu0 0.0
    %5225 = vmatprep.subr.mxu0 0.0
    %5226 = vmatpush1.xpose.msra.mxu0 0.0
    %5227 = vmatprep.subr.mxu0 0.0
    %5228 = vmatpush1.xpose.msra.mxu0 0.0
    %5229 = vmatprep.subr.mxu0 0.0
    %5230 = vmatpush1.xpose.msra.mxu0 0.0
    %5231 = vmatprep.subr.mxu0 0.0
    %5232 = vmatpush1.xpose.msra.mxu0 0.0
    %5233 = vmatprep.subr.mxu0 0.0
    %5234 = vmatpush1.xpose.msra.mxu0 0.0
    %5235 = vmatprep.subr.mxu0 0.0
    %5236 = vmatpush1.xpose.msra.mxu0 0.0
    %5237 = vmatprep.subr.mxu0 0.0
    %5238 = vmatpush1.xpose.msra.mxu0 0.0
    %5239 = vmatprep.subr.mxu0 0.0
    %5240 = vmatpush1.xpose.msra.mxu0 0.0
    %5241 = vmatprep.subr.mxu0 0.0
    %5242 = vmatpush1.xpose.msra.mxu0 0.0
    %5243 = vmatprep.subr.mxu0 0.0
    %5244 = vmatpush1.xpose.msra.mxu0 0.0
    %5245 = vmatprep.subr.mxu0 0.0
    %5246 = vmatpush1.xpose.msra.mxu0 0.0
    %5247 = vmatprep.subr.mxu0 0.0
    %5248 = vmatpush1.xpose.msra.mxu0 0.0
    %5249 = vmatprep.subr.mxu0 0.0
    %5250 = vmatpush1.xpose.msra.mxu0 0.0
    %5251 = vmatprep.subr.mxu0 0.0
    %5252 = vmatpush1.xpose.msra.mxu0 0.0
    %5253 = vmatprep.subr.mxu0 0.0
    %5254 = vmatpush1.xpose.msra.mxu0 0.0
    %5255 = vmatprep.subr.mxu0 0.0
    %5256 = vmatpush1.xpose.msra.mxu0 0.0
    %5257 = vmatprep.subr.mxu0 0.0
    %5258 = vmatpush1.xpose.msra.mxu0 0.0
    %5259 = vmatprep.subr.mxu0 0.0
    %5260 = vmatpush1.xpose.msra.mxu0 0.0
    %5261 = vmatprep.subr.mxu0 0.0
    %5262 = vmatpush1.xpose.msra.mxu0 0.0
    %5263 = vmatprep.subr.mxu0 0.0
    %5264 = vmatpush1.xpose.msra.mxu0 0.0
    %5265 = vmatprep.subr.mxu0 0.0
    %5266 = vmatpush1.xpose.msra.mxu0 0.0
    %5267 = vmatprep.subr.mxu0 0.0
    %5268 = vmatpush1.xpose.msra.mxu0 0.0
    %5269 = vmatprep.mubr.f32.mxu0 0.0
    %5270 = vmatmul.mubr.f32.gmra.mrb[0].mxu0 %v5197
    %v5271 = vpop.f32.mrb[0].mxu0
    %v5272 = vadd.f32 %v4512, %v5271
    %v5273 = vpop.f32.mrb[0].mxu0
    %5274 = vmatprep.mubr.f32.mxu0 0.0
    %5275 = vmatmul.mubr.f32.gmra.mrb[0].mxu0 %v5199
    %v5276 = vpop.f32.mrb[0].mxu0
    %v5277 = vadd.f32 %v4517, %v5276
    %v5278 = vpop.f32.mrb[0].mxu0
    %5279 = vdwg.mxu0
    %v5284 = vcombine.low %v922, %v947
    %v5285 = vcombine.low %v972, %v997
    %v5290 = vcombine.low %v3002, %v3027
    %v5291 = vcombine.low %v3052, %v3077
    %v5292 = vsel %vm4341, %v5284, 0
    %v5294 = vsel %vm4341, %v5285, 0
    %v5296 = vsel %vm4341, %v5290, 0
    %v5298 = vsel %vm4341, %v5291, 0
    %5300 = vmatprep.subr.mxu0 0.0
    %5301 = vmatpush1.xpose.msra.mxu0 %v5296
    %5302 = vmatprep.subr.mxu0 0.0
    %5303 = vmatpush1.xpose.msra.mxu0 %v5298
    %5304 = vmatprep.subr.mxu0 0.0
    %5305 = vmatpush1.xpose.msra.mxu0 0.0
    %5306 = vmatprep.subr.mxu0 0.0
    %5307 = vmatpush1.xpose.msra.mxu0 0.0
    %5308 = vmatprep.subr.mxu0 0.0
    %5309 = vmatpush1.xpose.msra.mxu0 0.0
    %5310 = vmatprep.subr.mxu0 0.0
    %5311 = vmatpush1.xpose.msra.mxu0 0.0
    %5312 = vmatprep.subr.mxu0 0.0
    %5313 = vmatpush1.xpose.msra.mxu0 0.0
    %5314 = vmatprep.subr.mxu0 0.0
    %5315 = vmatpush1.xpose.msra.mxu0 0.0
    %5316 = vmatprep.subr.mxu0 0.0
    %5317 = vmatpush1.xpose.msra.mxu0 0.0
    %5318 = vmatprep.subr.mxu0 0.0
    %5319 = vmatpush1.xpose.msra.mxu0 0.0
    %5320 = vmatprep.subr.mxu0 0.0
    %5321 = vmatpush1.xpose.msra.mxu0 0.0
    %5322 = vmatprep.subr.mxu0 0.0
    %5323 = vmatpush1.xpose.msra.mxu0 0.0
    %5324 = vmatprep.subr.mxu0 0.0
    %5325 = vmatpush1.xpose.msra.mxu0 0.0
    %5326 = vmatprep.subr.mxu0 0.0
    %5327 = vmatpush1.xpose.msra.mxu0 0.0
    %5328 = vmatprep.subr.mxu0 0.0
    %5329 = vmatpush1.xpose.msra.mxu0 0.0
    %5330 = vmatprep.subr.mxu0 0.0
    %5331 = vmatpush1.xpose.msra.mxu0 0.0
    %5332 = vmatprep.subr.mxu0 0.0
    %5333 = vmatpush1.xpose.msra.mxu0 0.0
    %5334 = vmatprep.subr.mxu0 0.0
    %5335 = vmatpush1.xpose.msra.mxu0 0.0
    %5336 = vmatprep.subr.mxu0 0.0
    %5337 = vmatpush1.xpose.msra.mxu0 0.0
    %5338 = vmatprep.subr.mxu0 0.0
    %5339 = vmatpush1.xpose.msra.mxu0 0.0
    %5340 = vmatprep.subr.mxu0 0.0
    %5341 = vmatpush1.xpose.msra.mxu0 0.0
    %5342 = vmatprep.subr.mxu0 0.0
    %5343 = vmatpush1.xpose.msra.mxu0 0.0
    %5344 = vmatprep.subr.mxu0 0.0
    %5345 = vmatpush1.xpose.msra.mxu0 0.0
    %5346 = vmatprep.subr.mxu0 0.0
    %5347 = vmatpush1.xpose.msra.mxu0 0.0
    %5348 = vmatprep.subr.mxu0 0.0
    %5349 = vmatpush1.xpose.msra.mxu0 0.0
    %5350 = vmatprep.subr.mxu0 0.0
    %5351 = vmatpush1.xpose.msra.mxu0 0.0
    %5352 = vmatprep.subr.mxu0 0.0
    %5353 = vmatpush1.xpose.msra.mxu0 0.0
    %5354 = vmatprep.subr.mxu0 0.0
    %5355 = vmatpush1.xpose.msra.mxu0 0.0
    %5356 = vmatprep.subr.mxu0 0.0
    %5357 = vmatpush1.xpose.msra.mxu0 0.0
    %5358 = vmatprep.subr.mxu0 0.0
    %5359 = vmatpush1.xpose.msra.mxu0 0.0
    %5360 = vmatprep.subr.mxu0 0.0
    %5361 = vmatpush1.xpose.msra.mxu0 0.0
    %5362 = vmatprep.subr.mxu0 0.0
    %5363 = vmatpush1.xpose.msra.mxu0 0.0
    %5364 = vmatprep.mubr.f32.mxu0 0.0
    %5365 = vmatmul.mubr.f32.gmra.mrb[0].mxu0 %v5292
    %v5366 = vpop.f32.mrb[0].mxu0
    %v5367 = vadd.f32 %v4607, %v5366
    %v5368 = vpop.f32.mrb[0].mxu0
    %5369 = vmatprep.mubr.f32.mxu0 0.0
    %5370 = vmatmul.mubr.f32.gmra.mrb[0].mxu0 %v5294
    %v5371 = vpop.f32.mrb[0].mxu0
    %v5372 = vadd.f32 %v4612, %v5371
    %v5373 = vpop.f32.mrb[0].mxu0
    %5374 = vdwg.mxu0
    %v5379 = vcombine.low %v1132, %v1157
    %v5380 = vcombine.low %v1182, %v1207
    %v5385 = vcombine.low %v3212, %v3237
    %v5386 = vcombine.low %v3262, %v3287
    %v5387 = vsel %vm4341, %v5379, 0
    %v5389 = vsel %vm4341, %v5380, 0
    %v5391 = vsel %vm4341, %v5385, 0
    %v5393 = vsel %vm4341, %v5386, 0
    %5395 = vmatprep.subr.mxu0 0.0
    %5396 = vmatpush1.xpose.msra.mxu0 %v5391
    %5397 = vmatprep.subr.mxu0 0.0
    %5398 = vmatpush1.xpose.msra.mxu0 %v5393
    %5399 = vmatprep.subr.mxu0 0.0
    %5400 = vmatpush1.xpose.msra.mxu0 0.0
    %5401 = vmatprep.subr.mxu0 0.0
    %5402 = vmatpush1.xpose.msra.mxu0 0.0
    %5403 = vmatprep.subr.mxu0 0.0
    %5404 = vmatpush1.xpose.msra.mxu0 0.0
    %5405 = vmatprep.subr.mxu0 0.0
    %5406 = vmatpush1.xpose.msra.mxu0 0.0
    %5407 = vmatprep.subr.mxu0 0.0
    %5408 = vmatpush1.xpose.msra.mxu0 0.0
    %5409 = vmatprep.subr.mxu0 0.0
    %5410 = vmatpush1.xpose.msra.mxu0 0.0
    %5411 = vmatprep.subr.mxu0 0.0
    %5412 = vmatpush1.xpose.msra.mxu0 0.0
    %5413 = vmatprep.subr.mxu0 0.0
    %5414 = vmatpush1.xpose.msra.mxu0 0.0
    %5415 = vmatprep.subr.mxu0 0.0
    %5416 = vmatpush1.xpose.msra.mxu0 0.0
    %5417 = vmatprep.subr.mxu0 0.0
    %5418 = vmatpush1.xpose.msra.mxu0 0.0
    %5419 = vmatprep.subr.mxu0 0.0
    %5420 = vmatpush1.xpose.msra.mxu0 0.0
    %5421 = vmatprep.subr.mxu0 0.0
    %5422 = vmatpush1.xpose.msra.mxu0 0.0
    %5423 = vmatprep.subr.mxu0 0.0
    %5424 = vmatpush1.xpose.msra.mxu0 0.0
    %5425 = vmatprep.subr.mxu0 0.0
    %5426 = vmatpush1.xpose.msra.mxu0 0.0
    %5427 = vmatprep.subr.mxu0 0.0
    %5428 = vmatpush1.xpose.msra.mxu0 0.0
    %5429 = vmatprep.subr.mxu0 0.0
    %5430 = vmatpush1.xpose.msra.mxu0 0.0
    %5431 = vmatprep.subr.mxu0 0.0
    %5432 = vmatpush1.xpose.msra.mxu0 0.0
    %5433 = vmatprep.subr.mxu0 0.0
    %5434 = vmatpush1.xpose.msra.mxu0 0.0
    %5435 = vmatprep.subr.mxu0 0.0
    %5436 = vmatpush1.xpose.msra.mxu0 0.0
    %5437 = vmatprep.subr.mxu0 0.0
    %5438 = vmatpush1.xpose.msra.mxu0 0.0
    %5439 = vmatprep.subr.mxu0 0.0
    %5440 = vmatpush1.xpose.msra.mxu0 0.0
    %5441 = vmatprep.subr.mxu0 0.0
    %5442 = vmatpush1.xpose.msra.mxu0 0.0
    %5443 = vmatprep.subr.mxu0 0.0
    %5444 = vmatpush1.xpose.msra.mxu0 0.0
    %5445 = vmatprep.subr.mxu0 0.0
    %5446 = vmatpush1.xpose.msra.mxu0 0.0
    %5447 = vmatprep.subr.mxu0 0.0
    %5448 = vmatpush1.xpose.msra.mxu0 0.0
    %5449 = vmatprep.subr.mxu0 0.0
    %5450 = vmatpush1.xpose.msra.mxu0 0.0
    %5451 = vmatprep.subr.mxu0 0.0
    %5452 = vmatpush1.xpose.msra.mxu0 0.0
    %5453 = vmatprep.subr.mxu0 0.0
    %5454 = vmatpush1.xpose.msra.mxu0 0.0
    %5455 = vmatprep.subr.mxu0 0.0
    %5456 = vmatpush1.xpose.msra.mxu0 0.0
    %5457 = vmatprep.subr.mxu0 0.0
    %5458 = vmatpush1.xpose.msra.mxu0 0.0
    %5459 = vmatprep.mubr.f32.mxu0 0.0
    %5460 = vmatmul.mubr.f32.gmra.mrb[0].mxu0 %v5387
    %v5461 = vpop.f32.mrb[0].mxu0
    %v5462 = vadd.f32 %v4702, %v5461
    %v5463 = vpop.f32.mrb[0].mxu0
    %5464 = vmatprep.mubr.f32.mxu0 0.0
    %5465 = vmatmul.mubr.f32.gmra.mrb[0].mxu0 %v5389
    %v5466 = vpop.f32.mrb[0].mxu0
    %v5467 = vadd.f32 %v4707, %v5466
    %v5468 = vpop.f32.mrb[0].mxu0
    %5469 = vdwg.mxu0
    %v5474 = vcombine.low %v503, %v528
    %v5475 = vcombine.low %v553, %v578
    %v5480 = vcombine.low %v2583, %v2608
    %v5481 = vcombine.low %v2633, %v2658
    %v5482 = vsel %vm4341, %v5474, 0
    %v5484 = vsel %vm4341, %v5475, 0
    %v5486 = vsel %vm4341, %v5480, 0
    %v5488 = vsel %vm4341, %v5481, 0
    %5490 = vmatprep.subr.mxu0 0.0
    %5491 = vmatpush1.xpose.msra.mxu0 %v5486
    %5492 = vmatprep.subr.mxu0 0.0
    %5493 = vmatpush1.xpose.msra.mxu0 %v5488
    %5494 = vmatprep.subr.mxu0 0.0
    %5495 = vmatpush1.xpose.msra.mxu0 0.0
    %5496 = vmatprep.subr.mxu0 0.0
    %5497 = vmatpush1.xpose.msra.mxu0 0.0
    %5498 = vmatprep.subr.mxu0 0.0
    %5499 = vmatpush1.xpose.msra.mxu0 0.0
    %5500 = vmatprep.subr.mxu0 0.0
    %5501 = vmatpush1.xpose.msra.mxu0 0.0
    %5502 = vmatprep.subr.mxu0 0.0
    %5503 = vmatpush1.xpose.msra.mxu0 0.0
    %5504 = vmatprep.subr.mxu0 0.0
    %5505 = vmatpush1.xpose.msra.mxu0 0.0
    %5506 = vmatprep.subr.mxu0 0.0
    %5507 = vmatpush1.xpose.msra.mxu0 0.0
    %5508 = vmatprep.subr.mxu0 0.0
    %5509 = vmatpush1.xpose.msra.mxu0 0.0
    %5510 = vmatprep.subr.mxu0 0.0
    %5511 = vmatpush1.xpose.msra.mxu0 0.0
    %5512 = vmatprep.subr.mxu0 0.0
    %5513 = vmatpush1.xpose.msra.mxu0 0.0
    %5514 = vmatprep.subr.mxu0 0.0
    %5515 = vmatpush1.xpose.msra.mxu0 0.0
    %5516 = vmatprep.subr.mxu0 0.0
    %5517 = vmatpush1.xpose.msra.mxu0 0.0
    %5518 = vmatprep.subr.mxu0 0.0
    %5519 = vmatpush1.xpose.msra.mxu0 0.0
    %5520 = vmatprep.subr.mxu0 0.0
    %5521 = vmatpush1.xpose.msra.mxu0 0.0
    %5522 = vmatprep.subr.mxu0 0.0
    %5523 = vmatpush1.xpose.msra.mxu0 0.0
    %5524 = vmatprep.subr.mxu0 0.0
    %5525 = vmatpush1.xpose.msra.mxu0 0.0
    %5526 = vmatprep.subr.mxu0 0.0
    %5527 = vmatpush1.xpose.msra.mxu0 0.0
    %5528 = vmatprep.subr.mxu0 0.0
    %5529 = vmatpush1.xpose.msra.mxu0 0.0
    %5530 = vmatprep.subr.mxu0 0.0
    %5531 = vmatpush1.xpose.msra.mxu0 0.0
    %5532 = vmatprep.subr.mxu0 0.0
    %5533 = vmatpush1.xpose.msra.mxu0 0.0
    %5534 = vmatprep.subr.mxu0 0.0
    %5535 = vmatpush1.xpose.msra.mxu0 0.0
    %5536 = vmatprep.subr.mxu0 0.0
    %5537 = vmatpush1.xpose.msra.mxu0 0.0
    %5538 = vmatprep.subr.mxu0 0.0
    %5539 = vmatpush1.xpose.msra.mxu0 0.0
    %5540 = vmatprep.subr.mxu0 0.0
    %5541 = vmatpush1.xpose.msra.mxu0 0.0
    %5542 = vmatprep.subr.mxu0 0.0
    %5543 = vmatpush1.xpose.msra.mxu0 0.0
    %5544 = vmatprep.subr.mxu0 0.0
    %5545 = vmatpush1.xpose.msra.mxu0 0.0
    %5546 = vmatprep.subr.mxu0 0.0
    %5547 = vmatpush1.xpose.msra.mxu0 0.0
    %5548 = vmatprep.subr.mxu0 0.0
    %5549 = vmatpush1.xpose.msra.mxu0 0.0
    %5550 = vmatprep.subr.mxu0 0.0
    %5551 = vmatpush1.xpose.msra.mxu0 0.0
    %5552 = vmatprep.subr.mxu0 0.0
    %5553 = vmatpush1.xpose.msra.mxu0 0.0
    %5554 = vmatprep.mubr.f32.mxu0 0.0
    %5555 = vmatmul.mubr.f32.gmra.mrb[0].mxu0 %v5482
    %v5556 = vpop.f32.mrb[0].mxu0
    %v5557 = vadd.f32 %v4797, %v5556
    %v5558 = vpop.f32.mrb[0].mxu0
    %5559 = vmatprep.mubr.f32.mxu0 0.0
    %5560 = vmatmul.mubr.f32.gmra.mrb[0].mxu0 %v5484
    %v5561 = vpop.f32.mrb[0].mxu0
    %v5562 = vadd.f32 %v4802, %v5561
    %v5563 = vpop.f32.mrb[0].mxu0
    %5564 = vdwg.mxu0
    %v5569 = vcombine.low %v713, %v738
    %v5570 = vcombine.low %v763, %v788
    %v5575 = vcombine.low %v2793, %v2818
    %v5576 = vcombine.low %v2843, %v2868
    %v5577 = vsel %vm4341, %v5569, 0
    %v5579 = vsel %vm4341, %v5570, 0
    %v5581 = vsel %vm4341, %v5575, 0
    %v5583 = vsel %vm4341, %v5576, 0
    %5585 = vmatprep.subr.mxu0 0.0
    %5586 = vmatpush1.xpose.msra.mxu0 %v5581
    %5587 = vmatprep.subr.mxu0 0.0
    %5588 = vmatpush1.xpose.msra.mxu0 %v5583
    %5589 = vmatprep.subr.mxu0 0.0
    %5590 = vmatpush1.xpose.msra.mxu0 0.0
    %5591 = vmatprep.subr.mxu0 0.0
    %5592 = vmatpush1.xpose.msra.mxu0 0.0
    %5593 = vmatprep.subr.mxu0 0.0
    %5594 = vmatpush1.xpose.msra.mxu0 0.0
    %5595 = vmatprep.subr.mxu0 0.0
    %5596 = vmatpush1.xpose.msra.mxu0 0.0
    %5597 = vmatprep.subr.mxu0 0.0
    %5598 = vmatpush1.xpose.msra.mxu0 0.0
    %5599 = vmatprep.subr.mxu0 0.0
    %5600 = vmatpush1.xpose.msra.mxu0 0.0
    %5601 = vmatprep.subr.mxu0 0.0
    %5602 = vmatpush1.xpose.msra.mxu0 0.0
    %5603 = vmatprep.subr.mxu0 0.0
    %5604 = vmatpush1.xpose.msra.mxu0 0.0
    %5605 = vmatprep.subr.mxu0 0.0
    %5606 = vmatpush1.xpose.msra.mxu0 0.0
    %5607 = vmatprep.subr.mxu0 0.0
    %5608 = vmatpush1.xpose.msra.mxu0 0.0
    %5609 = vmatprep.subr.mxu0 0.0
    %5610 = vmatpush1.xpose.msra.mxu0 0.0
    %5611 = vmatprep.subr.mxu0 0.0
    %5612 = vmatpush1.xpose.msra.mxu0 0.0
    %5613 = vmatprep.subr.mxu0 0.0
    %5614 = vmatpush1.xpose.msra.mxu0 0.0
    %5615 = vmatprep.subr.mxu0 0.0
    %5616 = vmatpush1.xpose.msra.mxu0 0.0
    %5617 = vmatprep.subr.mxu0 0.0
    %5618 = vmatpush1.xpose.msra.mxu0 0.0
    %5619 = vmatprep.subr.mxu0 0.0
    %5620 = vmatpush1.xpose.msra.mxu0 0.0
    %5621 = vmatprep.subr.mxu0 0.0
    %5622 = vmatpush1.xpose.msra.mxu0 0.0
    %5623 = vmatprep.subr.mxu0 0.0
    %5624 = vmatpush1.xpose.msra.mxu0 0.0
    %5625 = vmatprep.subr.mxu0 0.0
    %5626 = vmatpush1.xpose.msra.mxu0 0.0
    %5627 = vmatprep.subr.mxu0 0.0
    %5628 = vmatpush1.xpose.msra.mxu0 0.0
    %5629 = vmatprep.subr.mxu0 0.0
    %5630 = vmatpush1.xpose.msra.mxu0 0.0
    %5631 = vmatprep.subr.mxu0 0.0
    %5632 = vmatpush1.xpose.msra.mxu0 0.0
    %5633 = vmatprep.subr.mxu0 0.0
    %5634 = vmatpush1.xpose.msra.mxu0 0.0
    %5635 = vmatprep.subr.mxu0 0.0
    %5636 = vmatpush1.xpose.msra.mxu0 0.0
    %5637 = vmatprep.subr.mxu0 0.0
    %5638 = vmatpush1.xpose.msra.mxu0 0.0
    %5639 = vmatprep.subr.mxu0 0.0
    %5640 = vmatpush1.xpose.msra.mxu0 0.0
    %5641 = vmatprep.subr.mxu0 0.0
    %5642 = vmatpush1.xpose.msra.mxu0 0.0
    %5643 = vmatprep.subr.mxu0 0.0
    %5644 = vmatpush1.xpose.msra.mxu0 0.0
    %5645 = vmatprep.subr.mxu0 0.0
    %5646 = vmatpush1.xpose.msra.mxu0 0.0
    %5647 = vmatprep.subr.mxu0 0.0
    %5648 = vmatpush1.xpose.msra.mxu0 0.0
    %5649 = vmatprep.mubr.f32.mxu0 0.0
    %5650 = vmatmul.mubr.f32.gmra.mrb[0].mxu0 %v5577
    %v5651 = vpop.f32.mrb[0].mxu0
    %v5652 = vadd.f32 %v4892, %v5651
    %v5653 = vpop.f32.mrb[0].mxu0
    %5654 = vmatprep.mubr.f32.mxu0 0.0
    %5655 = vmatmul.mubr.f32.gmra.mrb[0].mxu0 %v5579
    %v5656 = vpop.f32.mrb[0].mxu0
    %v5657 = vadd.f32 %v4897, %v5656
    %v5658 = vpop.f32.mrb[0].mxu0
    %5659 = vdwg.mxu0
    %v5664 = vcombine.low %v923, %v948
    %v5665 = vcombine.low %v973, %v998
    %v5670 = vcombine.low %v3003, %v3028
    %v5671 = vcombine.low %v3053, %v3078
    %v5672 = vsel %vm4341, %v5664, 0
    %v5674 = vsel %vm4341, %v5665, 0
    %v5676 = vsel %vm4341, %v5670, 0
    %v5678 = vsel %vm4341, %v5671, 0
    %5680 = vmatprep.subr.mxu0 0.0
    %5681 = vmatpush1.xpose.msra.mxu0 %v5676
    %5682 = vmatprep.subr.mxu0 0.0
    %5683 = vmatpush1.xpose.msra.mxu0 %v5678
    %5684 = vmatprep.subr.mxu0 0.0
    %5685 = vmatpush1.xpose.msra.mxu0 0.0
    %5686 = vmatprep.subr.mxu0 0.0
    %5687 = vmatpush1.xpose.msra.mxu0 0.0
    %5688 = vmatprep.subr.mxu0 0.0
    %5689 = vmatpush1.xpose.msra.mxu0 0.0
    %5690 = vmatprep.subr.mxu0 0.0
    %5691 = vmatpush1.xpose.msra.mxu0 0.0
    %5692 = vmatprep.subr.mxu0 0.0
    %5693 = vmatpush1.xpose.msra.mxu0 0.0
    %5694 = vmatprep.subr.mxu0 0.0
    %5695 = vmatpush1.xpose.msra.mxu0 0.0
    %5696 = vmatprep.subr.mxu0 0.0
    %5697 = vmatpush1.xpose.msra.mxu0 0.0
    %5698 = vmatprep.subr.mxu0 0.0
    %5699 = vmatpush1.xpose.msra.mxu0 0.0
    %5700 = vmatprep.subr.mxu0 0.0
    %5701 = vmatpush1.xpose.msra.mxu0 0.0
    %5702 = vmatprep.subr.mxu0 0.0
    %5703 = vmatpush1.xpose.msra.mxu0 0.0
    %5704 = vmatprep.subr.mxu0 0.0
    %5705 = vmatpush1.xpose.msra.mxu0 0.0
    %5706 = vmatprep.subr.mxu0 0.0
    %5707 = vmatpush1.xpose.msra.mxu0 0.0
    %5708 = vmatprep.subr.mxu0 0.0
    %5709 = vmatpush1.xpose.msra.mxu0 0.0
    %5710 = vmatprep.subr.mxu0 0.0
    %5711 = vmatpush1.xpose.msra.mxu0 0.0
    %5712 = vmatprep.subr.mxu0 0.0
    %5713 = vmatpush1.xpose.msra.mxu0 0.0
    %5714 = vmatprep.subr.mxu0 0.0
    %5715 = vmatpush1.xpose.msra.mxu0 0.0
    %5716 = vmatprep.subr.mxu0 0.0
    %5717 = vmatpush1.xpose.msra.mxu0 0.0
    %5718 = vmatprep.subr.mxu0 0.0
    %5719 = vmatpush1.xpose.msra.mxu0 0.0
    %5720 = vmatprep.subr.mxu0 0.0
    %5721 = vmatpush1.xpose.msra.mxu0 0.0
    %5722 = vmatprep.subr.mxu0 0.0
    %5723 = vmatpush1.xpose.msra.mxu0 0.0
    %5724 = vmatprep.subr.mxu0 0.0
    %5725 = vmatpush1.xpose.msra.mxu0 0.0
    %5726 = vmatprep.subr.mxu0 0.0
    %5727 = vmatpush1.xpose.msra.mxu0 0.0
    %5728 = vmatprep.subr.mxu0 0.0
    %5729 = vmatpush1.xpose.msra.mxu0 0.0
    %5730 = vmatprep.subr.mxu0 0.0
    %5731 = vmatpush1.xpose.msra.mxu0 0.0
    %5732 = vmatprep.subr.mxu0 0.0
    %5733 = vmatpush1.xpose.msra.mxu0 0.0
    %5734 = vmatprep.subr.mxu0 0.0
    %5735 = vmatpush1.xpose.msra.mxu0 0.0
    %5736 = vmatprep.subr.mxu0 0.0
    %5737 = vmatpush1.xpose.msra.mxu0 0.0
    %5738 = vmatprep.subr.mxu0 0.0
    %5739 = vmatpush1.xpose.msra.mxu0 0.0
    %5740 = vmatprep.subr.mxu0 0.0
    %5741 = vmatpush1.xpose.msra.mxu0 0.0
    %5742 = vmatprep.subr.mxu0 0.0
    %5743 = vmatpush1.xpose.msra.mxu0 0.0
    %5744 = vmatprep.mubr.f32.mxu0 0.0
    %5745 = vmatmul.mubr.f32.gmra.mrb[0].mxu0 %v5672
    %v5746 = vpop.f32.mrb[0].mxu0
    %v5747 = vadd.f32 %v4987, %v5746
    %v5748 = vpop.f32.mrb[0].mxu0
    %5749 = vmatprep.mubr.f32.mxu0 0.0
    %5750 = vmatmul.mubr.f32.gmra.mrb[0].mxu0 %v5674
    %v5751 = vpop.f32.mrb[0].mxu0
    %v5752 = vadd.f32 %v4992, %v5751
    %v5753 = vpop.f32.mrb[0].mxu0
    %5754 = vdwg.mxu0
    %v5759 = vcombine.low %v1133, %v1158
    %v5760 = vcombine.low %v1183, %v1208
    %v5765 = vcombine.low %v3213, %v3238
    %v5766 = vcombine.low %v3263, %v3288
    %v5767 = vsel %vm4341, %v5759, 0
    %v5769 = vsel %vm4341, %v5760, 0
    %v5771 = vsel %vm4341, %v5765, 0
    %v5773 = vsel %vm4341, %v5766, 0
    %5775 = vmatprep.subr.mxu0 0.0
    %5776 = vmatpush1.xpose.msra.mxu0 %v5771
    %5777 = vmatprep.subr.mxu0 0.0
    %5778 = vmatpush1.xpose.msra.mxu0 %v5773
    %5779 = vmatprep.subr.mxu0 0.0
    %5780 = vmatpush1.xpose.msra.mxu0 0.0
    %5781 = vmatprep.subr.mxu0 0.0
    %5782 = vmatpush1.xpose.msra.mxu0 0.0
    %5783 = vmatprep.subr.mxu0 0.0
    %5784 = vmatpush1.xpose.msra.mxu0 0.0
    %5785 = vmatprep.subr.mxu0 0.0
    %5786 = vmatpush1.xpose.msra.mxu0 0.0
    %5787 = vmatprep.subr.mxu0 0.0
    %5788 = vmatpush1.xpose.msra.mxu0 0.0
    %5789 = vmatprep.subr.mxu0 0.0
    %5790 = vmatpush1.xpose.msra.mxu0 0.0
    %5791 = vmatprep.subr.mxu0 0.0
    %5792 = vmatpush1.xpose.msra.mxu0 0.0
    %5793 = vmatprep.subr.mxu0 0.0
    %5794 = vmatpush1.xpose.msra.mxu0 0.0
    %5795 = vmatprep.subr.mxu0 0.0
    %5796 = vmatpush1.xpose.msra.mxu0 0.0
    %5797 = vmatprep.subr.mxu0 0.0
    %5798 = vmatpush1.xpose.msra.mxu0 0.0
    %5799 = vmatprep.subr.mxu0 0.0
    %5800 = vmatpush1.xpose.msra.mxu0 0.0
    %5801 = vmatprep.subr.mxu0 0.0
    %5802 = vmatpush1.xpose.msra.mxu0 0.0
    %5803 = vmatprep.subr.mxu0 0.0
    %5804 = vmatpush1.xpose.msra.mxu0 0.0
    %5805 = vmatprep.subr.mxu0 0.0
    %5806 = vmatpush1.xpose.msra.mxu0 0.0
    %5807 = vmatprep.subr.mxu0 0.0
    %5808 = vmatpush1.xpose.msra.mxu0 0.0
    %5809 = vmatprep.subr.mxu0 0.0
    %5810 = vmatpush1.xpose.msra.mxu0 0.0
    %5811 = vmatprep.subr.mxu0 0.0
    %5812 = vmatpush1.xpose.msra.mxu0 0.0
    %5813 = vmatprep.subr.mxu0 0.0
    %5814 = vmatpush1.xpose.msra.mxu0 0.0
    %5815 = vmatprep.subr.mxu0 0.0
    %5816 = vmatpush1.xpose.msra.mxu0 0.0
    %5817 = vmatprep.subr.mxu0 0.0
    %5818 = vmatpush1.xpose.msra.mxu0 0.0
    %5819 = vmatprep.subr.mxu0 0.0
    %5820 = vmatpush1.xpose.msra.mxu0 0.0
    %5821 = vmatprep.subr.mxu0 0.0
    %5822 = vmatpush1.xpose.msra.mxu0 0.0
    %5823 = vmatprep.subr.mxu0 0.0
    %5824 = vmatpush1.xpose.msra.mxu0 0.0
    %5825 = vmatprep.subr.mxu0 0.0
    %5826 = vmatpush1.xpose.msra.mxu0 0.0
    %5827 = vmatprep.subr.mxu0 0.0
    %5828 = vmatpush1.xpose.msra.mxu0 0.0
    %5829 = vmatprep.subr.mxu0 0.0
    %5830 = vmatpush1.xpose.msra.mxu0 0.0
    %5831 = vmatprep.subr.mxu0 0.0
    %5832 = vmatpush1.xpose.msra.mxu0 0.0
    %5833 = vmatprep.subr.mxu0 0.0
    %5834 = vmatpush1.xpose.msra.mxu0 0.0
    %5835 = vmatprep.subr.mxu0 0.0
    %5836 = vmatpush1.xpose.msra.mxu0 0.0
    %5837 = vmatprep.subr.mxu0 0.0
    %5838 = vmatpush1.xpose.msra.mxu0 0.0
    %5839 = vmatprep.mubr.f32.mxu0 0.0
    %5840 = vmatmul.mubr.f32.gmra.mrb[0].mxu0 %v5767
    %v5841 = vpop.f32.mrb[0].mxu0
    %v5842 = vadd.f32 %v5082, %v5841
    %v5843 = vpop.f32.mrb[0].mxu0
    %5844 = vmatprep.mubr.f32.mxu0 0.0
    %5845 = vmatmul.mubr.f32.gmra.mrb[0].mxu0 %v5769
    %v5846 = vpop.f32.mrb[0].mxu0
    %v5847 = vadd.f32 %v5087, %v5846
    %v5848 = vpop.f32.mrb[0].mxu0
    %5849 = vdwg.mxu0
    %v5850 = vsel %vm4341, %v5177, -inf
    %5851 = vmax.xlane.f32.xlu0 %v5850
    %v5852 = vpop.xlane.xlu0 %5851
    %v5853 = vsel %vm4341, %v5182, -inf
    %5854 = vmax.xlane.f32.xlu0 %v5853
    %v5855 = vpop.xlane.xlu0 %5854
    %v5856 = vsel %vm4341, %v5272, -inf
    %5857 = vmax.xlane.f32.xlu0 %v5856
    %v5858 = vpop.xlane.xlu0 %5857
    %v5859 = vsel %vm4341, %v5277, -inf
    %5860 = vmax.xlane.f32.xlu0 %v5859
    %v5861 = vpop.xlane.xlu0 %5860
    %v5862 = vsel %vm4341, %v5367, -inf
    %5863 = vmax.xlane.f32.xlu0 %v5862
    %v5864 = vpop.xlane.xlu0 %5863
    %v5865 = vsel %vm4341, %v5372, -inf
    %5866 = vmax.xlane.f32.xlu0 %v5865
    %v5867 = vpop.xlane.xlu0 %5866
    %v5868 = vsel %vm4341, %v5462, -inf
    %5869 = vmax.xlane.f32.xlu0 %v5868
    %v5870 = vpop.xlane.xlu0 %5869
    %v5871 = vsel %vm4341, %v5467, -inf
    %5872 = vmax.xlane.f32.xlu0 %v5871
    %v5873 = vpop.xlane.xlu0 %5872
    %v5874 = vsel %vm4341, %v5557, -inf
    %5875 = vmax.xlane.f32.xlu0 %v5874
    %v5876 = vpop.xlane.xlu0 %5875
    %v5877 = vsel %vm4341, %v5562, -inf
    %5878 = vmax.xlane.f32.xlu0 %v5877
    %v5879 = vpop.xlane.xlu0 %5878
    %v5880 = vsel %vm4341, %v5652, -inf
    %5881 = vmax.xlane.f32.xlu0 %v5880
    %v5882 = vpop.xlane.xlu0 %5881
    %v5883 = vsel %vm4341, %v5657, -inf
    %5884 = vmax.xlane.f32.xlu0 %v5883
    %v5885 = vpop.xlane.xlu0 %5884
    %v5886 = vsel %vm4341, %v5747, -inf
    %5887 = vmax.xlane.f32.xlu0 %v5886
    %v5888 = vpop.xlane.xlu0 %5887
    %v5889 = vsel %vm4341, %v5752, -inf
    %5890 = vmax.xlane.f32.xlu0 %v5889
    %v5891 = vpop.xlane.xlu0 %5890
    %v5892 = vsel %vm4341, %v5842, -inf
    %5893 = vmax.xlane.f32.xlu0 %v5892
    %v5894 = vpop.xlane.xlu0 %5893
    %v5895 = vsel %vm4341, %v5847, -inf
    %5896 = vmax.xlane.f32.xlu0 %v5895
    %v5897 = vpop.xlane.xlu0 %5896
    %v5898 = vsub.f32 %v5177, %v5852
    %v5899 = vsub.f32 %v5182, %v5855
    %v5900 = vsub.f32 %v5272, %v5858
    %v5901 = vsub.f32 %v5277, %v5861
    %v5902 = vsub.f32 %v5367, %v5864
    %v5903 = vsub.f32 %v5372, %v5867
    %v5904 = vsub.f32 %v5462, %v5870
    %v5905 = vsub.f32 %v5467, %v5873
    %v5906 = vsub.f32 %v5557, %v5876
    %v5907 = vsub.f32 %v5562, %v5879
    %v5908 = vsub.f32 %v5652, %v5882
    %v5909 = vsub.f32 %v5657, %v5885
    %v5910 = vsub.f32 %v5747, %v5888
    %v5911 = vsub.f32 %v5752, %v5891
    %v5912 = vsub.f32 %v5842, %v5894
    %v5913 = vsub.f32 %v5847, %v5897
    %v5914 = vmul.f32 %v5898, 1.442695
    %v5915 = vpow.pop %v5914
    %v5916 = vmul.f32 %v5899, 1.442695
    %v5917 = vpow.pop %v5916
    %v5918 = vmul.f32 %v5900, 1.442695
    %v5919 = vpow.pop %v5918
    %v5920 = vmul.f32 %v5901, 1.442695
    %v5921 = vpow.pop %v5920
    %v5922 = vmul.f32 %v5902, 1.442695
    %v5923 = vpow.pop %v5922
    %v5924 = vmul.f32 %v5903, 1.442695
    %v5925 = vpow.pop %v5924
    %v5926 = vmul.f32 %v5904, 1.442695
    %v5927 = vpow.pop %v5926
    %v5928 = vmul.f32 %v5905, 1.442695
    %v5929 = vpow.pop %v5928
    %v5930 = vmul.f32 %v5906, 1.442695
    %v5931 = vpow.pop %v5930
    %v5932 = vmul.f32 %v5907, 1.442695
    %v5933 = vpow.pop %v5932
    %v5934 = vmul.f32 %v5908, 1.442695
    %v5935 = vpow.pop %v5934
    %v5936 = vmul.f32 %v5909, 1.442695
    %v5937 = vpow.pop %v5936
    %v5938 = vmul.f32 %v5910, 1.442695
    %v5939 = vpow.pop %v5938
    %v5940 = vmul.f32 %v5911, 1.442695
    %v5941 = vpow.pop %v5940
    %v5942 = vmul.f32 %v5912, 1.442695
    %v5943 = vpow.pop %v5942
    %v5944 = vmul.f32 %v5913, 1.442695
    %v5945 = vpow.pop %v5944
    %v5946 = vsel %vm4341, %v5915, 0.0
    %5947 = vadd.xlane.f32.xlu0 %v5946
    %v5948 = vpop.xlane.xlu0 %5947
    %v5949 = vsel %vm4341, %v5917, 0.0
    %5950 = vadd.xlane.f32.xlu0 %v5949
    %v5951 = vpop.xlane.xlu0 %5950
    %v5952 = vsel %vm4341, %v5919, 0.0
    %5953 = vadd.xlane.f32.xlu0 %v5952
    %v5954 = vpop.xlane.xlu0 %5953
    %v5955 = vsel %vm4341, %v5921, 0.0
    %5956 = vadd.xlane.f32.xlu0 %v5955
    %v5957 = vpop.xlane.xlu0 %5956
    %v5958 = vsel %vm4341, %v5923, 0.0
    %5959 = vadd.xlane.f32.xlu0 %v5958
    %v5960 = vpop.xlane.xlu0 %5959
    %v5961 = vsel %vm4341, %v5925, 0.0
    %5962 = vadd.xlane.f32.xlu0 %v5961
    %v5963 = vpop.xlane.xlu0 %5962
    %v5964 = vsel %vm4341, %v5927, 0.0
    %5965 = vadd.xlane.f32.xlu0 %v5964
    %v5966 = vpop.xlane.xlu0 %5965
    %v5967 = vsel %vm4341, %v5929, 0.0
    %5968 = vadd.xlane.f32.xlu0 %v5967
    %v5969 = vpop.xlane.xlu0 %5968
    %v5970 = vsel %vm4341, %v5931, 0.0
    %5971 = vadd.xlane.f32.xlu0 %v5970
    %v5972 = vpop.xlane.xlu0 %5971
    %v5973 = vsel %vm4341, %v5933, 0.0
    %5974 = vadd.xlane.f32.xlu0 %v5973
    %v5975 = vpop.xlane.xlu0 %5974
    %v5976 = vsel %vm4341, %v5935, 0.0
    %5977 = vadd.xlane.f32.xlu0 %v5976
    %v5978 = vpop.xlane.xlu0 %5977
    %v5979 = vsel %vm4341, %v5937, 0.0
    %5980 = vadd.xlane.f32.xlu0 %v5979
    %v5981 = vpop.xlane.xlu0 %5980
    %v5982 = vsel %vm4341, %v5939, 0.0
    %5983 = vadd.xlane.f32.xlu0 %v5982
    %v5984 = vpop.xlane.xlu0 %5983
    %v5985 = vsel %vm4341, %v5941, 0.0
    %5986 = vadd.xlane.f32.xlu0 %v5985
    %v5987 = vpop.xlane.xlu0 %5986
    %v5988 = vsel %vm4341, %v5943, 0.0
    %5989 = vadd.xlane.f32.xlu0 %v5988
    %v5990 = vpop.xlane.xlu0 %5989
    %v5991 = vsel %vm4341, %v5945, 0.0
    %5992 = vadd.xlane.f32.xlu0 %v5991
    %v5993 = vpop.xlane.xlu0 %5992
    %v5994 = vrcp.pop %v5948
    %v5995 = vmul.f32 %v5915, %v5994
    %v5996 = vrcp.pop %v5951
    %v5997 = vmul.f32 %v5917, %v5996
    %v5998 = vrcp.pop %v5954
    %v5999 = vmul.f32 %v5919, %v5998
    %v6000 = vrcp.pop %v5957
    %v6001 = vmul.f32 %v5921, %v6000
    %v6002 = vrcp.pop %v5960
    %v6003 = vmul.f32 %v5923, %v6002
    %v6004 = vrcp.pop %v5963
    %v6005 = vmul.f32 %v5925, %v6004
    %v6006 = vrcp.pop %v5966
    %v6007 = vmul.f32 %v5927, %v6006
    %v6008 = vrcp.pop %v5969
    %v6009 = vmul.f32 %v5929, %v6008
    %v6010 = vrcp.pop %v5972
    %v6011 = vmul.f32 %v5931, %v6010
    %v6012 = vrcp.pop %v5975
    %v6013 = vmul.f32 %v5933, %v6012
    %v6014 = vrcp.pop %v5978
    %v6015 = vmul.f32 %v5935, %v6014
    %v6016 = vrcp.pop %v5981
    %v6017 = vmul.f32 %v5937, %v6016
    %v6018 = vrcp.pop %v5984
    %v6019 = vmul.f32 %v5939, %v6018
    %v6020 = vrcp.pop %v5987
    %v6021 = vmul.f32 %v5941, %v6020
    %v6022 = vrcp.pop %v5990
    %v6023 = vmul.f32 %v5943, %v6022
    %v6024 = vrcp.pop %v5993
    %v6025 = vmul.f32 %v5945, %v6024
    %v6026 = vcombine.low %v5995, %v6003
    %v6027 = vcombine.high %v5995, %v6003
    %v6029 = vunpack.c.l.s4 1983009808
    %v6030 = vunpack.c.0.s8 %v6029
    %v6031 = vlaneseq
    %v6032 = vshrl.u32 %v6031, 7
    %v6033 = vsub.s32 %v6030, %v6032
    %v6034 = vrot.slane %v6026, %v6033
    %v6036 = vunpack.c.l.s4 1983009808
    %v6037 = vunpack.c.0.s8 %v6036
    %v6038 = vlaneseq
    %v6039 = vshrl.u32 %v6038, 7
    %v6040 = vsub.s32 %v6037, %v6039
    %v6041 = vrot.slane %v6027, %v6040
    %v6042 = vcombine.low %v5999, %v6007
    %v6043 = vcombine.high %v5999, %v6007
    %v6045 = vunpack.c.l.s4 1983009808
    %v6046 = vunpack.c.0.s8 %v6045
    %v6047 = vlaneseq
    %v6048 = vshrl.u32 %v6047, 7
    %v6049 = vsub.s32 %v6046, %v6048
    %v6050 = vrot.slane %v6042, %v6049
    %v6052 = vunpack.c.l.s4 1983009808
    %v6053 = vunpack.c.0.s8 %v6052
    %v6054 = vlaneseq
    %v6055 = vshrl.u32 %v6054, 7
    %v6056 = vsub.s32 %v6053, %v6055
    %v6057 = vrot.slane %v6043, %v6056
    %v6058 = vcombine.low %v6034, %v6050
    %v6059 = vcombine.high %v6034, %v6050
    %v6061 = vunpack.c.l.s4 1934713408
    %v6062 = vunpack.c.0.s8 %v6061
    %v6063 = vlaneseq
    %v6064 = vshrl.u32 %v6063, 7
    %v6065 = vsub.s32 %v6062, %v6064
    %v6066 = vrot.slane %v6058, %v6065
    %v6068 = vunpack.c.l.s4 1934713408
    %v6069 = vunpack.c.0.s8 %v6068
    %v6070 = vlaneseq
    %v6071 = vshrl.u32 %v6070, 7
    %v6072 = vsub.s32 %v6069, %v6071
    %v6073 = vrot.slane %v6059, %v6072
    %v6074 = vcombine.low %v6041, %v6057
    %v6075 = vcombine.high %v6041, %v6057
    %v6077 = vunpack.c.l.s4 1934713408
    %v6078 = vunpack.c.0.s8 %v6077
    %v6079 = vlaneseq
    %v6080 = vshrl.u32 %v6079, 7
    %v6081 = vsub.s32 %v6078, %v6080
    %v6082 = vrot.slane %v6074, %v6081
    %v6084 = vunpack.c.l.s4 1934713408
    %v6085 = vunpack.c.0.s8 %v6084
    %v6086 = vlaneseq
    %v6087 = vshrl.u32 %v6086, 7
    %v6088 = vsub.s32 %v6085, %v6087
    %v6089 = vrot.slane %v6075, %v6088
    %v6090 = vcombine.high %v6066, 0.0
    %v6091 = vcombine.high %v6073, 0.0
    %v6092 = vcombine.high %v6082, 0.0
    %v6093 = vcombine.high %v6089, 0.0
    %v6094 = vcombine.low %v5997, %v6005
    %v6095 = vcombine.high %v5997, %v6005
    %v6097 = vunpack.c.l.s4 1983009808
    %v6098 = vunpack.c.0.s8 %v6097
    %v6099 = vlaneseq
    %v6100 = vshrl.u32 %v6099, 7
    %v6101 = vsub.s32 %v6098, %v6100
    %v6102 = vrot.slane %v6094, %v6101
    %v6104 = vunpack.c.l.s4 1983009808
    %v6105 = vunpack.c.0.s8 %v6104
    %v6106 = vlaneseq
    %v6107 = vshrl.u32 %v6106, 7
    %v6108 = vsub.s32 %v6105, %v6107
    %v6109 = vrot.slane %v6095, %v6108
    %v6110 = vcombine.low %v6001, %v6009
    %v6111 = vcombine.high %v6001, %v6009
    %v6113 = vunpack.c.l.s4 1983009808
    %v6114 = vunpack.c.0.s8 %v6113
    %v6115 = vlaneseq
    %v6116 = vshrl.u32 %v6115, 7
    %v6117 = vsub.s32 %v6114, %v6116
    %v6118 = vrot.slane %v6110, %v6117
    %v6120 = vunpack.c.l.s4 1983009808
    %v6121 = vunpack.c.0.s8 %v6120
    %v6122 = vlaneseq
    %v6123 = vshrl.u32 %v6122, 7
    %v6124 = vsub.s32 %v6121, %v6123
    %v6125 = vrot.slane %v6111, %v6124
    %v6126 = vcombine.low %v6102, %v6118
    %v6127 = vcombine.high %v6102, %v6118
    %v6129 = vunpack.c.l.s4 1934713408
    %v6130 = vunpack.c.0.s8 %v6129
    %v6131 = vlaneseq
    %v6132 = vshrl.u32 %v6131, 7
    %v6133 = vsub.s32 %v6130, %v6132
    %v6134 = vrot.slane %v6126, %v6133
    %v6136 = vunpack.c.l.s4 1934713408
    %v6137 = vunpack.c.0.s8 %v6136
    %v6138 = vlaneseq
    %v6139 = vshrl.u32 %v6138, 7
    %v6140 = vsub.s32 %v6137, %v6139
    %v6141 = vrot.slane %v6127, %v6140
    %v6142 = vcombine.low %v6109, %v6125
    %v6143 = vcombine.high %v6109, %v6125
    %v6145 = vunpack.c.l.s4 1934713408
    %v6146 = vunpack.c.0.s8 %v6145
    %v6147 = vlaneseq
    %v6148 = vshrl.u32 %v6147, 7
    %v6149 = vsub.s32 %v6146, %v6148
    %v6150 = vrot.slane %v6142, %v6149
    %v6152 = vunpack.c.l.s4 1934713408
    %v6153 = vunpack.c.0.s8 %v6152
    %v6154 = vlaneseq
    %v6155 = vshrl.u32 %v6154, 7
    %v6156 = vsub.s32 %v6153, %v6155
    %v6157 = vrot.slane %v6143, %v6156
    %v6158 = vcombine.high %v6134, 0.0
    %v6159 = vcombine.high %v6141, 0.0
    %v6160 = vcombine.high %v6150, 0.0
    %v6161 = vcombine.high %v6157, 0.0
    %v6162 = vcombine.low %v6011, %v6019
    %v6163 = vcombine.high %v6011, %v6019
    %v6165 = vunpack.c.l.s4 1983009808
    %v6166 = vunpack.c.0.s8 %v6165
    %v6167 = vlaneseq
    %v6168 = vshrl.u32 %v6167, 7
    %v6169 = vsub.s32 %v6166, %v6168
    %v6170 = vrot.slane %v6162, %v6169
    %v6172 = vunpack.c.l.s4 1983009808
    %v6173 = vunpack.c.0.s8 %v6172
    %v6174 = vlaneseq
    %v6175 = vshrl.u32 %v6174, 7
    %v6176 = vsub.s32 %v6173, %v6175
    %v6177 = vrot.slane %v6163, %v6176
    %v6178 = vcombine.low %v6015, %v6023
    %v6179 = vcombine.high %v6015, %v6023
    %v6181 = vunpack.c.l.s4 1983009808
    %v6182 = vunpack.c.0.s8 %v6181
    %v6183 = vlaneseq
    %v6184 = vshrl.u32 %v6183, 7
    %v6185 = vsub.s32 %v6182, %v6184
    %v6186 = vrot.slane %v6178, %v6185
    %v6188 = vunpack.c.l.s4 1983009808
    %v6189 = vunpack.c.0.s8 %v6188
    %v6190 = vlaneseq
    %v6191 = vshrl.u32 %v6190, 7
    %v6192 = vsub.s32 %v6189, %v6191
    %v6193 = vrot.slane %v6179, %v6192
    %v6194 = vcombine.low %v6170, %v6186
    %v6195 = vcombine.high %v6170, %v6186
    %v6197 = vunpack.c.l.s4 1934713408
    %v6198 = vunpack.c.0.s8 %v6197
    %v6199 = vlaneseq
    %v6200 = vshrl.u32 %v6199, 7
    %v6201 = vsub.s32 %v6198, %v6200
    %v6202 = vrot.slane %v6194, %v6201
    %v6204 = vunpack.c.l.s4 1934713408
    %v6205 = vunpack.c.0.s8 %v6204
    %v6206 = vlaneseq
    %v6207 = vshrl.u32 %v6206, 7
    %v6208 = vsub.s32 %v6205, %v6207
    %v6209 = vrot.slane %v6195, %v6208
    %v6210 = vcombine.low %v6177, %v6193
    %v6211 = vcombine.high %v6177, %v6193
    %v6213 = vunpack.c.l.s4 1934713408
    %v6214 = vunpack.c.0.s8 %v6213
    %v6215 = vlaneseq
    %v6216 = vshrl.u32 %v6215, 7
    %v6217 = vsub.s32 %v6214, %v6216
    %v6218 = vrot.slane %v6210, %v6217
    %v6220 = vunpack.c.l.s4 1934713408
    %v6221 = vunpack.c.0.s8 %v6220
    %v6222 = vlaneseq
    %v6223 = vshrl.u32 %v6222, 7
    %v6224 = vsub.s32 %v6221, %v6223
    %v6225 = vrot.slane %v6211, %v6224
    %v6226 = vcombine.high %v6202, 0.0
    %v6227 = vcombine.high %v6209, 0.0
    %v6228 = vcombine.high %v6218, 0.0
    %v6229 = vcombine.high %v6225, 0.0
    %v6230 = vcombine.low %v6013, %v6021
    %v6231 = vcombine.high %v6013, %v6021
    %v6233 = vunpack.c.l.s4 1983009808
    %v6234 = vunpack.c.0.s8 %v6233
    %v6235 = vlaneseq
    %v6236 = vshrl.u32 %v6235, 7
    %v6237 = vsub.s32 %v6234, %v6236
    %v6238 = vrot.slane %v6230, %v6237
    %v6240 = vunpack.c.l.s4 1983009808
    %v6241 = vunpack.c.0.s8 %v6240
    %v6242 = vlaneseq
    %v6243 = vshrl.u32 %v6242, 7
    %v6244 = vsub.s32 %v6241, %v6243
    %v6245 = vrot.slane %v6231, %v6244
    %v6246 = vcombine.low %v6017, %v6025
    %v6247 = vcombine.high %v6017, %v6025
    %v6249 = vunpack.c.l.s4 1983009808
    %v6250 = vunpack.c.0.s8 %v6249
    %v6251 = vlaneseq
    %v6252 = vshrl.u32 %v6251, 7
    %v6253 = vsub.s32 %v6250, %v6252
    %v6254 = vrot.slane %v6246, %v6253
    %v6256 = vunpack.c.l.s4 1983009808
    %v6257 = vunpack.c.0.s8 %v6256
    %v6258 = vlaneseq
    %v6259 = vshrl.u32 %v6258, 7
    %v6260 = vsub.s32 %v6257, %v6259
    %v6261 = vrot.slane %v6247, %v6260
    %v6262 = vcombine.low %v6238, %v6254
    %v6263 = vcombine.high %v6238, %v6254
    %v6265 = vunpack.c.l.s4 1934713408
    %v6266 = vunpack.c.0.s8 %v6265
    %v6267 = vlaneseq
    %v6268 = vshrl.u32 %v6267, 7
    %v6269 = vsub.s32 %v6266, %v6268
    %v6270 = vrot.slane %v6262, %v6269
    %v6272 = vunpack.c.l.s4 1934713408
    %v6273 = vunpack.c.0.s8 %v6272
    %v6274 = vlaneseq
    %v6275 = vshrl.u32 %v6274, 7
    %v6276 = vsub.s32 %v6273, %v6275
    %v6277 = vrot.slane %v6263, %v6276
    %v6278 = vcombine.low %v6245, %v6261
    %v6279 = vcombine.high %v6245, %v6261
    %v6281 = vunpack.c.l.s4 1934713408
    %v6282 = vunpack.c.0.s8 %v6281
    %v6283 = vlaneseq
    %v6284 = vshrl.u32 %v6283, 7
    %v6285 = vsub.s32 %v6282, %v6284
    %v6286 = vrot.slane %v6278, %v6285
    %v6288 = vunpack.c.l.s4 1934713408
    %v6289 = vunpack.c.0.s8 %v6288
    %v6290 = vlaneseq
    %v6291 = vshrl.u32 %v6290, 7
    %v6292 = vsub.s32 %v6289, %v6291
    %v6293 = vrot.slane %v6279, %v6292
    %v6294 = vcombine.high %v6270, 0.0
    %v6295 = vcombine.high %v6277, 0.0
    %v6296 = vcombine.high %v6286, 0.0
    %v6297 = vcombine.high %v6293, 0.0
    %6300 = vrot.lane.b32.xlu0 %v6090, 16
    %v6301 = vpop.permute.xlu0 %6300
    %6302 = vrot.lane.b32.xlu0 %v6226, 16
    %v6303 = vpop.permute.xlu0 %6302
    %6308 = vrot.lane.b32.xlu0 %v6073, 32
    %v6309 = vpop.permute.xlu0 %6308
    %6310 = vrot.lane.b32.xlu0 %v6209, 32
    %v6311 = vpop.permute.xlu0 %6310
    %6316 = vrot.lane.b32.xlu0 %v6091, 48
    %v6317 = vpop.permute.xlu0 %6316
    %6318 = vrot.lane.b32.xlu0 %v6227, 48
    %v6319 = vpop.permute.xlu0 %6318
    %6324 = vrot.lane.b32.xlu0 %v6082, 64
    %v6325 = vpop.permute.xlu0 %6324
    %6326 = vrot.lane.b32.xlu0 %v6218, 64
    %v6327 = vpop.permute.xlu0 %6326
    %6332 = vrot.lane.b32.xlu0 %v6092, 80
    %v6333 = vpop.permute.xlu0 %6332
    %6334 = vrot.lane.b32.xlu0 %v6228, 80
    %v6335 = vpop.permute.xlu0 %6334
    %6340 = vrot.lane.b32.xlu0 %v6089, 96
    %v6341 = vpop.permute.xlu0 %6340
    %6342 = vrot.lane.b32.xlu0 %v6225, 96
    %v6343 = vpop.permute.xlu0 %6342
    %6348 = vrot.lane.b32.xlu0 %v6093, 112
    %v6349 = vpop.permute.xlu0 %6348
    %6350 = vrot.lane.b32.xlu0 %v6229, 112
    %v6351 = vpop.permute.xlu0 %6350
    %6356 = vrot.lane.b32.xlu0 %v6158, 16
    %v6357 = vpop.permute.xlu0 %6356
    %6358 = vrot.lane.b32.xlu0 %v6294, 16
    %v6359 = vpop.permute.xlu0 %6358
    %6364 = vrot.lane.b32.xlu0 %v6141, 32
    %v6365 = vpop.permute.xlu0 %6364
    %6366 = vrot.lane.b32.xlu0 %v6277, 32
    %v6367 = vpop.permute.xlu0 %6366
    %6372 = vrot.lane.b32.xlu0 %v6159, 48
    %v6373 = vpop.permute.xlu0 %6372
    %6374 = vrot.lane.b32.xlu0 %v6295, 48
    %v6375 = vpop.permute.xlu0 %6374
    %6380 = vrot.lane.b32.xlu0 %v6150, 64
    %v6381 = vpop.permute.xlu0 %6380
    %6382 = vrot.lane.b32.xlu0 %v6286, 64
    %v6383 = vpop.permute.xlu0 %6382
    %6388 = vrot.lane.b32.xlu0 %v6160, 80
    %v6389 = vpop.permute.xlu0 %6388
    %6390 = vrot.lane.b32.xlu0 %v6296, 80
    %v6391 = vpop.permute.xlu0 %6390
    %6396 = vrot.lane.b32.xlu0 %v6157, 96
    %v6397 = vpop.permute.xlu0 %6396
    %6398 = vrot.lane.b32.xlu0 %v6293, 96
    %v6399 = vpop.permute.xlu0 %6398
    %6404 = vrot.lane.b32.xlu0 %v6161, 112
    %v6405 = vpop.permute.xlu0 %6404
    %6406 = vrot.lane.b32.xlu0 %v6297, 112
    %v6407 = vpop.permute.xlu0 %6406
    %v6410 = vsel %vm4341, %v6066, %v6301
    %v6411 = vsel %vm4341, %v6202, %v6303
    %vm6412 = vcmask 261120
    %v6413 = vsel %vm6412, %v6410, %v6309
    %v6414 = vsel %vm6412, %v6411, %v6311
    %vm6415 = vcmask 392192
    %v6416 = vsel %vm6415, %v6413, %v6317
    %v6417 = vsel %vm6415, %v6414, %v6319
    %vm6418 = vcmask 523264
    %v6419 = vsel %vm6418, %v6416, %v6325
    %v6420 = vsel %vm6418, %v6417, %v6327
    %vm6421 = vcmask 654336
    %v6422 = vsel %vm6421, %v6419, %v6333
    %v6423 = vsel %vm6421, %v6420, %v6335
    %vm6424 = vcmask 785408
    %v6425 = vsel %vm6424, %v6422, %v6341
    %v6426 = vsel %vm6424, %v6423, %v6343
    %vm6427 = vcmask 916480
    %v6428 = vsel %vm6427, %v6425, %v6349
    %v6429 = vsel %vm6427, %v6426, %v6351
    %v6430 = vsel %vm4341, %v6134, %v6357
    %v6431 = vsel %vm4341, %v6270, %v6359
    %v6432 = vsel %vm6412, %v6430, %v6365
    %v6433 = vsel %vm6412, %v6431, %v6367
    %v6434 = vsel %vm6415, %v6432, %v6373
    %v6435 = vsel %vm6415, %v6433, %v6375
    %v6436 = vsel %vm6418, %v6434, %v6381
    %v6437 = vsel %vm6418, %v6435, %v6383
    %v6438 = vsel %vm6421, %v6436, %v6389
    %v6439 = vsel %vm6421, %v6437, %v6391
    %v6440 = vsel %vm6424, %v6438, %v6397
    %v6441 = vsel %vm6424, %v6439, %v6399
    %v6442 = vsel %vm6427, %v6440, %v6405
    %v6443 = vsel %vm6427, %v6441, %v6407
    %s6444 = sld [smem:[#allocation2]]
    %s6445 = sld [smem:[#allocation3]]
    %v6450 = vcombine.low %v6428, %v6442
    %v6451 = vcombine.low %v6429, %v6443
    %v6454 = vmul.f32 %v165, %v6450
    %v6455 = vmul.f32 %v166, %v6451
    %v6456 = vstv %s6445
    %v6457 = vmul.f32 %v6454, %v6456
    %v6458 = vmul.f32 %v6455, %v6456
    %v6459 = vmul.f32 %v163, %v6450
    %v6460 = vmul.f32 %v164, %v6451
    %v6461 = vstv %s6444
    %v6462 = vmul.f32 %v6459, %v6461
    %v6463 = vmul.f32 %v6460, %v6461
    %v6464 = vld [vmem:[%s10] sm:$0xf]
    %v6465 = vld [vmem:[%s11] sm:$0xf]
    %v6466 = vld [vmem:[%s14] sm:$0xf]
    %v6467 = vld [vmem:[%s15] sm:$0xf]
    %6469 = vset.pattern.permute.xlu0 0
    %6470 = vperm.xlu0 %6469, %v6464
    %v6471 = vpop.permute.xlu0 %6470
    %v6473 = vunpack.c.l.s4 839922192
    %v6474 = vunpack.c.0.s8 %v6473
    %v6475 = vlaneseq
    %v6476 = vshrl.u32 %v6475, 7
    %v6477 = vsub.s32 %v6474, %v6476
    %v6478 = vrot.slane %v6471, %v6477
    %v6480 = vmul.f32 %v6457, %v6478
    %v6481 = vmul.f32 %v6458, %v6478
    %6483 = vset.pattern.permute.xlu0 0
    %6484 = vperm.xlu0 %6483, %v6465
    %v6485 = vpop.permute.xlu0 %6484
    %v6487 = vunpack.c.l.s4 839922192
    %v6488 = vunpack.c.0.s8 %v6487
    %v6489 = vlaneseq
    %v6490 = vshrl.u32 %v6489, 7
    %v6491 = vsub.s32 %v6488, %v6490
    %v6492 = vrot.slane %v6485, %v6491
    %v6494 = vadd.f32 %v6480, %v6492
    %v6495 = vadd.f32 %v6481, %v6492
    %v6498 = vcombine.high %v6494, %v6494
    %v6499 = vcombine.high %v6495, %v6495
    %vm6502 = vcmask 1043456
    %v6503 = vsel %vm6502, %v6494, 0.0
    %v6504 = vsel %vm6502, %v6498, 0.0
    %v6505 = vadd.f32 %v6503, %v6504
    %6506 = vadd.xlane.f32.xlu0 %v6505
    %v6507 = vpop.xlane.xlu0 %6506
    %v6508 = vsel %vm6502, %v6495, 0.0
    %v6509 = vsel %vm6502, %v6499, 0.0
    %v6510 = vadd.f32 %v6508, %v6509
    %6511 = vadd.xlane.f32.xlu0 %v6510
    %v6512 = vpop.xlane.xlu0 %6511
    %v6513 = vsel %vm6502, %v6507, 0.0
    %v6514 = vsel %vm6502, %v6512, 0.0
    %v6515 = vadd.f32 %v6513, %v6514
    %v6516 = vmul.f32 %v6494, %v6494
    %v6517 = vmul.f32 %v6495, %v6495
    %v6520 = vcombine.high %v6516, %v6516
    %v6521 = vcombine.high %v6517, %v6517
    %v6524 = vsel %vm6502, %v6516, 0.0
    %v6525 = vsel %vm6502, %v6520, 0.0
    %v6526 = vadd.f32 %v6524, %v6525
    %6527 = vadd.xlane.f32.xlu0 %v6526
    %v6528 = vpop.xlane.xlu0 %6527
    %v6529 = vsel %vm6502, %v6517, 0.0
    %v6530 = vsel %vm6502, %v6521, 0.0
    %v6531 = vadd.f32 %v6529, %v6530
    %6532 = vadd.xlane.f32.xlu0 %v6531
    %v6533 = vpop.xlane.xlu0 %6532
    %v6534 = vsel %vm6502, %v6528, 0.0
    %v6535 = vsel %vm6502, %v6533, 0.0
    %v6536 = vadd.f32 %v6534, %v6535
    %v6537 = vmul.f32 %v6515, 0.001953125
    %v6538 = vmul.f32 %v6536, 0.001953125
    %v6539 = vmul.f32 %v6537, %v6537
    %v6540 = vsub.f32 %v6538, %v6539
    %v6543 = vunpack.c.l.s4 839922192
    %v6544 = vunpack.c.0.s8 %v6543
    %v6545 = vlaneseq
    %v6546 = vshrl.u32 %v6545, 7
    %v6547 = vsub.s32 %v6544, %v6546
    %v6548 = vrot.slane %v6537, %v6547
    %v6550 = vsub.f32 %v6494, %v6548
    %v6551 = vsub.f32 %v6495, %v6548
    %v6552 = vadd.f32 %v6540, 1e-05
    %v6553 = vrsqrt.pop %v6552
    %v6554 = vmul.f32 %v6553, %v6466
    %6556 = vset.pattern.permute.xlu0 0
    %6557 = vperm.xlu0 %6556, %v6554
    %v6558 = vpop.permute.xlu0 %6557
    %v6560 = vunpack.c.l.s4 839922192
    %v6561 = vunpack.c.0.s8 %v6560
    %v6562 = vlaneseq
    %v6563 = vshrl.u32 %v6562, 7
    %v6564 = vsub.s32 %v6561, %v6563
    %v6565 = vrot.slane %v6558, %v6564
    %v6567 = vmul.f32 %v6550, %v6565
    %v6568 = vmul.f32 %v6551, %v6565
    %6570 = vset.pattern.permute.xlu0 0
    %6571 = vperm.xlu0 %6570, %v6467
    %v6572 = vpop.permute.xlu0 %6571
    %v6574 = vunpack.c.l.s4 839922192
    %v6575 = vunpack.c.0.s8 %v6574
    %v6576 = vlaneseq
    %v6577 = vshrl.u32 %v6576, 7
    %v6578 = vsub.s32 %v6575, %v6577
    %v6579 = vrot.slane %v6572, %v6578
    %v6581 = vadd.f32 %v6567, %v6579
    %v6582 = vadd.f32 %v6568, %v6579
    %vm6583 = vcmp.ge.f32.partialorder %v6581, 0.0
    %vm6584 = vcmp.ge.f32.partialorder %v6582, 0.0
    %v6585 = vmul.f32 %v6581, 0.01
    %v6586 = vmul.f32 %v6582, 0.01
    %v6587 = vsel %vm6583, %v6581, %v6585
    %v6588 = vsel %vm6584, %v6582, %v6586
    %v6589 = vadd.f32 %v163, %v6587
    %v6590 = vadd.f32 %v164, %v6588
    %6591 = vst [vmem:[%s20] sm:$0xff] %v6589
    %6592 = vst [vmem:[%s20 + $0x8] sm:$0xff] %v6590
    %v6593 = vld [vmem:[%s12] sm:$0xf]
    %v6594 = vld [vmem:[%s13] sm:$0xf]
    %v6595 = vld [vmem:[%s16] sm:$0xf]
    %v6596 = vld [vmem:[%s17] sm:$0xf]
    %6598 = vset.pattern.permute.xlu0 0
    %6599 = vperm.xlu0 %6598, %v6593
    %v6600 = vpop.permute.xlu0 %6599
    %v6602 = vunpack.c.l.s4 839922192
    %v6603 = vunpack.c.0.s8 %v6602
    %v6604 = vlaneseq
    %v6605 = vshrl.u32 %v6604, 7
    %v6606 = vsub.s32 %v6603, %v6605
    %v6607 = vrot.slane %v6600, %v6606
    %v6609 = vmul.f32 %v6462, %v6607
    %v6610 = vmul.f32 %v6463, %v6607
    %6612 = vset.pattern.permute.xlu0 0
    %6613 = vperm.xlu0 %6612, %v6594
    %v6614 = vpop.permute.xlu0 %6613
    %v6616 = vunpack.c.l.s4 839922192
    %v6617 = vunpack.c.0.s8 %v6616
    %v6618 = vlaneseq
    %v6619 = vshrl.u32 %v6618, 7
    %v6620 = vsub.s32 %v6617, %v6619
    %v6621 = vrot.slane %v6614, %v6620
    %v6623 = vadd.f32 %v6609, %v6621
    %v6624 = vadd.f32 %v6610, %v6621
    %v6627 = vcombine.high %v6623, %v6623
    %v6628 = vcombine.high %v6624, %v6624
    %v6631 = vsel %vm6502, %v6623, 0.0
    %v6632 = vsel %vm6502, %v6627, 0.0
    %v6633 = vadd.f32 %v6631, %v6632
    %6634 = vadd.xlane.f32.xlu0 %v6633
    %v6635 = vpop.xlane.xlu0 %6634
    %v6636 = vsel %vm6502, %v6624, 0.0
    %v6637 = vsel %vm6502, %v6628, 0.0
    %v6638 = vadd.f32 %v6636, %v6637
    %6639 = vadd.xlane.f32.xlu0 %v6638
    %v6640 = vpop.xlane.xlu0 %6639
    %v6641 = vsel %vm6502, %v6635, 0.0
    %v6642 = vsel %vm6502, %v6640, 0.0
    %v6643 = vadd.f32 %v6641, %v6642
    %v6644 = vmul.f32 %v6623, %v6623
    %v6645 = vmul.f32 %v6624, %v6624
    %v6648 = vcombine.high %v6644, %v6644
    %v6649 = vcombine.high %v6645, %v6645
    %v6652 = vsel %vm6502, %v6644, 0.0
    %v6653 = vsel %vm6502, %v6648, 0.0
    %v6654 = vadd.f32 %v6652, %v6653
    %6655 = vadd.xlane.f32.xlu0 %v6654
    %v6656 = vpop.xlane.xlu0 %6655
    %v6657 = vsel %vm6502, %v6645, 0.0
    %v6658 = vsel %vm6502, %v6649, 0.0
    %v6659 = vadd.f32 %v6657, %v6658
    %6660 = vadd.xlane.f32.xlu0 %v6659
    %v6661 = vpop.xlane.xlu0 %6660
    %v6662 = vsel %vm6502, %v6656, 0.0
    %v6663 = vsel %vm6502, %v6661, 0.0
    %v6664 = vadd.f32 %v6662, %v6663
    %v6665 = vmul.f32 %v6643, 0.001953125
    %v6666 = vmul.f32 %v6664, 0.001953125
    %v6667 = vmul.f32 %v6665, %v6665
    %v6668 = vsub.f32 %v6666, %v6667
    %v6671 = vunpack.c.l.s4 839922192
    %v6672 = vunpack.c.0.s8 %v6671
    %v6673 = vlaneseq
    %v6674 = vshrl.u32 %v6673, 7
    %v6675 = vsub.s32 %v6672, %v6674
    %v6676 = vrot.slane %v6665, %v6675
    %v6678 = vsub.f32 %v6623, %v6676
    %v6679 = vsub.f32 %v6624, %v6676
    %v6680 = vadd.f32 %v6668, 1e-05
    %v6681 = vrsqrt.pop %v6680
    %v6682 = vmul.f32 %v6681, %v6595
    %6684 = vset.pattern.permute.xlu0 0
    %6685 = vperm.xlu0 %6684, %v6682
    %v6686 = vpop.permute.xlu0 %6685
    %v6688 = vunpack.c.l.s4 839922192
    %v6689 = vunpack.c.0.s8 %v6688
    %v6690 = vlaneseq
    %v6691 = vshrl.u32 %v6690, 7
    %v6692 = vsub.s32 %v6689, %v6691
    %v6693 = vrot.slane %v6686, %v6692
    %v6695 = vmul.f32 %v6678, %v6693
    %v6696 = vmul.f32 %v6679, %v6693
    %6698 = vset.pattern.permute.xlu0 0
    %6699 = vperm.xlu0 %6698, %v6596
    %v6700 = vpop.permute.xlu0 %6699
    %v6702 = vunpack.c.l.s4 839922192
    %v6703 = vunpack.c.0.s8 %v6702
    %v6704 = vlaneseq
    %v6705 = vshrl.u32 %v6704, 7
    %v6706 = vsub.s32 %v6703, %v6705
    %v6707 = vrot.slane %v6700, %v6706
    %v6709 = vadd.f32 %v6695, %v6707
    %v6710 = vadd.f32 %v6696, %v6707
    %vm6711 = vcmp.ge.f32.partialorder %v6709, 0.0
    %vm6712 = vcmp.ge.f32.partialorder %v6710, 0.0
    %v6713 = vmul.f32 %v6709, 0.01
    %v6714 = vmul.f32 %v6710, 0.01
    %v6715 = vsel %vm6711, %v6709, %v6713
    %v6716 = vsel %vm6712, %v6710, %v6714
    %v6717 = vadd.f32 %v165, %v6715
    %v6718 = vadd.f32 %v166, %v6716
    %6719 = vst [vmem:[%s21] sm:$0xff] %v6717
    %6720 = vst [vmem:[%s21 + $0x8] sm:$0xff] %v6718
    // Predicated region
    $region114: #{mixblock_forward.1} parent=1 // pred_check
      _
    $region115: #{mixblock_forward.1} parent=1 // pred_check_branch
      %6722 = sbr.rel (0) target = $region117
    $region116: #{mixblock_forward.1} parent=1 // pred_region
      _
    $region117: #{mixblock_forward.1} parent=1 // pred_fallthru
      _
    // Predicated region
    $region118: #{mixblock_forward.1} parent=1 // pred_check
      _
    $region119: #{mixblock_forward.1} parent=1 // pred_check_branch
      %6724 = sbr.rel (0) target = $region121
    $region120: #{mixblock_forward.1} parent=1 // pred_region
      _
    $region121: #{mixblock_forward.1} parent=1 // pred_fallthru
      _
    // Predicated region
    $region122: #{mixblock_forward.1} parent=1 // pred_check
      _
    $region123: #{mixblock_forward.1} parent=1 // pred_check_branch
      %6726 = sbr.rel (0) target = $region125
    $region124: #{mixblock_forward.1} parent=1 // pred_region
      _
    $region125: #{mixblock_forward.1} parent=1 // pred_fallthru
      _
    // Predicated region
    $region126: #{mixblock_forward.1} parent=1 // pred_check
      _
    $region127: #{mixblock_forward.1} parent=1 // pred_check_branch
      %6728 = sbr.rel (0) target = $region129
    $region128: #{mixblock_forward.1} parent=1 // pred_region
      _
    $region129: #{mixblock_forward.1} parent=1 // pred_fallthru
      _
    %6729 = vsyncpa [#allocation5], 1
    %6730 = vsyncpa [#allocation7], 1
    %6731 = vsyncpa [#allocation10], 1
    %6732 = vsyncpa [#allocation13], 1
    %6733 = vsyncpa [#allocation16], 1

</llo_original>
